<compile_context>
chip_gen: v6e
topology: v6e:2x2x1
jax: 0.10.0
libtpu: 0.0.40
codegen_flags: <defaults>
</compile_context>

<pallas_src>
import jax
import jax.numpy as jnp
from jax.experimental import pallas as pl
from jax.experimental.pallas import tpu as pltpu

EMBED = 9            # EarlyFusionTransformer.embed_dim
NHEAD = 3            # nhead
HEAD_DIM = EMBED // NHEAD
FF_DIM = 2048        # nn.TransformerEncoderLayer default dim_feedforward
NLAYERS = 3          # num_layers
LN_EPS = 1e-5        # nn.LayerNorm default eps


def _layernorm(x, gamma, beta):
    """LayerNorm with fused statistics: var = E[x^2] - mu^2 (independent reductions)."""
    inv_n = 1.0 / x.shape[-1]
    mu = jnp.sum(x, axis=-1, keepdims=True) * inv_n
    ms = jnp.sum(x * x, axis=-1, keepdims=True) * inv_n
    var = ms - mu * mu
    return (x - mu) * jax.lax.rsqrt(var + LN_EPS) * gamma + beta


def _softmax_last(s):
    """Numerically-stable softmax over the last axis (exact normalization)."""
    m = jnp.max(s, axis=-1, keepdims=True)
    e = jnp.exp(s - m)
    return e / jnp.sum(e, axis=-1, keepdims=True)


def early_fusion_kernel(x_ref, wc_ref,
                        wq_ref, bq_ref, wk_ref, bk_ref, wv_ref, bv_ref,
                        wo_ref, bo_ref, ln1g_ref, ln1b_ref,
                        w1_ref, b1_ref, w2_ref, b2_ref, ln2g_ref, ln2b_ref,
                        wl_ref, bl_ref, o_ref):
    B, L, F = x_ref.shape               # B is the batch tile
    T = B * L

    def attention(h_q, h_kv, lq, layer):
        """Per-head accumulated self-attention (no lane slicing / head concat).

        h_q: (B*lq, E) query-side activations; h_kv: (B*L, E) key/value-side activations.
        The 1/sqrt(head_dim) softmax scale is folded into wq / bq at init time.
        """
        attn = bo_ref[layer]             # (1, E); broadcasts on the first accumulate
        for hd in range(NHEAD):
            q = (jnp.dot(h_q, wq_ref[layer, hd],
                         preferred_element_type=jnp.float32)
                 + bq_ref[layer, hd]).reshape(B, lq, HEAD_DIM)
            k = (jnp.dot(h_kv, wk_ref[layer, hd],
                         preferred_element_type=jnp.float32)
                 + bk_ref[layer, hd]).reshape(B, L, HEAD_DIM)
            v = (jnp.dot(h_kv, wv_ref[layer, hd],
                         preferred_element_type=jnp.float32)
                 + bv_ref[layer, hd]).reshape(B, L, HEAD_DIM)
            # Tiny batched dot_generals (lq x L x Dh per batch element).
            s = jnp.einsum('bqd,bkd->bqk', q, k,
                           preferred_element_type=jnp.float32)
            p = _softmax_last(s)
            ctx = jnp.einsum('bqk,bkd->bqd', p, v,
                             preferred_element_type=jnp.float32).reshape(B * lq, HEAD_DIM)
            attn = attn + jnp.dot(ctx, wo_ref[layer, hd],
                                  preferred_element_type=jnp.float32)
        return attn                      # (B*lq, E)

    def feed_forward(h, layer):
        """linear1 -> relu -> linear2; bf16 MXU operands, f32 accumulation & elementwise."""
        ff = jnp.dot(h.astype(jnp.bfloat16), w1_ref[layer],
                     preferred_element_type=jnp.float32) + b1_ref[layer]      # (rows, FF)
        ff = jnp.maximum(ff, 0.0)
        return jnp.dot(ff.astype(jnp.bfloat16), w2_ref[layer],
                       preferred_element_type=jnp.float32) + b2_ref[layer]    # (rows, E)

    # Conv1d(F -> 9, kernel_size=1, bias=False) == per-token linear projection.
    xf = x_ref[...].reshape(T, F)
    h = jnp.dot(xf, wc_ref[...], preferred_element_type=jnp.float32)          # (T, E)

    # First NLAYERS-1 post-norm encoder layers over all sequence positions.
    for layer in range(NLAYERS - 1):
        h = _layernorm(h + attention(h, h, L, layer),
                       ln1g_ref[layer], ln1b_ref[layer])
        h = _layernorm(h + feed_forward(h, layer),
                       ln2g_ref[layer], ln2b_ref[layer])

    # Last layer: only the final sequence position feeds the output head, so compute a single
    # query row of attention (K/V still over all positions) and run the FF / LayerNorms on
    # (B, E) instead of (B*L, E) — removes ~(L-1)/L of the layer-3 FF FLOPs with no accuracy
    # change.
    layer = NLAYERS - 1
    h_last = h.reshape(B, L, EMBED)[:, L - 1, :]                              # (B, E)
    hl = _layernorm(h_last + attention(h_last, h, 1, layer),
                    ln1g_ref[layer], ln1b_ref[layer])
    hl = _layernorm(hl + feed_forward(hl, layer),
                    ln2g_ref[layer], ln2b_ref[layer])

    # Final Linear(9, 1): VPU multiply + lane reduction (no 1-column MXU matmul).
    # (A lane-dense (1, bt) output block would avoid the 1-lane masked store; kept as (bt, 1)
    #  since the win is negligible and this layout is the proven-clean one.)
    out = jnp.sum(hl * wl_ref[...], axis=-1, keepdims=True) + bl_ref[...]     # (B, 1)
    o_ref[...] = out


def _const_index_map(ndim):
    def imap(i):
        return (0,) * ndim
    return imap


def _pick_batch_tile(B, L):
    """Default batch tile: target T = bt*L ~ 256 (MXU M tile on v6e/v7x) with >= 2 grid
    steps when the batch allows (DMA/compute overlap, second TC on v7x), while keeping the
    (T, FF) f32 intermediate small enough for v5e's ~16 MiB scoped-VMEM default.  Tiles
    smaller than the batch must be a multiple of 8 (output-block sublane constraint)."""
    if B <= 8:
        return B
    target = max(8, 256 // max(L, 1))
    cands = [bt for bt in range(8, B, 8) if B % bt == 0]
    if not cands:
        return B
    return min(cands, key=lambda bt: abs(bt - target))


def early_fusion_forward(x, params, *, batch_tile=None, vmem_limit_bytes=None):
    B, L, F = x.shape
    bt = _pick_batch_tile(B, L) if batch_tile is None else batch_tile
    assert B % bt == 0, "batch_tile must divide batch"
    assert bt == B or bt % 8 == 0, "batch_tile < batch must be a multiple of 8"

    names = ('wc', 'wq', 'bq', 'wk', 'bk', 'wv', 'bv', 'wo', 'bo',
             'ln1g', 'ln1b', 'w1', 'b1', 'w2', 'b2', 'ln2g', 'ln2b', 'wl', 'bl')
    weights = tuple(params[n] for n in names)

    # Raise the scoped-VMEM limit only when the activation footprint needs it (v5e default is
    # ~16 MiB scoped); cap at 64 MiB so the request remains valid on v7x's 64 MiB VMEM.
    if vmem_limit_bytes is None:
        w_bytes = sum(int(w.size) * w.dtype.itemsize for w in weights)
        act_bytes = 3 * bt * L * FF_DIM * 4 + 4 * bt * L * EMBED * 4
        est = w_bytes + act_bytes + (4 << 20)
        if est > (16 << 20):
            vmem_limit_bytes = min(est, 64 << 20)

    in_specs = [pl.BlockSpec((bt, L, F), lambda i: (i, 0, 0))]
    # Weights: full-array blocks with constant index maps -> DMA'd once, stay VMEM resident.
    in_specs += [pl.BlockSpec(w.shape, _const_index_map(w.ndim)) for w in weights]
    out_specs = pl.BlockSpec((bt, 1), lambda i: (i, 0))

    return pl.pallas_call(
        early_fusion_kernel,
        out_shape=jax.ShapeDtypeStruct((B, 1), jnp.float32),
        grid=(B // bt,),
        in_specs=in_specs,
        out_specs=out_specs,
        compiler_params=pltpu.CompilerParams(
            dimension_semantics=("parallel",),
            vmem_limit_bytes=vmem_limit_bytes),
    )(x, *weights)


def init_params(key, n_features):
    """Deterministic synthetic parameters; shapes mirror the PyTorch module, pre-laid-out for
    the kernel: per-head Q/K/V/out-proj splits, transposed matmul operands, bf16 FF weights,
    and the 1/sqrt(head_dim) softmax scale folded into the q weight/bias."""
    E, H, D, FF, NL = EMBED, NHEAD, HEAD_DIM, FF_DIM, NLAYERS
    scale = 1.0 / (D ** 0.5)

    def nrm(k, shape, s=0.1):
        return s * jax.random.normal(k, shape, dtype=jnp.float32)

    keys = jax.random.split(key, 12)

    # Conv1d weight (E, F, 1), bias=False -> pre-transposed (F, E) so the kernel does x @ wc.
    wc = nrm(keys[0], (E, n_features)).T

    # MHA in_proj_weight (3E, E) with rows [q; k; v], heads contiguous inside each block.
    in_w = nrm(keys[1], (NL, 3 * E, E))
    in_b = nrm(keys[2], (NL, 3 * E))

    def head_split(row0, scl):
        w = jnp.stack([jnp.transpose(in_w[:, row0 + hd * D: row0 + (hd + 1) * D, :], (0, 2, 1))
                       for hd in range(H)], axis=1) * scl                    # (NL, H, E, D)
        b = jnp.stack([in_b[:, row0 + hd * D: row0 + (hd + 1) * D]
                       for hd in range(H)], axis=1)[:, :, None, :] * scl     # (NL, H, 1, D)
        return w, b

    wq, bq = head_split(0, scale)          # softmax scale folded into q
    wk, bk = head_split(E, 1.0)
    wv, bv = head_split(2 * E, 1.0)

    # out_proj weight (E, E), bias (E,): per-head slabs (NL, H, D, E) so the kernel does
    # attn += ctx_h @ wo[layer, h]  (ctx_h are head h's columns of the assembled context).
    out_w = nrm(keys[3], (NL, E, E))
    out_b = nrm(keys[4], (NL, E))
    wo = jnp.stack([jnp.transpose(out_w[:, :, hd * D:(hd + 1) * D], (0, 2, 1))
                    for hd in range(H)], axis=1)                             # (NL, H, D, E)
    bo = out_b[:, None, :]                                                   # (NL, 1, E)

    # LayerNorms (PyTorch init: gamma=1, beta=0).
    ln1g = jnp.ones((NL, 1, E), jnp.float32)
    ln1b = jnp.zeros((NL, 1, E), jnp.float32)
    ln2g = jnp.ones((NL, 1, E), jnp.float32)
    ln2b = jnp.zeros((NL, 1, E), jnp.float32)

    # Feed-forward.  linear1 (FF, E) -> (NL, E, FF); linear2 (E, FF) -> pre-transposed
    # (NL, FF, E) so both FF matmuls are plain row-major jnp.dot (no in-kernel transpose).
    # Both stored bf16 (MXU operands, f32 accumulation in-kernel); biases stay f32.
    w1 = jnp.transpose(nrm(keys[5], (NL, FF, E), 0.05), (0, 2, 1)).astype(jnp.bfloat16)
    b1 = nrm(keys[6], (NL, FF), 0.05)[:, None, :]
    w2 = jnp.transpose(nrm(keys[7], (NL, E, FF), 0.05), (0, 2, 1)).astype(jnp.bfloat16)
    b2 = nrm(keys[8], (NL, E), 0.05)[:, None, :]

    # Final Linear(9, 1): weight kept as a (1, E) row (VPU reduce in the kernel).
    wl = nrm(keys[9], (1, E))
    bl = nrm(keys[10], (1,)).reshape(1, 1)

    return dict(wc=wc, wq=wq, bq=bq, wk=wk, bk=bk, wv=wv, bv=bv, wo=wo, bo=bo,
                ln1g=ln1g, ln1b=ln1b, w1=w1, b1=b1, w2=w2, b2=b2,
                ln2g=ln2g, ln2b=ln2b, wl=wl, bl=bl)


if __name__ == "__main__":
    key = jax.random.PRNGKey(0)
    kx, kp = jax.random.split(key)

    B, L, F = 2, 8, 4                       # batch, seq_len, n_features
    x = jax.random.normal(kx, (B, L, F), dtype=jnp.float32)
    params = init_params(kp, F)

    out = early_fusion_forward(x, params)
    out = jax.block_until_ready(out)
    assert out.shape == (B, 1) and out.dtype == jnp.float32
    print("KERNEL_OK")
</pallas_src>

<mosaic_0001>
module attributes {stable_mosaic.version = 11 : i64} {
  func.func @early_fusion_kernel(%arg0: i32, %arg1: memref<2x8x4xf32, #tpu.memory_space<vmem>>, %arg2: memref<4x9xf32, #tpu.memory_space<vmem>>, %arg3: memref<3x3x9x3xf32, #tpu.memory_space<vmem>>, %arg4: memref<3x3x1x3xf32, #tpu.memory_space<vmem>>, %arg5: memref<3x3x9x3xf32, #tpu.memory_space<vmem>>, %arg6: memref<3x3x1x3xf32, #tpu.memory_space<vmem>>, %arg7: memref<3x3x9x3xf32, #tpu.memory_space<vmem>>, %arg8: memref<3x3x1x3xf32, #tpu.memory_space<vmem>>, %arg9: memref<3x3x3x9xf32, #tpu.memory_space<vmem>>, %arg10: memref<3x1x9xf32, #tpu.memory_space<vmem>>, %arg11: memref<3x1x9xf32, #tpu.memory_space<vmem>>, %arg12: memref<3x1x9xf32, #tpu.memory_space<vmem>>, %arg13: memref<3x9x2048xbf16, #tpu.memory_space<vmem>>, %arg14: memref<3x1x2048xf32, #tpu.memory_space<vmem>>, %arg15: memref<3x2048x9xbf16, #tpu.memory_space<vmem>>, %arg16: memref<3x1x9xf32, #tpu.memory_space<vmem>>, %arg17: memref<3x1x9xf32, #tpu.memory_space<vmem>>, %arg18: memref<3x1x9xf32, #tpu.memory_space<vmem>>, %arg19: memref<1x9xf32, #tpu.memory_space<vmem>>, %arg20: memref<1x1xf32, #tpu.memory_space<vmem>>, %arg21: memref<2x1xf32, #tpu.memory_space<vmem>>) attributes {dimension_semantics = [#tpu.dimension_semantics<parallel>], iteration_bounds = array<i64: 1>, scalar_prefetch = 0 : i64, scratch_operands = 0 : i64, tpu.core_type = #tpu.core_type<tc>, window_params = [{transform_indices = @transform_0, window_bounds = array<i64: 2, 8, 4>}, {pipeline_mode = #tpu.pipeline_mode<synchronous>, transform_indices = @transform_1, window_bounds = array<i64: 4, 9>}, {pipeline_mode = #tpu.pipeline_mode<synchronous>, transform_indices = @transform_2, window_bounds = array<i64: 3, 3, 9, 3>}, {pipeline_mode = #tpu.pipeline_mode<synchronous>, transform_indices = @transform_3, window_bounds = array<i64: 3, 3, 1, 3>}, {pipeline_mode = #tpu.pipeline_mode<synchronous>, transform_indices = @transform_4, window_bounds = array<i64: 3, 3, 9, 3>}, {pipeline_mode = #tpu.pipeline_mode<synchronous>, transform_indices = @transform_5, window_bounds = array<i64: 3, 3, 1, 3>}, {pipeline_mode = #tpu.pipeline_mode<synchronous>, transform_indices = @transform_6, window_bounds = array<i64: 3, 3, 9, 3>}, {pipeline_mode = #tpu.pipeline_mode<synchronous>, transform_indices = @transform_7, window_bounds = array<i64: 3, 3, 1, 3>}, {pipeline_mode = #tpu.pipeline_mode<synchronous>, transform_indices = @transform_8, window_bounds = array<i64: 3, 3, 3, 9>}, {pipeline_mode = #tpu.pipeline_mode<synchronous>, transform_indices = @transform_9, window_bounds = array<i64: 3, 1, 9>}, {pipeline_mode = #tpu.pipeline_mode<synchronous>, transform_indices = @transform_10, window_bounds = array<i64: 3, 1, 9>}, {pipeline_mode = #tpu.pipeline_mode<synchronous>, transform_indices = @transform_11, window_bounds = array<i64: 3, 1, 9>}, {pipeline_mode = #tpu.pipeline_mode<synchronous>, transform_indices = @transform_12, window_bounds = array<i64: 3, 9, 2048>}, {pipeline_mode = #tpu.pipeline_mode<synchronous>, transform_indices = @transform_13, window_bounds = array<i64: 3, 1, 2048>}, {pipeline_mode = #tpu.pipeline_mode<synchronous>, transform_indices = @transform_14, window_bounds = array<i64: 3, 2048, 9>}, {pipeline_mode = #tpu.pipeline_mode<synchronous>, transform_indices = @transform_15, window_bounds = array<i64: 3, 1, 9>}, {pipeline_mode = #tpu.pipeline_mode<synchronous>, transform_indices = @transform_16, window_bounds = array<i64: 3, 1, 9>}, {pipeline_mode = #tpu.pipeline_mode<synchronous>, transform_indices = @transform_17, window_bounds = array<i64: 3, 1, 9>}, {pipeline_mode = #tpu.pipeline_mode<synchronous>, transform_indices = @transform_18, window_bounds = array<i64: 1, 9>}, {pipeline_mode = #tpu.pipeline_mode<synchronous>, transform_indices = @transform_19, window_bounds = array<i64: 1, 1>}, {transform_indices = @transform_20, window_bounds = array<i64: 2, 1>}]} {
    %c0 = arith.constant 0 : index
    %c0_0 = arith.constant 0 : index
    %c0_1 = arith.constant 0 : index
    %0 = vector.load %arg1[%c0, %c0_0, %c0_1] : memref<2x8x4xf32, #tpu.memory_space<vmem>>, vector<2x8x4xf32>
    %1 = vector.shape_cast %0 : vector<2x8x4xf32> to vector<16x4xf32>
    %c0_2 = arith.constant 0 : index
    %c0_3 = arith.constant 0 : index
    %2 = vector.load %arg2[%c0_2, %c0_3] : memref<4x9xf32, #tpu.memory_space<vmem>>, vector<4x9xf32>
    %cst = arith.constant dense<0.000000e+00> : vector<16x9xf32>
    %3 = tpu.matmul %1, %2, %cst {dimension_numbers = #tpu.dot_dimension_numbers<[1], [0], [0], [1], [0, 0, 1, 1], [], []>} : vector<16x4xf32>, vector<4x9xf32>, vector<16x9xf32> -> vector<16x9xf32>
    %c0_4 = arith.constant 0 : index
    %c0_5 = arith.constant 0 : index
    %c0_6 = arith.constant 0 : index
    %4 = vector.load %arg10[%c0_4, %c0_5, %c0_6] : memref<3x1x9xf32, #tpu.memory_space<vmem>>, vector<1x1x9xf32>
    %5 = vector.shape_cast %4 : vector<1x1x9xf32> to vector<1x9xf32>
    %c0_7 = arith.constant 0 : index
    %c0_8 = arith.constant 0 : index
    %c0_9 = arith.constant 0 : index
    %c0_10 = arith.constant 0 : index
    %6 = vector.load %arg3[%c0_7, %c0_8, %c0_9, %c0_10] : memref<3x3x9x3xf32, #tpu.memory_space<vmem>>, vector<1x1x9x3xf32>
    %7 = vector.shape_cast %6 : vector<1x1x9x3xf32> to vector<9x3xf32>
    %cst_11 = arith.constant dense<0.000000e+00> : vector<16x3xf32>
    %8 = tpu.matmul %3, %7, %cst_11 {dimension_numbers = #tpu.dot_dimension_numbers<[1], [0], [0], [1], [0, 0, 1, 1], [], []>} : vector<16x9xf32>, vector<9x3xf32>, vector<16x3xf32> -> vector<16x3xf32>
    %c0_12 = arith.constant 0 : index
    %c0_13 = arith.constant 0 : index
    %c0_14 = arith.constant 0 : index
    %c0_15 = arith.constant 0 : index
    %9 = vector.load %arg4[%c0_12, %c0_13, %c0_14, %c0_15] : memref<3x3x1x3xf32, #tpu.memory_space<vmem>>, vector<1x1x1x3xf32>
    %10 = vector.shape_cast %9 : vector<1x1x1x3xf32> to vector<1x3xf32>
    %11 = vector.broadcast %10 : vector<1x3xf32> to vector<16x3xf32>
    %12 = arith.addf %8, %11 : vector<16x3xf32>
    %13 = vector.shape_cast %12 : vector<16x3xf32> to vector<2x8x3xf32>
    %c0_16 = arith.constant 0 : index
    %c0_17 = arith.constant 0 : index
    %c0_18 = arith.constant 0 : index
    %c0_19 = arith.constant 0 : index
    %14 = vector.load %arg5[%c0_16, %c0_17, %c0_18, %c0_19] : memref<3x3x9x3xf32, #tpu.memory_space<vmem>>, vector<1x1x9x3xf32>
    %15 = vector.shape_cast %14 : vector<1x1x9x3xf32> to vector<9x3xf32>
    %cst_20 = arith.constant dense<0.000000e+00> : vector<16x3xf32>
    %16 = tpu.matmul %3, %15, %cst_20 {dimension_numbers = #tpu.dot_dimension_numbers<[1], [0], [0], [1], [0, 0, 1, 1], [], []>} : vector<16x9xf32>, vector<9x3xf32>, vector<16x3xf32> -> vector<16x3xf32>
    %c0_21 = arith.constant 0 : index
    %c0_22 = arith.constant 0 : index
    %c0_23 = arith.constant 0 : index
    %c0_24 = arith.constant 0 : index
    %17 = vector.load %arg6[%c0_21, %c0_22, %c0_23, %c0_24] : memref<3x3x1x3xf32, #tpu.memory_space<vmem>>, vector<1x1x1x3xf32>
    %18 = vector.shape_cast %17 : vector<1x1x1x3xf32> to vector<1x3xf32>
    %19 = vector.broadcast %18 : vector<1x3xf32> to vector<16x3xf32>
    %20 = arith.addf %16, %19 : vector<16x3xf32>
    %21 = vector.shape_cast %20 : vector<16x3xf32> to vector<2x8x3xf32>
    %c0_25 = arith.constant 0 : index
    %c0_26 = arith.constant 0 : index
    %c0_27 = arith.constant 0 : index
    %c0_28 = arith.constant 0 : index
    %22 = vector.load %arg7[%c0_25, %c0_26, %c0_27, %c0_28] : memref<3x3x9x3xf32, #tpu.memory_space<vmem>>, vector<1x1x9x3xf32>
    %23 = vector.shape_cast %22 : vector<1x1x9x3xf32> to vector<9x3xf32>
    %cst_29 = arith.constant dense<0.000000e+00> : vector<16x3xf32>
    %24 = tpu.matmul %3, %23, %cst_29 {dimension_numbers = #tpu.dot_dimension_numbers<[1], [0], [0], [1], [0, 0, 1, 1], [], []>} : vector<16x9xf32>, vector<9x3xf32>, vector<16x3xf32> -> vector<16x3xf32>
    %c0_30 = arith.constant 0 : index
    %c0_31 = arith.constant 0 : index
    %c0_32 = arith.constant 0 : index
    %c0_33 = arith.constant 0 : index
    %25 = vector.load %arg8[%c0_30, %c0_31, %c0_32, %c0_33] : memref<3x3x1x3xf32, #tpu.memory_space<vmem>>, vector<1x1x1x3xf32>
    %26 = vector.shape_cast %25 : vector<1x1x1x3xf32> to vector<1x3xf32>
    %27 = vector.broadcast %26 : vector<1x3xf32> to vector<16x3xf32>
    %28 = arith.addf %24, %27 : vector<16x3xf32>
    %29 = vector.shape_cast %28 : vector<16x3xf32> to vector<2x8x3xf32>
    "tpu.trace_start"() <{level = 10 : i32, message = "bqd,bkd->bqk"}> : () -> ()
    %cst_34 = arith.constant dense<0.000000e+00> : vector<2x8x8xf32>
    %30 = tpu.matmul %13, %21, %cst_34 {dimension_numbers = #tpu.dot_dimension_numbers<[2], [2], [1], [1], [0, 0, 0, 1, 1, 1], [0], [0]>} : vector<2x8x3xf32>, vector<2x8x3xf32>, vector<2x8x8xf32> -> vector<2x8x8xf32>
    "tpu.trace_stop"() : () -> ()
    %cst_35 = arith.constant dense<0xFF800000> : vector<2x8xf32>
    %31 = vector.multi_reduction <maximumf>, %30, %cst_35 [2] : vector<2x8x8xf32> to vector<2x8xf32>
    %32 = vector.shape_cast %31 : vector<2x8xf32> to vector<2x8x1xf32>
    %33 = vector.broadcast %32 : vector<2x8x1xf32> to vector<2x8x8xf32>
    %34 = arith.subf %30, %33 : vector<2x8x8xf32>
    %35 = math.exp %34 : vector<2x8x8xf32>
    %cst_36 = arith.constant dense<0.000000e+00> : vector<2x8xf32>
    %36 = vector.multi_reduction <add>, %35, %cst_36 [2] : vector<2x8x8xf32> to vector<2x8xf32>
    %37 = vector.shape_cast %36 : vector<2x8xf32> to vector<2x8x1xf32>
    %38 = vector.broadcast %37 : vector<2x8x1xf32> to vector<2x8x8xf32>
    %39 = arith.divf %35, %38 : vector<2x8x8xf32>
    "tpu.trace_start"() <{level = 10 : i32, message = "bqk,bkd->bqd"}> : () -> ()
    %cst_37 = arith.constant dense<0.000000e+00> : vector<2x8x3xf32>
    %40 = tpu.matmul %39, %29, %cst_37 {dimension_numbers = #tpu.dot_dimension_numbers<[2], [1], [1], [2], [0, 0, 0, 1, 1, 2], [0], [0]>} : vector<2x8x8xf32>, vector<2x8x3xf32>, vector<2x8x3xf32> -> vector<2x8x3xf32>
    "tpu.trace_stop"() : () -> ()
    %41 = vector.shape_cast %40 : vector<2x8x3xf32> to vector<16x3xf32>
    %c0_38 = arith.constant 0 : index
    %c0_39 = arith.constant 0 : index
    %c0_40 = arith.constant 0 : index
    %c0_41 = arith.constant 0 : index
    %42 = vector.load %arg9[%c0_38, %c0_39, %c0_40, %c0_41] : memref<3x3x3x9xf32, #tpu.memory_space<vmem>>, vector<1x1x3x9xf32>
    %43 = vector.shape_cast %42 : vector<1x1x3x9xf32> to vector<3x9xf32>
    %cst_42 = arith.constant dense<0.000000e+00> : vector<16x9xf32>
    %44 = tpu.matmul %41, %43, %cst_42 {dimension_numbers = #tpu.dot_dimension_numbers<[1], [0], [0], [1], [0, 0, 1, 1], [], []>} : vector<16x3xf32>, vector<3x9xf32>, vector<16x9xf32> -> vector<16x9xf32>
    %45 = vector.broadcast %5 : vector<1x9xf32> to vector<16x9xf32>
    %46 = arith.addf %45, %44 : vector<16x9xf32>
    %c0_43 = arith.constant 0 : index
    %c1 = arith.constant 1 : index
    %c0_44 = arith.constant 0 : index
    %c0_45 = arith.constant 0 : index
    %47 = vector.load %arg3[%c0_43, %c1, %c0_44, %c0_45] : memref<3x3x9x3xf32, #tpu.memory_space<vmem>>, vector<1x1x9x3xf32>
    %48 = vector.shape_cast %47 : vector<1x1x9x3xf32> to vector<9x3xf32>
    %cst_46 = arith.constant dense<0.000000e+00> : vector<16x3xf32>
    %49 = tpu.matmul %3, %48, %cst_46 {dimension_numbers = #tpu.dot_dimension_numbers<[1], [0], [0], [1], [0, 0, 1, 1], [], []>} : vector<16x9xf32>, vector<9x3xf32>, vector<16x3xf32> -> vector<16x3xf32>
    %c0_47 = arith.constant 0 : index
    %c1_48 = arith.constant 1 : index
    %c0_49 = arith.constant 0 : index
    %c0_50 = arith.constant 0 : index
    %50 = vector.load %arg4[%c0_47, %c1_48, %c0_49, %c0_50] : memref<3x3x1x3xf32, #tpu.memory_space<vmem>>, vector<1x1x1x3xf32>
    %51 = vector.shape_cast %50 : vector<1x1x1x3xf32> to vector<1x3xf32>
    %52 = vector.broadcast %51 : vector<1x3xf32> to vector<16x3xf32>
    %53 = arith.addf %49, %52 : vector<16x3xf32>
    %54 = vector.shape_cast %53 : vector<16x3xf32> to vector<2x8x3xf32>
    %c0_51 = arith.constant 0 : index
    %c1_52 = arith.constant 1 : index
    %c0_53 = arith.constant 0 : index
    %c0_54 = arith.constant 0 : index
    %55 = vector.load %arg5[%c0_51, %c1_52, %c0_53, %c0_54] : memref<3x3x9x3xf32, #tpu.memory_space<vmem>>, vector<1x1x9x3xf32>
    %56 = vector.shape_cast %55 : vector<1x1x9x3xf32> to vector<9x3xf32>
    %cst_55 = arith.constant dense<0.000000e+00> : vector<16x3xf32>
    %57 = tpu.matmul %3, %56, %cst_55 {dimension_numbers = #tpu.dot_dimension_numbers<[1], [0], [0], [1], [0, 0, 1, 1], [], []>} : vector<16x9xf32>, vector<9x3xf32>, vector<16x3xf32> -> vector<16x3xf32>
    %c0_56 = arith.constant 0 : index
    %c1_57 = arith.constant 1 : index
    %c0_58 = arith.constant 0 : index
    %c0_59 = arith.constant 0 : index
    %58 = vector.load %arg6[%c0_56, %c1_57, %c0_58, %c0_59] : memref<3x3x1x3xf32, #tpu.memory_space<vmem>>, vector<1x1x1x3xf32>
    %59 = vector.shape_cast %58 : vector<1x1x1x3xf32> to vector<1x3xf32>
    %60 = vector.broadcast %59 : vector<1x3xf32> to vector<16x3xf32>
    %61 = arith.addf %57, %60 : vector<16x3xf32>
    %62 = vector.shape_cast %61 : vector<16x3xf32> to vector<2x8x3xf32>
    %c0_60 = arith.constant 0 : index
    %c1_61 = arith.constant 1 : index
    %c0_62 = arith.constant 0 : index
    %c0_63 = arith.constant 0 : index
    %63 = vector.load %arg7[%c0_60, %c1_61, %c0_62, %c0_63] : memref<3x3x9x3xf32, #tpu.memory_space<vmem>>, vector<1x1x9x3xf32>
    %64 = vector.shape_cast %63 : vector<1x1x9x3xf32> to vector<9x3xf32>
    %cst_64 = arith.constant dense<0.000000e+00> : vector<16x3xf32>
    %65 = tpu.matmul %3, %64, %cst_64 {dimension_numbers = #tpu.dot_dimension_numbers<[1], [0], [0], [1], [0, 0, 1, 1], [], []>} : vector<16x9xf32>, vector<9x3xf32>, vector<16x3xf32> -> vector<16x3xf32>
    %c0_65 = arith.constant 0 : index
    %c1_66 = arith.constant 1 : index
    %c0_67 = arith.constant 0 : index
    %c0_68 = arith.constant 0 : index
    %66 = vector.load %arg8[%c0_65, %c1_66, %c0_67, %c0_68] : memref<3x3x1x3xf32, #tpu.memory_space<vmem>>, vector<1x1x1x3xf32>
    %67 = vector.shape_cast %66 : vector<1x1x1x3xf32> to vector<1x3xf32>
    %68 = vector.broadcast %67 : vector<1x3xf32> to vector<16x3xf32>
    %69 = arith.addf %65, %68 : vector<16x3xf32>
    %70 = vector.shape_cast %69 : vector<16x3xf32> to vector<2x8x3xf32>
    "tpu.trace_start"() <{level = 10 : i32, message = "bqd,bkd->bqk"}> : () -> ()
    %cst_69 = arith.constant dense<0.000000e+00> : vector<2x8x8xf32>
    %71 = tpu.matmul %54, %62, %cst_69 {dimension_numbers = #tpu.dot_dimension_numbers<[2], [2], [1], [1], [0, 0, 0, 1, 1, 1], [0], [0]>} : vector<2x8x3xf32>, vector<2x8x3xf32>, vector<2x8x8xf32> -> vector<2x8x8xf32>
    "tpu.trace_stop"() : () -> ()
    %cst_70 = arith.constant dense<0xFF800000> : vector<2x8xf32>
    %72 = vector.multi_reduction <maximumf>, %71, %cst_70 [2] : vector<2x8x8xf32> to vector<2x8xf32>
    %73 = vector.shape_cast %72 : vector<2x8xf32> to vector<2x8x1xf32>
    %74 = vector.broadcast %73 : vector<2x8x1xf32> to vector<2x8x8xf32>
    %75 = arith.subf %71, %74 : vector<2x8x8xf32>
    %76 = math.exp %75 : vector<2x8x8xf32>
    %cst_71 = arith.constant dense<0.000000e+00> : vector<2x8xf32>
    %77 = vector.multi_reduction <add>, %76, %cst_71 [2] : vector<2x8x8xf32> to vector<2x8xf32>
    %78 = vector.shape_cast %77 : vector<2x8xf32> to vector<2x8x1xf32>
    %79 = vector.broadcast %78 : vector<2x8x1xf32> to vector<2x8x8xf32>
    %80 = arith.divf %76, %79 : vector<2x8x8xf32>
    "tpu.trace_start"() <{level = 10 : i32, message = "bqk,bkd->bqd"}> : () -> ()
    %cst_72 = arith.constant dense<0.000000e+00> : vector<2x8x3xf32>
    %81 = tpu.matmul %80, %70, %cst_72 {dimension_numbers = #tpu.dot_dimension_numbers<[2], [1], [1], [2], [0, 0, 0, 1, 1, 2], [0], [0]>} : vector<2x8x8xf32>, vector<2x8x3xf32>, vector<2x8x3xf32> -> vector<2x8x3xf32>
    "tpu.trace_stop"() : () -> ()
    %82 = vector.shape_cast %81 : vector<2x8x3xf32> to vector<16x3xf32>
    %c0_73 = arith.constant 0 : index
    %c1_74 = arith.constant 1 : index
    %c0_75 = arith.constant 0 : index
    %c0_76 = arith.constant 0 : index
    %83 = vector.load %arg9[%c0_73, %c1_74, %c0_75, %c0_76] : memref<3x3x3x9xf32, #tpu.memory_space<vmem>>, vector<1x1x3x9xf32>
    %84 = vector.shape_cast %83 : vector<1x1x3x9xf32> to vector<3x9xf32>
    %cst_77 = arith.constant dense<0.000000e+00> : vector<16x9xf32>
    %85 = tpu.matmul %82, %84, %cst_77 {dimension_numbers = #tpu.dot_dimension_numbers<[1], [0], [0], [1], [0, 0, 1, 1], [], []>} : vector<16x3xf32>, vector<3x9xf32>, vector<16x9xf32> -> vector<16x9xf32>
    %86 = arith.addf %46, %85 : vector<16x9xf32>
    %c0_78 = arith.constant 0 : index
    %c2 = arith.constant 2 : index
    %c0_79 = arith.constant 0 : index
    %c0_80 = arith.constant 0 : index
    %87 = vector.load %arg3[%c0_78, %c2, %c0_79, %c0_80] : memref<3x3x9x3xf32, #tpu.memory_space<vmem>>, vector<1x1x9x3xf32>
    %88 = vector.shape_cast %87 : vector<1x1x9x3xf32> to vector<9x3xf32>
    %cst_81 = arith.constant dense<0.000000e+00> : vector<16x3xf32>
    %89 = tpu.matmul %3, %88, %cst_81 {dimension_numbers = #tpu.dot_dimension_numbers<[1], [0], [0], [1], [0, 0, 1, 1], [], []>} : vector<16x9xf32>, vector<9x3xf32>, vector<16x3xf32> -> vector<16x3xf32>
    %c0_82 = arith.constant 0 : index
    %c2_83 = arith.constant 2 : index
    %c0_84 = arith.constant 0 : index
    %c0_85 = arith.constant 0 : index
    %90 = vector.load %arg4[%c0_82, %c2_83, %c0_84, %c0_85] : memref<3x3x1x3xf32, #tpu.memory_space<vmem>>, vector<1x1x1x3xf32>
    %91 = vector.shape_cast %90 : vector<1x1x1x3xf32> to vector<1x3xf32>
    %92 = vector.broadcast %91 : vector<1x3xf32> to vector<16x3xf32>
    %93 = arith.addf %89, %92 : vector<16x3xf32>
    %94 = vector.shape_cast %93 : vector<16x3xf32> to vector<2x8x3xf32>
    %c0_86 = arith.constant 0 : index
    %c2_87 = arith.constant 2 : index
    %c0_88 = arith.constant 0 : index
    %c0_89 = arith.constant 0 : index
    %95 = vector.load %arg5[%c0_86, %c2_87, %c0_88, %c0_89] : memref<3x3x9x3xf32, #tpu.memory_space<vmem>>, vector<1x1x9x3xf32>
    %96 = vector.shape_cast %95 : vector<1x1x9x3xf32> to vector<9x3xf32>
    %cst_90 = arith.constant dense<0.000000e+00> : vector<16x3xf32>
    %97 = tpu.matmul %3, %96, %cst_90 {dimension_numbers = #tpu.dot_dimension_numbers<[1], [0], [0], [1], [0, 0, 1, 1], [], []>} : vector<16x9xf32>, vector<9x3xf32>, vector<16x3xf32> -> vector<16x3xf32>
    %c0_91 = arith.constant 0 : index
    %c2_92 = arith.constant 2 : index
    %c0_93 = arith.constant 0 : index
    %c0_94 = arith.constant 0 : index
    %98 = vector.load %arg6[%c0_91, %c2_92, %c0_93, %c0_94] : memref<3x3x1x3xf32, #tpu.memory_space<vmem>>, vector<1x1x1x3xf32>
    %99 = vector.shape_cast %98 : vector<1x1x1x3xf32> to vector<1x3xf32>
    %100 = vector.broadcast %99 : vector<1x3xf32> to vector<16x3xf32>
    %101 = arith.addf %97, %100 : vector<16x3xf32>
    %102 = vector.shape_cast %101 : vector<16x3xf32> to vector<2x8x3xf32>
    %c0_95 = arith.constant 0 : index
    %c2_96 = arith.constant 2 : index
    %c0_97 = arith.constant 0 : index
    %c0_98 = arith.constant 0 : index
    %103 = vector.load %arg7[%c0_95, %c2_96, %c0_97, %c0_98] : memref<3x3x9x3xf32, #tpu.memory_space<vmem>>, vector<1x1x9x3xf32>
    %104 = vector.shape_cast %103 : vector<1x1x9x3xf32> to vector<9x3xf32>
    %cst_99 = arith.constant dense<0.000000e+00> : vector<16x3xf32>
    %105 = tpu.matmul %3, %104, %cst_99 {dimension_numbers = #tpu.dot_dimension_numbers<[1], [0], [0], [1], [0, 0, 1, 1], [], []>} : vector<16x9xf32>, vector<9x3xf32>, vector<16x3xf32> -> vector<16x3xf32>
    %c0_100 = arith.constant 0 : index
    %c2_101 = arith.constant 2 : index
    %c0_102 = arith.constant 0 : index
    %c0_103 = arith.constant 0 : index
    %106 = vector.load %arg8[%c0_100, %c2_101, %c0_102, %c0_103] : memref<3x3x1x3xf32, #tpu.memory_space<vmem>>, vector<1x1x1x3xf32>
    %107 = vector.shape_cast %106 : vector<1x1x1x3xf32> to vector<1x3xf32>
    %108 = vector.broadcast %107 : vector<1x3xf32> to vector<16x3xf32>
    %109 = arith.addf %105, %108 : vector<16x3xf32>
    %110 = vector.shape_cast %109 : vector<16x3xf32> to vector<2x8x3xf32>
    "tpu.trace_start"() <{level = 10 : i32, message = "bqd,bkd->bqk"}> : () -> ()
    %cst_104 = arith.constant dense<0.000000e+00> : vector<2x8x8xf32>
    %111 = tpu.matmul %94, %102, %cst_104 {dimension_numbers = #tpu.dot_dimension_numbers<[2], [2], [1], [1], [0, 0, 0, 1, 1, 1], [0], [0]>} : vector<2x8x3xf32>, vector<2x8x3xf32>, vector<2x8x8xf32> -> vector<2x8x8xf32>
    "tpu.trace_stop"() : () -> ()
    %cst_105 = arith.constant dense<0xFF800000> : vector<2x8xf32>
    %112 = vector.multi_reduction <maximumf>, %111, %cst_105 [2] : vector<2x8x8xf32> to vector<2x8xf32>
    %113 = vector.shape_cast %112 : vector<2x8xf32> to vector<2x8x1xf32>
    %114 = vector.broadcast %113 : vector<2x8x1xf32> to vector<2x8x8xf32>
    %115 = arith.subf %111, %114 : vector<2x8x8xf32>
    %116 = math.exp %115 : vector<2x8x8xf32>
    %cst_106 = arith.constant dense<0.000000e+00> : vector<2x8xf32>
    %117 = vector.multi_reduction <add>, %116, %cst_106 [2] : vector<2x8x8xf32> to vector<2x8xf32>
    %118 = vector.shape_cast %117 : vector<2x8xf32> to vector<2x8x1xf32>
    %119 = vector.broadcast %118 : vector<2x8x1xf32> to vector<2x8x8xf32>
    %120 = arith.divf %116, %119 : vector<2x8x8xf32>
    "tpu.trace_start"() <{level = 10 : i32, message = "bqk,bkd->bqd"}> : () -> ()
    %cst_107 = arith.constant dense<0.000000e+00> : vector<2x8x3xf32>
    %121 = tpu.matmul %120, %110, %cst_107 {dimension_numbers = #tpu.dot_dimension_numbers<[2], [1], [1], [2], [0, 0, 0, 1, 1, 2], [0], [0]>} : vector<2x8x8xf32>, vector<2x8x3xf32>, vector<2x8x3xf32> -> vector<2x8x3xf32>
    "tpu.trace_stop"() : () -> ()
    %122 = vector.shape_cast %121 : vector<2x8x3xf32> to vector<16x3xf32>
    %c0_108 = arith.constant 0 : index
    %c2_109 = arith.constant 2 : index
    %c0_110 = arith.constant 0 : index
    %c0_111 = arith.constant 0 : index
    %123 = vector.load %arg9[%c0_108, %c2_109, %c0_110, %c0_111] : memref<3x3x3x9xf32, #tpu.memory_space<vmem>>, vector<1x1x3x9xf32>
    %124 = vector.shape_cast %123 : vector<1x1x3x9xf32> to vector<3x9xf32>
    %cst_112 = arith.constant dense<0.000000e+00> : vector<16x9xf32>
    %125 = tpu.matmul %122, %124, %cst_112 {dimension_numbers = #tpu.dot_dimension_numbers<[1], [0], [0], [1], [0, 0, 1, 1], [], []>} : vector<16x3xf32>, vector<3x9xf32>, vector<16x9xf32> -> vector<16x9xf32>
    %126 = arith.addf %86, %125 : vector<16x9xf32>
    %127 = arith.addf %3, %126 : vector<16x9xf32>
    %c0_113 = arith.constant 0 : index
    %c0_114 = arith.constant 0 : index
    %c0_115 = arith.constant 0 : index
    %128 = vector.load %arg11[%c0_113, %c0_114, %c0_115] : memref<3x1x9xf32, #tpu.memory_space<vmem>>, vector<1x1x9xf32>
    %129 = vector.shape_cast %128 : vector<1x1x9xf32> to vector<1x9xf32>
    %c0_116 = arith.constant 0 : index
    %c0_117 = arith.constant 0 : index
    %c0_118 = arith.constant 0 : index
    %130 = vector.load %arg12[%c0_116, %c0_117, %c0_118] : memref<3x1x9xf32, #tpu.memory_space<vmem>>, vector<1x1x9xf32>
    %131 = vector.shape_cast %130 : vector<1x1x9xf32> to vector<1x9xf32>
    %cst_119 = arith.constant dense<0.000000e+00> : vector<16xf32>
    %132 = vector.multi_reduction <add>, %127, %cst_119 [1] : vector<16x9xf32> to vector<16xf32>
    %133 = vector.shape_cast %132 : vector<16xf32> to vector<16x1xf32>
    %cst_120 = arith.constant 0.111111112 : f32
    %134 = vector.broadcast %cst_120 : f32 to vector<16x1xf32>
    %135 = arith.mulf %133, %134 : vector<16x1xf32>
    %136 = arith.mulf %127, %127 : vector<16x9xf32>
    %cst_121 = arith.constant dense<0.000000e+00> : vector<16xf32>
    %137 = vector.multi_reduction <add>, %136, %cst_121 [1] : vector<16x9xf32> to vector<16xf32>
    %138 = vector.shape_cast %137 : vector<16xf32> to vector<16x1xf32>
    %cst_122 = arith.constant 0.111111112 : f32
    %139 = vector.broadcast %cst_122 : f32 to vector<16x1xf32>
    %140 = arith.mulf %138, %139 : vector<16x1xf32>
    %141 = arith.mulf %135, %135 : vector<16x1xf32>
    %142 = arith.subf %140, %141 : vector<16x1xf32>
    %143 = vector.broadcast %135 : vector<16x1xf32> to vector<16x9xf32>
    %144 = arith.subf %127, %143 : vector<16x9xf32>
    %cst_123 = arith.constant 9.99999974E-6 : f32
    %145 = vector.broadcast %cst_123 : f32 to vector<16x1xf32>
    %146 = arith.addf %142, %145 : vector<16x1xf32>
    %147 = math.rsqrt %146 : vector<16x1xf32>
    %148 = vector.broadcast %147 : vector<16x1xf32> to vector<16x9xf32>
    %149 = arith.mulf %144, %148 : vector<16x9xf32>
    %150 = vector.broadcast %129 : vector<1x9xf32> to vector<16x9xf32>
    %151 = arith.mulf %149, %150 : vector<16x9xf32>
    %152 = vector.broadcast %131 : vector<1x9xf32> to vector<16x9xf32>
    %153 = arith.addf %151, %152 : vector<16x9xf32>
    %154 = arith.truncf %153 : vector<16x9xf32> to vector<16x9xbf16>
    %c0_124 = arith.constant 0 : index
    %c0_125 = arith.constant 0 : index
    %c0_126 = arith.constant 0 : index
    %155 = vector.load %arg13[%c0_124, %c0_125, %c0_126] : memref<3x9x2048xbf16, #tpu.memory_space<vmem>>, vector<1x9x2048xbf16>
    %156 = vector.shape_cast %155 : vector<1x9x2048xbf16> to vector<9x2048xbf16>
    %cst_127 = arith.constant dense<0.000000e+00> : vector<16x2048xf32>
    %157 = tpu.matmul %154, %156, %cst_127 {dimension_numbers = #tpu.dot_dimension_numbers<[1], [0], [0], [1], [0, 0, 1, 1], [], []>} : vector<16x9xbf16>, vector<9x2048xbf16>, vector<16x2048xf32> -> vector<16x2048xf32>
    %c0_128 = arith.constant 0 : index
    %c0_129 = arith.constant 0 : index
    %c0_130 = arith.constant 0 : index
    %158 = vector.load %arg14[%c0_128, %c0_129, %c0_130] : memref<3x1x2048xf32, #tpu.memory_space<vmem>>, vector<1x1x2048xf32>
    %159 = vector.shape_cast %158 : vector<1x1x2048xf32> to vector<1x2048xf32>
    %160 = vector.broadcast %159 : vector<1x2048xf32> to vector<16x2048xf32>
    %161 = arith.addf %157, %160 : vector<16x2048xf32>
    %cst_131 = arith.constant 0.000000e+00 : f32
    %162 = vector.broadcast %cst_131 : f32 to vector<16x2048xf32>
    %163 = arith.maximumf %161, %162 : vector<16x2048xf32>
    %164 = arith.truncf %163 : vector<16x2048xf32> to vector<16x2048xbf16>
    %c0_132 = arith.constant 0 : index
    %c0_133 = arith.constant 0 : index
    %c0_134 = arith.constant 0 : index
    %165 = vector.load %arg15[%c0_132, %c0_133, %c0_134] : memref<3x2048x9xbf16, #tpu.memory_space<vmem>>, vector<1x2048x9xbf16>
    %166 = vector.shape_cast %165 : vector<1x2048x9xbf16> to vector<2048x9xbf16>
    %cst_135 = arith.constant dense<0.000000e+00> : vector<16x9xf32>
    %167 = tpu.matmul %164, %166, %cst_135 {dimension_numbers = #tpu.dot_dimension_numbers<[1], [0], [0], [1], [0, 0, 1, 1], [], []>} : vector<16x2048xbf16>, vector<2048x9xbf16>, vector<16x9xf32> -> vector<16x9xf32>
    %c0_136 = arith.constant 0 : index
    %c0_137 = arith.constant 0 : index
    %c0_138 = arith.constant 0 : index
    %168 = vector.load %arg16[%c0_136, %c0_137, %c0_138] : memref<3x1x9xf32, #tpu.memory_space<vmem>>, vector<1x1x9xf32>
    %169 = vector.shape_cast %168 : vector<1x1x9xf32> to vector<1x9xf32>
    %170 = vector.broadcast %169 : vector<1x9xf32> to vector<16x9xf32>
    %171 = arith.addf %167, %170 : vector<16x9xf32>
    %172 = arith.addf %153, %171 : vector<16x9xf32>
    %c0_139 = arith.constant 0 : index
    %c0_140 = arith.constant 0 : index
    %c0_141 = arith.constant 0 : index
    %173 = vector.load %arg17[%c0_139, %c0_140, %c0_141] : memref<3x1x9xf32, #tpu.memory_space<vmem>>, vector<1x1x9xf32>
    %174 = vector.shape_cast %173 : vector<1x1x9xf32> to vector<1x9xf32>
    %c0_142 = arith.constant 0 : index
    %c0_143 = arith.constant 0 : index
    %c0_144 = arith.constant 0 : index
    %175 = vector.load %arg18[%c0_142, %c0_143, %c0_144] : memref<3x1x9xf32, #tpu.memory_space<vmem>>, vector<1x1x9xf32>
    %176 = vector.shape_cast %175 : vector<1x1x9xf32> to vector<1x9xf32>
    %cst_145 = arith.constant dense<0.000000e+00> : vector<16xf32>
    %177 = vector.multi_reduction <add>, %172, %cst_145 [1] : vector<16x9xf32> to vector<16xf32>
    %178 = vector.shape_cast %177 : vector<16xf32> to vector<16x1xf32>
    %cst_146 = arith.constant 0.111111112 : f32
    %179 = vector.broadcast %cst_146 : f32 to vector<16x1xf32>
    %180 = arith.mulf %178, %179 : vector<16x1xf32>
    %181 = arith.mulf %172, %172 : vector<16x9xf32>
    %cst_147 = arith.constant dense<0.000000e+00> : vector<16xf32>
    %182 = vector.multi_reduction <add>, %181, %cst_147 [1] : vector<16x9xf32> to vector<16xf32>
    %183 = vector.shape_cast %182 : vector<16xf32> to vector<16x1xf32>
    %cst_148 = arith.constant 0.111111112 : f32
    %184 = vector.broadcast %cst_148 : f32 to vector<16x1xf32>
    %185 = arith.mulf %183, %184 : vector<16x1xf32>
    %186 = arith.mulf %180, %180 : vector<16x1xf32>
    %187 = arith.subf %185, %186 : vector<16x1xf32>
    %188 = vector.broadcast %180 : vector<16x1xf32> to vector<16x9xf32>
    %189 = arith.subf %172, %188 : vector<16x9xf32>
    %cst_149 = arith.constant 9.99999974E-6 : f32
    %190 = vector.broadcast %cst_149 : f32 to vector<16x1xf32>
    %191 = arith.addf %187, %190 : vector<16x1xf32>
    %192 = math.rsqrt %191 : vector<16x1xf32>
    %193 = vector.broadcast %192 : vector<16x1xf32> to vector<16x9xf32>
    %194 = arith.mulf %189, %193 : vector<16x9xf32>
    %195 = vector.broadcast %174 : vector<1x9xf32> to vector<16x9xf32>
    %196 = arith.mulf %194, %195 : vector<16x9xf32>
    %197 = vector.broadcast %176 : vector<1x9xf32> to vector<16x9xf32>
    %198 = arith.addf %196, %197 : vector<16x9xf32>
    %c1_150 = arith.constant 1 : index
    %c0_151 = arith.constant 0 : index
    %c0_152 = arith.constant 0 : index
    %199 = vector.load %arg10[%c1_150, %c0_151, %c0_152] : memref<3x1x9xf32, #tpu.memory_space<vmem>>, vector<1x1x9xf32>
    %200 = vector.shape_cast %199 : vector<1x1x9xf32> to vector<1x9xf32>
    %c1_153 = arith.constant 1 : index
    %c0_154 = arith.constant 0 : index
    %c0_155 = arith.constant 0 : index
    %c0_156 = arith.constant 0 : index
    %201 = vector.load %arg3[%c1_153, %c0_154, %c0_155, %c0_156] : memref<3x3x9x3xf32, #tpu.memory_space<vmem>>, vector<1x1x9x3xf32>
    %202 = vector.shape_cast %201 : vector<1x1x9x3xf32> to vector<9x3xf32>
    %cst_157 = arith.constant dense<0.000000e+00> : vector<16x3xf32>
    %203 = tpu.matmul %198, %202, %cst_157 {dimension_numbers = #tpu.dot_dimension_numbers<[1], [0], [0], [1], [0, 0, 1, 1], [], []>} : vector<16x9xf32>, vector<9x3xf32>, vector<16x3xf32> -> vector<16x3xf32>
    %c1_158 = arith.constant 1 : index
    %c0_159 = arith.constant 0 : index
    %c0_160 = arith.constant 0 : index
    %c0_161 = arith.constant 0 : index
    %204 = vector.load %arg4[%c1_158, %c0_159, %c0_160, %c0_161] : memref<3x3x1x3xf32, #tpu.memory_space<vmem>>, vector<1x1x1x3xf32>
    %205 = vector.shape_cast %204 : vector<1x1x1x3xf32> to vector<1x3xf32>
    %206 = vector.broadcast %205 : vector<1x3xf32> to vector<16x3xf32>
    %207 = arith.addf %203, %206 : vector<16x3xf32>
    %208 = vector.shape_cast %207 : vector<16x3xf32> to vector<2x8x3xf32>
    %c1_162 = arith.constant 1 : index
    %c0_163 = arith.constant 0 : index
    %c0_164 = arith.constant 0 : index
    %c0_165 = arith.constant 0 : index
    %209 = vector.load %arg5[%c1_162, %c0_163, %c0_164, %c0_165] : memref<3x3x9x3xf32, #tpu.memory_space<vmem>>, vector<1x1x9x3xf32>
    %210 = vector.shape_cast %209 : vector<1x1x9x3xf32> to vector<9x3xf32>
    %cst_166 = arith.constant dense<0.000000e+00> : vector<16x3xf32>
    %211 = tpu.matmul %198, %210, %cst_166 {dimension_numbers = #tpu.dot_dimension_numbers<[1], [0], [0], [1], [0, 0, 1, 1], [], []>} : vector<16x9xf32>, vector<9x3xf32>, vector<16x3xf32> -> vector<16x3xf32>
    %c1_167 = arith.constant 1 : index
    %c0_168 = arith.constant 0 : index
    %c0_169 = arith.constant 0 : index
    %c0_170 = arith.constant 0 : index
    %212 = vector.load %arg6[%c1_167, %c0_168, %c0_169, %c0_170] : memref<3x3x1x3xf32, #tpu.memory_space<vmem>>, vector<1x1x1x3xf32>
    %213 = vector.shape_cast %212 : vector<1x1x1x3xf32> to vector<1x3xf32>
    %214 = vector.broadcast %213 : vector<1x3xf32> to vector<16x3xf32>
    %215 = arith.addf %211, %214 : vector<16x3xf32>
    %216 = vector.shape_cast %215 : vector<16x3xf32> to vector<2x8x3xf32>
    %c1_171 = arith.constant 1 : index
    %c0_172 = arith.constant 0 : index
    %c0_173 = arith.constant 0 : index
    %c0_174 = arith.constant 0 : index
    %217 = vector.load %arg7[%c1_171, %c0_172, %c0_173, %c0_174] : memref<3x3x9x3xf32, #tpu.memory_space<vmem>>, vector<1x1x9x3xf32>
    %218 = vector.shape_cast %217 : vector<1x1x9x3xf32> to vector<9x3xf32>
    %cst_175 = arith.constant dense<0.000000e+00> : vector<16x3xf32>
    %219 = tpu.matmul %198, %218, %cst_175 {dimension_numbers = #tpu.dot_dimension_numbers<[1], [0], [0], [1], [0, 0, 1, 1], [], []>} : vector<16x9xf32>, vector<9x3xf32>, vector<16x3xf32> -> vector<16x3xf32>
    %c1_176 = arith.constant 1 : index
    %c0_177 = arith.constant 0 : index
    %c0_178 = arith.constant 0 : index
    %c0_179 = arith.constant 0 : index
    %220 = vector.load %arg8[%c1_176, %c0_177, %c0_178, %c0_179] : memref<3x3x1x3xf32, #tpu.memory_space<vmem>>, vector<1x1x1x3xf32>
    %221 = vector.shape_cast %220 : vector<1x1x1x3xf32> to vector<1x3xf32>
    %222 = vector.broadcast %221 : vector<1x3xf32> to vector<16x3xf32>
    %223 = arith.addf %219, %222 : vector<16x3xf32>
    %224 = vector.shape_cast %223 : vector<16x3xf32> to vector<2x8x3xf32>
    "tpu.trace_start"() <{level = 10 : i32, message = "bqd,bkd->bqk"}> : () -> ()
    %cst_180 = arith.constant dense<0.000000e+00> : vector<2x8x8xf32>
    %225 = tpu.matmul %208, %216, %cst_180 {dimension_numbers = #tpu.dot_dimension_numbers<[2], [2], [1], [1], [0, 0, 0, 1, 1, 1], [0], [0]>} : vector<2x8x3xf32>, vector<2x8x3xf32>, vector<2x8x8xf32> -> vector<2x8x8xf32>
    "tpu.trace_stop"() : () -> ()
    %cst_181 = arith.constant dense<0xFF800000> : vector<2x8xf32>
    %226 = vector.multi_reduction <maximumf>, %225, %cst_181 [2] : vector<2x8x8xf32> to vector<2x8xf32>
    %227 = vector.shape_cast %226 : vector<2x8xf32> to vector<2x8x1xf32>
    %228 = vector.broadcast %227 : vector<2x8x1xf32> to vector<2x8x8xf32>
    %229 = arith.subf %225, %228 : vector<2x8x8xf32>
    %230 = math.exp %229 : vector<2x8x8xf32>
    %cst_182 = arith.constant dense<0.000000e+00> : vector<2x8xf32>
    %231 = vector.multi_reduction <add>, %230, %cst_182 [2] : vector<2x8x8xf32> to vector<2x8xf32>
    %232 = vector.shape_cast %231 : vector<2x8xf32> to vector<2x8x1xf32>
    %233 = vector.broadcast %232 : vector<2x8x1xf32> to vector<2x8x8xf32>
    %234 = arith.divf %230, %233 : vector<2x8x8xf32>
    "tpu.trace_start"() <{level = 10 : i32, message = "bqk,bkd->bqd"}> : () -> ()
    %cst_183 = arith.constant dense<0.000000e+00> : vector<2x8x3xf32>
    %235 = tpu.matmul %234, %224, %cst_183 {dimension_numbers = #tpu.dot_dimension_numbers<[2], [1], [1], [2], [0, 0, 0, 1, 1, 2], [0], [0]>} : vector<2x8x8xf32>, vector<2x8x3xf32>, vector<2x8x3xf32> -> vector<2x8x3xf32>
    "tpu.trace_stop"() : () -> ()
    %236 = vector.shape_cast %235 : vector<2x8x3xf32> to vector<16x3xf32>
    %c1_184 = arith.constant 1 : index
    %c0_185 = arith.constant 0 : index
    %c0_186 = arith.constant 0 : index
    %c0_187 = arith.constant 0 : index
    %237 = vector.load %arg9[%c1_184, %c0_185, %c0_186, %c0_187] : memref<3x3x3x9xf32, #tpu.memory_space<vmem>>, vector<1x1x3x9xf32>
    %238 = vector.shape_cast %237 : vector<1x1x3x9xf32> to vector<3x9xf32>
    %cst_188 = arith.constant dense<0.000000e+00> : vector<16x9xf32>
    %239 = tpu.matmul %236, %238, %cst_188 {dimension_numbers = #tpu.dot_dimension_numbers<[1], [0], [0], [1], [0, 0, 1, 1], [], []>} : vector<16x3xf32>, vector<3x9xf32>, vector<16x9xf32> -> vector<16x9xf32>
    %240 = vector.broadcast %200 : vector<1x9xf32> to vector<16x9xf32>
    %241 = arith.addf %240, %239 : vector<16x9xf32>
    %c1_189 = arith.constant 1 : index
    %c1_190 = arith.constant 1 : index
    %c0_191 = arith.constant 0 : index
    %c0_192 = arith.constant 0 : index
    %242 = vector.load %arg3[%c1_189, %c1_190, %c0_191, %c0_192] : memref<3x3x9x3xf32, #tpu.memory_space<vmem>>, vector<1x1x9x3xf32>
    %243 = vector.shape_cast %242 : vector<1x1x9x3xf32> to vector<9x3xf32>
    %cst_193 = arith.constant dense<0.000000e+00> : vector<16x3xf32>
    %244 = tpu.matmul %198, %243, %cst_193 {dimension_numbers = #tpu.dot_dimension_numbers<[1], [0], [0], [1], [0, 0, 1, 1], [], []>} : vector<16x9xf32>, vector<9x3xf32>, vector<16x3xf32> -> vector<16x3xf32>
    %c1_194 = arith.constant 1 : index
    %c1_195 = arith.constant 1 : index
    %c0_196 = arith.constant 0 : index
    %c0_197 = arith.constant 0 : index
    %245 = vector.load %arg4[%c1_194, %c1_195, %c0_196, %c0_197] : memref<3x3x1x3xf32, #tpu.memory_space<vmem>>, vector<1x1x1x3xf32>
    %246 = vector.shape_cast %245 : vector<1x1x1x3xf32> to vector<1x3xf32>
    %247 = vector.broadcast %246 : vector<1x3xf32> to vector<16x3xf32>
    %248 = arith.addf %244, %247 : vector<16x3xf32>
    %249 = vector.shape_cast %248 : vector<16x3xf32> to vector<2x8x3xf32>
    %c1_198 = arith.constant 1 : index
    %c1_199 = arith.constant 1 : index
    %c0_200 = arith.constant 0 : index
    %c0_201 = arith.constant 0 : index
    %250 = vector.load %arg5[%c1_198, %c1_199, %c0_200, %c0_201] : memref<3x3x9x3xf32, #tpu.memory_space<vmem>>, vector<1x1x9x3xf32>
    %251 = vector.shape_cast %250 : vector<1x1x9x3xf32> to vector<9x3xf32>
    %cst_202 = arith.constant dense<0.000000e+00> : vector<16x3xf32>
    %252 = tpu.matmul %198, %251, %cst_202 {dimension_numbers = #tpu.dot_dimension_numbers<[1], [0], [0], [1], [0, 0, 1, 1], [], []>} : vector<16x9xf32>, vector<9x3xf32>, vector<16x3xf32> -> vector<16x3xf32>
    %c1_203 = arith.constant 1 : index
    %c1_204 = arith.constant 1 : index
    %c0_205 = arith.constant 0 : index
    %c0_206 = arith.constant 0 : index
    %253 = vector.load %arg6[%c1_203, %c1_204, %c0_205, %c0_206] : memref<3x3x1x3xf32, #tpu.memory_space<vmem>>, vector<1x1x1x3xf32>
    %254 = vector.shape_cast %253 : vector<1x1x1x3xf32> to vector<1x3xf32>
    %255 = vector.broadcast %254 : vector<1x3xf32> to vector<16x3xf32>
    %256 = arith.addf %252, %255 : vector<16x3xf32>
    %257 = vector.shape_cast %256 : vector<16x3xf32> to vector<2x8x3xf32>
    %c1_207 = arith.constant 1 : index
    %c1_208 = arith.constant 1 : index
    %c0_209 = arith.constant 0 : index
    %c0_210 = arith.constant 0 : index
    %258 = vector.load %arg7[%c1_207, %c1_208, %c0_209, %c0_210] : memref<3x3x9x3xf32, #tpu.memory_space<vmem>>, vector<1x1x9x3xf32>
    %259 = vector.shape_cast %258 : vector<1x1x9x3xf32> to vector<9x3xf32>
    %cst_211 = arith.constant dense<0.000000e+00> : vector<16x3xf32>
    %260 = tpu.matmul %198, %259, %cst_211 {dimension_numbers = #tpu.dot_dimension_numbers<[1], [0], [0], [1], [0, 0, 1, 1], [], []>} : vector<16x9xf32>, vector<9x3xf32>, vector<16x3xf32> -> vector<16x3xf32>
    %c1_212 = arith.constant 1 : index
    %c1_213 = arith.constant 1 : index
    %c0_214 = arith.constant 0 : index
    %c0_215 = arith.constant 0 : index
    %261 = vector.load %arg8[%c1_212, %c1_213, %c0_214, %c0_215] : memref<3x3x1x3xf32, #tpu.memory_space<vmem>>, vector<1x1x1x3xf32>
    %262 = vector.shape_cast %261 : vector<1x1x1x3xf32> to vector<1x3xf32>
    %263 = vector.broadcast %262 : vector<1x3xf32> to vector<16x3xf32>
    %264 = arith.addf %260, %263 : vector<16x3xf32>
    %265 = vector.shape_cast %264 : vector<16x3xf32> to vector<2x8x3xf32>
    "tpu.trace_start"() <{level = 10 : i32, message = "bqd,bkd->bqk"}> : () -> ()
    %cst_216 = arith.constant dense<0.000000e+00> : vector<2x8x8xf32>
    %266 = tpu.matmul %249, %257, %cst_216 {dimension_numbers = #tpu.dot_dimension_numbers<[2], [2], [1], [1], [0, 0, 0, 1, 1, 1], [0], [0]>} : vector<2x8x3xf32>, vector<2x8x3xf32>, vector<2x8x8xf32> -> vector<2x8x8xf32>
    "tpu.trace_stop"() : () -> ()
    %cst_217 = arith.constant dense<0xFF800000> : vector<2x8xf32>
    %267 = vector.multi_reduction <maximumf>, %266, %cst_217 [2] : vector<2x8x8xf32> to vector<2x8xf32>
    %268 = vector.shape_cast %267 : vector<2x8xf32> to vector<2x8x1xf32>
    %269 = vector.broadcast %268 : vector<2x8x1xf32> to vector<2x8x8xf32>
    %270 = arith.subf %266, %269 : vector<2x8x8xf32>
    %271 = math.exp %270 : vector<2x8x8xf32>
    %cst_218 = arith.constant dense<0.000000e+00> : vector<2x8xf32>
    %272 = vector.multi_reduction <add>, %271, %cst_218 [2] : vector<2x8x8xf32> to vector<2x8xf32>
    %273 = vector.shape_cast %272 : vector<2x8xf32> to vector<2x8x1xf32>
    %274 = vector.broadcast %273 : vector<2x8x1xf32> to vector<2x8x8xf32>
    %275 = arith.divf %271, %274 : vector<2x8x8xf32>
    "tpu.trace_start"() <{level = 10 : i32, message = "bqk,bkd->bqd"}> : () -> ()
    %cst_219 = arith.constant dense<0.000000e+00> : vector<2x8x3xf32>
    %276 = tpu.matmul %275, %265, %cst_219 {dimension_numbers = #tpu.dot_dimension_numbers<[2], [1], [1], [2], [0, 0, 0, 1, 1, 2], [0], [0]>} : vector<2x8x8xf32>, vector<2x8x3xf32>, vector<2x8x3xf32> -> vector<2x8x3xf32>
    "tpu.trace_stop"() : () -> ()
    %277 = vector.shape_cast %276 : vector<2x8x3xf32> to vector<16x3xf32>
    %c1_220 = arith.constant 1 : index
    %c1_221 = arith.constant 1 : index
    %c0_222 = arith.constant 0 : index
    %c0_223 = arith.constant 0 : index
    %278 = vector.load %arg9[%c1_220, %c1_221, %c0_222, %c0_223] : memref<3x3x3x9xf32, #tpu.memory_space<vmem>>, vector<1x1x3x9xf32>
    %279 = vector.shape_cast %278 : vector<1x1x3x9xf32> to vector<3x9xf32>
    %cst_224 = arith.constant dense<0.000000e+00> : vector<16x9xf32>
    %280 = tpu.matmul %277, %279, %cst_224 {dimension_numbers = #tpu.dot_dimension_numbers<[1], [0], [0], [1], [0, 0, 1, 1], [], []>} : vector<16x3xf32>, vector<3x9xf32>, vector<16x9xf32> -> vector<16x9xf32>
    %281 = arith.addf %241, %280 : vector<16x9xf32>
    %c1_225 = arith.constant 1 : index
    %c2_226 = arith.constant 2 : index
    %c0_227 = arith.constant 0 : index
    %c0_228 = arith.constant 0 : index
    %282 = vector.load %arg3[%c1_225, %c2_226, %c0_227, %c0_228] : memref<3x3x9x3xf32, #tpu.memory_space<vmem>>, vector<1x1x9x3xf32>
    %283 = vector.shape_cast %282 : vector<1x1x9x3xf32> to vector<9x3xf32>
    %cst_229 = arith.constant dense<0.000000e+00> : vector<16x3xf32>
    %284 = tpu.matmul %198, %283, %cst_229 {dimension_numbers = #tpu.dot_dimension_numbers<[1], [0], [0], [1], [0, 0, 1, 1], [], []>} : vector<16x9xf32>, vector<9x3xf32>, vector<16x3xf32> -> vector<16x3xf32>
    %c1_230 = arith.constant 1 : index
    %c2_231 = arith.constant 2 : index
    %c0_232 = arith.constant 0 : index
    %c0_233 = arith.constant 0 : index
    %285 = vector.load %arg4[%c1_230, %c2_231, %c0_232, %c0_233] : memref<3x3x1x3xf32, #tpu.memory_space<vmem>>, vector<1x1x1x3xf32>
    %286 = vector.shape_cast %285 : vector<1x1x1x3xf32> to vector<1x3xf32>
    %287 = vector.broadcast %286 : vector<1x3xf32> to vector<16x3xf32>
    %288 = arith.addf %284, %287 : vector<16x3xf32>
    %289 = vector.shape_cast %288 : vector<16x3xf32> to vector<2x8x3xf32>
    %c1_234 = arith.constant 1 : index
    %c2_235 = arith.constant 2 : index
    %c0_236 = arith.constant 0 : index
    %c0_237 = arith.constant 0 : index
    %290 = vector.load %arg5[%c1_234, %c2_235, %c0_236, %c0_237] : memref<3x3x9x3xf32, #tpu.memory_space<vmem>>, vector<1x1x9x3xf32>
    %291 = vector.shape_cast %290 : vector<1x1x9x3xf32> to vector<9x3xf32>
    %cst_238 = arith.constant dense<0.000000e+00> : vector<16x3xf32>
    %292 = tpu.matmul %198, %291, %cst_238 {dimension_numbers = #tpu.dot_dimension_numbers<[1], [0], [0], [1], [0, 0, 1, 1], [], []>} : vector<16x9xf32>, vector<9x3xf32>, vector<16x3xf32> -> vector<16x3xf32>
    %c1_239 = arith.constant 1 : index
    %c2_240 = arith.constant 2 : index
    %c0_241 = arith.constant 0 : index
    %c0_242 = arith.constant 0 : index
    %293 = vector.load %arg6[%c1_239, %c2_240, %c0_241, %c0_242] : memref<3x3x1x3xf32, #tpu.memory_space<vmem>>, vector<1x1x1x3xf32>
    %294 = vector.shape_cast %293 : vector<1x1x1x3xf32> to vector<1x3xf32>
    %295 = vector.broadcast %294 : vector<1x3xf32> to vector<16x3xf32>
    %296 = arith.addf %292, %295 : vector<16x3xf32>
    %297 = vector.shape_cast %296 : vector<16x3xf32> to vector<2x8x3xf32>
    %c1_243 = arith.constant 1 : index
    %c2_244 = arith.constant 2 : index
    %c0_245 = arith.constant 0 : index
    %c0_246 = arith.constant 0 : index
    %298 = vector.load %arg7[%c1_243, %c2_244, %c0_245, %c0_246] : memref<3x3x9x3xf32, #tpu.memory_space<vmem>>, vector<1x1x9x3xf32>
    %299 = vector.shape_cast %298 : vector<1x1x9x3xf32> to vector<9x3xf32>
    %cst_247 = arith.constant dense<0.000000e+00> : vector<16x3xf32>
    %300 = tpu.matmul %198, %299, %cst_247 {dimension_numbers = #tpu.dot_dimension_numbers<[1], [0], [0], [1], [0, 0, 1, 1], [], []>} : vector<16x9xf32>, vector<9x3xf32>, vector<16x3xf32> -> vector<16x3xf32>
    %c1_248 = arith.constant 1 : index
    %c2_249 = arith.constant 2 : index
    %c0_250 = arith.constant 0 : index
    %c0_251 = arith.constant 0 : index
    %301 = vector.load %arg8[%c1_248, %c2_249, %c0_250, %c0_251] : memref<3x3x1x3xf32, #tpu.memory_space<vmem>>, vector<1x1x1x3xf32>
    %302 = vector.shape_cast %301 : vector<1x1x1x3xf32> to vector<1x3xf32>
    %303 = vector.broadcast %302 : vector<1x3xf32> to vector<16x3xf32>
    %304 = arith.addf %300, %303 : vector<16x3xf32>
    %305 = vector.shape_cast %304 : vector<16x3xf32> to vector<2x8x3xf32>
    "tpu.trace_start"() <{level = 10 : i32, message = "bqd,bkd->bqk"}> : () -> ()
    %cst_252 = arith.constant dense<0.000000e+00> : vector<2x8x8xf32>
    %306 = tpu.matmul %289, %297, %cst_252 {dimension_numbers = #tpu.dot_dimension_numbers<[2], [2], [1], [1], [0, 0, 0, 1, 1, 1], [0], [0]>} : vector<2x8x3xf32>, vector<2x8x3xf32>, vector<2x8x8xf32> -> vector<2x8x8xf32>
    "tpu.trace_stop"() : () -> ()
    %cst_253 = arith.constant dense<0xFF800000> : vector<2x8xf32>
    %307 = vector.multi_reduction <maximumf>, %306, %cst_253 [2] : vector<2x8x8xf32> to vector<2x8xf32>
    %308 = vector.shape_cast %307 : vector<2x8xf32> to vector<2x8x1xf32>
    %309 = vector.broadcast %308 : vector<2x8x1xf32> to vector<2x8x8xf32>
    %310 = arith.subf %306, %309 : vector<2x8x8xf32>
    %311 = math.exp %310 : vector<2x8x8xf32>
    %cst_254 = arith.constant dense<0.000000e+00> : vector<2x8xf32>
    %312 = vector.multi_reduction <add>, %311, %cst_254 [2] : vector<2x8x8xf32> to vector<2x8xf32>
    %313 = vector.shape_cast %312 : vector<2x8xf32> to vector<2x8x1xf32>
    %314 = vector.broadcast %313 : vector<2x8x1xf32> to vector<2x8x8xf32>
    %315 = arith.divf %311, %314 : vector<2x8x8xf32>
    "tpu.trace_start"() <{level = 10 : i32, message = "bqk,bkd->bqd"}> : () -> ()
    %cst_255 = arith.constant dense<0.000000e+00> : vector<2x8x3xf32>
    %316 = tpu.matmul %315, %305, %cst_255 {dimension_numbers = #tpu.dot_dimension_numbers<[2], [1], [1], [2], [0, 0, 0, 1, 1, 2], [0], [0]>} : vector<2x8x8xf32>, vector<2x8x3xf32>, vector<2x8x3xf32> -> vector<2x8x3xf32>
    "tpu.trace_stop"() : () -> ()
    %317 = vector.shape_cast %316 : vector<2x8x3xf32> to vector<16x3xf32>
    %c1_256 = arith.constant 1 : index
    %c2_257 = arith.constant 2 : index
    %c0_258 = arith.constant 0 : index
    %c0_259 = arith.constant 0 : index
    %318 = vector.load %arg9[%c1_256, %c2_257, %c0_258, %c0_259] : memref<3x3x3x9xf32, #tpu.memory_space<vmem>>, vector<1x1x3x9xf32>
    %319 = vector.shape_cast %318 : vector<1x1x3x9xf32> to vector<3x9xf32>
    %cst_260 = arith.constant dense<0.000000e+00> : vector<16x9xf32>
    %320 = tpu.matmul %317, %319, %cst_260 {dimension_numbers = #tpu.dot_dimension_numbers<[1], [0], [0], [1], [0, 0, 1, 1], [], []>} : vector<16x3xf32>, vector<3x9xf32>, vector<16x9xf32> -> vector<16x9xf32>
    %321 = arith.addf %281, %320 : vector<16x9xf32>
    %322 = arith.addf %198, %321 : vector<16x9xf32>
    %c1_261 = arith.constant 1 : index
    %c0_262 = arith.constant 0 : index
    %c0_263 = arith.constant 0 : index
    %323 = vector.load %arg11[%c1_261, %c0_262, %c0_263] : memref<3x1x9xf32, #tpu.memory_space<vmem>>, vector<1x1x9xf32>
    %324 = vector.shape_cast %323 : vector<1x1x9xf32> to vector<1x9xf32>
    %c1_264 = arith.constant 1 : index
    %c0_265 = arith.constant 0 : index
    %c0_266 = arith.constant 0 : index
    %325 = vector.load %arg12[%c1_264, %c0_265, %c0_266] : memref<3x1x9xf32, #tpu.memory_space<vmem>>, vector<1x1x9xf32>
    %326 = vector.shape_cast %325 : vector<1x1x9xf32> to vector<1x9xf32>
    %cst_267 = arith.constant dense<0.000000e+00> : vector<16xf32>
    %327 = vector.multi_reduction <add>, %322, %cst_267 [1] : vector<16x9xf32> to vector<16xf32>
    %328 = vector.shape_cast %327 : vector<16xf32> to vector<16x1xf32>
    %cst_268 = arith.constant 0.111111112 : f32
    %329 = vector.broadcast %cst_268 : f32 to vector<16x1xf32>
    %330 = arith.mulf %328, %329 : vector<16x1xf32>
    %331 = arith.mulf %322, %322 : vector<16x9xf32>
    %cst_269 = arith.constant dense<0.000000e+00> : vector<16xf32>
    %332 = vector.multi_reduction <add>, %331, %cst_269 [1] : vector<16x9xf32> to vector<16xf32>
    %333 = vector.shape_cast %332 : vector<16xf32> to vector<16x1xf32>
    %cst_270 = arith.constant 0.111111112 : f32
    %334 = vector.broadcast %cst_270 : f32 to vector<16x1xf32>
    %335 = arith.mulf %333, %334 : vector<16x1xf32>
    %336 = arith.mulf %330, %330 : vector<16x1xf32>
    %337 = arith.subf %335, %336 : vector<16x1xf32>
    %338 = vector.broadcast %330 : vector<16x1xf32> to vector<16x9xf32>
    %339 = arith.subf %322, %338 : vector<16x9xf32>
    %cst_271 = arith.constant 9.99999974E-6 : f32
    %340 = vector.broadcast %cst_271 : f32 to vector<16x1xf32>
    %341 = arith.addf %337, %340 : vector<16x1xf32>
    %342 = math.rsqrt %341 : vector<16x1xf32>
    %343 = vector.broadcast %342 : vector<16x1xf32> to vector<16x9xf32>
    %344 = arith.mulf %339, %343 : vector<16x9xf32>
    %345 = vector.broadcast %324 : vector<1x9xf32> to vector<16x9xf32>
    %346 = arith.mulf %344, %345 : vector<16x9xf32>
    %347 = vector.broadcast %326 : vector<1x9xf32> to vector<16x9xf32>
    %348 = arith.addf %346, %347 : vector<16x9xf32>
    %349 = arith.truncf %348 : vector<16x9xf32> to vector<16x9xbf16>
    %c1_272 = arith.constant 1 : index
    %c0_273 = arith.constant 0 : index
    %c0_274 = arith.constant 0 : index
    %350 = vector.load %arg13[%c1_272, %c0_273, %c0_274] : memref<3x9x2048xbf16, #tpu.memory_space<vmem>>, vector<1x9x2048xbf16>
    %351 = vector.shape_cast %350 : vector<1x9x2048xbf16> to vector<9x2048xbf16>
    %cst_275 = arith.constant dense<0.000000e+00> : vector<16x2048xf32>
    %352 = tpu.matmul %349, %351, %cst_275 {dimension_numbers = #tpu.dot_dimension_numbers<[1], [0], [0], [1], [0, 0, 1, 1], [], []>} : vector<16x9xbf16>, vector<9x2048xbf16>, vector<16x2048xf32> -> vector<16x2048xf32>
    %c1_276 = arith.constant 1 : index
    %c0_277 = arith.constant 0 : index
    %c0_278 = arith.constant 0 : index
    %353 = vector.load %arg14[%c1_276, %c0_277, %c0_278] : memref<3x1x2048xf32, #tpu.memory_space<vmem>>, vector<1x1x2048xf32>
    %354 = vector.shape_cast %353 : vector<1x1x2048xf32> to vector<1x2048xf32>
    %355 = vector.broadcast %354 : vector<1x2048xf32> to vector<16x2048xf32>
    %356 = arith.addf %352, %355 : vector<16x2048xf32>
    %cst_279 = arith.constant 0.000000e+00 : f32
    %357 = vector.broadcast %cst_279 : f32 to vector<16x2048xf32>
    %358 = arith.maximumf %356, %357 : vector<16x2048xf32>
    %359 = arith.truncf %358 : vector<16x2048xf32> to vector<16x2048xbf16>
    %c1_280 = arith.constant 1 : index
    %c0_281 = arith.constant 0 : index
    %c0_282 = arith.constant 0 : index
    %360 = vector.load %arg15[%c1_280, %c0_281, %c0_282] : memref<3x2048x9xbf16, #tpu.memory_space<vmem>>, vector<1x2048x9xbf16>
    %361 = vector.shape_cast %360 : vector<1x2048x9xbf16> to vector<2048x9xbf16>
    %cst_283 = arith.constant dense<0.000000e+00> : vector<16x9xf32>
    %362 = tpu.matmul %359, %361, %cst_283 {dimension_numbers = #tpu.dot_dimension_numbers<[1], [0], [0], [1], [0, 0, 1, 1], [], []>} : vector<16x2048xbf16>, vector<2048x9xbf16>, vector<16x9xf32> -> vector<16x9xf32>
    %c1_284 = arith.constant 1 : index
    %c0_285 = arith.constant 0 : index
    %c0_286 = arith.constant 0 : index
    %363 = vector.load %arg16[%c1_284, %c0_285, %c0_286] : memref<3x1x9xf32, #tpu.memory_space<vmem>>, vector<1x1x9xf32>
    %364 = vector.shape_cast %363 : vector<1x1x9xf32> to vector<1x9xf32>
    %365 = vector.broadcast %364 : vector<1x9xf32> to vector<16x9xf32>
    %366 = arith.addf %362, %365 : vector<16x9xf32>
    %367 = arith.addf %348, %366 : vector<16x9xf32>
    %c1_287 = arith.constant 1 : index
    %c0_288 = arith.constant 0 : index
    %c0_289 = arith.constant 0 : index
    %368 = vector.load %arg17[%c1_287, %c0_288, %c0_289] : memref<3x1x9xf32, #tpu.memory_space<vmem>>, vector<1x1x9xf32>
    %369 = vector.shape_cast %368 : vector<1x1x9xf32> to vector<1x9xf32>
    %c1_290 = arith.constant 1 : index
    %c0_291 = arith.constant 0 : index
    %c0_292 = arith.constant 0 : index
    %370 = vector.load %arg18[%c1_290, %c0_291, %c0_292] : memref<3x1x9xf32, #tpu.memory_space<vmem>>, vector<1x1x9xf32>
    %371 = vector.shape_cast %370 : vector<1x1x9xf32> to vector<1x9xf32>
    %cst_293 = arith.constant dense<0.000000e+00> : vector<16xf32>
    %372 = vector.multi_reduction <add>, %367, %cst_293 [1] : vector<16x9xf32> to vector<16xf32>
    %373 = vector.shape_cast %372 : vector<16xf32> to vector<16x1xf32>
    %cst_294 = arith.constant 0.111111112 : f32
    %374 = vector.broadcast %cst_294 : f32 to vector<16x1xf32>
    %375 = arith.mulf %373, %374 : vector<16x1xf32>
    %376 = arith.mulf %367, %367 : vector<16x9xf32>
    %cst_295 = arith.constant dense<0.000000e+00> : vector<16xf32>
    %377 = vector.multi_reduction <add>, %376, %cst_295 [1] : vector<16x9xf32> to vector<16xf32>
    %378 = vector.shape_cast %377 : vector<16xf32> to vector<16x1xf32>
    %cst_296 = arith.constant 0.111111112 : f32
    %379 = vector.broadcast %cst_296 : f32 to vector<16x1xf32>
    %380 = arith.mulf %378, %379 : vector<16x1xf32>
    %381 = arith.mulf %375, %375 : vector<16x1xf32>
    %382 = arith.subf %380, %381 : vector<16x1xf32>
    %383 = vector.broadcast %375 : vector<16x1xf32> to vector<16x9xf32>
    %384 = arith.subf %367, %383 : vector<16x9xf32>
    %cst_297 = arith.constant 9.99999974E-6 : f32
    %385 = vector.broadcast %cst_297 : f32 to vector<16x1xf32>
    %386 = arith.addf %382, %385 : vector<16x1xf32>
    %387 = math.rsqrt %386 : vector<16x1xf32>
    %388 = vector.broadcast %387 : vector<16x1xf32> to vector<16x9xf32>
    %389 = arith.mulf %384, %388 : vector<16x9xf32>
    %390 = vector.broadcast %369 : vector<1x9xf32> to vector<16x9xf32>
    %391 = arith.mulf %389, %390 : vector<16x9xf32>
    %392 = vector.broadcast %371 : vector<1x9xf32> to vector<16x9xf32>
    %393 = arith.addf %391, %392 : vector<16x9xf32>
    %394 = vector.shape_cast %393 : vector<16x9xf32> to vector<2x8x9xf32>
    %395 = vector.extract_strided_slice %394 {offsets = [0, 7, 0], sizes = [2, 1, 9], strides = [1, 1, 1]} : vector<2x8x9xf32> to vector<2x1x9xf32>
    %396 = vector.shape_cast %395 : vector<2x1x9xf32> to vector<2x9xf32>
    %c2_298 = arith.constant 2 : index
    %c0_299 = arith.constant 0 : index
    %c0_300 = arith.constant 0 : index
    %397 = vector.load %arg10[%c2_298, %c0_299, %c0_300] : memref<3x1x9xf32, #tpu.memory_space<vmem>>, vector<1x1x9xf32>
    %398 = vector.shape_cast %397 : vector<1x1x9xf32> to vector<1x9xf32>
    %c2_301 = arith.constant 2 : index
    %c0_302 = arith.constant 0 : index
    %c0_303 = arith.constant 0 : index
    %c0_304 = arith.constant 0 : index
    %399 = vector.load %arg3[%c2_301, %c0_302, %c0_303, %c0_304] : memref<3x3x9x3xf32, #tpu.memory_space<vmem>>, vector<1x1x9x3xf32>
    %400 = vector.shape_cast %399 : vector<1x1x9x3xf32> to vector<9x3xf32>
    %cst_305 = arith.constant dense<0.000000e+00> : vector<2x3xf32>
    %401 = tpu.matmul %396, %400, %cst_305 {dimension_numbers = #tpu.dot_dimension_numbers<[1], [0], [0], [1], [0, 0, 1, 1], [], []>} : vector<2x9xf32>, vector<9x3xf32>, vector<2x3xf32> -> vector<2x3xf32>
    %c2_306 = arith.constant 2 : index
    %c0_307 = arith.constant 0 : index
    %c0_308 = arith.constant 0 : index
    %c0_309 = arith.constant 0 : index
    %402 = vector.load %arg4[%c2_306, %c0_307, %c0_308, %c0_309] : memref<3x3x1x3xf32, #tpu.memory_space<vmem>>, vector<1x1x1x3xf32>
    %403 = vector.shape_cast %402 : vector<1x1x1x3xf32> to vector<1x3xf32>
    %404 = vector.broadcast %403 : vector<1x3xf32> to vector<2x3xf32>
    %405 = arith.addf %401, %404 : vector<2x3xf32>
    %406 = vector.shape_cast %405 : vector<2x3xf32> to vector<2x1x3xf32>
    %c2_310 = arith.constant 2 : index
    %c0_311 = arith.constant 0 : index
    %c0_312 = arith.constant 0 : index
    %c0_313 = arith.constant 0 : index
    %407 = vector.load %arg5[%c2_310, %c0_311, %c0_312, %c0_313] : memref<3x3x9x3xf32, #tpu.memory_space<vmem>>, vector<1x1x9x3xf32>
    %408 = vector.shape_cast %407 : vector<1x1x9x3xf32> to vector<9x3xf32>
    %cst_314 = arith.constant dense<0.000000e+00> : vector<16x3xf32>
    %409 = tpu.matmul %393, %408, %cst_314 {dimension_numbers = #tpu.dot_dimension_numbers<[1], [0], [0], [1], [0, 0, 1, 1], [], []>} : vector<16x9xf32>, vector<9x3xf32>, vector<16x3xf32> -> vector<16x3xf32>
    %c2_315 = arith.constant 2 : index
    %c0_316 = arith.constant 0 : index
    %c0_317 = arith.constant 0 : index
    %c0_318 = arith.constant 0 : index
    %410 = vector.load %arg6[%c2_315, %c0_316, %c0_317, %c0_318] : memref<3x3x1x3xf32, #tpu.memory_space<vmem>>, vector<1x1x1x3xf32>
    %411 = vector.shape_cast %410 : vector<1x1x1x3xf32> to vector<1x3xf32>
    %412 = vector.broadcast %411 : vector<1x3xf32> to vector<16x3xf32>
    %413 = arith.addf %409, %412 : vector<16x3xf32>
    %414 = vector.shape_cast %413 : vector<16x3xf32> to vector<2x8x3xf32>
    %c2_319 = arith.constant 2 : index
    %c0_320 = arith.constant 0 : index
    %c0_321 = arith.constant 0 : index
    %c0_322 = arith.constant 0 : index
    %415 = vector.load %arg7[%c2_319, %c0_320, %c0_321, %c0_322] : memref<3x3x9x3xf32, #tpu.memory_space<vmem>>, vector<1x1x9x3xf32>
    %416 = vector.shape_cast %415 : vector<1x1x9x3xf32> to vector<9x3xf32>
    %cst_323 = arith.constant dense<0.000000e+00> : vector<16x3xf32>
    %417 = tpu.matmul %393, %416, %cst_323 {dimension_numbers = #tpu.dot_dimension_numbers<[1], [0], [0], [1], [0, 0, 1, 1], [], []>} : vector<16x9xf32>, vector<9x3xf32>, vector<16x3xf32> -> vector<16x3xf32>
    %c2_324 = arith.constant 2 : index
    %c0_325 = arith.constant 0 : index
    %c0_326 = arith.constant 0 : index
    %c0_327 = arith.constant 0 : index
    %418 = vector.load %arg8[%c2_324, %c0_325, %c0_326, %c0_327] : memref<3x3x1x3xf32, #tpu.memory_space<vmem>>, vector<1x1x1x3xf32>
    %419 = vector.shape_cast %418 : vector<1x1x1x3xf32> to vector<1x3xf32>
    %420 = vector.broadcast %419 : vector<1x3xf32> to vector<16x3xf32>
    %421 = arith.addf %417, %420 : vector<16x3xf32>
    %422 = vector.shape_cast %421 : vector<16x3xf32> to vector<2x8x3xf32>
    "tpu.trace_start"() <{level = 10 : i32, message = "bqd,bkd->bqk"}> : () -> ()
    %cst_328 = arith.constant dense<0.000000e+00> : vector<2x1x8xf32>
    %423 = tpu.matmul %406, %414, %cst_328 {dimension_numbers = #tpu.dot_dimension_numbers<[2], [2], [1], [1], [0, 0, 0, 1, 1, 1], [0], [0]>} : vector<2x1x3xf32>, vector<2x8x3xf32>, vector<2x1x8xf32> -> vector<2x1x8xf32>
    "tpu.trace_stop"() : () -> ()
    %cst_329 = arith.constant dense<0xFF800000> : vector<2x1xf32>
    %424 = vector.multi_reduction <maximumf>, %423, %cst_329 [2] : vector<2x1x8xf32> to vector<2x1xf32>
    %425 = vector.shape_cast %424 : vector<2x1xf32> to vector<2x1x1xf32>
    %426 = vector.broadcast %425 : vector<2x1x1xf32> to vector<2x1x8xf32>
    %427 = arith.subf %423, %426 : vector<2x1x8xf32>
    %428 = math.exp %427 : vector<2x1x8xf32>
    %cst_330 = arith.constant dense<0.000000e+00> : vector<2x1xf32>
    %429 = vector.multi_reduction <add>, %428, %cst_330 [2] : vector<2x1x8xf32> to vector<2x1xf32>
    %430 = vector.shape_cast %429 : vector<2x1xf32> to vector<2x1x1xf32>
    %431 = vector.broadcast %430 : vector<2x1x1xf32> to vector<2x1x8xf32>
    %432 = arith.divf %428, %431 : vector<2x1x8xf32>
    "tpu.trace_start"() <{level = 10 : i32, message = "bqk,bkd->bqd"}> : () -> ()
    %cst_331 = arith.constant dense<0.000000e+00> : vector<2x1x3xf32>
    %433 = tpu.matmul %432, %422, %cst_331 {dimension_numbers = #tpu.dot_dimension_numbers<[2], [1], [1], [2], [0, 0, 0, 1, 1, 2], [0], [0]>} : vector<2x1x8xf32>, vector<2x8x3xf32>, vector<2x1x3xf32> -> vector<2x1x3xf32>
    "tpu.trace_stop"() : () -> ()
    %434 = vector.shape_cast %433 : vector<2x1x3xf32> to vector<2x3xf32>
    %c2_332 = arith.constant 2 : index
    %c0_333 = arith.constant 0 : index
    %c0_334 = arith.constant 0 : index
    %c0_335 = arith.constant 0 : index
    %435 = vector.load %arg9[%c2_332, %c0_333, %c0_334, %c0_335] : memref<3x3x3x9xf32, #tpu.memory_space<vmem>>, vector<1x1x3x9xf32>
    %436 = vector.shape_cast %435 : vector<1x1x3x9xf32> to vector<3x9xf32>
    %cst_336 = arith.constant dense<0.000000e+00> : vector<2x9xf32>
    %437 = tpu.matmul %434, %436, %cst_336 {dimension_numbers = #tpu.dot_dimension_numbers<[1], [0], [0], [1], [0, 0, 1, 1], [], []>} : vector<2x3xf32>, vector<3x9xf32>, vector<2x9xf32> -> vector<2x9xf32>
    %438 = vector.broadcast %398 : vector<1x9xf32> to vector<2x9xf32>
    %439 = arith.addf %438, %437 : vector<2x9xf32>
    %c2_337 = arith.constant 2 : index
    %c1_338 = arith.constant 1 : index
    %c0_339 = arith.constant 0 : index
    %c0_340 = arith.constant 0 : index
    %440 = vector.load %arg3[%c2_337, %c1_338, %c0_339, %c0_340] : memref<3x3x9x3xf32, #tpu.memory_space<vmem>>, vector<1x1x9x3xf32>
    %441 = vector.shape_cast %440 : vector<1x1x9x3xf32> to vector<9x3xf32>
    %cst_341 = arith.constant dense<0.000000e+00> : vector<2x3xf32>
    %442 = tpu.matmul %396, %441, %cst_341 {dimension_numbers = #tpu.dot_dimension_numbers<[1], [0], [0], [1], [0, 0, 1, 1], [], []>} : vector<2x9xf32>, vector<9x3xf32>, vector<2x3xf32> -> vector<2x3xf32>
    %c2_342 = arith.constant 2 : index
    %c1_343 = arith.constant 1 : index
    %c0_344 = arith.constant 0 : index
    %c0_345 = arith.constant 0 : index
    %443 = vector.load %arg4[%c2_342, %c1_343, %c0_344, %c0_345] : memref<3x3x1x3xf32, #tpu.memory_space<vmem>>, vector<1x1x1x3xf32>
    %444 = vector.shape_cast %443 : vector<1x1x1x3xf32> to vector<1x3xf32>
    %445 = vector.broadcast %444 : vector<1x3xf32> to vector<2x3xf32>
    %446 = arith.addf %442, %445 : vector<2x3xf32>
    %447 = vector.shape_cast %446 : vector<2x3xf32> to vector<2x1x3xf32>
    %c2_346 = arith.constant 2 : index
    %c1_347 = arith.constant 1 : index
    %c0_348 = arith.constant 0 : index
    %c0_349 = arith.constant 0 : index
    %448 = vector.load %arg5[%c2_346, %c1_347, %c0_348, %c0_349] : memref<3x3x9x3xf32, #tpu.memory_space<vmem>>, vector<1x1x9x3xf32>
    %449 = vector.shape_cast %448 : vector<1x1x9x3xf32> to vector<9x3xf32>
    %cst_350 = arith.constant dense<0.000000e+00> : vector<16x3xf32>
    %450 = tpu.matmul %393, %449, %cst_350 {dimension_numbers = #tpu.dot_dimension_numbers<[1], [0], [0], [1], [0, 0, 1, 1], [], []>} : vector<16x9xf32>, vector<9x3xf32>, vector<16x3xf32> -> vector<16x3xf32>
    %c2_351 = arith.constant 2 : index
    %c1_352 = arith.constant 1 : index
    %c0_353 = arith.constant 0 : index
    %c0_354 = arith.constant 0 : index
    %451 = vector.load %arg6[%c2_351, %c1_352, %c0_353, %c0_354] : memref<3x3x1x3xf32, #tpu.memory_space<vmem>>, vector<1x1x1x3xf32>
    %452 = vector.shape_cast %451 : vector<1x1x1x3xf32> to vector<1x3xf32>
    %453 = vector.broadcast %452 : vector<1x3xf32> to vector<16x3xf32>
    %454 = arith.addf %450, %453 : vector<16x3xf32>
    %455 = vector.shape_cast %454 : vector<16x3xf32> to vector<2x8x3xf32>
    %c2_355 = arith.constant 2 : index
    %c1_356 = arith.constant 1 : index
    %c0_357 = arith.constant 0 : index
    %c0_358 = arith.constant 0 : index
    %456 = vector.load %arg7[%c2_355, %c1_356, %c0_357, %c0_358] : memref<3x3x9x3xf32, #tpu.memory_space<vmem>>, vector<1x1x9x3xf32>
    %457 = vector.shape_cast %456 : vector<1x1x9x3xf32> to vector<9x3xf32>
    %cst_359 = arith.constant dense<0.000000e+00> : vector<16x3xf32>
    %458 = tpu.matmul %393, %457, %cst_359 {dimension_numbers = #tpu.dot_dimension_numbers<[1], [0], [0], [1], [0, 0, 1, 1], [], []>} : vector<16x9xf32>, vector<9x3xf32>, vector<16x3xf32> -> vector<16x3xf32>
    %c2_360 = arith.constant 2 : index
    %c1_361 = arith.constant 1 : index
    %c0_362 = arith.constant 0 : index
    %c0_363 = arith.constant 0 : index
    %459 = vector.load %arg8[%c2_360, %c1_361, %c0_362, %c0_363] : memref<3x3x1x3xf32, #tpu.memory_space<vmem>>, vector<1x1x1x3xf32>
    %460 = vector.shape_cast %459 : vector<1x1x1x3xf32> to vector<1x3xf32>
    %461 = vector.broadcast %460 : vector<1x3xf32> to vector<16x3xf32>
    %462 = arith.addf %458, %461 : vector<16x3xf32>
    %463 = vector.shape_cast %462 : vector<16x3xf32> to vector<2x8x3xf32>
    "tpu.trace_start"() <{level = 10 : i32, message = "bqd,bkd->bqk"}> : () -> ()
    %cst_364 = arith.constant dense<0.000000e+00> : vector<2x1x8xf32>
    %464 = tpu.matmul %447, %455, %cst_364 {dimension_numbers = #tpu.dot_dimension_numbers<[2], [2], [1], [1], [0, 0, 0, 1, 1, 1], [0], [0]>} : vector<2x1x3xf32>, vector<2x8x3xf32>, vector<2x1x8xf32> -> vector<2x1x8xf32>
    "tpu.trace_stop"() : () -> ()
    %cst_365 = arith.constant dense<0xFF800000> : vector<2x1xf32>
    %465 = vector.multi_reduction <maximumf>, %464, %cst_365 [2] : vector<2x1x8xf32> to vector<2x1xf32>
    %466 = vector.shape_cast %465 : vector<2x1xf32> to vector<2x1x1xf32>
    %467 = vector.broadcast %466 : vector<2x1x1xf32> to vector<2x1x8xf32>
    %468 = arith.subf %464, %467 : vector<2x1x8xf32>
    %469 = math.exp %468 : vector<2x1x8xf32>
    %cst_366 = arith.constant dense<0.000000e+00> : vector<2x1xf32>
    %470 = vector.multi_reduction <add>, %469, %cst_366 [2] : vector<2x1x8xf32> to vector<2x1xf32>
    %471 = vector.shape_cast %470 : vector<2x1xf32> to vector<2x1x1xf32>
    %472 = vector.broadcast %471 : vector<2x1x1xf32> to vector<2x1x8xf32>
    %473 = arith.divf %469, %472 : vector<2x1x8xf32>
    "tpu.trace_start"() <{level = 10 : i32, message = "bqk,bkd->bqd"}> : () -> ()
    %cst_367 = arith.constant dense<0.000000e+00> : vector<2x1x3xf32>
    %474 = tpu.matmul %473, %463, %cst_367 {dimension_numbers = #tpu.dot_dimension_numbers<[2], [1], [1], [2], [0, 0, 0, 1, 1, 2], [0], [0]>} : vector<2x1x8xf32>, vector<2x8x3xf32>, vector<2x1x3xf32> -> vector<2x1x3xf32>
    "tpu.trace_stop"() : () -> ()
    %475 = vector.shape_cast %474 : vector<2x1x3xf32> to vector<2x3xf32>
    %c2_368 = arith.constant 2 : index
    %c1_369 = arith.constant 1 : index
    %c0_370 = arith.constant 0 : index
    %c0_371 = arith.constant 0 : index
    %476 = vector.load %arg9[%c2_368, %c1_369, %c0_370, %c0_371] : memref<3x3x3x9xf32, #tpu.memory_space<vmem>>, vector<1x1x3x9xf32>
    %477 = vector.shape_cast %476 : vector<1x1x3x9xf32> to vector<3x9xf32>
    %cst_372 = arith.constant dense<0.000000e+00> : vector<2x9xf32>
    %478 = tpu.matmul %475, %477, %cst_372 {dimension_numbers = #tpu.dot_dimension_numbers<[1], [0], [0], [1], [0, 0, 1, 1], [], []>} : vector<2x3xf32>, vector<3x9xf32>, vector<2x9xf32> -> vector<2x9xf32>
    %479 = arith.addf %439, %478 : vector<2x9xf32>
    %c2_373 = arith.constant 2 : index
    %c2_374 = arith.constant 2 : index
    %c0_375 = arith.constant 0 : index
    %c0_376 = arith.constant 0 : index
    %480 = vector.load %arg3[%c2_373, %c2_374, %c0_375, %c0_376] : memref<3x3x9x3xf32, #tpu.memory_space<vmem>>, vector<1x1x9x3xf32>
    %481 = vector.shape_cast %480 : vector<1x1x9x3xf32> to vector<9x3xf32>
    %cst_377 = arith.constant dense<0.000000e+00> : vector<2x3xf32>
    %482 = tpu.matmul %396, %481, %cst_377 {dimension_numbers = #tpu.dot_dimension_numbers<[1], [0], [0], [1], [0, 0, 1, 1], [], []>} : vector<2x9xf32>, vector<9x3xf32>, vector<2x3xf32> -> vector<2x3xf32>
    %c2_378 = arith.constant 2 : index
    %c2_379 = arith.constant 2 : index
    %c0_380 = arith.constant 0 : index
    %c0_381 = arith.constant 0 : index
    %483 = vector.load %arg4[%c2_378, %c2_379, %c0_380, %c0_381] : memref<3x3x1x3xf32, #tpu.memory_space<vmem>>, vector<1x1x1x3xf32>
    %484 = vector.shape_cast %483 : vector<1x1x1x3xf32> to vector<1x3xf32>
    %485 = vector.broadcast %484 : vector<1x3xf32> to vector<2x3xf32>
    %486 = arith.addf %482, %485 : vector<2x3xf32>
    %487 = vector.shape_cast %486 : vector<2x3xf32> to vector<2x1x3xf32>
    %c2_382 = arith.constant 2 : index
    %c2_383 = arith.constant 2 : index
    %c0_384 = arith.constant 0 : index
    %c0_385 = arith.constant 0 : index
    %488 = vector.load %arg5[%c2_382, %c2_383, %c0_384, %c0_385] : memref<3x3x9x3xf32, #tpu.memory_space<vmem>>, vector<1x1x9x3xf32>
    %489 = vector.shape_cast %488 : vector<1x1x9x3xf32> to vector<9x3xf32>
    %cst_386 = arith.constant dense<0.000000e+00> : vector<16x3xf32>
    %490 = tpu.matmul %393, %489, %cst_386 {dimension_numbers = #tpu.dot_dimension_numbers<[1], [0], [0], [1], [0, 0, 1, 1], [], []>} : vector<16x9xf32>, vector<9x3xf32>, vector<16x3xf32> -> vector<16x3xf32>
    %c2_387 = arith.constant 2 : index
    %c2_388 = arith.constant 2 : index
    %c0_389 = arith.constant 0 : index
    %c0_390 = arith.constant 0 : index
    %491 = vector.load %arg6[%c2_387, %c2_388, %c0_389, %c0_390] : memref<3x3x1x3xf32, #tpu.memory_space<vmem>>, vector<1x1x1x3xf32>
    %492 = vector.shape_cast %491 : vector<1x1x1x3xf32> to vector<1x3xf32>
    %493 = vector.broadcast %492 : vector<1x3xf32> to vector<16x3xf32>
    %494 = arith.addf %490, %493 : vector<16x3xf32>
    %495 = vector.shape_cast %494 : vector<16x3xf32> to vector<2x8x3xf32>
    %c2_391 = arith.constant 2 : index
    %c2_392 = arith.constant 2 : index
    %c0_393 = arith.constant 0 : index
    %c0_394 = arith.constant 0 : index
    %496 = vector.load %arg7[%c2_391, %c2_392, %c0_393, %c0_394] : memref<3x3x9x3xf32, #tpu.memory_space<vmem>>, vector<1x1x9x3xf32>
    %497 = vector.shape_cast %496 : vector<1x1x9x3xf32> to vector<9x3xf32>
    %cst_395 = arith.constant dense<0.000000e+00> : vector<16x3xf32>
    %498 = tpu.matmul %393, %497, %cst_395 {dimension_numbers = #tpu.dot_dimension_numbers<[1], [0], [0], [1], [0, 0, 1, 1], [], []>} : vector<16x9xf32>, vector<9x3xf32>, vector<16x3xf32> -> vector<16x3xf32>
    %c2_396 = arith.constant 2 : index
    %c2_397 = arith.constant 2 : index
    %c0_398 = arith.constant 0 : index
    %c0_399 = arith.constant 0 : index
    %499 = vector.load %arg8[%c2_396, %c2_397, %c0_398, %c0_399] : memref<3x3x1x3xf32, #tpu.memory_space<vmem>>, vector<1x1x1x3xf32>
    %500 = vector.shape_cast %499 : vector<1x1x1x3xf32> to vector<1x3xf32>
    %501 = vector.broadcast %500 : vector<1x3xf32> to vector<16x3xf32>
    %502 = arith.addf %498, %501 : vector<16x3xf32>
    %503 = vector.shape_cast %502 : vector<16x3xf32> to vector<2x8x3xf32>
    "tpu.trace_start"() <{level = 10 : i32, message = "bqd,bkd->bqk"}> : () -> ()
    %cst_400 = arith.constant dense<0.000000e+00> : vector<2x1x8xf32>
    %504 = tpu.matmul %487, %495, %cst_400 {dimension_numbers = #tpu.dot_dimension_numbers<[2], [2], [1], [1], [0, 0, 0, 1, 1, 1], [0], [0]>} : vector<2x1x3xf32>, vector<2x8x3xf32>, vector<2x1x8xf32> -> vector<2x1x8xf32>
    "tpu.trace_stop"() : () -> ()
    %cst_401 = arith.constant dense<0xFF800000> : vector<2x1xf32>
    %505 = vector.multi_reduction <maximumf>, %504, %cst_401 [2] : vector<2x1x8xf32> to vector<2x1xf32>
    %506 = vector.shape_cast %505 : vector<2x1xf32> to vector<2x1x1xf32>
    %507 = vector.broadcast %506 : vector<2x1x1xf32> to vector<2x1x8xf32>
    %508 = arith.subf %504, %507 : vector<2x1x8xf32>
    %509 = math.exp %508 : vector<2x1x8xf32>
    %cst_402 = arith.constant dense<0.000000e+00> : vector<2x1xf32>
    %510 = vector.multi_reduction <add>, %509, %cst_402 [2] : vector<2x1x8xf32> to vector<2x1xf32>
    %511 = vector.shape_cast %510 : vector<2x1xf32> to vector<2x1x1xf32>
    %512 = vector.broadcast %511 : vector<2x1x1xf32> to vector<2x1x8xf32>
    %513 = arith.divf %509, %512 : vector<2x1x8xf32>
    "tpu.trace_start"() <{level = 10 : i32, message = "bqk,bkd->bqd"}> : () -> ()
    %cst_403 = arith.constant dense<0.000000e+00> : vector<2x1x3xf32>
    %514 = tpu.matmul %513, %503, %cst_403 {dimension_numbers = #tpu.dot_dimension_numbers<[2], [1], [1], [2], [0, 0, 0, 1, 1, 2], [0], [0]>} : vector<2x1x8xf32>, vector<2x8x3xf32>, vector<2x1x3xf32> -> vector<2x1x3xf32>
    "tpu.trace_stop"() : () -> ()
    %515 = vector.shape_cast %514 : vector<2x1x3xf32> to vector<2x3xf32>
    %c2_404 = arith.constant 2 : index
    %c2_405 = arith.constant 2 : index
    %c0_406 = arith.constant 0 : index
    %c0_407 = arith.constant 0 : index
    %516 = vector.load %arg9[%c2_404, %c2_405, %c0_406, %c0_407] : memref<3x3x3x9xf32, #tpu.memory_space<vmem>>, vector<1x1x3x9xf32>
    %517 = vector.shape_cast %516 : vector<1x1x3x9xf32> to vector<3x9xf32>
    %cst_408 = arith.constant dense<0.000000e+00> : vector<2x9xf32>
    %518 = tpu.matmul %515, %517, %cst_408 {dimension_numbers = #tpu.dot_dimension_numbers<[1], [0], [0], [1], [0, 0, 1, 1], [], []>} : vector<2x3xf32>, vector<3x9xf32>, vector<2x9xf32> -> vector<2x9xf32>
    %519 = arith.addf %479, %518 : vector<2x9xf32>
    %520 = arith.addf %396, %519 : vector<2x9xf32>
    %c2_409 = arith.constant 2 : index
    %c0_410 = arith.constant 0 : index
    %c0_411 = arith.constant 0 : index
    %521 = vector.load %arg11[%c2_409, %c0_410, %c0_411] : memref<3x1x9xf32, #tpu.memory_space<vmem>>, vector<1x1x9xf32>
    %522 = vector.shape_cast %521 : vector<1x1x9xf32> to vector<1x9xf32>
    %c2_412 = arith.constant 2 : index
    %c0_413 = arith.constant 0 : index
    %c0_414 = arith.constant 0 : index
    %523 = vector.load %arg12[%c2_412, %c0_413, %c0_414] : memref<3x1x9xf32, #tpu.memory_space<vmem>>, vector<1x1x9xf32>
    %524 = vector.shape_cast %523 : vector<1x1x9xf32> to vector<1x9xf32>
    %cst_415 = arith.constant dense<0.000000e+00> : vector<2xf32>
    %525 = vector.multi_reduction <add>, %520, %cst_415 [1] : vector<2x9xf32> to vector<2xf32>
    %526 = vector.shape_cast %525 : vector<2xf32> to vector<2x1xf32>
    %cst_416 = arith.constant 0.111111112 : f32
    %527 = vector.broadcast %cst_416 : f32 to vector<2x1xf32>
    %528 = arith.mulf %526, %527 : vector<2x1xf32>
    %529 = arith.mulf %520, %520 : vector<2x9xf32>
    %cst_417 = arith.constant dense<0.000000e+00> : vector<2xf32>
    %530 = vector.multi_reduction <add>, %529, %cst_417 [1] : vector<2x9xf32> to vector<2xf32>
    %531 = vector.shape_cast %530 : vector<2xf32> to vector<2x1xf32>
    %cst_418 = arith.constant 0.111111112 : f32
    %532 = vector.broadcast %cst_418 : f32 to vector<2x1xf32>
    %533 = arith.mulf %531, %532 : vector<2x1xf32>
    %534 = arith.mulf %528, %528 : vector<2x1xf32>
    %535 = arith.subf %533, %534 : vector<2x1xf32>
    %536 = vector.broadcast %528 : vector<2x1xf32> to vector<2x9xf32>
    %537 = arith.subf %520, %536 : vector<2x9xf32>
    %cst_419 = arith.constant 9.99999974E-6 : f32
    %538 = vector.broadcast %cst_419 : f32 to vector<2x1xf32>
    %539 = arith.addf %535, %538 : vector<2x1xf32>
    %540 = math.rsqrt %539 : vector<2x1xf32>
    %541 = vector.broadcast %540 : vector<2x1xf32> to vector<2x9xf32>
    %542 = arith.mulf %537, %541 : vector<2x9xf32>
    %543 = vector.broadcast %522 : vector<1x9xf32> to vector<2x9xf32>
    %544 = arith.mulf %542, %543 : vector<2x9xf32>
    %545 = vector.broadcast %524 : vector<1x9xf32> to vector<2x9xf32>
    %546 = arith.addf %544, %545 : vector<2x9xf32>
    %547 = arith.truncf %546 : vector<2x9xf32> to vector<2x9xbf16>
    %c2_420 = arith.constant 2 : index
    %c0_421 = arith.constant 0 : index
    %c0_422 = arith.constant 0 : index
    %548 = vector.load %arg13[%c2_420, %c0_421, %c0_422] : memref<3x9x2048xbf16, #tpu.memory_space<vmem>>, vector<1x9x2048xbf16>
    %549 = vector.shape_cast %548 : vector<1x9x2048xbf16> to vector<9x2048xbf16>
    %cst_423 = arith.constant dense<0.000000e+00> : vector<2x2048xf32>
    %550 = tpu.matmul %547, %549, %cst_423 {dimension_numbers = #tpu.dot_dimension_numbers<[1], [0], [0], [1], [0, 0, 1, 1], [], []>} : vector<2x9xbf16>, vector<9x2048xbf16>, vector<2x2048xf32> -> vector<2x2048xf32>
    %c2_424 = arith.constant 2 : index
    %c0_425 = arith.constant 0 : index
    %c0_426 = arith.constant 0 : index
    %551 = vector.load %arg14[%c2_424, %c0_425, %c0_426] : memref<3x1x2048xf32, #tpu.memory_space<vmem>>, vector<1x1x2048xf32>
    %552 = vector.shape_cast %551 : vector<1x1x2048xf32> to vector<1x2048xf32>
    %553 = vector.broadcast %552 : vector<1x2048xf32> to vector<2x2048xf32>
    %554 = arith.addf %550, %553 : vector<2x2048xf32>
    %cst_427 = arith.constant 0.000000e+00 : f32
    %555 = vector.broadcast %cst_427 : f32 to vector<2x2048xf32>
    %556 = arith.maximumf %554, %555 : vector<2x2048xf32>
    %557 = arith.truncf %556 : vector<2x2048xf32> to vector<2x2048xbf16>
    %c2_428 = arith.constant 2 : index
    %c0_429 = arith.constant 0 : index
    %c0_430 = arith.constant 0 : index
    %558 = vector.load %arg15[%c2_428, %c0_429, %c0_430] : memref<3x2048x9xbf16, #tpu.memory_space<vmem>>, vector<1x2048x9xbf16>
    %559 = vector.shape_cast %558 : vector<1x2048x9xbf16> to vector<2048x9xbf16>
    %cst_431 = arith.constant dense<0.000000e+00> : vector<2x9xf32>
    %560 = tpu.matmul %557, %559, %cst_431 {dimension_numbers = #tpu.dot_dimension_numbers<[1], [0], [0], [1], [0, 0, 1, 1], [], []>} : vector<2x2048xbf16>, vector<2048x9xbf16>, vector<2x9xf32> -> vector<2x9xf32>
    %c2_432 = arith.constant 2 : index
    %c0_433 = arith.constant 0 : index
    %c0_434 = arith.constant 0 : index
    %561 = vector.load %arg16[%c2_432, %c0_433, %c0_434] : memref<3x1x9xf32, #tpu.memory_space<vmem>>, vector<1x1x9xf32>
    %562 = vector.shape_cast %561 : vector<1x1x9xf32> to vector<1x9xf32>
    %563 = vector.broadcast %562 : vector<1x9xf32> to vector<2x9xf32>
    %564 = arith.addf %560, %563 : vector<2x9xf32>
    %565 = arith.addf %546, %564 : vector<2x9xf32>
    %c2_435 = arith.constant 2 : index
    %c0_436 = arith.constant 0 : index
    %c0_437 = arith.constant 0 : index
    %566 = vector.load %arg17[%c2_435, %c0_436, %c0_437] : memref<3x1x9xf32, #tpu.memory_space<vmem>>, vector<1x1x9xf32>
    %567 = vector.shape_cast %566 : vector<1x1x9xf32> to vector<1x9xf32>
    %c2_438 = arith.constant 2 : index
    %c0_439 = arith.constant 0 : index
    %c0_440 = arith.constant 0 : index
    %568 = vector.load %arg18[%c2_438, %c0_439, %c0_440] : memref<3x1x9xf32, #tpu.memory_space<vmem>>, vector<1x1x9xf32>
    %569 = vector.shape_cast %568 : vector<1x1x9xf32> to vector<1x9xf32>
    %cst_441 = arith.constant dense<0.000000e+00> : vector<2xf32>
    %570 = vector.multi_reduction <add>, %565, %cst_441 [1] : vector<2x9xf32> to vector<2xf32>
    %571 = vector.shape_cast %570 : vector<2xf32> to vector<2x1xf32>
    %cst_442 = arith.constant 0.111111112 : f32
    %572 = vector.broadcast %cst_442 : f32 to vector<2x1xf32>
    %573 = arith.mulf %571, %572 : vector<2x1xf32>
    %574 = arith.mulf %565, %565 : vector<2x9xf32>
    %cst_443 = arith.constant dense<0.000000e+00> : vector<2xf32>
    %575 = vector.multi_reduction <add>, %574, %cst_443 [1] : vector<2x9xf32> to vector<2xf32>
    %576 = vector.shape_cast %575 : vector<2xf32> to vector<2x1xf32>
    %cst_444 = arith.constant 0.111111112 : f32
    %577 = vector.broadcast %cst_444 : f32 to vector<2x1xf32>
    %578 = arith.mulf %576, %577 : vector<2x1xf32>
    %579 = arith.mulf %573, %573 : vector<2x1xf32>
    %580 = arith.subf %578, %579 : vector<2x1xf32>
    %581 = vector.broadcast %573 : vector<2x1xf32> to vector<2x9xf32>
    %582 = arith.subf %565, %581 : vector<2x9xf32>
    %cst_445 = arith.constant 9.99999974E-6 : f32
    %583 = vector.broadcast %cst_445 : f32 to vector<2x1xf32>
    %584 = arith.addf %580, %583 : vector<2x1xf32>
    %585 = math.rsqrt %584 : vector<2x1xf32>
    %586 = vector.broadcast %585 : vector<2x1xf32> to vector<2x9xf32>
    %587 = arith.mulf %582, %586 : vector<2x9xf32>
    %588 = vector.broadcast %567 : vector<1x9xf32> to vector<2x9xf32>
    %589 = arith.mulf %587, %588 : vector<2x9xf32>
    %590 = vector.broadcast %569 : vector<1x9xf32> to vector<2x9xf32>
    %591 = arith.addf %589, %590 : vector<2x9xf32>
    %c0_446 = arith.constant 0 : index
    %c0_447 = arith.constant 0 : index
    %592 = vector.load %arg19[%c0_446, %c0_447] : memref<1x9xf32, #tpu.memory_space<vmem>>, vector<1x9xf32>
    %593 = vector.broadcast %592 : vector<1x9xf32> to vector<2x9xf32>
    %594 = arith.mulf %591, %593 : vector<2x9xf32>
    %cst_448 = arith.constant dense<0.000000e+00> : vector<2xf32>
    %595 = vector.multi_reduction <add>, %594, %cst_448 [1] : vector<2x9xf32> to vector<2xf32>
    %596 = vector.shape_cast %595 : vector<2xf32> to vector<2x1xf32>
    %c0_449 = arith.constant 0 : index
    %c0_450 = arith.constant 0 : index
    %597 = vector.load %arg20[%c0_449, %c0_450] : memref<1x1xf32, #tpu.memory_space<vmem>>, vector<1x1xf32>
    %598 = vector.broadcast %597 : vector<1x1xf32> to vector<2x1xf32>
    %599 = arith.addf %596, %598 : vector<2x1xf32>
    %c0_451 = arith.constant 0 : index
    %c0_452 = arith.constant 0 : index
    %600 = vector.load %arg21[%c0_451, %c0_452] : memref<2x1xf32, #tpu.memory_space<vmem>>, vector<2x1xf32>
    tpu.vector_store %arg21[%c0_451, %c0_452], %599 {strides = array<i32>} : memref<2x1xf32, #tpu.memory_space<vmem>>, vector<2x1xf32>,
    return
  }
  func.func @transform_0(%arg0: i32) -> (i32, i32, i32) {
    %c0_i32 = arith.constant 0 : i32
    %c0_i32_0 = arith.constant 0 : i32
    %c0_i32_1 = arith.constant 0 : i32
    return %arg0, %c0_i32, %c0_i32_0 : i32, i32, i32
  }
  func.func @transform_1(%arg0: i32) -> (i32, i32) {
    %c0_i32 = arith.constant 0 : i32
    %c0_i32_0 = arith.constant 0 : i32
    %c0_i32_1 = arith.constant 0 : i32
    return %c0_i32, %c0_i32_0 : i32, i32
  }
  func.func @transform_2(%arg0: i32) -> (i32, i32, i32, i32) {
    %c0_i32 = arith.constant 0 : i32
    %c0_i32_0 = arith.constant 0 : i32
    %c0_i32_1 = arith.constant 0 : i32
    %c0_i32_2 = arith.constant 0 : i32
    %c0_i32_3 = arith.constant 0 : i32
    return %c0_i32, %c0_i32_0, %c0_i32_1, %c0_i32_2 : i32, i32, i32, i32
  }
  func.func @transform_3(%arg0: i32) -> (i32, i32, i32, i32) {
    %c0_i32 = arith.constant 0 : i32
    %c0_i32_0 = arith.constant 0 : i32
    %c0_i32_1 = arith.constant 0 : i32
    %c0_i32_2 = arith.constant 0 : i32
    %c0_i32_3 = arith.constant 0 : i32
    return %c0_i32, %c0_i32_0, %c0_i32_1, %c0_i32_2 : i32, i32, i32, i32
  }
  func.func @transform_4(%arg0: i32) -> (i32, i32, i32, i32) {
    %c0_i32 = arith.constant 0 : i32
    %c0_i32_0 = arith.constant 0 : i32
    %c0_i32_1 = arith.constant 0 : i32
    %c0_i32_2 = arith.constant 0 : i32
    %c0_i32_3 = arith.constant 0 : i32
    return %c0_i32, %c0_i32_0, %c0_i32_1, %c0_i32_2 : i32, i32, i32, i32
  }
  func.func @transform_5(%arg0: i32) -> (i32, i32, i32, i32) {
    %c0_i32 = arith.constant 0 : i32
    %c0_i32_0 = arith.constant 0 : i32
    %c0_i32_1 = arith.constant 0 : i32
    %c0_i32_2 = arith.constant 0 : i32
    %c0_i32_3 = arith.constant 0 : i32
    return %c0_i32, %c0_i32_0, %c0_i32_1, %c0_i32_2 : i32, i32, i32, i32
  }
  func.func @transform_6(%arg0: i32) -> (i32, i32, i32, i32) {
    %c0_i32 = arith.constant 0 : i32
    %c0_i32_0 = arith.constant 0 : i32
    %c0_i32_1 = arith.constant 0 : i32
    %c0_i32_2 = arith.constant 0 : i32
    %c0_i32_3 = arith.constant 0 : i32
    return %c0_i32, %c0_i32_0, %c0_i32_1, %c0_i32_2 : i32, i32, i32, i32
  }
  func.func @transform_7(%arg0: i32) -> (i32, i32, i32, i32) {
    %c0_i32 = arith.constant 0 : i32
    %c0_i32_0 = arith.constant 0 : i32
    %c0_i32_1 = arith.constant 0 : i32
    %c0_i32_2 = arith.constant 0 : i32
    %c0_i32_3 = arith.constant 0 : i32
    return %c0_i32, %c0_i32_0, %c0_i32_1, %c0_i32_2 : i32, i32, i32, i32
  }
  func.func @transform_8(%arg0: i32) -> (i32, i32, i32, i32) {
    %c0_i32 = arith.constant 0 : i32
    %c0_i32_0 = arith.constant 0 : i32
    %c0_i32_1 = arith.constant 0 : i32
    %c0_i32_2 = arith.constant 0 : i32
    %c0_i32_3 = arith.constant 0 : i32
    return %c0_i32, %c0_i32_0, %c0_i32_1, %c0_i32_2 : i32, i32, i32, i32
  }
  func.func @transform_9(%arg0: i32) -> (i32, i32, i32) {
    %c0_i32 = arith.constant 0 : i32
    %c0_i32_0 = arith.constant 0 : i32
    %c0_i32_1 = arith.constant 0 : i32
    %c0_i32_2 = arith.constant 0 : i32
    return %c0_i32, %c0_i32_0, %c0_i32_1 : i32, i32, i32
  }
  func.func @transform_10(%arg0: i32) -> (i32, i32, i32) {
    %c0_i32 = arith.constant 0 : i32
    %c0_i32_0 = arith.constant 0 : i32
    %c0_i32_1 = arith.constant 0 : i32
    %c0_i32_2 = arith.constant 0 : i32
    return %c0_i32, %c0_i32_0, %c0_i32_1 : i32, i32, i32
  }
  func.func @transform_11(%arg0: i32) -> (i32, i32, i32) {
    %c0_i32 = arith.constant 0 : i32
    %c0_i32_0 = arith.constant 0 : i32
    %c0_i32_1 = arith.constant 0 : i32
    %c0_i32_2 = arith.constant 0 : i32
    return %c0_i32, %c0_i32_0, %c0_i32_1 : i32, i32, i32
  }
  func.func @transform_12(%arg0: i32) -> (i32, i32, i32) {
    %c0_i32 = arith.constant 0 : i32
    %c0_i32_0 = arith.constant 0 : i32
    %c0_i32_1 = arith.constant 0 : i32
    %c0_i32_2 = arith.constant 0 : i32
    return %c0_i32, %c0_i32_0, %c0_i32_1 : i32, i32, i32
  }
  func.func @transform_13(%arg0: i32) -> (i32, i32, i32) {
    %c0_i32 = arith.constant 0 : i32
    %c0_i32_0 = arith.constant 0 : i32
    %c0_i32_1 = arith.constant 0 : i32
    %c0_i32_2 = arith.constant 0 : i32
    return %c0_i32, %c0_i32_0, %c0_i32_1 : i32, i32, i32
  }
  func.func @transform_14(%arg0: i32) -> (i32, i32, i32) {
    %c0_i32 = arith.constant 0 : i32
    %c0_i32_0 = arith.constant 0 : i32
    %c0_i32_1 = arith.constant 0 : i32
    %c0_i32_2 = arith.constant 0 : i32
    return %c0_i32, %c0_i32_0, %c0_i32_1 : i32, i32, i32
  }
  func.func @transform_15(%arg0: i32) -> (i32, i32, i32) {
    %c0_i32 = arith.constant 0 : i32
    %c0_i32_0 = arith.constant 0 : i32
    %c0_i32_1 = arith.constant 0 : i32
    %c0_i32_2 = arith.constant 0 : i32
    return %c0_i32, %c0_i32_0, %c0_i32_1 : i32, i32, i32
  }
  func.func @transform_16(%arg0: i32) -> (i32, i32, i32) {
    %c0_i32 = arith.constant 0 : i32
    %c0_i32_0 = arith.constant 0 : i32
    %c0_i32_1 = arith.constant 0 : i32
    %c0_i32_2 = arith.constant 0 : i32
    return %c0_i32, %c0_i32_0, %c0_i32_1 : i32, i32, i32
  }
  func.func @transform_17(%arg0: i32) -> (i32, i32, i32) {
    %c0_i32 = arith.constant 0 : i32
    %c0_i32_0 = arith.constant 0 : i32
    %c0_i32_1 = arith.constant 0 : i32
    %c0_i32_2 = arith.constant 0 : i32
    return %c0_i32, %c0_i32_0, %c0_i32_1 : i32, i32, i32
  }
  func.func @transform_18(%arg0: i32) -> (i32, i32) {
    %c0_i32 = arith.constant 0 : i32
    %c0_i32_0 = arith.constant 0 : i32
    %c0_i32_1 = arith.constant 0 : i32
    return %c0_i32, %c0_i32_0 : i32, i32
  }
  func.func @transform_19(%arg0: i32) -> (i32, i32) {
    %c0_i32 = arith.constant 0 : i32
    %c0_i32_0 = arith.constant 0 : i32
    %c0_i32_1 = arith.constant 0 : i32
    return %c0_i32, %c0_i32_0 : i32, i32
  }
  func.func @transform_20(%arg0: i32) -> (i32, i32) {
    %c0_i32 = arith.constant 0 : i32
    %c0_i32_0 = arith.constant 0 : i32
    return %arg0, %c0_i32 : i32, i32
  }
}

</mosaic_0001>

<llo_original>
// kernel: tpu_custom_call.1
$region0: #{tpu_custom_call.1}
  #allocation0 [shape = 'u32[]', space=smem, size = 0x4, offset = 0x4, fixed_abs, tag = 'smem constant byte address 0x4 - core index']
  #allocation1 [shape = 'u32[144,128]{1,0:T(1,128)}', space=vmem, size = 0x12000, scoped, tag = 'internal scratch']
  #allocation2 [shape = 'f32[1,1]{1,0:T(1,128)S(1)}', space=vmem, size = 0x200, scoped, tag = 'scoped memory for tpu_custom_call.1']
  %s0 = inlined_call_operand.vmem [shape: f32[2,8,4], index: 0, kind: input, shape index: {}]
  %s1 = inlined_call_operand.vmem [shape: f32[4,9], index: 1, kind: input, shape index: {}]
  %s2 = inlined_call_operand.vmem [shape: f32[3,3,9,3], index: 2, kind: input, shape index: {}]
  %s3 = inlined_call_operand.vmem [shape: f32[3,3,1,3], index: 3, kind: input, shape index: {}]
  %s4 = inlined_call_operand.vmem [shape: f32[3,3,9,3], index: 4, kind: input, shape index: {}]
  %s5 = inlined_call_operand.vmem [shape: f32[3,3,1,3], index: 5, kind: input, shape index: {}]
  %s6 = inlined_call_operand.vmem [shape: f32[3,3,9,3], index: 6, kind: input, shape index: {}]
  %s7 = inlined_call_operand.vmem [shape: f32[3,3,1,3], index: 7, kind: input, shape index: {}]
  %s8 = inlined_call_operand.vmem [shape: f32[3,3,3,9], index: 8, kind: input, shape index: {}]
  %s9 = inlined_call_operand.vmem [shape: f32[3,1,9], index: 9, kind: input, shape index: {}]
  %s10 = inlined_call_operand.vmem [shape: f32[3,1,9], index: 10, kind: input, shape index: {}]
  %s11 = inlined_call_operand.vmem [shape: f32[3,1,9], index: 11, kind: input, shape index: {}]
  %s12 = inlined_call_operand.vmem [shape: bf16[3,9,2048], index: 12, kind: input, shape index: {}]
  %s13 = inlined_call_operand.vmem [shape: f32[3,1,2048], index: 13, kind: input, shape index: {}]
  %s14 = inlined_call_operand.vmem [shape: bf16[3,2048,9], index: 14, kind: input, shape index: {}]
  %s15 = inlined_call_operand.vmem [shape: f32[3,1,9], index: 15, kind: input, shape index: {}]
  %s16 = inlined_call_operand.vmem [shape: f32[3,1,9], index: 16, kind: input, shape index: {}]
  %s17 = inlined_call_operand.vmem [shape: f32[3,1,9], index: 17, kind: input, shape index: {}]
  %s18 = inlined_call_operand.vmem [shape: f32[1,9], index: 18, kind: input, shape index: {}]
  %s19 = inlined_call_operand.<no memory space> [shape: f32[1,1], index: 19, kind: input, shape index: {}]
  %s20 = inlined_call_operand.vmem [shape: f32[2,1], index: 20, kind: output, shape index: {}]
  %s21 = sld [smem:[#allocation0]]
  $region90: #{tpu_custom_call.1} parent=0
    _
  %s23 = ssub.s32 1, %s21
  %s24 = scalar_select 0, %s23, %s21
  %v25 = vstv %s19
  %26 = vst [vmem:[#allocation2] sm:$0x1] %v25
  // Predicated region
  $region2: #{tpu_custom_call.1} parent=0 // pred_check
    _
  $region3: #{tpu_custom_call.1} parent=0 // pred_check_branch
    %28 = sbr.rel (0) target = $region5
  $region4: #{tpu_custom_call.1} parent=0 // pred_region
    _
  $region5: #{tpu_custom_call.1} parent=0 // pred_fallthru
    _
  // Predicated region
  $region6: #{tpu_custom_call.1} parent=0 // pred_check
    _
  $region7: #{tpu_custom_call.1} parent=0 // pred_check_branch
    %30 = sbr.rel (0) target = $region9
  $region8: #{tpu_custom_call.1} parent=0 // pred_region
    _
  $region9: #{tpu_custom_call.1} parent=0 // pred_fallthru
    _
  // Predicated region
  $region10: #{tpu_custom_call.1} parent=0 // pred_check
    _
  $region11: #{tpu_custom_call.1} parent=0 // pred_check_branch
    %32 = sbr.rel (0) target = $region13
  $region12: #{tpu_custom_call.1} parent=0 // pred_region
    _
  $region13: #{tpu_custom_call.1} parent=0 // pred_fallthru
    _
  // Predicated region
  $region14: #{tpu_custom_call.1} parent=0 // pred_check
    _
  $region15: #{tpu_custom_call.1} parent=0 // pred_check_branch
    %34 = sbr.rel (0) target = $region17
  $region16: #{tpu_custom_call.1} parent=0 // pred_region
    _
  $region17: #{tpu_custom_call.1} parent=0 // pred_fallthru
    _
  // Predicated region
  $region18: #{tpu_custom_call.1} parent=0 // pred_check
    _
  $region19: #{tpu_custom_call.1} parent=0 // pred_check_branch
    %36 = sbr.rel (0) target = $region21
  $region20: #{tpu_custom_call.1} parent=0 // pred_region
    _
  $region21: #{tpu_custom_call.1} parent=0 // pred_fallthru
    _
  // Predicated region
  $region22: #{tpu_custom_call.1} parent=0 // pred_check
    _
  $region23: #{tpu_custom_call.1} parent=0 // pred_check_branch
    %38 = sbr.rel (0) target = $region25
  $region24: #{tpu_custom_call.1} parent=0 // pred_region
    _
  $region25: #{tpu_custom_call.1} parent=0 // pred_fallthru
    _
  // Predicated region
  $region26: #{tpu_custom_call.1} parent=0 // pred_check
    _
  $region27: #{tpu_custom_call.1} parent=0 // pred_check_branch
    %40 = sbr.rel (0) target = $region29
  $region28: #{tpu_custom_call.1} parent=0 // pred_region
    _
  $region29: #{tpu_custom_call.1} parent=0 // pred_fallthru
    _
  // Predicated region
  $region30: #{tpu_custom_call.1} parent=0 // pred_check
    _
  $region31: #{tpu_custom_call.1} parent=0 // pred_check_branch
    %42 = sbr.rel (0) target = $region33
  $region32: #{tpu_custom_call.1} parent=0 // pred_region
    _
  $region33: #{tpu_custom_call.1} parent=0 // pred_fallthru
    _
  // Predicated region
  $region34: #{tpu_custom_call.1} parent=0 // pred_check
    _
  $region35: #{tpu_custom_call.1} parent=0 // pred_check_branch
    %44 = sbr.rel (0) target = $region37
  $region36: #{tpu_custom_call.1} parent=0 // pred_region
    _
  $region37: #{tpu_custom_call.1} parent=0 // pred_fallthru
    _
  // Predicated region
  $region38: #{tpu_custom_call.1} parent=0 // pred_check
    _
  $region39: #{tpu_custom_call.1} parent=0 // pred_check_branch
    %46 = sbr.rel (0) target = $region41
  $region40: #{tpu_custom_call.1} parent=0 // pred_region
    _
  $region41: #{tpu_custom_call.1} parent=0 // pred_fallthru
    _
  // Predicated region
  $region42: #{tpu_custom_call.1} parent=0 // pred_check
    _
  $region43: #{tpu_custom_call.1} parent=0 // pred_check_branch
    %48 = sbr.rel (0) target = $region45
  $region44: #{tpu_custom_call.1} parent=0 // pred_region
    _
  $region45: #{tpu_custom_call.1} parent=0 // pred_fallthru
    _
  // Predicated region
  $region46: #{tpu_custom_call.1} parent=0 // pred_check
    _
  $region47: #{tpu_custom_call.1} parent=0 // pred_check_branch
    %50 = sbr.rel (0) target = $region49
  $region48: #{tpu_custom_call.1} parent=0 // pred_region
    _
  $region49: #{tpu_custom_call.1} parent=0 // pred_fallthru
    _
  // Predicated region
  $region50: #{tpu_custom_call.1} parent=0 // pred_check
    _
  $region51: #{tpu_custom_call.1} parent=0 // pred_check_branch
    %52 = sbr.rel (0) target = $region53
  $region52: #{tpu_custom_call.1} parent=0 // pred_region
    _
  $region53: #{tpu_custom_call.1} parent=0 // pred_fallthru
    _
  // Predicated region
  $region54: #{tpu_custom_call.1} parent=0 // pred_check
    _
  $region55: #{tpu_custom_call.1} parent=0 // pred_check_branch
    %54 = sbr.rel (0) target = $region57
  $region56: #{tpu_custom_call.1} parent=0 // pred_region
    _
  $region57: #{tpu_custom_call.1} parent=0 // pred_fallthru
    _
  // Predicated region
  $region58: #{tpu_custom_call.1} parent=0 // pred_check
    _
  $region59: #{tpu_custom_call.1} parent=0 // pred_check_branch
    %56 = sbr.rel (0) target = $region61
  $region60: #{tpu_custom_call.1} parent=0 // pred_region
    _
  $region61: #{tpu_custom_call.1} parent=0 // pred_fallthru
    _
  // Predicated region
  $region62: #{tpu_custom_call.1} parent=0 // pred_check
    _
  $region63: #{tpu_custom_call.1} parent=0 // pred_check_branch
    %58 = sbr.rel (0) target = $region65
  $region64: #{tpu_custom_call.1} parent=0 // pred_region
    _
  $region65: #{tpu_custom_call.1} parent=0 // pred_fallthru
    _
  // Predicated region
  $region66: #{tpu_custom_call.1} parent=0 // pred_check
    _
  $region67: #{tpu_custom_call.1} parent=0 // pred_check_branch
    %60 = sbr.rel (0) target = $region69
  $region68: #{tpu_custom_call.1} parent=0 // pred_region
    _
  $region69: #{tpu_custom_call.1} parent=0 // pred_fallthru
    _
  // Predicated region
  $region70: #{tpu_custom_call.1} parent=0 // pred_check
    _
  $region71: #{tpu_custom_call.1} parent=0 // pred_check_branch
    %62 = sbr.rel (0) target = $region73
  $region72: #{tpu_custom_call.1} parent=0 // pred_region
    _
  $region73: #{tpu_custom_call.1} parent=0 // pred_fallthru
    _
  // Predicated region
  $region74: #{tpu_custom_call.1} parent=0 // pred_check
    _
  $region75: #{tpu_custom_call.1} parent=0 // pred_check_branch
    %64 = sbr.rel (0) target = $region77
  $region76: #{tpu_custom_call.1} parent=0 // pred_region
    _
  $region77: #{tpu_custom_call.1} parent=0 // pred_fallthru
    _
  // Predicated region
  $region78: #{tpu_custom_call.1} parent=0 // pred_check
    _
  $region79: #{tpu_custom_call.1} parent=0 // pred_check_branch
    %66 = sbr.rel (0) target = $region81
  $region80: #{tpu_custom_call.1} parent=0 // pred_region
    _
  $region81: #{tpu_custom_call.1} parent=0 // pred_fallthru
    _
  %v68 = vld [vmem:[%s0] sm:$0xff]
  %v69 = vld [vmem:[%s0 + $0x8] sm:$0xff]
  %v70 = vld [vmem:[%s1] sm:$0xf]
  %vm71 = vcmask 31744
  %v73 = vsel %vm71, %v68, 0
  %v76 = vsel %vm71, %v69, 0
  %vm78 = vcmask 1043456
  %v80 = vsel %vm78, %v70, 0
  %82 = vmatprep.subr.mxu0 0.0
  %83 = vmatpush1.msra.mxu0 0.0
  %84 = vmatprep.subr.mxu0 0.0
  %85 = vmatpush1.msra.mxu0 0.0
  %86 = vmatprep.subr.mxu0 0.0
  %87 = vmatpush1.msra.mxu0 0.0
  %88 = vmatprep.subr.mxu0 0.0
  %89 = vmatpush1.msra.mxu0 0.0
  %90 = vmatprep.subr.mxu0 0.0
  %91 = vmatpush1.msra.mxu0 0.0
  %92 = vmatprep.subr.mxu0 0.0
  %93 = vmatpush1.msra.mxu0 0.0
  %94 = vmatprep.subr.mxu0 0.0
  %95 = vmatpush1.msra.mxu0 0.0
  %96 = vmatprep.subr.mxu0 0.0
  %97 = vmatpush1.msra.mxu0 0.0
  %98 = vmatprep.subr.mxu0 0.0
  %99 = vmatpush1.msra.mxu0 0.0
  %100 = vmatprep.subr.mxu0 0.0
  %101 = vmatpush1.msra.mxu0 0.0
  %102 = vmatprep.subr.mxu0 0.0
  %103 = vmatpush1.msra.mxu0 0.0
  %104 = vmatprep.subr.mxu0 0.0
  %105 = vmatpush1.msra.mxu0 0.0
  %106 = vmatprep.subr.mxu0 0.0
  %107 = vmatpush1.msra.mxu0 0.0
  %108 = vmatprep.subr.mxu0 0.0
  %109 = vmatpush1.msra.mxu0 0.0
  %110 = vmatprep.subr.mxu0 0.0
  %111 = vmatpush1.msra.mxu0 0.0
  %112 = vmatprep.subr.mxu0 0.0
  %113 = vmatpush1.msra.mxu0 %v80
  %114 = vmatprep.subr.mxu0 0.0
  %115 = vmatpush2.msra.mxu0 0.0
  %116 = vmatprep.subr.mxu0 0.0
  %117 = vmatpush2.msra.mxu0 0.0
  %118 = vmatprep.subr.mxu0 0.0
  %119 = vmatpush2.msra.mxu0 0.0
  %120 = vmatprep.subr.mxu0 0.0
  %121 = vmatpush2.msra.mxu0 0.0
  %122 = vmatprep.subr.mxu0 0.0
  %123 = vmatpush2.msra.mxu0 0.0
  %124 = vmatprep.subr.mxu0 0.0
  %125 = vmatpush2.msra.mxu0 0.0
  %126 = vmatprep.subr.mxu0 0.0
  %127 = vmatpush2.msra.mxu0 0.0
  %128 = vmatprep.subr.mxu0 0.0
  %129 = vmatpush2.msra.mxu0 0.0
  %130 = vmatprep.subr.mxu0 0.0
  %131 = vmatpush2.msra.mxu0 0.0
  %132 = vmatprep.subr.mxu0 0.0
  %133 = vmatpush2.msra.mxu0 0.0
  %134 = vmatprep.subr.mxu0 0.0
  %135 = vmatpush2.msra.mxu0 0.0
  %136 = vmatprep.subr.mxu0 0.0
  %137 = vmatpush2.msra.mxu0 0.0
  %138 = vmatprep.subr.mxu0 0.0
  %139 = vmatpush2.msra.mxu0 0.0
  %140 = vmatprep.subr.mxu0 0.0
  %141 = vmatpush2.msra.mxu0 0.0
  %142 = vmatprep.subr.mxu0 0.0
  %143 = vmatpush2.msra.mxu0 0.0
  %144 = vmatprep.subr.mxu0 0.0
  %145 = vmatpush2.msra.mxu0 0.0
  %146 = vmatprep.mubr.f32.mxu0 0.0
  %147 = vmatmul.mubr.f32.gmra.mxu0 %v73
  %v148 = vpop.f32.mrf.mxu0
  %v149 = vadd.f32 0.0, %v148
  %v150 = vpop.f32.mrf.mxu0
  %151 = vmatprep.mubr.f32.mxu0 0.0
  %152 = vmatmul.mubr.f32.gmra.mxu0 %v76
  %v153 = vpop.f32.mrf.mxu0
  %v154 = vadd.f32 0.0, %v153
  %v155 = vpop.f32.mrf.mxu0
  %156 = vdwg.mxu0
  %v157 = vld [vmem:[%s9] sm:$0x1]
  %v158 = vld [vmem:[%s2] sm:$0xff]
  %v159 = vld [vmem:[%s2 + $0x8] sm:$0x1]
  %v160 = vld [vmem:[%s3] sm:$0x1]
  %v162 = vlaneseq
  %v163 = vshrl.u32 %v162, 7
  %v164 = vsub.s32 0, %v163
  %v165 = vrot.slane %v160, %v164
  %vm167 = vcmask 72704
  %v169 = vsel %vm167, %v149, 0
  %v172 = vsel %vm167, %v154, 0
  %vm174 = vcmask 1040384
  %v176 = vsel %vm174, %v159, 0
  %178 = vmatprep.subr.mxu0 0.0
  %179 = vmatpush1.msra.mxu0 0.0
  %180 = vmatprep.subr.mxu0 0.0
  %181 = vmatpush1.msra.mxu0 0.0
  %182 = vmatprep.subr.mxu0 0.0
  %183 = vmatpush1.msra.mxu0 0.0
  %184 = vmatprep.subr.mxu0 0.0
  %185 = vmatpush1.msra.mxu0 0.0
  %186 = vmatprep.subr.mxu0 0.0
  %187 = vmatpush1.msra.mxu0 0.0
  %188 = vmatprep.subr.mxu0 0.0
  %189 = vmatpush1.msra.mxu0 0.0
  %190 = vmatprep.subr.mxu0 0.0
  %191 = vmatpush1.msra.mxu0 0.0
  %192 = vmatprep.subr.mxu0 0.0
  %193 = vmatpush1.msra.mxu0 0.0
  %194 = vmatprep.subr.mxu0 0.0
  %195 = vmatpush1.msra.mxu0 0.0
  %196 = vmatprep.subr.mxu0 0.0
  %197 = vmatpush1.msra.mxu0 0.0
  %198 = vmatprep.subr.mxu0 0.0
  %199 = vmatpush1.msra.mxu0 0.0
  %200 = vmatprep.subr.mxu0 0.0
  %201 = vmatpush1.msra.mxu0 0.0
  %202 = vmatprep.subr.mxu0 0.0
  %203 = vmatpush1.msra.mxu0 0.0
  %204 = vmatprep.subr.mxu0 0.0
  %205 = vmatpush1.msra.mxu0 0.0
  %206 = vmatprep.subr.mxu0 0.0
  %207 = vmatpush1.msra.mxu0 %v176
  %208 = vmatprep.subr.mxu0 0.0
  %209 = vmatpush1.msra.mxu0 %v158
  %210 = vmatprep.subr.mxu0 0.0
  %211 = vmatpush2.msra.mxu0 0.0
  %212 = vmatprep.subr.mxu0 0.0
  %213 = vmatpush2.msra.mxu0 0.0
  %214 = vmatprep.subr.mxu0 0.0
  %215 = vmatpush2.msra.mxu0 0.0
  %216 = vmatprep.subr.mxu0 0.0
  %217 = vmatpush2.msra.mxu0 0.0
  %218 = vmatprep.subr.mxu0 0.0
  %219 = vmatpush2.msra.mxu0 0.0
  %220 = vmatprep.subr.mxu0 0.0
  %221 = vmatpush2.msra.mxu0 0.0
  %222 = vmatprep.subr.mxu0 0.0
  %223 = vmatpush2.msra.mxu0 0.0
  %224 = vmatprep.subr.mxu0 0.0
  %225 = vmatpush2.msra.mxu0 0.0
  %226 = vmatprep.subr.mxu0 0.0
  %227 = vmatpush2.msra.mxu0 0.0
  %228 = vmatprep.subr.mxu0 0.0
  %229 = vmatpush2.msra.mxu0 0.0
  %230 = vmatprep.subr.mxu0 0.0
  %231 = vmatpush2.msra.mxu0 0.0
  %232 = vmatprep.subr.mxu0 0.0
  %233 = vmatpush2.msra.mxu0 0.0
  %234 = vmatprep.subr.mxu0 0.0
  %235 = vmatpush2.msra.mxu0 0.0
  %236 = vmatprep.subr.mxu0 0.0
  %237 = vmatpush2.msra.mxu0 0.0
  %238 = vmatprep.subr.mxu0 0.0
  %239 = vmatpush2.msra.mxu0 0.0
  %240 = vmatprep.subr.mxu0 0.0
  %241 = vmatpush2.msra.mxu0 0.0
  %242 = vmatprep.mubr.f32.mxu0 0.0
  %243 = vmatmul.mubr.f32.gmra.mxu0 %v169
  %v244 = vpop.f32.mrf.mxu0
  %v245 = vadd.f32 %v165, %v244
  %v246 = vpop.f32.mrf.mxu0
  %247 = vmatprep.mubr.f32.mxu0 0.0
  %248 = vmatmul.mubr.f32.gmra.mxu0 %v172
  %v249 = vpop.f32.mrf.mxu0
  %v250 = vadd.f32 %v165, %v249
  %v251 = vpop.f32.mrf.mxu0
  %252 = vdwg.mxu0
  %v253 = vld [vmem:[%s4] sm:$0xff]
  %v254 = vld [vmem:[%s4 + $0x8] sm:$0x1]
  %v255 = vld [vmem:[%s5] sm:$0x1]
  %v257 = vlaneseq
  %v258 = vshrl.u32 %v257, 7
  %v259 = vsub.s32 0, %v258
  %v260 = vrot.slane %v255, %v259
  %v263 = vsel %vm174, %v254, 0
  %265 = vmatprep.subr.mxu0 0.0
  %266 = vmatpush1.msra.mxu0 0.0
  %267 = vmatprep.subr.mxu0 0.0
  %268 = vmatpush1.msra.mxu0 0.0
  %269 = vmatprep.subr.mxu0 0.0
  %270 = vmatpush1.msra.mxu0 0.0
  %271 = vmatprep.subr.mxu0 0.0
  %272 = vmatpush1.msra.mxu0 0.0
  %273 = vmatprep.subr.mxu0 0.0
  %274 = vmatpush1.msra.mxu0 0.0
  %275 = vmatprep.subr.mxu0 0.0
  %276 = vmatpush1.msra.mxu0 0.0
  %277 = vmatprep.subr.mxu0 0.0
  %278 = vmatpush1.msra.mxu0 0.0
  %279 = vmatprep.subr.mxu0 0.0
  %280 = vmatpush1.msra.mxu0 0.0
  %281 = vmatprep.subr.mxu0 0.0
  %282 = vmatpush1.msra.mxu0 0.0
  %283 = vmatprep.subr.mxu0 0.0
  %284 = vmatpush1.msra.mxu0 0.0
  %285 = vmatprep.subr.mxu0 0.0
  %286 = vmatpush1.msra.mxu0 0.0
  %287 = vmatprep.subr.mxu0 0.0
  %288 = vmatpush1.msra.mxu0 0.0
  %289 = vmatprep.subr.mxu0 0.0
  %290 = vmatpush1.msra.mxu0 0.0
  %291 = vmatprep.subr.mxu0 0.0
  %292 = vmatpush1.msra.mxu0 0.0
  %293 = vmatprep.subr.mxu0 0.0
  %294 = vmatpush1.msra.mxu0 %v263
  %295 = vmatprep.subr.mxu0 0.0
  %296 = vmatpush1.msra.mxu0 %v253
  %297 = vmatprep.subr.mxu0 0.0
  %298 = vmatpush2.msra.mxu0 0.0
  %299 = vmatprep.subr.mxu0 0.0
  %300 = vmatpush2.msra.mxu0 0.0
  %301 = vmatprep.subr.mxu0 0.0
  %302 = vmatpush2.msra.mxu0 0.0
  %303 = vmatprep.subr.mxu0 0.0
  %304 = vmatpush2.msra.mxu0 0.0
  %305 = vmatprep.subr.mxu0 0.0
  %306 = vmatpush2.msra.mxu0 0.0
  %307 = vmatprep.subr.mxu0 0.0
  %308 = vmatpush2.msra.mxu0 0.0
  %309 = vmatprep.subr.mxu0 0.0
  %310 = vmatpush2.msra.mxu0 0.0
  %311 = vmatprep.subr.mxu0 0.0
  %312 = vmatpush2.msra.mxu0 0.0
  %313 = vmatprep.subr.mxu0 0.0
  %314 = vmatpush2.msra.mxu0 0.0
  %315 = vmatprep.subr.mxu0 0.0
  %316 = vmatpush2.msra.mxu0 0.0
  %317 = vmatprep.subr.mxu0 0.0
  %318 = vmatpush2.msra.mxu0 0.0
  %319 = vmatprep.subr.mxu0 0.0
  %320 = vmatpush2.msra.mxu0 0.0
  %321 = vmatprep.subr.mxu0 0.0
  %322 = vmatpush2.msra.mxu0 0.0
  %323 = vmatprep.subr.mxu0 0.0
  %324 = vmatpush2.msra.mxu0 0.0
  %325 = vmatprep.subr.mxu0 0.0
  %326 = vmatpush2.msra.mxu0 0.0
  %327 = vmatprep.subr.mxu0 0.0
  %328 = vmatpush2.msra.mxu0 0.0
  %329 = vmatprep.mubr.f32.mxu0 0.0
  %330 = vmatmul.mubr.f32.gmra.mxu0 %v169
  %v331 = vpop.f32.mrf.mxu0
  %v332 = vadd.f32 %v260, %v331
  %v333 = vpop.f32.mrf.mxu0
  %334 = vmatprep.mubr.f32.mxu0 0.0
  %335 = vmatmul.mubr.f32.gmra.mxu0 %v172
  %v336 = vpop.f32.mrf.mxu0
  %v337 = vadd.f32 %v260, %v336
  %v338 = vpop.f32.mrf.mxu0
  %339 = vdwg.mxu0
  %v340 = vld [vmem:[%s6] sm:$0xff]
  %v341 = vld [vmem:[%s6 + $0x8] sm:$0x1]
  %v342 = vld [vmem:[%s7] sm:$0x1]
  %v344 = vlaneseq
  %v345 = vshrl.u32 %v344, 7
  %v346 = vsub.s32 0, %v345
  %v347 = vrot.slane %v342, %v346
  %v350 = vsel %vm174, %v341, 0
  %352 = vmatprep.subr.mxu0 0.0
  %353 = vmatpush1.msra.mxu0 0.0
  %354 = vmatprep.subr.mxu0 0.0
  %355 = vmatpush1.msra.mxu0 0.0
  %356 = vmatprep.subr.mxu0 0.0
  %357 = vmatpush1.msra.mxu0 0.0
  %358 = vmatprep.subr.mxu0 0.0
  %359 = vmatpush1.msra.mxu0 0.0
  %360 = vmatprep.subr.mxu0 0.0
  %361 = vmatpush1.msra.mxu0 0.0
  %362 = vmatprep.subr.mxu0 0.0
  %363 = vmatpush1.msra.mxu0 0.0
  %364 = vmatprep.subr.mxu0 0.0
  %365 = vmatpush1.msra.mxu0 0.0
  %366 = vmatprep.subr.mxu0 0.0
  %367 = vmatpush1.msra.mxu0 0.0
  %368 = vmatprep.subr.mxu0 0.0
  %369 = vmatpush1.msra.mxu0 0.0
  %370 = vmatprep.subr.mxu0 0.0
  %371 = vmatpush1.msra.mxu0 0.0
  %372 = vmatprep.subr.mxu0 0.0
  %373 = vmatpush1.msra.mxu0 0.0
  %374 = vmatprep.subr.mxu0 0.0
  %375 = vmatpush1.msra.mxu0 0.0
  %376 = vmatprep.subr.mxu0 0.0
  %377 = vmatpush1.msra.mxu0 0.0
  %378 = vmatprep.subr.mxu0 0.0
  %379 = vmatpush1.msra.mxu0 0.0
  %380 = vmatprep.subr.mxu0 0.0
  %381 = vmatpush1.msra.mxu0 %v350
  %382 = vmatprep.subr.mxu0 0.0
  %383 = vmatpush1.msra.mxu0 %v340
  %384 = vmatprep.subr.mxu0 0.0
  %385 = vmatpush2.msra.mxu0 0.0
  %386 = vmatprep.subr.mxu0 0.0
  %387 = vmatpush2.msra.mxu0 0.0
  %388 = vmatprep.subr.mxu0 0.0
  %389 = vmatpush2.msra.mxu0 0.0
  %390 = vmatprep.subr.mxu0 0.0
  %391 = vmatpush2.msra.mxu0 0.0
  %392 = vmatprep.subr.mxu0 0.0
  %393 = vmatpush2.msra.mxu0 0.0
  %394 = vmatprep.subr.mxu0 0.0
  %395 = vmatpush2.msra.mxu0 0.0
  %396 = vmatprep.subr.mxu0 0.0
  %397 = vmatpush2.msra.mxu0 0.0
  %398 = vmatprep.subr.mxu0 0.0
  %399 = vmatpush2.msra.mxu0 0.0
  %400 = vmatprep.subr.mxu0 0.0
  %401 = vmatpush2.msra.mxu0 0.0
  %402 = vmatprep.subr.mxu0 0.0
  %403 = vmatpush2.msra.mxu0 0.0
  %404 = vmatprep.subr.mxu0 0.0
  %405 = vmatpush2.msra.mxu0 0.0
  %406 = vmatprep.subr.mxu0 0.0
  %407 = vmatpush2.msra.mxu0 0.0
  %408 = vmatprep.subr.mxu0 0.0
  %409 = vmatpush2.msra.mxu0 0.0
  %410 = vmatprep.subr.mxu0 0.0
  %411 = vmatpush2.msra.mxu0 0.0
  %412 = vmatprep.subr.mxu0 0.0
  %413 = vmatpush2.msra.mxu0 0.0
  %414 = vmatprep.subr.mxu0 0.0
  %415 = vmatpush2.msra.mxu0 0.0
  %416 = vmatprep.mubr.f32.mxu0 0.0
  %417 = vmatmul.mubr.f32.gmra.mxu0 %v169
  %v418 = vpop.f32.mrf.mxu0
  %v419 = vadd.f32 %v347, %v418
  %v420 = vpop.f32.mrf.mxu0
  %421 = vmatprep.mubr.f32.mxu0 0.0
  %422 = vmatmul.mubr.f32.gmra.mxu0 %v172
  %v423 = vpop.f32.mrf.mxu0
  %v424 = vadd.f32 %v347, %v423
  %v425 = vpop.f32.mrf.mxu0
  %426 = vdwg.mxu0
  %vm427 = vcmask 23552
  %v429 = vsel %vm427, %v245, 0
  %v432 = vsel %vm427, %v332, 0
  %434 = vmatprep.subr.mxu0 0.0
  %435 = vmatpush1.xpose.msra.mxu0 0.0
  %436 = vmatprep.subr.mxu0 0.0
  %437 = vmatpush1.xpose.msra.mxu0 0.0
  %438 = vmatprep.subr.mxu0 0.0
  %439 = vmatpush1.xpose.msra.mxu0 0.0
  %440 = vmatprep.subr.mxu0 0.0
  %441 = vmatpush1.xpose.msra.mxu0 0.0
  %442 = vmatprep.subr.mxu0 0.0
  %443 = vmatpush1.xpose.msra.mxu0 0.0
  %444 = vmatprep.subr.mxu0 0.0
  %445 = vmatpush1.xpose.msra.mxu0 0.0
  %446 = vmatprep.subr.mxu0 0.0
  %447 = vmatpush1.xpose.msra.mxu0 0.0
  %448 = vmatprep.subr.mxu0 0.0
  %449 = vmatpush1.xpose.msra.mxu0 0.0
  %450 = vmatprep.subr.mxu0 0.0
  %451 = vmatpush1.xpose.msra.mxu0 0.0
  %452 = vmatprep.subr.mxu0 0.0
  %453 = vmatpush1.xpose.msra.mxu0 0.0
  %454 = vmatprep.subr.mxu0 0.0
  %455 = vmatpush1.xpose.msra.mxu0 0.0
  %456 = vmatprep.subr.mxu0 0.0
  %457 = vmatpush1.xpose.msra.mxu0 0.0
  %458 = vmatprep.subr.mxu0 0.0
  %459 = vmatpush1.xpose.msra.mxu0 0.0
  %460 = vmatprep.subr.mxu0 0.0
  %461 = vmatpush1.xpose.msra.mxu0 0.0
  %462 = vmatprep.subr.mxu0 0.0
  %463 = vmatpush1.xpose.msra.mxu0 0.0
  %464 = vmatprep.subr.mxu0 0.0
  %465 = vmatpush1.xpose.msra.mxu0 %v432
  %466 = vmatprep.subr.mxu0 0.0
  %467 = vmatpush2.xpose.msra.mxu0 0.0
  %468 = vmatprep.subr.mxu0 0.0
  %469 = vmatpush2.xpose.msra.mxu0 0.0
  %470 = vmatprep.subr.mxu0 0.0
  %471 = vmatpush2.xpose.msra.mxu0 0.0
  %472 = vmatprep.subr.mxu0 0.0
  %473 = vmatpush2.xpose.msra.mxu0 0.0
  %474 = vmatprep.subr.mxu0 0.0
  %475 = vmatpush2.xpose.msra.mxu0 0.0
  %476 = vmatprep.subr.mxu0 0.0
  %477 = vmatpush2.xpose.msra.mxu0 0.0
  %478 = vmatprep.subr.mxu0 0.0
  %479 = vmatpush2.xpose.msra.mxu0 0.0
  %480 = vmatprep.subr.mxu0 0.0
  %481 = vmatpush2.xpose.msra.mxu0 0.0
  %482 = vmatprep.subr.mxu0 0.0
  %483 = vmatpush2.xpose.msra.mxu0 0.0
  %484 = vmatprep.subr.mxu0 0.0
  %485 = vmatpush2.xpose.msra.mxu0 0.0
  %486 = vmatprep.subr.mxu0 0.0
  %487 = vmatpush2.xpose.msra.mxu0 0.0
  %488 = vmatprep.subr.mxu0 0.0
  %489 = vmatpush2.xpose.msra.mxu0 0.0
  %490 = vmatprep.subr.mxu0 0.0
  %491 = vmatpush2.xpose.msra.mxu0 0.0
  %492 = vmatprep.subr.mxu0 0.0
  %493 = vmatpush2.xpose.msra.mxu0 0.0
  %494 = vmatprep.subr.mxu0 0.0
  %495 = vmatpush2.xpose.msra.mxu0 0.0
  %496 = vmatprep.subr.mxu0 0.0
  %497 = vmatpush2.xpose.msra.mxu0 0.0
  %498 = vmatprep.mubr.f32.mxu0 0.0
  %499 = vmatmul.mubr.f32.gmra.mxu0 %v429
  %v500 = vpop.f32.mrf.mxu0
  %v501 = vadd.f32 0.0, %v500
  %v502 = vpop.f32.mrf.mxu0
  %503 = vdwg.mxu0
  %v505 = vsel %vm427, %v250, 0
  %v508 = vsel %vm427, %v337, 0
  %510 = vmatprep.subr.mxu0 0.0
  %511 = vmatpush1.xpose.msra.mxu0 0.0
  %512 = vmatprep.subr.mxu0 0.0
  %513 = vmatpush1.xpose.msra.mxu0 0.0
  %514 = vmatprep.subr.mxu0 0.0
  %515 = vmatpush1.xpose.msra.mxu0 0.0
  %516 = vmatprep.subr.mxu0 0.0
  %517 = vmatpush1.xpose.msra.mxu0 0.0
  %518 = vmatprep.subr.mxu0 0.0
  %519 = vmatpush1.xpose.msra.mxu0 0.0
  %520 = vmatprep.subr.mxu0 0.0
  %521 = vmatpush1.xpose.msra.mxu0 0.0
  %522 = vmatprep.subr.mxu0 0.0
  %523 = vmatpush1.xpose.msra.mxu0 0.0
  %524 = vmatprep.subr.mxu0 0.0
  %525 = vmatpush1.xpose.msra.mxu0 0.0
  %526 = vmatprep.subr.mxu0 0.0
  %527 = vmatpush1.xpose.msra.mxu0 0.0
  %528 = vmatprep.subr.mxu0 0.0
  %529 = vmatpush1.xpose.msra.mxu0 0.0
  %530 = vmatprep.subr.mxu0 0.0
  %531 = vmatpush1.xpose.msra.mxu0 0.0
  %532 = vmatprep.subr.mxu0 0.0
  %533 = vmatpush1.xpose.msra.mxu0 0.0
  %534 = vmatprep.subr.mxu0 0.0
  %535 = vmatpush1.xpose.msra.mxu0 0.0
  %536 = vmatprep.subr.mxu0 0.0
  %537 = vmatpush1.xpose.msra.mxu0 0.0
  %538 = vmatprep.subr.mxu0 0.0
  %539 = vmatpush1.xpose.msra.mxu0 0.0
  %540 = vmatprep.subr.mxu0 0.0
  %541 = vmatpush1.xpose.msra.mxu0 %v508
  %542 = vmatprep.subr.mxu0 0.0
  %543 = vmatpush2.xpose.msra.mxu0 0.0
  %544 = vmatprep.subr.mxu0 0.0
  %545 = vmatpush2.xpose.msra.mxu0 0.0
  %546 = vmatprep.subr.mxu0 0.0
  %547 = vmatpush2.xpose.msra.mxu0 0.0
  %548 = vmatprep.subr.mxu0 0.0
  %549 = vmatpush2.xpose.msra.mxu0 0.0
  %550 = vmatprep.subr.mxu0 0.0
  %551 = vmatpush2.xpose.msra.mxu0 0.0
  %552 = vmatprep.subr.mxu0 0.0
  %553 = vmatpush2.xpose.msra.mxu0 0.0
  %554 = vmatprep.subr.mxu0 0.0
  %555 = vmatpush2.xpose.msra.mxu0 0.0
  %556 = vmatprep.subr.mxu0 0.0
  %557 = vmatpush2.xpose.msra.mxu0 0.0
  %558 = vmatprep.subr.mxu0 0.0
  %559 = vmatpush2.xpose.msra.mxu0 0.0
  %560 = vmatprep.subr.mxu0 0.0
  %561 = vmatpush2.xpose.msra.mxu0 0.0
  %562 = vmatprep.subr.mxu0 0.0
  %563 = vmatpush2.xpose.msra.mxu0 0.0
  %564 = vmatprep.subr.mxu0 0.0
  %565 = vmatpush2.xpose.msra.mxu0 0.0
  %566 = vmatprep.subr.mxu0 0.0
  %567 = vmatpush2.xpose.msra.mxu0 0.0
  %568 = vmatprep.subr.mxu0 0.0
  %569 = vmatpush2.xpose.msra.mxu0 0.0
  %570 = vmatprep.subr.mxu0 0.0
  %571 = vmatpush2.xpose.msra.mxu0 0.0
  %572 = vmatprep.subr.mxu0 0.0
  %573 = vmatpush2.xpose.msra.mxu0 0.0
  %574 = vmatprep.mubr.f32.mxu0 0.0
  %575 = vmatmul.mubr.f32.gmra.mxu0 %v505
  %v576 = vpop.f32.mrf.mxu0
  %v577 = vadd.f32 0.0, %v576
  %v578 = vpop.f32.mrf.mxu0
  %579 = vdwg.mxu0
  %vm580 = vcmask 64512
  %v581 = vsel %vm580, %v501, -inf
  %582 = vmax.xlane.f32.xlu0 %v581
  %v583 = vpop.xlane.xlu0 %582
  %v584 = vsel %vm580, %v577, -inf
  %585 = vmax.xlane.f32.xlu0 %v584
  %v586 = vpop.xlane.xlu0 %585
  %v587 = vsub.f32 %v501, %v583
  %v588 = vsub.f32 %v577, %v586
  %v589 = vmul.f32 %v587, 1.442695
  %v590 = vpow.pop %v589
  %v591 = vmul.f32 %v588, 1.442695
  %v592 = vpow.pop %v591
  %v593 = vsel %vm580, %v590, 0.0
  %594 = vadd.xlane.f32.xlu0 %v593
  %v595 = vpop.xlane.xlu0 %594
  %v596 = vsel %vm580, %v592, 0.0
  %597 = vadd.xlane.f32.xlu0 %v596
  %v598 = vpop.xlane.xlu0 %597
  %v599 = vrcp.pop %v595
  %v600 = vmul.f32 %v590, %v599
  %v601 = vrcp.pop %v598
  %v602 = vmul.f32 %v592, %v601
  %v604 = vsel %vm580, %v600, 0
  %606 = vmatprep.subr.mxu0 0.0
  %607 = vmatpush1.msra.mxu0 0.0
  %608 = vmatprep.subr.mxu0 0.0
  %609 = vmatpush1.msra.mxu0 0.0
  %610 = vmatprep.subr.mxu0 0.0
  %611 = vmatpush1.msra.mxu0 0.0
  %612 = vmatprep.subr.mxu0 0.0
  %613 = vmatpush1.msra.mxu0 0.0
  %614 = vmatprep.subr.mxu0 0.0
  %615 = vmatpush1.msra.mxu0 0.0
  %616 = vmatprep.subr.mxu0 0.0
  %617 = vmatpush1.msra.mxu0 0.0
  %618 = vmatprep.subr.mxu0 0.0
  %619 = vmatpush1.msra.mxu0 0.0
  %620 = vmatprep.subr.mxu0 0.0
  %621 = vmatpush1.msra.mxu0 0.0
  %622 = vmatprep.subr.mxu0 0.0
  %623 = vmatpush1.msra.mxu0 0.0
  %624 = vmatprep.subr.mxu0 0.0
  %625 = vmatpush1.msra.mxu0 0.0
  %626 = vmatprep.subr.mxu0 0.0
  %627 = vmatpush1.msra.mxu0 0.0
  %628 = vmatprep.subr.mxu0 0.0
  %629 = vmatpush1.msra.mxu0 0.0
  %630 = vmatprep.subr.mxu0 0.0
  %631 = vmatpush1.msra.mxu0 0.0
  %632 = vmatprep.subr.mxu0 0.0
  %633 = vmatpush1.msra.mxu0 0.0
  %634 = vmatprep.subr.mxu0 0.0
  %635 = vmatpush1.msra.mxu0 0.0
  %636 = vmatprep.subr.mxu0 0.0
  %637 = vmatpush1.msra.mxu0 %v419
  %638 = vmatprep.subr.mxu0 0.0
  %639 = vmatpush2.msra.mxu0 0.0
  %640 = vmatprep.subr.mxu0 0.0
  %641 = vmatpush2.msra.mxu0 0.0
  %642 = vmatprep.subr.mxu0 0.0
  %643 = vmatpush2.msra.mxu0 0.0
  %644 = vmatprep.subr.mxu0 0.0
  %645 = vmatpush2.msra.mxu0 0.0
  %646 = vmatprep.subr.mxu0 0.0
  %647 = vmatpush2.msra.mxu0 0.0
  %648 = vmatprep.subr.mxu0 0.0
  %649 = vmatpush2.msra.mxu0 0.0
  %650 = vmatprep.subr.mxu0 0.0
  %651 = vmatpush2.msra.mxu0 0.0
  %652 = vmatprep.subr.mxu0 0.0
  %653 = vmatpush2.msra.mxu0 0.0
  %654 = vmatprep.subr.mxu0 0.0
  %655 = vmatpush2.msra.mxu0 0.0
  %656 = vmatprep.subr.mxu0 0.0
  %657 = vmatpush2.msra.mxu0 0.0
  %658 = vmatprep.subr.mxu0 0.0
  %659 = vmatpush2.msra.mxu0 0.0
  %660 = vmatprep.subr.mxu0 0.0
  %661 = vmatpush2.msra.mxu0 0.0
  %662 = vmatprep.subr.mxu0 0.0
  %663 = vmatpush2.msra.mxu0 0.0
  %664 = vmatprep.subr.mxu0 0.0
  %665 = vmatpush2.msra.mxu0 0.0
  %666 = vmatprep.subr.mxu0 0.0
  %667 = vmatpush2.msra.mxu0 0.0
  %668 = vmatprep.subr.mxu0 0.0
  %669 = vmatpush2.msra.mxu0 0.0
  %670 = vmatprep.mubr.f32.mxu0 0.0
  %671 = vmatmul.mubr.f32.gmra.mxu0 %v604
  %v672 = vpop.f32.mrf.mxu0
  %v673 = vadd.f32 0.0, %v672
  %v674 = vpop.f32.mrf.mxu0
  %675 = vdwg.mxu0
  %v677 = vsel %vm580, %v602, 0
  %679 = vmatprep.subr.mxu0 0.0
  %680 = vmatpush1.msra.mxu0 0.0
  %681 = vmatprep.subr.mxu0 0.0
  %682 = vmatpush1.msra.mxu0 0.0
  %683 = vmatprep.subr.mxu0 0.0
  %684 = vmatpush1.msra.mxu0 0.0
  %685 = vmatprep.subr.mxu0 0.0
  %686 = vmatpush1.msra.mxu0 0.0
  %687 = vmatprep.subr.mxu0 0.0
  %688 = vmatpush1.msra.mxu0 0.0
  %689 = vmatprep.subr.mxu0 0.0
  %690 = vmatpush1.msra.mxu0 0.0
  %691 = vmatprep.subr.mxu0 0.0
  %692 = vmatpush1.msra.mxu0 0.0
  %693 = vmatprep.subr.mxu0 0.0
  %694 = vmatpush1.msra.mxu0 0.0
  %695 = vmatprep.subr.mxu0 0.0
  %696 = vmatpush1.msra.mxu0 0.0
  %697 = vmatprep.subr.mxu0 0.0
  %698 = vmatpush1.msra.mxu0 0.0
  %699 = vmatprep.subr.mxu0 0.0
  %700 = vmatpush1.msra.mxu0 0.0
  %701 = vmatprep.subr.mxu0 0.0
  %702 = vmatpush1.msra.mxu0 0.0
  %703 = vmatprep.subr.mxu0 0.0
  %704 = vmatpush1.msra.mxu0 0.0
  %705 = vmatprep.subr.mxu0 0.0
  %706 = vmatpush1.msra.mxu0 0.0
  %707 = vmatprep.subr.mxu0 0.0
  %708 = vmatpush1.msra.mxu0 0.0
  %709 = vmatprep.subr.mxu0 0.0
  %710 = vmatpush1.msra.mxu0 %v424
  %711 = vmatprep.subr.mxu0 0.0
  %712 = vmatpush2.msra.mxu0 0.0
  %713 = vmatprep.subr.mxu0 0.0
  %714 = vmatpush2.msra.mxu0 0.0
  %715 = vmatprep.subr.mxu0 0.0
  %716 = vmatpush2.msra.mxu0 0.0
  %717 = vmatprep.subr.mxu0 0.0
  %718 = vmatpush2.msra.mxu0 0.0
  %719 = vmatprep.subr.mxu0 0.0
  %720 = vmatpush2.msra.mxu0 0.0
  %721 = vmatprep.subr.mxu0 0.0
  %722 = vmatpush2.msra.mxu0 0.0
  %723 = vmatprep.subr.mxu0 0.0
  %724 = vmatpush2.msra.mxu0 0.0
  %725 = vmatprep.subr.mxu0 0.0
  %726 = vmatpush2.msra.mxu0 0.0
  %727 = vmatprep.subr.mxu0 0.0
  %728 = vmatpush2.msra.mxu0 0.0
  %729 = vmatprep.subr.mxu0 0.0
  %730 = vmatpush2.msra.mxu0 0.0
  %731 = vmatprep.subr.mxu0 0.0
  %732 = vmatpush2.msra.mxu0 0.0
  %733 = vmatprep.subr.mxu0 0.0
  %734 = vmatpush2.msra.mxu0 0.0
  %735 = vmatprep.subr.mxu0 0.0
  %736 = vmatpush2.msra.mxu0 0.0
  %737 = vmatprep.subr.mxu0 0.0
  %738 = vmatpush2.msra.mxu0 0.0
  %739 = vmatprep.subr.mxu0 0.0
  %740 = vmatpush2.msra.mxu0 0.0
  %741 = vmatprep.subr.mxu0 0.0
  %742 = vmatpush2.msra.mxu0 0.0
  %743 = vmatprep.mubr.f32.mxu0 0.0
  %744 = vmatmul.mubr.f32.gmra.mxu0 %v677
  %v745 = vpop.f32.mrf.mxu0
  %v746 = vadd.f32 0.0, %v745
  %v747 = vpop.f32.mrf.mxu0
  %748 = vdwg.mxu0
  %v749 = vld [vmem:[%s8] sm:$0x7]
  %v751 = vsel %vm427, %v673, 0
  %v754 = vsel %vm427, %v746, 0
  %vm756 = vcmask 1042432
  %v758 = vsel %vm756, %v749, 0
  %760 = vmatprep.subr.mxu0 0.0
  %761 = vmatpush1.msra.mxu0 0.0
  %762 = vmatprep.subr.mxu0 0.0
  %763 = vmatpush1.msra.mxu0 0.0
  %764 = vmatprep.subr.mxu0 0.0
  %765 = vmatpush1.msra.mxu0 0.0
  %766 = vmatprep.subr.mxu0 0.0
  %767 = vmatpush1.msra.mxu0 0.0
  %768 = vmatprep.subr.mxu0 0.0
  %769 = vmatpush1.msra.mxu0 0.0
  %770 = vmatprep.subr.mxu0 0.0
  %771 = vmatpush1.msra.mxu0 0.0
  %772 = vmatprep.subr.mxu0 0.0
  %773 = vmatpush1.msra.mxu0 0.0
  %774 = vmatprep.subr.mxu0 0.0
  %775 = vmatpush1.msra.mxu0 0.0
  %776 = vmatprep.subr.mxu0 0.0
  %777 = vmatpush1.msra.mxu0 0.0
  %778 = vmatprep.subr.mxu0 0.0
  %779 = vmatpush1.msra.mxu0 0.0
  %780 = vmatprep.subr.mxu0 0.0
  %781 = vmatpush1.msra.mxu0 0.0
  %782 = vmatprep.subr.mxu0 0.0
  %783 = vmatpush1.msra.mxu0 0.0
  %784 = vmatprep.subr.mxu0 0.0
  %785 = vmatpush1.msra.mxu0 0.0
  %786 = vmatprep.subr.mxu0 0.0
  %787 = vmatpush1.msra.mxu0 0.0
  %788 = vmatprep.subr.mxu0 0.0
  %789 = vmatpush1.msra.mxu0 0.0
  %790 = vmatprep.subr.mxu0 0.0
  %791 = vmatpush1.msra.mxu0 %v758
  %792 = vmatprep.subr.mxu0 0.0
  %793 = vmatpush2.msra.mxu0 0.0
  %794 = vmatprep.subr.mxu0 0.0
  %795 = vmatpush2.msra.mxu0 0.0
  %796 = vmatprep.subr.mxu0 0.0
  %797 = vmatpush2.msra.mxu0 0.0
  %798 = vmatprep.subr.mxu0 0.0
  %799 = vmatpush2.msra.mxu0 0.0
  %800 = vmatprep.subr.mxu0 0.0
  %801 = vmatpush2.msra.mxu0 0.0
  %802 = vmatprep.subr.mxu0 0.0
  %803 = vmatpush2.msra.mxu0 0.0
  %804 = vmatprep.subr.mxu0 0.0
  %805 = vmatpush2.msra.mxu0 0.0
  %806 = vmatprep.subr.mxu0 0.0
  %807 = vmatpush2.msra.mxu0 0.0
  %808 = vmatprep.subr.mxu0 0.0
  %809 = vmatpush2.msra.mxu0 0.0
  %810 = vmatprep.subr.mxu0 0.0
  %811 = vmatpush2.msra.mxu0 0.0
  %812 = vmatprep.subr.mxu0 0.0
  %813 = vmatpush2.msra.mxu0 0.0
  %814 = vmatprep.subr.mxu0 0.0
  %815 = vmatpush2.msra.mxu0 0.0
  %816 = vmatprep.subr.mxu0 0.0
  %817 = vmatpush2.msra.mxu0 0.0
  %818 = vmatprep.subr.mxu0 0.0
  %819 = vmatpush2.msra.mxu0 0.0
  %820 = vmatprep.subr.mxu0 0.0
  %821 = vmatpush2.msra.mxu0 0.0
  %822 = vmatprep.subr.mxu0 0.0
  %823 = vmatpush2.msra.mxu0 0.0
  %824 = vmatprep.mubr.f32.mxu0 0.0
  %825 = vmatmul.mubr.f32.gmra.mxu0 %v751
  %v826 = vpop.f32.mrf.mxu0
  %v827 = vadd.f32 0.0, %v826
  %v828 = vpop.f32.mrf.mxu0
  %829 = vmatprep.mubr.f32.mxu0 0.0
  %830 = vmatmul.mubr.f32.gmra.mxu0 %v754
  %v831 = vpop.f32.mrf.mxu0
  %v832 = vadd.f32 0.0, %v831
  %v833 = vpop.f32.mrf.mxu0
  %834 = vdwg.mxu0
  %v836 = vlaneseq
  %v837 = vshrl.u32 %v836, 7
  %v838 = vsub.s32 0, %v837
  %v839 = vrot.slane %v157, %v838
  %v841 = vadd.f32 %v839, %v827
  %v842 = vadd.f32 %v839, %v832
  %s843 = scalar_lea.vmem %s2, 16
  %v844 = vld [vmem:[%s843] sm:$0xff]
  %v845 = vld [vmem:[%s843 + $0x8] sm:$0x1]
  %s846 = scalar_lea.vmem %s3, 1
  %v847 = vld [vmem:[%s846] sm:$0x1]
  %v849 = vlaneseq
  %v850 = vshrl.u32 %v849, 7
  %v851 = vsub.s32 0, %v850
  %v852 = vrot.slane %v847, %v851
  %v855 = vsel %vm174, %v845, 0
  %857 = vmatprep.subr.mxu0 0.0
  %858 = vmatpush1.msra.mxu0 0.0
  %859 = vmatprep.subr.mxu0 0.0
  %860 = vmatpush1.msra.mxu0 0.0
  %861 = vmatprep.subr.mxu0 0.0
  %862 = vmatpush1.msra.mxu0 0.0
  %863 = vmatprep.subr.mxu0 0.0
  %864 = vmatpush1.msra.mxu0 0.0
  %865 = vmatprep.subr.mxu0 0.0
  %866 = vmatpush1.msra.mxu0 0.0
  %867 = vmatprep.subr.mxu0 0.0
  %868 = vmatpush1.msra.mxu0 0.0
  %869 = vmatprep.subr.mxu0 0.0
  %870 = vmatpush1.msra.mxu0 0.0
  %871 = vmatprep.subr.mxu0 0.0
  %872 = vmatpush1.msra.mxu0 0.0
  %873 = vmatprep.subr.mxu0 0.0
  %874 = vmatpush1.msra.mxu0 0.0
  %875 = vmatprep.subr.mxu0 0.0
  %876 = vmatpush1.msra.mxu0 0.0
  %877 = vmatprep.subr.mxu0 0.0
  %878 = vmatpush1.msra.mxu0 0.0
  %879 = vmatprep.subr.mxu0 0.0
  %880 = vmatpush1.msra.mxu0 0.0
  %881 = vmatprep.subr.mxu0 0.0
  %882 = vmatpush1.msra.mxu0 0.0
  %883 = vmatprep.subr.mxu0 0.0
  %884 = vmatpush1.msra.mxu0 0.0
  %885 = vmatprep.subr.mxu0 0.0
  %886 = vmatpush1.msra.mxu0 %v855
  %887 = vmatprep.subr.mxu0 0.0
  %888 = vmatpush1.msra.mxu0 %v844
  %889 = vmatprep.subr.mxu0 0.0
  %890 = vmatpush2.msra.mxu0 0.0
  %891 = vmatprep.subr.mxu0 0.0
  %892 = vmatpush2.msra.mxu0 0.0
  %893 = vmatprep.subr.mxu0 0.0
  %894 = vmatpush2.msra.mxu0 0.0
  %895 = vmatprep.subr.mxu0 0.0
  %896 = vmatpush2.msra.mxu0 0.0
  %897 = vmatprep.subr.mxu0 0.0
  %898 = vmatpush2.msra.mxu0 0.0
  %899 = vmatprep.subr.mxu0 0.0
  %900 = vmatpush2.msra.mxu0 0.0
  %901 = vmatprep.subr.mxu0 0.0
  %902 = vmatpush2.msra.mxu0 0.0
  %903 = vmatprep.subr.mxu0 0.0
  %904 = vmatpush2.msra.mxu0 0.0
  %905 = vmatprep.subr.mxu0 0.0
  %906 = vmatpush2.msra.mxu0 0.0
  %907 = vmatprep.subr.mxu0 0.0
  %908 = vmatpush2.msra.mxu0 0.0
  %909 = vmatprep.subr.mxu0 0.0
  %910 = vmatpush2.msra.mxu0 0.0
  %911 = vmatprep.subr.mxu0 0.0
  %912 = vmatpush2.msra.mxu0 0.0
  %913 = vmatprep.subr.mxu0 0.0
  %914 = vmatpush2.msra.mxu0 0.0
  %915 = vmatprep.subr.mxu0 0.0
  %916 = vmatpush2.msra.mxu0 0.0
  %917 = vmatprep.subr.mxu0 0.0
  %918 = vmatpush2.msra.mxu0 0.0
  %919 = vmatprep.subr.mxu0 0.0
  %920 = vmatpush2.msra.mxu0 0.0
  %921 = vmatprep.mubr.f32.mxu0 0.0
  %922 = vmatmul.mubr.f32.gmra.mxu0 %v169
  %v923 = vpop.f32.mrf.mxu0
  %v924 = vadd.f32 %v852, %v923
  %v925 = vpop.f32.mrf.mxu0
  %926 = vmatprep.mubr.f32.mxu0 0.0
  %927 = vmatmul.mubr.f32.gmra.mxu0 %v172
  %v928 = vpop.f32.mrf.mxu0
  %v929 = vadd.f32 %v852, %v928
  %v930 = vpop.f32.mrf.mxu0
  %931 = vdwg.mxu0
  %s932 = scalar_lea.vmem %s4, 16
  %v933 = vld [vmem:[%s932] sm:$0xff]
  %v934 = vld [vmem:[%s932 + $0x8] sm:$0x1]
  %s935 = scalar_lea.vmem %s5, 1
  %v936 = vld [vmem:[%s935] sm:$0x1]
  %v938 = vlaneseq
  %v939 = vshrl.u32 %v938, 7
  %v940 = vsub.s32 0, %v939
  %v941 = vrot.slane %v936, %v940
  %v944 = vsel %vm174, %v934, 0
  %946 = vmatprep.subr.mxu0 0.0
  %947 = vmatpush1.msra.mxu0 0.0
  %948 = vmatprep.subr.mxu0 0.0
  %949 = vmatpush1.msra.mxu0 0.0
  %950 = vmatprep.subr.mxu0 0.0
  %951 = vmatpush1.msra.mxu0 0.0
  %952 = vmatprep.subr.mxu0 0.0
  %953 = vmatpush1.msra.mxu0 0.0
  %954 = vmatprep.subr.mxu0 0.0
  %955 = vmatpush1.msra.mxu0 0.0
  %956 = vmatprep.subr.mxu0 0.0
  %957 = vmatpush1.msra.mxu0 0.0
  %958 = vmatprep.subr.mxu0 0.0
  %959 = vmatpush1.msra.mxu0 0.0
  %960 = vmatprep.subr.mxu0 0.0
  %961 = vmatpush1.msra.mxu0 0.0
  %962 = vmatprep.subr.mxu0 0.0
  %963 = vmatpush1.msra.mxu0 0.0
  %964 = vmatprep.subr.mxu0 0.0
  %965 = vmatpush1.msra.mxu0 0.0
  %966 = vmatprep.subr.mxu0 0.0
  %967 = vmatpush1.msra.mxu0 0.0
  %968 = vmatprep.subr.mxu0 0.0
  %969 = vmatpush1.msra.mxu0 0.0
  %970 = vmatprep.subr.mxu0 0.0
  %971 = vmatpush1.msra.mxu0 0.0
  %972 = vmatprep.subr.mxu0 0.0
  %973 = vmatpush1.msra.mxu0 0.0
  %974 = vmatprep.subr.mxu0 0.0
  %975 = vmatpush1.msra.mxu0 %v944
  %976 = vmatprep.subr.mxu0 0.0
  %977 = vmatpush1.msra.mxu0 %v933
  %978 = vmatprep.subr.mxu0 0.0
  %979 = vmatpush2.msra.mxu0 0.0
  %980 = vmatprep.subr.mxu0 0.0
  %981 = vmatpush2.msra.mxu0 0.0
  %982 = vmatprep.subr.mxu0 0.0
  %983 = vmatpush2.msra.mxu0 0.0
  %984 = vmatprep.subr.mxu0 0.0
  %985 = vmatpush2.msra.mxu0 0.0
  %986 = vmatprep.subr.mxu0 0.0
  %987 = vmatpush2.msra.mxu0 0.0
  %988 = vmatprep.subr.mxu0 0.0
  %989 = vmatpush2.msra.mxu0 0.0
  %990 = vmatprep.subr.mxu0 0.0
  %991 = vmatpush2.msra.mxu0 0.0
  %992 = vmatprep.subr.mxu0 0.0
  %993 = vmatpush2.msra.mxu0 0.0
  %994 = vmatprep.subr.mxu0 0.0
  %995 = vmatpush2.msra.mxu0 0.0
  %996 = vmatprep.subr.mxu0 0.0
  %997 = vmatpush2.msra.mxu0 0.0
  %998 = vmatprep.subr.mxu0 0.0
  %999 = vmatpush2.msra.mxu0 0.0
  %1000 = vmatprep.subr.mxu0 0.0
  %1001 = vmatpush2.msra.mxu0 0.0
  %1002 = vmatprep.subr.mxu0 0.0
  %1003 = vmatpush2.msra.mxu0 0.0
  %1004 = vmatprep.subr.mxu0 0.0
  %1005 = vmatpush2.msra.mxu0 0.0
  %1006 = vmatprep.subr.mxu0 0.0
  %1007 = vmatpush2.msra.mxu0 0.0
  %1008 = vmatprep.subr.mxu0 0.0
  %1009 = vmatpush2.msra.mxu0 0.0
  %1010 = vmatprep.mubr.f32.mxu0 0.0
  %1011 = vmatmul.mubr.f32.gmra.mxu0 %v169
  %v1012 = vpop.f32.mrf.mxu0
  %v1013 = vadd.f32 %v941, %v1012
  %v1014 = vpop.f32.mrf.mxu0
  %1015 = vmatprep.mubr.f32.mxu0 0.0
  %1016 = vmatmul.mubr.f32.gmra.mxu0 %v172
  %v1017 = vpop.f32.mrf.mxu0
  %v1018 = vadd.f32 %v941, %v1017
  %v1019 = vpop.f32.mrf.mxu0
  %1020 = vdwg.mxu0
  %s1021 = scalar_lea.vmem %s6, 16
  %v1022 = vld [vmem:[%s1021] sm:$0xff]
  %v1023 = vld [vmem:[%s1021 + $0x8] sm:$0x1]
  %s1024 = scalar_lea.vmem %s7, 1
  %v1025 = vld [vmem:[%s1024] sm:$0x1]
  %v1027 = vlaneseq
  %v1028 = vshrl.u32 %v1027, 7
  %v1029 = vsub.s32 0, %v1028
  %v1030 = vrot.slane %v1025, %v1029
  %v1033 = vsel %vm174, %v1023, 0
  %1035 = vmatprep.subr.mxu0 0.0
  %1036 = vmatpush1.msra.mxu0 0.0
  %1037 = vmatprep.subr.mxu0 0.0
  %1038 = vmatpush1.msra.mxu0 0.0
  %1039 = vmatprep.subr.mxu0 0.0
  %1040 = vmatpush1.msra.mxu0 0.0
  %1041 = vmatprep.subr.mxu0 0.0
  %1042 = vmatpush1.msra.mxu0 0.0
  %1043 = vmatprep.subr.mxu0 0.0
  %1044 = vmatpush1.msra.mxu0 0.0
  %1045 = vmatprep.subr.mxu0 0.0
  %1046 = vmatpush1.msra.mxu0 0.0
  %1047 = vmatprep.subr.mxu0 0.0
  %1048 = vmatpush1.msra.mxu0 0.0
  %1049 = vmatprep.subr.mxu0 0.0
  %1050 = vmatpush1.msra.mxu0 0.0
  %1051 = vmatprep.subr.mxu0 0.0
  %1052 = vmatpush1.msra.mxu0 0.0
  %1053 = vmatprep.subr.mxu0 0.0
  %1054 = vmatpush1.msra.mxu0 0.0
  %1055 = vmatprep.subr.mxu0 0.0
  %1056 = vmatpush1.msra.mxu0 0.0
  %1057 = vmatprep.subr.mxu0 0.0
  %1058 = vmatpush1.msra.mxu0 0.0
  %1059 = vmatprep.subr.mxu0 0.0
  %1060 = vmatpush1.msra.mxu0 0.0
  %1061 = vmatprep.subr.mxu0 0.0
  %1062 = vmatpush1.msra.mxu0 0.0
  %1063 = vmatprep.subr.mxu0 0.0
  %1064 = vmatpush1.msra.mxu0 %v1033
  %1065 = vmatprep.subr.mxu0 0.0
  %1066 = vmatpush1.msra.mxu0 %v1022
  %1067 = vmatprep.subr.mxu0 0.0
  %1068 = vmatpush2.msra.mxu0 0.0
  %1069 = vmatprep.subr.mxu0 0.0
  %1070 = vmatpush2.msra.mxu0 0.0
  %1071 = vmatprep.subr.mxu0 0.0
  %1072 = vmatpush2.msra.mxu0 0.0
  %1073 = vmatprep.subr.mxu0 0.0
  %1074 = vmatpush2.msra.mxu0 0.0
  %1075 = vmatprep.subr.mxu0 0.0
  %1076 = vmatpush2.msra.mxu0 0.0
  %1077 = vmatprep.subr.mxu0 0.0
  %1078 = vmatpush2.msra.mxu0 0.0
  %1079 = vmatprep.subr.mxu0 0.0
  %1080 = vmatpush2.msra.mxu0 0.0
  %1081 = vmatprep.subr.mxu0 0.0
  %1082 = vmatpush2.msra.mxu0 0.0
  %1083 = vmatprep.subr.mxu0 0.0
  %1084 = vmatpush2.msra.mxu0 0.0
  %1085 = vmatprep.subr.mxu0 0.0
  %1086 = vmatpush2.msra.mxu0 0.0
  %1087 = vmatprep.subr.mxu0 0.0
  %1088 = vmatpush2.msra.mxu0 0.0
  %1089 = vmatprep.subr.mxu0 0.0
  %1090 = vmatpush2.msra.mxu0 0.0
  %1091 = vmatprep.subr.mxu0 0.0
  %1092 = vmatpush2.msra.mxu0 0.0
  %1093 = vmatprep.subr.mxu0 0.0
  %1094 = vmatpush2.msra.mxu0 0.0
  %1095 = vmatprep.subr.mxu0 0.0
  %1096 = vmatpush2.msra.mxu0 0.0
  %1097 = vmatprep.subr.mxu0 0.0
  %1098 = vmatpush2.msra.mxu0 0.0
  %1099 = vmatprep.mubr.f32.mxu0 0.0
  %1100 = vmatmul.mubr.f32.gmra.mxu0 %v169
  %v1101 = vpop.f32.mrf.mxu0
  %v1102 = vadd.f32 %v1030, %v1101
  %v1103 = vpop.f32.mrf.mxu0
  %1104 = vmatprep.mubr.f32.mxu0 0.0
  %1105 = vmatmul.mubr.f32.gmra.mxu0 %v172
  %v1106 = vpop.f32.mrf.mxu0
  %v1107 = vadd.f32 %v1030, %v1106
  %v1108 = vpop.f32.mrf.mxu0
  %1109 = vdwg.mxu0
  %v1111 = vsel %vm427, %v924, 0
  %v1114 = vsel %vm427, %v1013, 0
  %1116 = vmatprep.subr.mxu0 0.0
  %1117 = vmatpush1.xpose.msra.mxu0 0.0
  %1118 = vmatprep.subr.mxu0 0.0
  %1119 = vmatpush1.xpose.msra.mxu0 0.0
  %1120 = vmatprep.subr.mxu0 0.0
  %1121 = vmatpush1.xpose.msra.mxu0 0.0
  %1122 = vmatprep.subr.mxu0 0.0
  %1123 = vmatpush1.xpose.msra.mxu0 0.0
  %1124 = vmatprep.subr.mxu0 0.0
  %1125 = vmatpush1.xpose.msra.mxu0 0.0
  %1126 = vmatprep.subr.mxu0 0.0
  %1127 = vmatpush1.xpose.msra.mxu0 0.0
  %1128 = vmatprep.subr.mxu0 0.0
  %1129 = vmatpush1.xpose.msra.mxu0 0.0
  %1130 = vmatprep.subr.mxu0 0.0
  %1131 = vmatpush1.xpose.msra.mxu0 0.0
  %1132 = vmatprep.subr.mxu0 0.0
  %1133 = vmatpush1.xpose.msra.mxu0 0.0
  %1134 = vmatprep.subr.mxu0 0.0
  %1135 = vmatpush1.xpose.msra.mxu0 0.0
  %1136 = vmatprep.subr.mxu0 0.0
  %1137 = vmatpush1.xpose.msra.mxu0 0.0
  %1138 = vmatprep.subr.mxu0 0.0
  %1139 = vmatpush1.xpose.msra.mxu0 0.0
  %1140 = vmatprep.subr.mxu0 0.0
  %1141 = vmatpush1.xpose.msra.mxu0 0.0
  %1142 = vmatprep.subr.mxu0 0.0
  %1143 = vmatpush1.xpose.msra.mxu0 0.0
  %1144 = vmatprep.subr.mxu0 0.0
  %1145 = vmatpush1.xpose.msra.mxu0 0.0
  %1146 = vmatprep.subr.mxu0 0.0
  %1147 = vmatpush1.xpose.msra.mxu0 %v1114
  %1148 = vmatprep.subr.mxu0 0.0
  %1149 = vmatpush2.xpose.msra.mxu0 0.0
  %1150 = vmatprep.subr.mxu0 0.0
  %1151 = vmatpush2.xpose.msra.mxu0 0.0
  %1152 = vmatprep.subr.mxu0 0.0
  %1153 = vmatpush2.xpose.msra.mxu0 0.0
  %1154 = vmatprep.subr.mxu0 0.0
  %1155 = vmatpush2.xpose.msra.mxu0 0.0
  %1156 = vmatprep.subr.mxu0 0.0
  %1157 = vmatpush2.xpose.msra.mxu0 0.0
  %1158 = vmatprep.subr.mxu0 0.0
  %1159 = vmatpush2.xpose.msra.mxu0 0.0
  %1160 = vmatprep.subr.mxu0 0.0
  %1161 = vmatpush2.xpose.msra.mxu0 0.0
  %1162 = vmatprep.subr.mxu0 0.0
  %1163 = vmatpush2.xpose.msra.mxu0 0.0
  %1164 = vmatprep.subr.mxu0 0.0
  %1165 = vmatpush2.xpose.msra.mxu0 0.0
  %1166 = vmatprep.subr.mxu0 0.0
  %1167 = vmatpush2.xpose.msra.mxu0 0.0
  %1168 = vmatprep.subr.mxu0 0.0
  %1169 = vmatpush2.xpose.msra.mxu0 0.0
  %1170 = vmatprep.subr.mxu0 0.0
  %1171 = vmatpush2.xpose.msra.mxu0 0.0
  %1172 = vmatprep.subr.mxu0 0.0
  %1173 = vmatpush2.xpose.msra.mxu0 0.0
  %1174 = vmatprep.subr.mxu0 0.0
  %1175 = vmatpush2.xpose.msra.mxu0 0.0
  %1176 = vmatprep.subr.mxu0 0.0
  %1177 = vmatpush2.xpose.msra.mxu0 0.0
  %1178 = vmatprep.subr.mxu0 0.0
  %1179 = vmatpush2.xpose.msra.mxu0 0.0
  %1180 = vmatprep.mubr.f32.mxu0 0.0
  %1181 = vmatmul.mubr.f32.gmra.mxu0 %v1111
  %v1182 = vpop.f32.mrf.mxu0
  %v1183 = vadd.f32 0.0, %v1182
  %v1184 = vpop.f32.mrf.mxu0
  %1185 = vdwg.mxu0
  %v1187 = vsel %vm427, %v929, 0
  %v1190 = vsel %vm427, %v1018, 0
  %1192 = vmatprep.subr.mxu0 0.0
  %1193 = vmatpush1.xpose.msra.mxu0 0.0
  %1194 = vmatprep.subr.mxu0 0.0
  %1195 = vmatpush1.xpose.msra.mxu0 0.0
  %1196 = vmatprep.subr.mxu0 0.0
  %1197 = vmatpush1.xpose.msra.mxu0 0.0
  %1198 = vmatprep.subr.mxu0 0.0
  %1199 = vmatpush1.xpose.msra.mxu0 0.0
  %1200 = vmatprep.subr.mxu0 0.0
  %1201 = vmatpush1.xpose.msra.mxu0 0.0
  %1202 = vmatprep.subr.mxu0 0.0
  %1203 = vmatpush1.xpose.msra.mxu0 0.0
  %1204 = vmatprep.subr.mxu0 0.0
  %1205 = vmatpush1.xpose.msra.mxu0 0.0
  %1206 = vmatprep.subr.mxu0 0.0
  %1207 = vmatpush1.xpose.msra.mxu0 0.0
  %1208 = vmatprep.subr.mxu0 0.0
  %1209 = vmatpush1.xpose.msra.mxu0 0.0
  %1210 = vmatprep.subr.mxu0 0.0
  %1211 = vmatpush1.xpose.msra.mxu0 0.0
  %1212 = vmatprep.subr.mxu0 0.0
  %1213 = vmatpush1.xpose.msra.mxu0 0.0
  %1214 = vmatprep.subr.mxu0 0.0
  %1215 = vmatpush1.xpose.msra.mxu0 0.0
  %1216 = vmatprep.subr.mxu0 0.0
  %1217 = vmatpush1.xpose.msra.mxu0 0.0
  %1218 = vmatprep.subr.mxu0 0.0
  %1219 = vmatpush1.xpose.msra.mxu0 0.0
  %1220 = vmatprep.subr.mxu0 0.0
  %1221 = vmatpush1.xpose.msra.mxu0 0.0
  %1222 = vmatprep.subr.mxu0 0.0
  %1223 = vmatpush1.xpose.msra.mxu0 %v1190
  %1224 = vmatprep.subr.mxu0 0.0
  %1225 = vmatpush2.xpose.msra.mxu0 0.0
  %1226 = vmatprep.subr.mxu0 0.0
  %1227 = vmatpush2.xpose.msra.mxu0 0.0
  %1228 = vmatprep.subr.mxu0 0.0
  %1229 = vmatpush2.xpose.msra.mxu0 0.0
  %1230 = vmatprep.subr.mxu0 0.0
  %1231 = vmatpush2.xpose.msra.mxu0 0.0
  %1232 = vmatprep.subr.mxu0 0.0
  %1233 = vmatpush2.xpose.msra.mxu0 0.0
  %1234 = vmatprep.subr.mxu0 0.0
  %1235 = vmatpush2.xpose.msra.mxu0 0.0
  %1236 = vmatprep.subr.mxu0 0.0
  %1237 = vmatpush2.xpose.msra.mxu0 0.0
  %1238 = vmatprep.subr.mxu0 0.0
  %1239 = vmatpush2.xpose.msra.mxu0 0.0
  %1240 = vmatprep.subr.mxu0 0.0
  %1241 = vmatpush2.xpose.msra.mxu0 0.0
  %1242 = vmatprep.subr.mxu0 0.0
  %1243 = vmatpush2.xpose.msra.mxu0 0.0
  %1244 = vmatprep.subr.mxu0 0.0
  %1245 = vmatpush2.xpose.msra.mxu0 0.0
  %1246 = vmatprep.subr.mxu0 0.0
  %1247 = vmatpush2.xpose.msra.mxu0 0.0
  %1248 = vmatprep.subr.mxu0 0.0
  %1249 = vmatpush2.xpose.msra.mxu0 0.0
  %1250 = vmatprep.subr.mxu0 0.0
  %1251 = vmatpush2.xpose.msra.mxu0 0.0
  %1252 = vmatprep.subr.mxu0 0.0
  %1253 = vmatpush2.xpose.msra.mxu0 0.0
  %1254 = vmatprep.subr.mxu0 0.0
  %1255 = vmatpush2.xpose.msra.mxu0 0.0
  %1256 = vmatprep.mubr.f32.mxu0 0.0
  %1257 = vmatmul.mubr.f32.gmra.mxu0 %v1187
  %v1258 = vpop.f32.mrf.mxu0
  %v1259 = vadd.f32 0.0, %v1258
  %v1260 = vpop.f32.mrf.mxu0
  %1261 = vdwg.mxu0
  %v1262 = vsel %vm580, %v1183, -inf
  %1263 = vmax.xlane.f32.xlu0 %v1262
  %v1264 = vpop.xlane.xlu0 %1263
  %v1265 = vsel %vm580, %v1259, -inf
  %1266 = vmax.xlane.f32.xlu0 %v1265
  %v1267 = vpop.xlane.xlu0 %1266
  %v1268 = vsub.f32 %v1183, %v1264
  %v1269 = vsub.f32 %v1259, %v1267
  %v1270 = vmul.f32 %v1268, 1.442695
  %v1271 = vpow.pop %v1270
  %v1272 = vmul.f32 %v1269, 1.442695
  %v1273 = vpow.pop %v1272
  %v1274 = vsel %vm580, %v1271, 0.0
  %1275 = vadd.xlane.f32.xlu0 %v1274
  %v1276 = vpop.xlane.xlu0 %1275
  %v1277 = vsel %vm580, %v1273, 0.0
  %1278 = vadd.xlane.f32.xlu0 %v1277
  %v1279 = vpop.xlane.xlu0 %1278
  %v1280 = vrcp.pop %v1276
  %v1281 = vmul.f32 %v1271, %v1280
  %v1282 = vrcp.pop %v1279
  %v1283 = vmul.f32 %v1273, %v1282
  %v1285 = vsel %vm580, %v1281, 0
  %1287 = vmatprep.subr.mxu0 0.0
  %1288 = vmatpush1.msra.mxu0 0.0
  %1289 = vmatprep.subr.mxu0 0.0
  %1290 = vmatpush1.msra.mxu0 0.0
  %1291 = vmatprep.subr.mxu0 0.0
  %1292 = vmatpush1.msra.mxu0 0.0
  %1293 = vmatprep.subr.mxu0 0.0
  %1294 = vmatpush1.msra.mxu0 0.0
  %1295 = vmatprep.subr.mxu0 0.0
  %1296 = vmatpush1.msra.mxu0 0.0
  %1297 = vmatprep.subr.mxu0 0.0
  %1298 = vmatpush1.msra.mxu0 0.0
  %1299 = vmatprep.subr.mxu0 0.0
  %1300 = vmatpush1.msra.mxu0 0.0
  %1301 = vmatprep.subr.mxu0 0.0
  %1302 = vmatpush1.msra.mxu0 0.0
  %1303 = vmatprep.subr.mxu0 0.0
  %1304 = vmatpush1.msra.mxu0 0.0
  %1305 = vmatprep.subr.mxu0 0.0
  %1306 = vmatpush1.msra.mxu0 0.0
  %1307 = vmatprep.subr.mxu0 0.0
  %1308 = vmatpush1.msra.mxu0 0.0
  %1309 = vmatprep.subr.mxu0 0.0
  %1310 = vmatpush1.msra.mxu0 0.0
  %1311 = vmatprep.subr.mxu0 0.0
  %1312 = vmatpush1.msra.mxu0 0.0
  %1313 = vmatprep.subr.mxu0 0.0
  %1314 = vmatpush1.msra.mxu0 0.0
  %1315 = vmatprep.subr.mxu0 0.0
  %1316 = vmatpush1.msra.mxu0 0.0
  %1317 = vmatprep.subr.mxu0 0.0
  %1318 = vmatpush1.msra.mxu0 %v1102
  %1319 = vmatprep.subr.mxu0 0.0
  %1320 = vmatpush2.msra.mxu0 0.0
  %1321 = vmatprep.subr.mxu0 0.0
  %1322 = vmatpush2.msra.mxu0 0.0
  %1323 = vmatprep.subr.mxu0 0.0
  %1324 = vmatpush2.msra.mxu0 0.0
  %1325 = vmatprep.subr.mxu0 0.0
  %1326 = vmatpush2.msra.mxu0 0.0
  %1327 = vmatprep.subr.mxu0 0.0
  %1328 = vmatpush2.msra.mxu0 0.0
  %1329 = vmatprep.subr.mxu0 0.0
  %1330 = vmatpush2.msra.mxu0 0.0
  %1331 = vmatprep.subr.mxu0 0.0
  %1332 = vmatpush2.msra.mxu0 0.0
  %1333 = vmatprep.subr.mxu0 0.0
  %1334 = vmatpush2.msra.mxu0 0.0
  %1335 = vmatprep.subr.mxu0 0.0
  %1336 = vmatpush2.msra.mxu0 0.0
  %1337 = vmatprep.subr.mxu0 0.0
  %1338 = vmatpush2.msra.mxu0 0.0
  %1339 = vmatprep.subr.mxu0 0.0
  %1340 = vmatpush2.msra.mxu0 0.0
  %1341 = vmatprep.subr.mxu0 0.0
  %1342 = vmatpush2.msra.mxu0 0.0
  %1343 = vmatprep.subr.mxu0 0.0
  %1344 = vmatpush2.msra.mxu0 0.0
  %1345 = vmatprep.subr.mxu0 0.0
  %1346 = vmatpush2.msra.mxu0 0.0
  %1347 = vmatprep.subr.mxu0 0.0
  %1348 = vmatpush2.msra.mxu0 0.0
  %1349 = vmatprep.subr.mxu0 0.0
  %1350 = vmatpush2.msra.mxu0 0.0
  %1351 = vmatprep.mubr.f32.mxu0 0.0
  %1352 = vmatmul.mubr.f32.gmra.mxu0 %v1285
  %v1353 = vpop.f32.mrf.mxu0
  %v1354 = vadd.f32 0.0, %v1353
  %v1355 = vpop.f32.mrf.mxu0
  %1356 = vdwg.mxu0
  %v1358 = vsel %vm580, %v1283, 0
  %1360 = vmatprep.subr.mxu0 0.0
  %1361 = vmatpush1.msra.mxu0 0.0
  %1362 = vmatprep.subr.mxu0 0.0
  %1363 = vmatpush1.msra.mxu0 0.0
  %1364 = vmatprep.subr.mxu0 0.0
  %1365 = vmatpush1.msra.mxu0 0.0
  %1366 = vmatprep.subr.mxu0 0.0
  %1367 = vmatpush1.msra.mxu0 0.0
  %1368 = vmatprep.subr.mxu0 0.0
  %1369 = vmatpush1.msra.mxu0 0.0
  %1370 = vmatprep.subr.mxu0 0.0
  %1371 = vmatpush1.msra.mxu0 0.0
  %1372 = vmatprep.subr.mxu0 0.0
  %1373 = vmatpush1.msra.mxu0 0.0
  %1374 = vmatprep.subr.mxu0 0.0
  %1375 = vmatpush1.msra.mxu0 0.0
  %1376 = vmatprep.subr.mxu0 0.0
  %1377 = vmatpush1.msra.mxu0 0.0
  %1378 = vmatprep.subr.mxu0 0.0
  %1379 = vmatpush1.msra.mxu0 0.0
  %1380 = vmatprep.subr.mxu0 0.0
  %1381 = vmatpush1.msra.mxu0 0.0
  %1382 = vmatprep.subr.mxu0 0.0
  %1383 = vmatpush1.msra.mxu0 0.0
  %1384 = vmatprep.subr.mxu0 0.0
  %1385 = vmatpush1.msra.mxu0 0.0
  %1386 = vmatprep.subr.mxu0 0.0
  %1387 = vmatpush1.msra.mxu0 0.0
  %1388 = vmatprep.subr.mxu0 0.0
  %1389 = vmatpush1.msra.mxu0 0.0
  %1390 = vmatprep.subr.mxu0 0.0
  %1391 = vmatpush1.msra.mxu0 %v1107
  %1392 = vmatprep.subr.mxu0 0.0
  %1393 = vmatpush2.msra.mxu0 0.0
  %1394 = vmatprep.subr.mxu0 0.0
  %1395 = vmatpush2.msra.mxu0 0.0
  %1396 = vmatprep.subr.mxu0 0.0
  %1397 = vmatpush2.msra.mxu0 0.0
  %1398 = vmatprep.subr.mxu0 0.0
  %1399 = vmatpush2.msra.mxu0 0.0
  %1400 = vmatprep.subr.mxu0 0.0
  %1401 = vmatpush2.msra.mxu0 0.0
  %1402 = vmatprep.subr.mxu0 0.0
  %1403 = vmatpush2.msra.mxu0 0.0
  %1404 = vmatprep.subr.mxu0 0.0
  %1405 = vmatpush2.msra.mxu0 0.0
  %1406 = vmatprep.subr.mxu0 0.0
  %1407 = vmatpush2.msra.mxu0 0.0
  %1408 = vmatprep.subr.mxu0 0.0
  %1409 = vmatpush2.msra.mxu0 0.0
  %1410 = vmatprep.subr.mxu0 0.0
  %1411 = vmatpush2.msra.mxu0 0.0
  %1412 = vmatprep.subr.mxu0 0.0
  %1413 = vmatpush2.msra.mxu0 0.0
  %1414 = vmatprep.subr.mxu0 0.0
  %1415 = vmatpush2.msra.mxu0 0.0
  %1416 = vmatprep.subr.mxu0 0.0
  %1417 = vmatpush2.msra.mxu0 0.0
  %1418 = vmatprep.subr.mxu0 0.0
  %1419 = vmatpush2.msra.mxu0 0.0
  %1420 = vmatprep.subr.mxu0 0.0
  %1421 = vmatpush2.msra.mxu0 0.0
  %1422 = vmatprep.subr.mxu0 0.0
  %1423 = vmatpush2.msra.mxu0 0.0
  %1424 = vmatprep.mubr.f32.mxu0 0.0
  %1425 = vmatmul.mubr.f32.gmra.mxu0 %v1358
  %v1426 = vpop.f32.mrf.mxu0
  %v1427 = vadd.f32 0.0, %v1426
  %v1428 = vpop.f32.mrf.mxu0
  %1429 = vdwg.mxu0
  %s1430 = scalar_lea.vmem %s8, 4
  %v1431 = vld [vmem:[%s1430] sm:$0x7]
  %v1433 = vsel %vm427, %v1354, 0
  %v1436 = vsel %vm427, %v1427, 0
  %v1439 = vsel %vm756, %v1431, 0
  %1441 = vmatprep.subr.mxu0 0.0
  %1442 = vmatpush1.msra.mxu0 0.0
  %1443 = vmatprep.subr.mxu0 0.0
  %1444 = vmatpush1.msra.mxu0 0.0
  %1445 = vmatprep.subr.mxu0 0.0
  %1446 = vmatpush1.msra.mxu0 0.0
  %1447 = vmatprep.subr.mxu0 0.0
  %1448 = vmatpush1.msra.mxu0 0.0
  %1449 = vmatprep.subr.mxu0 0.0
  %1450 = vmatpush1.msra.mxu0 0.0
  %1451 = vmatprep.subr.mxu0 0.0
  %1452 = vmatpush1.msra.mxu0 0.0
  %1453 = vmatprep.subr.mxu0 0.0
  %1454 = vmatpush1.msra.mxu0 0.0
  %1455 = vmatprep.subr.mxu0 0.0
  %1456 = vmatpush1.msra.mxu0 0.0
  %1457 = vmatprep.subr.mxu0 0.0
  %1458 = vmatpush1.msra.mxu0 0.0
  %1459 = vmatprep.subr.mxu0 0.0
  %1460 = vmatpush1.msra.mxu0 0.0
  %1461 = vmatprep.subr.mxu0 0.0
  %1462 = vmatpush1.msra.mxu0 0.0
  %1463 = vmatprep.subr.mxu0 0.0
  %1464 = vmatpush1.msra.mxu0 0.0
  %1465 = vmatprep.subr.mxu0 0.0
  %1466 = vmatpush1.msra.mxu0 0.0
  %1467 = vmatprep.subr.mxu0 0.0
  %1468 = vmatpush1.msra.mxu0 0.0
  %1469 = vmatprep.subr.mxu0 0.0
  %1470 = vmatpush1.msra.mxu0 0.0
  %1471 = vmatprep.subr.mxu0 0.0
  %1472 = vmatpush1.msra.mxu0 %v1439
  %1473 = vmatprep.subr.mxu0 0.0
  %1474 = vmatpush2.msra.mxu0 0.0
  %1475 = vmatprep.subr.mxu0 0.0
  %1476 = vmatpush2.msra.mxu0 0.0
  %1477 = vmatprep.subr.mxu0 0.0
  %1478 = vmatpush2.msra.mxu0 0.0
  %1479 = vmatprep.subr.mxu0 0.0
  %1480 = vmatpush2.msra.mxu0 0.0
  %1481 = vmatprep.subr.mxu0 0.0
  %1482 = vmatpush2.msra.mxu0 0.0
  %1483 = vmatprep.subr.mxu0 0.0
  %1484 = vmatpush2.msra.mxu0 0.0
  %1485 = vmatprep.subr.mxu0 0.0
  %1486 = vmatpush2.msra.mxu0 0.0
  %1487 = vmatprep.subr.mxu0 0.0
  %1488 = vmatpush2.msra.mxu0 0.0
  %1489 = vmatprep.subr.mxu0 0.0
  %1490 = vmatpush2.msra.mxu0 0.0
  %1491 = vmatprep.subr.mxu0 0.0
  %1492 = vmatpush2.msra.mxu0 0.0
  %1493 = vmatprep.subr.mxu0 0.0
  %1494 = vmatpush2.msra.mxu0 0.0
  %1495 = vmatprep.subr.mxu0 0.0
  %1496 = vmatpush2.msra.mxu0 0.0
  %1497 = vmatprep.subr.mxu0 0.0
  %1498 = vmatpush2.msra.mxu0 0.0
  %1499 = vmatprep.subr.mxu0 0.0
  %1500 = vmatpush2.msra.mxu0 0.0
  %1501 = vmatprep.subr.mxu0 0.0
  %1502 = vmatpush2.msra.mxu0 0.0
  %1503 = vmatprep.subr.mxu0 0.0
  %1504 = vmatpush2.msra.mxu0 0.0
  %1505 = vmatprep.mubr.f32.mxu0 0.0
  %1506 = vmatmul.mubr.f32.gmra.mxu0 %v1433
  %v1507 = vpop.f32.mrf.mxu0
  %v1508 = vadd.f32 0.0, %v1507
  %v1509 = vpop.f32.mrf.mxu0
  %1510 = vmatprep.mubr.f32.mxu0 0.0
  %1511 = vmatmul.mubr.f32.gmra.mxu0 %v1436
  %v1512 = vpop.f32.mrf.mxu0
  %v1513 = vadd.f32 0.0, %v1512
  %v1514 = vpop.f32.mrf.mxu0
  %1515 = vdwg.mxu0
  %v1516 = vadd.f32 %v841, %v1508
  %v1517 = vadd.f32 %v842, %v1513
  %s1518 = scalar_lea.vmem %s2, 32
  %v1519 = vld [vmem:[%s1518] sm:$0xff]
  %v1520 = vld [vmem:[%s1518 + $0x8] sm:$0x1]
  %s1521 = scalar_lea.vmem %s3, 2
  %v1522 = vld [vmem:[%s1521] sm:$0x1]
  %v1524 = vlaneseq
  %v1525 = vshrl.u32 %v1524, 7
  %v1526 = vsub.s32 0, %v1525
  %v1527 = vrot.slane %v1522, %v1526
  %v1530 = vsel %vm174, %v1520, 0
  %1532 = vmatprep.subr.mxu0 0.0
  %1533 = vmatpush1.msra.mxu0 0.0
  %1534 = vmatprep.subr.mxu0 0.0
  %1535 = vmatpush1.msra.mxu0 0.0
  %1536 = vmatprep.subr.mxu0 0.0
  %1537 = vmatpush1.msra.mxu0 0.0
  %1538 = vmatprep.subr.mxu0 0.0
  %1539 = vmatpush1.msra.mxu0 0.0
  %1540 = vmatprep.subr.mxu0 0.0
  %1541 = vmatpush1.msra.mxu0 0.0
  %1542 = vmatprep.subr.mxu0 0.0
  %1543 = vmatpush1.msra.mxu0 0.0
  %1544 = vmatprep.subr.mxu0 0.0
  %1545 = vmatpush1.msra.mxu0 0.0
  %1546 = vmatprep.subr.mxu0 0.0
  %1547 = vmatpush1.msra.mxu0 0.0
  %1548 = vmatprep.subr.mxu0 0.0
  %1549 = vmatpush1.msra.mxu0 0.0
  %1550 = vmatprep.subr.mxu0 0.0
  %1551 = vmatpush1.msra.mxu0 0.0
  %1552 = vmatprep.subr.mxu0 0.0
  %1553 = vmatpush1.msra.mxu0 0.0
  %1554 = vmatprep.subr.mxu0 0.0
  %1555 = vmatpush1.msra.mxu0 0.0
  %1556 = vmatprep.subr.mxu0 0.0
  %1557 = vmatpush1.msra.mxu0 0.0
  %1558 = vmatprep.subr.mxu0 0.0
  %1559 = vmatpush1.msra.mxu0 0.0
  %1560 = vmatprep.subr.mxu0 0.0
  %1561 = vmatpush1.msra.mxu0 %v1530
  %1562 = vmatprep.subr.mxu0 0.0
  %1563 = vmatpush1.msra.mxu0 %v1519
  %1564 = vmatprep.subr.mxu0 0.0
  %1565 = vmatpush2.msra.mxu0 0.0
  %1566 = vmatprep.subr.mxu0 0.0
  %1567 = vmatpush2.msra.mxu0 0.0
  %1568 = vmatprep.subr.mxu0 0.0
  %1569 = vmatpush2.msra.mxu0 0.0
  %1570 = vmatprep.subr.mxu0 0.0
  %1571 = vmatpush2.msra.mxu0 0.0
  %1572 = vmatprep.subr.mxu0 0.0
  %1573 = vmatpush2.msra.mxu0 0.0
  %1574 = vmatprep.subr.mxu0 0.0
  %1575 = vmatpush2.msra.mxu0 0.0
  %1576 = vmatprep.subr.mxu0 0.0
  %1577 = vmatpush2.msra.mxu0 0.0
  %1578 = vmatprep.subr.mxu0 0.0
  %1579 = vmatpush2.msra.mxu0 0.0
  %1580 = vmatprep.subr.mxu0 0.0
  %1581 = vmatpush2.msra.mxu0 0.0
  %1582 = vmatprep.subr.mxu0 0.0
  %1583 = vmatpush2.msra.mxu0 0.0
  %1584 = vmatprep.subr.mxu0 0.0
  %1585 = vmatpush2.msra.mxu0 0.0
  %1586 = vmatprep.subr.mxu0 0.0
  %1587 = vmatpush2.msra.mxu0 0.0
  %1588 = vmatprep.subr.mxu0 0.0
  %1589 = vmatpush2.msra.mxu0 0.0
  %1590 = vmatprep.subr.mxu0 0.0
  %1591 = vmatpush2.msra.mxu0 0.0
  %1592 = vmatprep.subr.mxu0 0.0
  %1593 = vmatpush2.msra.mxu0 0.0
  %1594 = vmatprep.subr.mxu0 0.0
  %1595 = vmatpush2.msra.mxu0 0.0
  %1596 = vmatprep.mubr.f32.mxu0 0.0
  %1597 = vmatmul.mubr.f32.gmra.mxu0 %v169
  %v1598 = vpop.f32.mrf.mxu0
  %v1599 = vadd.f32 %v1527, %v1598
  %v1600 = vpop.f32.mrf.mxu0
  %1601 = vmatprep.mubr.f32.mxu0 0.0
  %1602 = vmatmul.mubr.f32.gmra.mxu0 %v172
  %v1603 = vpop.f32.mrf.mxu0
  %v1604 = vadd.f32 %v1527, %v1603
  %v1605 = vpop.f32.mrf.mxu0
  %1606 = vdwg.mxu0
  %s1607 = scalar_lea.vmem %s4, 32
  %v1608 = vld [vmem:[%s1607] sm:$0xff]
  %v1609 = vld [vmem:[%s1607 + $0x8] sm:$0x1]
  %s1610 = scalar_lea.vmem %s5, 2
  %v1611 = vld [vmem:[%s1610] sm:$0x1]
  %v1613 = vlaneseq
  %v1614 = vshrl.u32 %v1613, 7
  %v1615 = vsub.s32 0, %v1614
  %v1616 = vrot.slane %v1611, %v1615
  %v1619 = vsel %vm174, %v1609, 0
  %1621 = vmatprep.subr.mxu0 0.0
  %1622 = vmatpush1.msra.mxu0 0.0
  %1623 = vmatprep.subr.mxu0 0.0
  %1624 = vmatpush1.msra.mxu0 0.0
  %1625 = vmatprep.subr.mxu0 0.0
  %1626 = vmatpush1.msra.mxu0 0.0
  %1627 = vmatprep.subr.mxu0 0.0
  %1628 = vmatpush1.msra.mxu0 0.0
  %1629 = vmatprep.subr.mxu0 0.0
  %1630 = vmatpush1.msra.mxu0 0.0
  %1631 = vmatprep.subr.mxu0 0.0
  %1632 = vmatpush1.msra.mxu0 0.0
  %1633 = vmatprep.subr.mxu0 0.0
  %1634 = vmatpush1.msra.mxu0 0.0
  %1635 = vmatprep.subr.mxu0 0.0
  %1636 = vmatpush1.msra.mxu0 0.0
  %1637 = vmatprep.subr.mxu0 0.0
  %1638 = vmatpush1.msra.mxu0 0.0
  %1639 = vmatprep.subr.mxu0 0.0
  %1640 = vmatpush1.msra.mxu0 0.0
  %1641 = vmatprep.subr.mxu0 0.0
  %1642 = vmatpush1.msra.mxu0 0.0
  %1643 = vmatprep.subr.mxu0 0.0
  %1644 = vmatpush1.msra.mxu0 0.0
  %1645 = vmatprep.subr.mxu0 0.0
  %1646 = vmatpush1.msra.mxu0 0.0
  %1647 = vmatprep.subr.mxu0 0.0
  %1648 = vmatpush1.msra.mxu0 0.0
  %1649 = vmatprep.subr.mxu0 0.0
  %1650 = vmatpush1.msra.mxu0 %v1619
  %1651 = vmatprep.subr.mxu0 0.0
  %1652 = vmatpush1.msra.mxu0 %v1608
  %1653 = vmatprep.subr.mxu0 0.0
  %1654 = vmatpush2.msra.mxu0 0.0
  %1655 = vmatprep.subr.mxu0 0.0
  %1656 = vmatpush2.msra.mxu0 0.0
  %1657 = vmatprep.subr.mxu0 0.0
  %1658 = vmatpush2.msra.mxu0 0.0
  %1659 = vmatprep.subr.mxu0 0.0
  %1660 = vmatpush2.msra.mxu0 0.0
  %1661 = vmatprep.subr.mxu0 0.0
  %1662 = vmatpush2.msra.mxu0 0.0
  %1663 = vmatprep.subr.mxu0 0.0
  %1664 = vmatpush2.msra.mxu0 0.0
  %1665 = vmatprep.subr.mxu0 0.0
  %1666 = vmatpush2.msra.mxu0 0.0
  %1667 = vmatprep.subr.mxu0 0.0
  %1668 = vmatpush2.msra.mxu0 0.0
  %1669 = vmatprep.subr.mxu0 0.0
  %1670 = vmatpush2.msra.mxu0 0.0
  %1671 = vmatprep.subr.mxu0 0.0
  %1672 = vmatpush2.msra.mxu0 0.0
  %1673 = vmatprep.subr.mxu0 0.0
  %1674 = vmatpush2.msra.mxu0 0.0
  %1675 = vmatprep.subr.mxu0 0.0
  %1676 = vmatpush2.msra.mxu0 0.0
  %1677 = vmatprep.subr.mxu0 0.0
  %1678 = vmatpush2.msra.mxu0 0.0
  %1679 = vmatprep.subr.mxu0 0.0
  %1680 = vmatpush2.msra.mxu0 0.0
  %1681 = vmatprep.subr.mxu0 0.0
  %1682 = vmatpush2.msra.mxu0 0.0
  %1683 = vmatprep.subr.mxu0 0.0
  %1684 = vmatpush2.msra.mxu0 0.0
  %1685 = vmatprep.mubr.f32.mxu0 0.0
  %1686 = vmatmul.mubr.f32.gmra.mxu0 %v169
  %v1687 = vpop.f32.mrf.mxu0
  %v1688 = vadd.f32 %v1616, %v1687
  %v1689 = vpop.f32.mrf.mxu0
  %1690 = vmatprep.mubr.f32.mxu0 0.0
  %1691 = vmatmul.mubr.f32.gmra.mxu0 %v172
  %v1692 = vpop.f32.mrf.mxu0
  %v1693 = vadd.f32 %v1616, %v1692
  %v1694 = vpop.f32.mrf.mxu0
  %1695 = vdwg.mxu0
  %s1696 = scalar_lea.vmem %s6, 32
  %v1697 = vld [vmem:[%s1696] sm:$0xff]
  %v1698 = vld [vmem:[%s1696 + $0x8] sm:$0x1]
  %s1699 = scalar_lea.vmem %s7, 2
  %v1700 = vld [vmem:[%s1699] sm:$0x1]
  %v1702 = vlaneseq
  %v1703 = vshrl.u32 %v1702, 7
  %v1704 = vsub.s32 0, %v1703
  %v1705 = vrot.slane %v1700, %v1704
  %v1708 = vsel %vm174, %v1698, 0
  %1710 = vmatprep.subr.mxu0 0.0
  %1711 = vmatpush1.msra.mxu0 0.0
  %1712 = vmatprep.subr.mxu0 0.0
  %1713 = vmatpush1.msra.mxu0 0.0
  %1714 = vmatprep.subr.mxu0 0.0
  %1715 = vmatpush1.msra.mxu0 0.0
  %1716 = vmatprep.subr.mxu0 0.0
  %1717 = vmatpush1.msra.mxu0 0.0
  %1718 = vmatprep.subr.mxu0 0.0
  %1719 = vmatpush1.msra.mxu0 0.0
  %1720 = vmatprep.subr.mxu0 0.0
  %1721 = vmatpush1.msra.mxu0 0.0
  %1722 = vmatprep.subr.mxu0 0.0
  %1723 = vmatpush1.msra.mxu0 0.0
  %1724 = vmatprep.subr.mxu0 0.0
  %1725 = vmatpush1.msra.mxu0 0.0
  %1726 = vmatprep.subr.mxu0 0.0
  %1727 = vmatpush1.msra.mxu0 0.0
  %1728 = vmatprep.subr.mxu0 0.0
  %1729 = vmatpush1.msra.mxu0 0.0
  %1730 = vmatprep.subr.mxu0 0.0
  %1731 = vmatpush1.msra.mxu0 0.0
  %1732 = vmatprep.subr.mxu0 0.0
  %1733 = vmatpush1.msra.mxu0 0.0
  %1734 = vmatprep.subr.mxu0 0.0
  %1735 = vmatpush1.msra.mxu0 0.0
  %1736 = vmatprep.subr.mxu0 0.0
  %1737 = vmatpush1.msra.mxu0 0.0
  %1738 = vmatprep.subr.mxu0 0.0
  %1739 = vmatpush1.msra.mxu0 %v1708
  %1740 = vmatprep.subr.mxu0 0.0
  %1741 = vmatpush1.msra.mxu0 %v1697
  %1742 = vmatprep.subr.mxu0 0.0
  %1743 = vmatpush2.msra.mxu0 0.0
  %1744 = vmatprep.subr.mxu0 0.0
  %1745 = vmatpush2.msra.mxu0 0.0
  %1746 = vmatprep.subr.mxu0 0.0
  %1747 = vmatpush2.msra.mxu0 0.0
  %1748 = vmatprep.subr.mxu0 0.0
  %1749 = vmatpush2.msra.mxu0 0.0
  %1750 = vmatprep.subr.mxu0 0.0
  %1751 = vmatpush2.msra.mxu0 0.0
  %1752 = vmatprep.subr.mxu0 0.0
  %1753 = vmatpush2.msra.mxu0 0.0
  %1754 = vmatprep.subr.mxu0 0.0
  %1755 = vmatpush2.msra.mxu0 0.0
  %1756 = vmatprep.subr.mxu0 0.0
  %1757 = vmatpush2.msra.mxu0 0.0
  %1758 = vmatprep.subr.mxu0 0.0
  %1759 = vmatpush2.msra.mxu0 0.0
  %1760 = vmatprep.subr.mxu0 0.0
  %1761 = vmatpush2.msra.mxu0 0.0
  %1762 = vmatprep.subr.mxu0 0.0
  %1763 = vmatpush2.msra.mxu0 0.0
  %1764 = vmatprep.subr.mxu0 0.0
  %1765 = vmatpush2.msra.mxu0 0.0
  %1766 = vmatprep.subr.mxu0 0.0
  %1767 = vmatpush2.msra.mxu0 0.0
  %1768 = vmatprep.subr.mxu0 0.0
  %1769 = vmatpush2.msra.mxu0 0.0
  %1770 = vmatprep.subr.mxu0 0.0
  %1771 = vmatpush2.msra.mxu0 0.0
  %1772 = vmatprep.subr.mxu0 0.0
  %1773 = vmatpush2.msra.mxu0 0.0
  %1774 = vmatprep.mubr.f32.mxu0 0.0
  %1775 = vmatmul.mubr.f32.gmra.mxu0 %v169
  %v1776 = vpop.f32.mrf.mxu0
  %v1777 = vadd.f32 %v1705, %v1776
  %v1778 = vpop.f32.mrf.mxu0
  %1779 = vmatprep.mubr.f32.mxu0 0.0
  %1780 = vmatmul.mubr.f32.gmra.mxu0 %v172
  %v1781 = vpop.f32.mrf.mxu0
  %v1782 = vadd.f32 %v1705, %v1781
  %v1783 = vpop.f32.mrf.mxu0
  %1784 = vdwg.mxu0
  %v1786 = vsel %vm427, %v1599, 0
  %v1789 = vsel %vm427, %v1688, 0
  %1791 = vmatprep.subr.mxu0 0.0
  %1792 = vmatpush1.xpose.msra.mxu0 0.0
  %1793 = vmatprep.subr.mxu0 0.0
  %1794 = vmatpush1.xpose.msra.mxu0 0.0
  %1795 = vmatprep.subr.mxu0 0.0
  %1796 = vmatpush1.xpose.msra.mxu0 0.0
  %1797 = vmatprep.subr.mxu0 0.0
  %1798 = vmatpush1.xpose.msra.mxu0 0.0
  %1799 = vmatprep.subr.mxu0 0.0
  %1800 = vmatpush1.xpose.msra.mxu0 0.0
  %1801 = vmatprep.subr.mxu0 0.0
  %1802 = vmatpush1.xpose.msra.mxu0 0.0
  %1803 = vmatprep.subr.mxu0 0.0
  %1804 = vmatpush1.xpose.msra.mxu0 0.0
  %1805 = vmatprep.subr.mxu0 0.0
  %1806 = vmatpush1.xpose.msra.mxu0 0.0
  %1807 = vmatprep.subr.mxu0 0.0
  %1808 = vmatpush1.xpose.msra.mxu0 0.0
  %1809 = vmatprep.subr.mxu0 0.0
  %1810 = vmatpush1.xpose.msra.mxu0 0.0
  %1811 = vmatprep.subr.mxu0 0.0
  %1812 = vmatpush1.xpose.msra.mxu0 0.0
  %1813 = vmatprep.subr.mxu0 0.0
  %1814 = vmatpush1.xpose.msra.mxu0 0.0
  %1815 = vmatprep.subr.mxu0 0.0
  %1816 = vmatpush1.xpose.msra.mxu0 0.0
  %1817 = vmatprep.subr.mxu0 0.0
  %1818 = vmatpush1.xpose.msra.mxu0 0.0
  %1819 = vmatprep.subr.mxu0 0.0
  %1820 = vmatpush1.xpose.msra.mxu0 0.0
  %1821 = vmatprep.subr.mxu0 0.0
  %1822 = vmatpush1.xpose.msra.mxu0 %v1789
  %1823 = vmatprep.subr.mxu0 0.0
  %1824 = vmatpush2.xpose.msra.mxu0 0.0
  %1825 = vmatprep.subr.mxu0 0.0
  %1826 = vmatpush2.xpose.msra.mxu0 0.0
  %1827 = vmatprep.subr.mxu0 0.0
  %1828 = vmatpush2.xpose.msra.mxu0 0.0
  %1829 = vmatprep.subr.mxu0 0.0
  %1830 = vmatpush2.xpose.msra.mxu0 0.0
  %1831 = vmatprep.subr.mxu0 0.0
  %1832 = vmatpush2.xpose.msra.mxu0 0.0
  %1833 = vmatprep.subr.mxu0 0.0
  %1834 = vmatpush2.xpose.msra.mxu0 0.0
  %1835 = vmatprep.subr.mxu0 0.0
  %1836 = vmatpush2.xpose.msra.mxu0 0.0
  %1837 = vmatprep.subr.mxu0 0.0
  %1838 = vmatpush2.xpose.msra.mxu0 0.0
  %1839 = vmatprep.subr.mxu0 0.0
  %1840 = vmatpush2.xpose.msra.mxu0 0.0
  %1841 = vmatprep.subr.mxu0 0.0
  %1842 = vmatpush2.xpose.msra.mxu0 0.0
  %1843 = vmatprep.subr.mxu0 0.0
  %1844 = vmatpush2.xpose.msra.mxu0 0.0
  %1845 = vmatprep.subr.mxu0 0.0
  %1846 = vmatpush2.xpose.msra.mxu0 0.0
  %1847 = vmatprep.subr.mxu0 0.0
  %1848 = vmatpush2.xpose.msra.mxu0 0.0
  %1849 = vmatprep.subr.mxu0 0.0
  %1850 = vmatpush2.xpose.msra.mxu0 0.0
  %1851 = vmatprep.subr.mxu0 0.0
  %1852 = vmatpush2.xpose.msra.mxu0 0.0
  %1853 = vmatprep.subr.mxu0 0.0
  %1854 = vmatpush2.xpose.msra.mxu0 0.0
  %1855 = vmatprep.mubr.f32.mxu0 0.0
  %1856 = vmatmul.mubr.f32.gmra.mxu0 %v1786
  %v1857 = vpop.f32.mrf.mxu0
  %v1858 = vadd.f32 0.0, %v1857
  %v1859 = vpop.f32.mrf.mxu0
  %1860 = vdwg.mxu0
  %v1862 = vsel %vm427, %v1604, 0
  %v1865 = vsel %vm427, %v1693, 0
  %1867 = vmatprep.subr.mxu0 0.0
  %1868 = vmatpush1.xpose.msra.mxu0 0.0
  %1869 = vmatprep.subr.mxu0 0.0
  %1870 = vmatpush1.xpose.msra.mxu0 0.0
  %1871 = vmatprep.subr.mxu0 0.0
  %1872 = vmatpush1.xpose.msra.mxu0 0.0
  %1873 = vmatprep.subr.mxu0 0.0
  %1874 = vmatpush1.xpose.msra.mxu0 0.0
  %1875 = vmatprep.subr.mxu0 0.0
  %1876 = vmatpush1.xpose.msra.mxu0 0.0
  %1877 = vmatprep.subr.mxu0 0.0
  %1878 = vmatpush1.xpose.msra.mxu0 0.0
  %1879 = vmatprep.subr.mxu0 0.0
  %1880 = vmatpush1.xpose.msra.mxu0 0.0
  %1881 = vmatprep.subr.mxu0 0.0
  %1882 = vmatpush1.xpose.msra.mxu0 0.0
  %1883 = vmatprep.subr.mxu0 0.0
  %1884 = vmatpush1.xpose.msra.mxu0 0.0
  %1885 = vmatprep.subr.mxu0 0.0
  %1886 = vmatpush1.xpose.msra.mxu0 0.0
  %1887 = vmatprep.subr.mxu0 0.0
  %1888 = vmatpush1.xpose.msra.mxu0 0.0
  %1889 = vmatprep.subr.mxu0 0.0
  %1890 = vmatpush1.xpose.msra.mxu0 0.0
  %1891 = vmatprep.subr.mxu0 0.0
  %1892 = vmatpush1.xpose.msra.mxu0 0.0
  %1893 = vmatprep.subr.mxu0 0.0
  %1894 = vmatpush1.xpose.msra.mxu0 0.0
  %1895 = vmatprep.subr.mxu0 0.0
  %1896 = vmatpush1.xpose.msra.mxu0 0.0
  %1897 = vmatprep.subr.mxu0 0.0
  %1898 = vmatpush1.xpose.msra.mxu0 %v1865
  %1899 = vmatprep.subr.mxu0 0.0
  %1900 = vmatpush2.xpose.msra.mxu0 0.0
  %1901 = vmatprep.subr.mxu0 0.0
  %1902 = vmatpush2.xpose.msra.mxu0 0.0
  %1903 = vmatprep.subr.mxu0 0.0
  %1904 = vmatpush2.xpose.msra.mxu0 0.0
  %1905 = vmatprep.subr.mxu0 0.0
  %1906 = vmatpush2.xpose.msra.mxu0 0.0
  %1907 = vmatprep.subr.mxu0 0.0
  %1908 = vmatpush2.xpose.msra.mxu0 0.0
  %1909 = vmatprep.subr.mxu0 0.0
  %1910 = vmatpush2.xpose.msra.mxu0 0.0
  %1911 = vmatprep.subr.mxu0 0.0
  %1912 = vmatpush2.xpose.msra.mxu0 0.0
  %1913 = vmatprep.subr.mxu0 0.0
  %1914 = vmatpush2.xpose.msra.mxu0 0.0
  %1915 = vmatprep.subr.mxu0 0.0
  %1916 = vmatpush2.xpose.msra.mxu0 0.0
  %1917 = vmatprep.subr.mxu0 0.0
  %1918 = vmatpush2.xpose.msra.mxu0 0.0
  %1919 = vmatprep.subr.mxu0 0.0
  %1920 = vmatpush2.xpose.msra.mxu0 0.0
  %1921 = vmatprep.subr.mxu0 0.0
  %1922 = vmatpush2.xpose.msra.mxu0 0.0
  %1923 = vmatprep.subr.mxu0 0.0
  %1924 = vmatpush2.xpose.msra.mxu0 0.0
  %1925 = vmatprep.subr.mxu0 0.0
  %1926 = vmatpush2.xpose.msra.mxu0 0.0
  %1927 = vmatprep.subr.mxu0 0.0
  %1928 = vmatpush2.xpose.msra.mxu0 0.0
  %1929 = vmatprep.subr.mxu0 0.0
  %1930 = vmatpush2.xpose.msra.mxu0 0.0
  %1931 = vmatprep.mubr.f32.mxu0 0.0
  %1932 = vmatmul.mubr.f32.gmra.mxu0 %v1862
  %v1933 = vpop.f32.mrf.mxu0
  %v1934 = vadd.f32 0.0, %v1933
  %v1935 = vpop.f32.mrf.mxu0
  %1936 = vdwg.mxu0
  %v1937 = vsel %vm580, %v1858, -inf
  %1938 = vmax.xlane.f32.xlu0 %v1937
  %v1939 = vpop.xlane.xlu0 %1938
  %v1940 = vsel %vm580, %v1934, -inf
  %1941 = vmax.xlane.f32.xlu0 %v1940
  %v1942 = vpop.xlane.xlu0 %1941
  %v1943 = vsub.f32 %v1858, %v1939
  %v1944 = vsub.f32 %v1934, %v1942
  %v1945 = vmul.f32 %v1943, 1.442695
  %v1946 = vpow.pop %v1945
  %v1947 = vmul.f32 %v1944, 1.442695
  %v1948 = vpow.pop %v1947
  %v1949 = vsel %vm580, %v1946, 0.0
  %1950 = vadd.xlane.f32.xlu0 %v1949
  %v1951 = vpop.xlane.xlu0 %1950
  %v1952 = vsel %vm580, %v1948, 0.0
  %1953 = vadd.xlane.f32.xlu0 %v1952
  %v1954 = vpop.xlane.xlu0 %1953
  %v1955 = vrcp.pop %v1951
  %v1956 = vmul.f32 %v1946, %v1955
  %v1957 = vrcp.pop %v1954
  %v1958 = vmul.f32 %v1948, %v1957
  %v1960 = vsel %vm580, %v1956, 0
  %1962 = vmatprep.subr.mxu0 0.0
  %1963 = vmatpush1.msra.mxu0 0.0
  %1964 = vmatprep.subr.mxu0 0.0
  %1965 = vmatpush1.msra.mxu0 0.0
  %1966 = vmatprep.subr.mxu0 0.0
  %1967 = vmatpush1.msra.mxu0 0.0
  %1968 = vmatprep.subr.mxu0 0.0
  %1969 = vmatpush1.msra.mxu0 0.0
  %1970 = vmatprep.subr.mxu0 0.0
  %1971 = vmatpush1.msra.mxu0 0.0
  %1972 = vmatprep.subr.mxu0 0.0
  %1973 = vmatpush1.msra.mxu0 0.0
  %1974 = vmatprep.subr.mxu0 0.0
  %1975 = vmatpush1.msra.mxu0 0.0
  %1976 = vmatprep.subr.mxu0 0.0
  %1977 = vmatpush1.msra.mxu0 0.0
  %1978 = vmatprep.subr.mxu0 0.0
  %1979 = vmatpush1.msra.mxu0 0.0
  %1980 = vmatprep.subr.mxu0 0.0
  %1981 = vmatpush1.msra.mxu0 0.0
  %1982 = vmatprep.subr.mxu0 0.0
  %1983 = vmatpush1.msra.mxu0 0.0
  %1984 = vmatprep.subr.mxu0 0.0
  %1985 = vmatpush1.msra.mxu0 0.0
  %1986 = vmatprep.subr.mxu0 0.0
  %1987 = vmatpush1.msra.mxu0 0.0
  %1988 = vmatprep.subr.mxu0 0.0
  %1989 = vmatpush1.msra.mxu0 0.0
  %1990 = vmatprep.subr.mxu0 0.0
  %1991 = vmatpush1.msra.mxu0 0.0
  %1992 = vmatprep.subr.mxu0 0.0
  %1993 = vmatpush1.msra.mxu0 %v1777
  %1994 = vmatprep.subr.mxu0 0.0
  %1995 = vmatpush2.msra.mxu0 0.0
  %1996 = vmatprep.subr.mxu0 0.0
  %1997 = vmatpush2.msra.mxu0 0.0
  %1998 = vmatprep.subr.mxu0 0.0
  %1999 = vmatpush2.msra.mxu0 0.0
  %2000 = vmatprep.subr.mxu0 0.0
  %2001 = vmatpush2.msra.mxu0 0.0
  %2002 = vmatprep.subr.mxu0 0.0
  %2003 = vmatpush2.msra.mxu0 0.0
  %2004 = vmatprep.subr.mxu0 0.0
  %2005 = vmatpush2.msra.mxu0 0.0
  %2006 = vmatprep.subr.mxu0 0.0
  %2007 = vmatpush2.msra.mxu0 0.0
  %2008 = vmatprep.subr.mxu0 0.0
  %2009 = vmatpush2.msra.mxu0 0.0
  %2010 = vmatprep.subr.mxu0 0.0
  %2011 = vmatpush2.msra.mxu0 0.0
  %2012 = vmatprep.subr.mxu0 0.0
  %2013 = vmatpush2.msra.mxu0 0.0
  %2014 = vmatprep.subr.mxu0 0.0
  %2015 = vmatpush2.msra.mxu0 0.0
  %2016 = vmatprep.subr.mxu0 0.0
  %2017 = vmatpush2.msra.mxu0 0.0
  %2018 = vmatprep.subr.mxu0 0.0
  %2019 = vmatpush2.msra.mxu0 0.0
  %2020 = vmatprep.subr.mxu0 0.0
  %2021 = vmatpush2.msra.mxu0 0.0
  %2022 = vmatprep.subr.mxu0 0.0
  %2023 = vmatpush2.msra.mxu0 0.0
  %2024 = vmatprep.subr.mxu0 0.0
  %2025 = vmatpush2.msra.mxu0 0.0
  %2026 = vmatprep.mubr.f32.mxu0 0.0
  %2027 = vmatmul.mubr.f32.gmra.mxu0 %v1960
  %v2028 = vpop.f32.mrf.mxu0
  %v2029 = vadd.f32 0.0, %v2028
  %v2030 = vpop.f32.mrf.mxu0
  %2031 = vdwg.mxu0
  %v2033 = vsel %vm580, %v1958, 0
  %2035 = vmatprep.subr.mxu0 0.0
  %2036 = vmatpush1.msra.mxu0 0.0
  %2037 = vmatprep.subr.mxu0 0.0
  %2038 = vmatpush1.msra.mxu0 0.0
  %2039 = vmatprep.subr.mxu0 0.0
  %2040 = vmatpush1.msra.mxu0 0.0
  %2041 = vmatprep.subr.mxu0 0.0
  %2042 = vmatpush1.msra.mxu0 0.0
  %2043 = vmatprep.subr.mxu0 0.0
  %2044 = vmatpush1.msra.mxu0 0.0
  %2045 = vmatprep.subr.mxu0 0.0
  %2046 = vmatpush1.msra.mxu0 0.0
  %2047 = vmatprep.subr.mxu0 0.0
  %2048 = vmatpush1.msra.mxu0 0.0
  %2049 = vmatprep.subr.mxu0 0.0
  %2050 = vmatpush1.msra.mxu0 0.0
  %2051 = vmatprep.subr.mxu0 0.0
  %2052 = vmatpush1.msra.mxu0 0.0
  %2053 = vmatprep.subr.mxu0 0.0
  %2054 = vmatpush1.msra.mxu0 0.0
  %2055 = vmatprep.subr.mxu0 0.0
  %2056 = vmatpush1.msra.mxu0 0.0
  %2057 = vmatprep.subr.mxu0 0.0
  %2058 = vmatpush1.msra.mxu0 0.0
  %2059 = vmatprep.subr.mxu0 0.0
  %2060 = vmatpush1.msra.mxu0 0.0
  %2061 = vmatprep.subr.mxu0 0.0
  %2062 = vmatpush1.msra.mxu0 0.0
  %2063 = vmatprep.subr.mxu0 0.0
  %2064 = vmatpush1.msra.mxu0 0.0
  %2065 = vmatprep.subr.mxu0 0.0
  %2066 = vmatpush1.msra.mxu0 %v1782
  %2067 = vmatprep.subr.mxu0 0.0
  %2068 = vmatpush2.msra.mxu0 0.0
  %2069 = vmatprep.subr.mxu0 0.0
  %2070 = vmatpush2.msra.mxu0 0.0
  %2071 = vmatprep.subr.mxu0 0.0
  %2072 = vmatpush2.msra.mxu0 0.0
  %2073 = vmatprep.subr.mxu0 0.0
  %2074 = vmatpush2.msra.mxu0 0.0
  %2075 = vmatprep.subr.mxu0 0.0
  %2076 = vmatpush2.msra.mxu0 0.0
  %2077 = vmatprep.subr.mxu0 0.0
  %2078 = vmatpush2.msra.mxu0 0.0
  %2079 = vmatprep.subr.mxu0 0.0
  %2080 = vmatpush2.msra.mxu0 0.0
  %2081 = vmatprep.subr.mxu0 0.0
  %2082 = vmatpush2.msra.mxu0 0.0
  %2083 = vmatprep.subr.mxu0 0.0
  %2084 = vmatpush2.msra.mxu0 0.0
  %2085 = vmatprep.subr.mxu0 0.0
  %2086 = vmatpush2.msra.mxu0 0.0
  %2087 = vmatprep.subr.mxu0 0.0
  %2088 = vmatpush2.msra.mxu0 0.0
  %2089 = vmatprep.subr.mxu0 0.0
  %2090 = vmatpush2.msra.mxu0 0.0
  %2091 = vmatprep.subr.mxu0 0.0
  %2092 = vmatpush2.msra.mxu0 0.0
  %2093 = vmatprep.subr.mxu0 0.0
  %2094 = vmatpush2.msra.mxu0 0.0
  %2095 = vmatprep.subr.mxu0 0.0
  %2096 = vmatpush2.msra.mxu0 0.0
  %2097 = vmatprep.subr.mxu0 0.0
  %2098 = vmatpush2.msra.mxu0 0.0
  %2099 = vmatprep.mubr.f32.mxu0 0.0
  %2100 = vmatmul.mubr.f32.gmra.mxu0 %v2033
  %v2101 = vpop.f32.mrf.mxu0
  %v2102 = vadd.f32 0.0, %v2101
  %v2103 = vpop.f32.mrf.mxu0
  %2104 = vdwg.mxu0
  %s2105 = scalar_lea.vmem %s8, 8
  %v2106 = vld [vmem:[%s2105] sm:$0x7]
  %v2108 = vsel %vm427, %v2029, 0
  %v2111 = vsel %vm427, %v2102, 0
  %v2114 = vsel %vm756, %v2106, 0
  %2116 = vmatprep.subr.mxu0 0.0
  %2117 = vmatpush1.msra.mxu0 0.0
  %2118 = vmatprep.subr.mxu0 0.0
  %2119 = vmatpush1.msra.mxu0 0.0
  %2120 = vmatprep.subr.mxu0 0.0
  %2121 = vmatpush1.msra.mxu0 0.0
  %2122 = vmatprep.subr.mxu0 0.0
  %2123 = vmatpush1.msra.mxu0 0.0
  %2124 = vmatprep.subr.mxu0 0.0
  %2125 = vmatpush1.msra.mxu0 0.0
  %2126 = vmatprep.subr.mxu0 0.0
  %2127 = vmatpush1.msra.mxu0 0.0
  %2128 = vmatprep.subr.mxu0 0.0
  %2129 = vmatpush1.msra.mxu0 0.0
  %2130 = vmatprep.subr.mxu0 0.0
  %2131 = vmatpush1.msra.mxu0 0.0
  %2132 = vmatprep.subr.mxu0 0.0
  %2133 = vmatpush1.msra.mxu0 0.0
  %2134 = vmatprep.subr.mxu0 0.0
  %2135 = vmatpush1.msra.mxu0 0.0
  %2136 = vmatprep.subr.mxu0 0.0
  %2137 = vmatpush1.msra.mxu0 0.0
  %2138 = vmatprep.subr.mxu0 0.0
  %2139 = vmatpush1.msra.mxu0 0.0
  %2140 = vmatprep.subr.mxu0 0.0
  %2141 = vmatpush1.msra.mxu0 0.0
  %2142 = vmatprep.subr.mxu0 0.0
  %2143 = vmatpush1.msra.mxu0 0.0
  %2144 = vmatprep.subr.mxu0 0.0
  %2145 = vmatpush1.msra.mxu0 0.0
  %2146 = vmatprep.subr.mxu0 0.0
  %2147 = vmatpush1.msra.mxu0 %v2114
  %2148 = vmatprep.subr.mxu0 0.0
  %2149 = vmatpush2.msra.mxu0 0.0
  %2150 = vmatprep.subr.mxu0 0.0
  %2151 = vmatpush2.msra.mxu0 0.0
  %2152 = vmatprep.subr.mxu0 0.0
  %2153 = vmatpush2.msra.mxu0 0.0
  %2154 = vmatprep.subr.mxu0 0.0
  %2155 = vmatpush2.msra.mxu0 0.0
  %2156 = vmatprep.subr.mxu0 0.0
  %2157 = vmatpush2.msra.mxu0 0.0
  %2158 = vmatprep.subr.mxu0 0.0
  %2159 = vmatpush2.msra.mxu0 0.0
  %2160 = vmatprep.subr.mxu0 0.0
  %2161 = vmatpush2.msra.mxu0 0.0
  %2162 = vmatprep.subr.mxu0 0.0
  %2163 = vmatpush2.msra.mxu0 0.0
  %2164 = vmatprep.subr.mxu0 0.0
  %2165 = vmatpush2.msra.mxu0 0.0
  %2166 = vmatprep.subr.mxu0 0.0
  %2167 = vmatpush2.msra.mxu0 0.0
  %2168 = vmatprep.subr.mxu0 0.0
  %2169 = vmatpush2.msra.mxu0 0.0
  %2170 = vmatprep.subr.mxu0 0.0
  %2171 = vmatpush2.msra.mxu0 0.0
  %2172 = vmatprep.subr.mxu0 0.0
  %2173 = vmatpush2.msra.mxu0 0.0
  %2174 = vmatprep.subr.mxu0 0.0
  %2175 = vmatpush2.msra.mxu0 0.0
  %2176 = vmatprep.subr.mxu0 0.0
  %2177 = vmatpush2.msra.mxu0 0.0
  %2178 = vmatprep.subr.mxu0 0.0
  %2179 = vmatpush2.msra.mxu0 0.0
  %2180 = vmatprep.mubr.f32.mxu0 0.0
  %2181 = vmatmul.mubr.f32.gmra.mxu0 %v2108
  %v2182 = vpop.f32.mrf.mxu0
  %v2183 = vadd.f32 0.0, %v2182
  %v2184 = vpop.f32.mrf.mxu0
  %2185 = vmatprep.mubr.f32.mxu0 0.0
  %2186 = vmatmul.mubr.f32.gmra.mxu0 %v2111
  %v2187 = vpop.f32.mrf.mxu0
  %v2188 = vadd.f32 0.0, %v2187
  %v2189 = vpop.f32.mrf.mxu0
  %2190 = vdwg.mxu0
  %v2191 = vadd.f32 %v1516, %v2183
  %v2192 = vadd.f32 %v1517, %v2188
  %v2193 = vadd.f32 %v149, %v2191
  %v2194 = vadd.f32 %v154, %v2192
  %v2195 = vld [vmem:[%s10] sm:$0x1]
  %v2196 = vld [vmem:[%s11] sm:$0x1]
  %v2197 = vsel %vm167, %v2193, 0.0
  %2198 = vadd.xlane.f32.xlu0 %v2197
  %v2199 = vpop.xlane.xlu0 %2198
  %v2200 = vsel %vm167, %v2194, 0.0
  %2201 = vadd.xlane.f32.xlu0 %v2200
  %v2202 = vpop.xlane.xlu0 %2201
  %v2203 = vmul.f32 %v2199, 0.11111111
  %v2204 = vmul.f32 %v2202, 0.11111111
  %v2205 = vmul.f32 %v2193, %v2193
  %v2206 = vmul.f32 %v2194, %v2194
  %v2207 = vsel %vm167, %v2205, 0.0
  %2208 = vadd.xlane.f32.xlu0 %v2207
  %v2209 = vpop.xlane.xlu0 %2208
  %v2210 = vsel %vm167, %v2206, 0.0
  %2211 = vadd.xlane.f32.xlu0 %v2210
  %v2212 = vpop.xlane.xlu0 %2211
  %v2213 = vmul.f32 %v2209, 0.11111111
  %v2214 = vmul.f32 %v2212, 0.11111111
  %v2215 = vmul.f32 %v2203, %v2203
  %v2216 = vmul.f32 %v2204, %v2204
  %v2217 = vsub.f32 %v2213, %v2215
  %v2218 = vsub.f32 %v2214, %v2216
  %v2219 = vsub.f32 %v2193, %v2203
  %v2220 = vsub.f32 %v2194, %v2204
  %v2221 = vadd.f32 %v2217, 1e-05
  %v2222 = vadd.f32 %v2218, 1e-05
  %v2223 = vrsqrt.pop %v2221
  %v2224 = vrsqrt.pop %v2222
  %v2225 = vmul.f32 %v2219, %v2223
  %v2226 = vmul.f32 %v2220, %v2224
  %v2228 = vlaneseq
  %v2229 = vshrl.u32 %v2228, 7
  %v2230 = vsub.s32 0, %v2229
  %v2231 = vrot.slane %v2195, %v2230
  %v2233 = vmul.f32 %v2225, %v2231
  %v2234 = vmul.f32 %v2226, %v2231
  %v2236 = vlaneseq
  %v2237 = vshrl.u32 %v2236, 7
  %v2238 = vsub.s32 0, %v2237
  %v2239 = vrot.slane %v2196, %v2238
  %v2241 = vadd.f32 %v2233, %v2239
  %v2242 = vadd.f32 %v2234, %v2239
  %v2243 = vpack.c.bf16 %v2242, %v2241
  %v2244 = vld [vmem:[%s12] sm:$0xff]
  %v2245 = vld [vmem:[%s12 + $0x8] sm:$0xff]
  %v2246 = vld [vmem:[%s12 + $0x10] sm:$0xff]
  %v2247 = vld [vmem:[%s12 + $0x18] sm:$0xff]
  %v2248 = vld [vmem:[%s12 + $0x20] sm:$0xff]
  %v2249 = vld [vmem:[%s12 + $0x28] sm:$0xff]
  %v2250 = vld [vmem:[%s12 + $0x30] sm:$0xff]
  %v2251 = vld [vmem:[%s12 + $0x38] sm:$0xff]
  %v2252 = vld [vmem:[%s12 + $0x40] sm:$0x11]
  %v2253 = vld [vmem:[%s12 + $0x48] sm:$0x11]
  %v2254 = vld [vmem:[%s12 + $0x50] sm:$0x11]
  %v2255 = vld [vmem:[%s12 + $0x58] sm:$0x11]
  %v2256 = vld [vmem:[%s12 + $0x60] sm:$0x11]
  %v2257 = vld [vmem:[%s12 + $0x68] sm:$0x11]
  %v2258 = vld [vmem:[%s12 + $0x70] sm:$0x11]
  %v2259 = vld [vmem:[%s12 + $0x78] sm:$0x11]
  %v2260 = vld [vmem:[%s13] sm:$0xff]
  %v2261 = vld [vmem:[%s13 + $0x8] sm:$0xff]
  %v2264 = vlaneseq
  %v2265 = vshrl.u32 %v2264, 7
  %v2266 = vsub.s32 0, %v2265
  %v2267 = vrot.slane %v2260, %v2266
  %v2268 = vlaneseq
  %v2269 = vshrl.u32 %v2268, 7
  %v2270 = vsub.s32 1, %v2269
  %v2271 = vrot.slane %v2260, %v2270
  %v2272 = vlaneseq
  %v2273 = vshrl.u32 %v2272, 7
  %v2274 = vsub.s32 2, %v2273
  %v2275 = vrot.slane %v2260, %v2274
  %v2276 = vlaneseq
  %v2277 = vshrl.u32 %v2276, 7
  %v2278 = vsub.s32 3, %v2277
  %v2279 = vrot.slane %v2260, %v2278
  %v2280 = vlaneseq
  %v2281 = vshrl.u32 %v2280, 7
  %v2282 = vsub.s32 4, %v2281
  %v2283 = vrot.slane %v2260, %v2282
  %v2284 = vlaneseq
  %v2285 = vshrl.u32 %v2284, 7
  %v2286 = vsub.s32 5, %v2285
  %v2287 = vrot.slane %v2260, %v2286
  %v2288 = vlaneseq
  %v2289 = vshrl.u32 %v2288, 7
  %v2290 = vsub.s32 6, %v2289
  %v2291 = vrot.slane %v2260, %v2290
  %v2292 = vlaneseq
  %v2293 = vshrl.u32 %v2292, 7
  %v2294 = vsub.s32 7, %v2293
  %v2295 = vrot.slane %v2260, %v2294
  %v2296 = vlaneseq
  %v2297 = vshrl.u32 %v2296, 7
  %v2298 = vsub.s32 0, %v2297
  %v2299 = vrot.slane %v2261, %v2298
  %v2300 = vlaneseq
  %v2301 = vshrl.u32 %v2300, 7
  %v2302 = vsub.s32 1, %v2301
  %v2303 = vrot.slane %v2261, %v2302
  %v2304 = vlaneseq
  %v2305 = vshrl.u32 %v2304, 7
  %v2306 = vsub.s32 2, %v2305
  %v2307 = vrot.slane %v2261, %v2306
  %v2308 = vlaneseq
  %v2309 = vshrl.u32 %v2308, 7
  %v2310 = vsub.s32 3, %v2309
  %v2311 = vrot.slane %v2261, %v2310
  %v2312 = vlaneseq
  %v2313 = vshrl.u32 %v2312, 7
  %v2314 = vsub.s32 4, %v2313
  %v2315 = vrot.slane %v2261, %v2314
  %v2316 = vlaneseq
  %v2317 = vshrl.u32 %v2316, 7
  %v2318 = vsub.s32 5, %v2317
  %v2319 = vrot.slane %v2261, %v2318
  %v2320 = vlaneseq
  %v2321 = vshrl.u32 %v2320, 7
  %v2322 = vsub.s32 6, %v2321
  %v2323 = vrot.slane %v2261, %v2322
  %v2324 = vlaneseq
  %v2325 = vshrl.u32 %v2324, 7
  %v2326 = vsub.s32 7, %v2325
  %v2327 = vrot.slane %v2261, %v2326
  %v2360 = vunpack.c.l.b16 %v2244
  %v2361 = vunpack.c.h.b16 %v2244
  %v2362 = vunpack.c.l.b16 %v2245
  %v2363 = vunpack.c.h.b16 %v2245
  %v2364 = vunpack.c.l.b16 %v2246
  %v2365 = vunpack.c.h.b16 %v2246
  %v2366 = vunpack.c.l.b16 %v2247
  %v2367 = vunpack.c.h.b16 %v2247
  %v2368 = vunpack.c.l.b16 %v2248
  %v2369 = vunpack.c.h.b16 %v2248
  %v2370 = vunpack.c.l.b16 %v2249
  %v2371 = vunpack.c.h.b16 %v2249
  %v2372 = vunpack.c.l.b16 %v2250
  %v2373 = vunpack.c.h.b16 %v2250
  %v2374 = vunpack.c.l.b16 %v2251
  %v2375 = vunpack.c.h.b16 %v2251
  %v2376 = vunpack.c.l.b16 %v2252
  %v2377 = vunpack.c.h.b16 %v2252
  %v2378 = vunpack.c.l.b16 %v2253
  %v2379 = vunpack.c.h.b16 %v2253
  %v2380 = vunpack.c.l.b16 %v2254
  %v2381 = vunpack.c.h.b16 %v2254
  %v2382 = vunpack.c.l.b16 %v2255
  %v2383 = vunpack.c.h.b16 %v2255
  %v2384 = vunpack.c.l.b16 %v2256
  %v2385 = vunpack.c.h.b16 %v2256
  %v2386 = vunpack.c.l.b16 %v2257
  %v2387 = vunpack.c.h.b16 %v2257
  %v2388 = vunpack.c.l.b16 %v2258
  %v2389 = vunpack.c.h.b16 %v2258
  %v2390 = vunpack.c.l.b16 %v2259
  %v2391 = vunpack.c.h.b16 %v2259
  %v2392 = vpack.c.b16 %v2376, %v2360
  %v2393 = vpack.c.b16 %v2377, %v2361
  %v2394 = vpack.c.b16 %v2378, %v2362
  %v2395 = vpack.c.b16 %v2379, %v2363
  %v2396 = vpack.c.b16 %v2380, %v2364
  %v2397 = vpack.c.b16 %v2381, %v2365
  %v2398 = vpack.c.b16 %v2382, %v2366
  %v2399 = vpack.c.b16 %v2383, %v2367
  %v2400 = vpack.c.b16 %v2384, %v2368
  %v2401 = vpack.c.b16 %v2385, %v2369
  %v2402 = vpack.c.b16 %v2386, %v2370
  %v2403 = vpack.c.b16 %v2387, %v2371
  %v2404 = vpack.c.b16 %v2388, %v2372
  %v2405 = vpack.c.b16 %v2389, %v2373
  %v2406 = vpack.c.b16 %v2390, %v2374
  %v2407 = vpack.c.b16 %v2391, %v2375
  %v2409 = vsel %vm167, %v2243, 0
  %vm2411 = vcmask 1044480
  %v2412 = vsel %vm78, 4294967295, 65535
  %v2413 = vsel %vm2411, %v2412, 0
  %v2415 = vand.u32 %v2392, %v2413
  %v2418 = vand.u32 %v2393, %v2413
  %v2421 = vand.u32 %v2394, %v2413
  %v2424 = vand.u32 %v2395, %v2413
  %v2427 = vand.u32 %v2396, %v2413
  %v2430 = vand.u32 %v2397, %v2413
  %v2433 = vand.u32 %v2398, %v2413
  %v2436 = vand.u32 %v2399, %v2413
  %v2439 = vand.u32 %v2400, %v2413
  %v2442 = vand.u32 %v2401, %v2413
  %v2445 = vand.u32 %v2402, %v2413
  %v2448 = vand.u32 %v2403, %v2413
  %v2451 = vand.u32 %v2404, %v2413
  %v2454 = vand.u32 %v2405, %v2413
  %v2457 = vand.u32 %v2406, %v2413
  %v2460 = vand.u32 %v2407, %v2413
  %2462 = vmatprep.subr.bf16.mxu0 0
  %2463 = vmatpush1.bf16.msra.mxu0 0
  %2464 = vmatprep.subr.bf16.mxu0 0
  %2465 = vmatpush1.bf16.msra.mxu0 0
  %2466 = vmatprep.subr.bf16.mxu0 0
  %2467 = vmatpush1.bf16.msra.mxu0 0
  %2468 = vmatprep.subr.bf16.mxu0 0
  %2469 = vmatpush1.bf16.msra.mxu0 0
  %2470 = vmatprep.subr.bf16.mxu0 0
  %2471 = vmatpush1.bf16.msra.mxu0 0
  %2472 = vmatprep.subr.bf16.mxu0 0
  %2473 = vmatpush1.bf16.msra.mxu0 0
  %2474 = vmatprep.subr.bf16.mxu0 0
  %2475 = vmatpush1.bf16.msra.mxu0 0
  %2476 = vmatprep.subr.bf16.mxu0 %v2418
  %2477 = vmatpush1.bf16.msra.mxu0 %v2415
  %2478 = vmatprep.subr.bf16.mxu0 0
  %2479 = vmatpush2.bf16.msra.mxu0 0
  %2480 = vmatprep.subr.bf16.mxu0 0
  %2481 = vmatpush2.bf16.msra.mxu0 0
  %2482 = vmatprep.subr.bf16.mxu0 0
  %2483 = vmatpush2.bf16.msra.mxu0 0
  %2484 = vmatprep.subr.bf16.mxu0 0
  %2485 = vmatpush2.bf16.msra.mxu0 0
  %2486 = vmatprep.subr.bf16.mxu0 0
  %2487 = vmatpush2.bf16.msra.mxu0 0
  %2488 = vmatprep.subr.bf16.mxu0 0
  %2489 = vmatpush2.bf16.msra.mxu0 0
  %2490 = vmatprep.subr.bf16.mxu0 0
  %2491 = vmatpush2.bf16.msra.mxu0 0
  %2492 = vmatprep.subr.bf16.mxu0 0
  %2493 = vmatpush2.bf16.msra.mxu0 0
  %2494 = vmatprep.mubr.bf16.mxu0 0
  %2495 = vmatmul.mubr.bf16.gmra.mxu0 %v2409
  %v2496 = vpop.f32.mrf.mxu0
  %v2497 = vadd.f32 %v2267, %v2496
  %v2498 = vpop.f32.mrf.mxu0
  %v2499 = vadd.f32 %v2271, %v2498
  %v2500 = vpop.f32.mrf.mxu0
  %v2501 = vadd.f32 %v2267, %v2500
  %v2502 = vpop.f32.mrf.mxu0
  %v2503 = vadd.f32 %v2271, %v2502
  %2504 = vdwg.mxu0
  %2505 = vmatprep.subr.bf16.mxu0 0
  %2506 = vmatpush1.bf16.msra.mxu0 0
  %2507 = vmatprep.subr.bf16.mxu0 0
  %2508 = vmatpush1.bf16.msra.mxu0 0
  %2509 = vmatprep.subr.bf16.mxu0 0
  %2510 = vmatpush1.bf16.msra.mxu0 0
  %2511 = vmatprep.subr.bf16.mxu0 0
  %2512 = vmatpush1.bf16.msra.mxu0 0
  %2513 = vmatprep.subr.bf16.mxu0 0
  %2514 = vmatpush1.bf16.msra.mxu0 0
  %2515 = vmatprep.subr.bf16.mxu0 0
  %2516 = vmatpush1.bf16.msra.mxu0 0
  %2517 = vmatprep.subr.bf16.mxu0 0
  %2518 = vmatpush1.bf16.msra.mxu0 0
  %2519 = vmatprep.subr.bf16.mxu0 %v2424
  %2520 = vmatpush1.bf16.msra.mxu0 %v2421
  %2521 = vmatprep.subr.bf16.mxu0 0
  %2522 = vmatpush2.bf16.msra.mxu0 0
  %2523 = vmatprep.subr.bf16.mxu0 0
  %2524 = vmatpush2.bf16.msra.mxu0 0
  %2525 = vmatprep.subr.bf16.mxu0 0
  %2526 = vmatpush2.bf16.msra.mxu0 0
  %2527 = vmatprep.subr.bf16.mxu0 0
  %2528 = vmatpush2.bf16.msra.mxu0 0
  %2529 = vmatprep.subr.bf16.mxu0 0
  %2530 = vmatpush2.bf16.msra.mxu0 0
  %2531 = vmatprep.subr.bf16.mxu0 0
  %2532 = vmatpush2.bf16.msra.mxu0 0
  %2533 = vmatprep.subr.bf16.mxu0 0
  %2534 = vmatpush2.bf16.msra.mxu0 0
  %2535 = vmatprep.subr.bf16.mxu0 0
  %2536 = vmatpush2.bf16.msra.mxu0 0
  %2537 = vmatprep.mubr.bf16.mxu0 0
  %2538 = vmatmul.mubr.bf16.gmra.mxu0 %v2409
  %v2539 = vpop.f32.mrf.mxu0
  %v2540 = vadd.f32 %v2275, %v2539
  %v2541 = vpop.f32.mrf.mxu0
  %v2542 = vadd.f32 %v2279, %v2541
  %v2543 = vpop.f32.mrf.mxu0
  %v2544 = vadd.f32 %v2275, %v2543
  %v2545 = vpop.f32.mrf.mxu0
  %v2546 = vadd.f32 %v2279, %v2545
  %2547 = vdwg.mxu0
  %2548 = vmatprep.subr.bf16.mxu0 0
  %2549 = vmatpush1.bf16.msra.mxu0 0
  %2550 = vmatprep.subr.bf16.mxu0 0
  %2551 = vmatpush1.bf16.msra.mxu0 0
  %2552 = vmatprep.subr.bf16.mxu0 0
  %2553 = vmatpush1.bf16.msra.mxu0 0
  %2554 = vmatprep.subr.bf16.mxu0 0
  %2555 = vmatpush1.bf16.msra.mxu0 0
  %2556 = vmatprep.subr.bf16.mxu0 0
  %2557 = vmatpush1.bf16.msra.mxu0 0
  %2558 = vmatprep.subr.bf16.mxu0 0
  %2559 = vmatpush1.bf16.msra.mxu0 0
  %2560 = vmatprep.subr.bf16.mxu0 0
  %2561 = vmatpush1.bf16.msra.mxu0 0
  %2562 = vmatprep.subr.bf16.mxu0 %v2430
  %2563 = vmatpush1.bf16.msra.mxu0 %v2427
  %2564 = vmatprep.subr.bf16.mxu0 0
  %2565 = vmatpush2.bf16.msra.mxu0 0
  %2566 = vmatprep.subr.bf16.mxu0 0
  %2567 = vmatpush2.bf16.msra.mxu0 0
  %2568 = vmatprep.subr.bf16.mxu0 0
  %2569 = vmatpush2.bf16.msra.mxu0 0
  %2570 = vmatprep.subr.bf16.mxu0 0
  %2571 = vmatpush2.bf16.msra.mxu0 0
  %2572 = vmatprep.subr.bf16.mxu0 0
  %2573 = vmatpush2.bf16.msra.mxu0 0
  %2574 = vmatprep.subr.bf16.mxu0 0
  %2575 = vmatpush2.bf16.msra.mxu0 0
  %2576 = vmatprep.subr.bf16.mxu0 0
  %2577 = vmatpush2.bf16.msra.mxu0 0
  %2578 = vmatprep.subr.bf16.mxu0 0
  %2579 = vmatpush2.bf16.msra.mxu0 0
  %2580 = vmatprep.mubr.bf16.mxu0 0
  %2581 = vmatmul.mubr.bf16.gmra.mxu0 %v2409
  %v2582 = vpop.f32.mrf.mxu0
  %v2583 = vadd.f32 %v2283, %v2582
  %v2584 = vpop.f32.mrf.mxu0
  %v2585 = vadd.f32 %v2287, %v2584
  %v2586 = vpop.f32.mrf.mxu0
  %v2587 = vadd.f32 %v2283, %v2586
  %v2588 = vpop.f32.mrf.mxu0
  %v2589 = vadd.f32 %v2287, %v2588
  %2590 = vdwg.mxu0
  %2591 = vmatprep.subr.bf16.mxu0 0
  %2592 = vmatpush1.bf16.msra.mxu0 0
  %2593 = vmatprep.subr.bf16.mxu0 0
  %2594 = vmatpush1.bf16.msra.mxu0 0
  %2595 = vmatprep.subr.bf16.mxu0 0
  %2596 = vmatpush1.bf16.msra.mxu0 0
  %2597 = vmatprep.subr.bf16.mxu0 0
  %2598 = vmatpush1.bf16.msra.mxu0 0
  %2599 = vmatprep.subr.bf16.mxu0 0
  %2600 = vmatpush1.bf16.msra.mxu0 0
  %2601 = vmatprep.subr.bf16.mxu0 0
  %2602 = vmatpush1.bf16.msra.mxu0 0
  %2603 = vmatprep.subr.bf16.mxu0 0
  %2604 = vmatpush1.bf16.msra.mxu0 0
  %2605 = vmatprep.subr.bf16.mxu0 %v2436
  %2606 = vmatpush1.bf16.msra.mxu0 %v2433
  %2607 = vmatprep.subr.bf16.mxu0 0
  %2608 = vmatpush2.bf16.msra.mxu0 0
  %2609 = vmatprep.subr.bf16.mxu0 0
  %2610 = vmatpush2.bf16.msra.mxu0 0
  %2611 = vmatprep.subr.bf16.mxu0 0
  %2612 = vmatpush2.bf16.msra.mxu0 0
  %2613 = vmatprep.subr.bf16.mxu0 0
  %2614 = vmatpush2.bf16.msra.mxu0 0
  %2615 = vmatprep.subr.bf16.mxu0 0
  %2616 = vmatpush2.bf16.msra.mxu0 0
  %2617 = vmatprep.subr.bf16.mxu0 0
  %2618 = vmatpush2.bf16.msra.mxu0 0
  %2619 = vmatprep.subr.bf16.mxu0 0
  %2620 = vmatpush2.bf16.msra.mxu0 0
  %2621 = vmatprep.subr.bf16.mxu0 0
  %2622 = vmatpush2.bf16.msra.mxu0 0
  %2623 = vmatprep.mubr.bf16.mxu0 0
  %2624 = vmatmul.mubr.bf16.gmra.mxu0 %v2409
  %v2625 = vpop.f32.mrf.mxu0
  %v2626 = vadd.f32 %v2291, %v2625
  %v2627 = vpop.f32.mrf.mxu0
  %v2628 = vadd.f32 %v2295, %v2627
  %v2629 = vpop.f32.mrf.mxu0
  %v2630 = vadd.f32 %v2291, %v2629
  %v2631 = vpop.f32.mrf.mxu0
  %v2632 = vadd.f32 %v2295, %v2631
  %2633 = vdwg.mxu0
  %2634 = vmatprep.subr.bf16.mxu0 0
  %2635 = vmatpush1.bf16.msra.mxu0 0
  %2636 = vmatprep.subr.bf16.mxu0 0
  %2637 = vmatpush1.bf16.msra.mxu0 0
  %2638 = vmatprep.subr.bf16.mxu0 0
  %2639 = vmatpush1.bf16.msra.mxu0 0
  %2640 = vmatprep.subr.bf16.mxu0 0
  %2641 = vmatpush1.bf16.msra.mxu0 0
  %2642 = vmatprep.subr.bf16.mxu0 0
  %2643 = vmatpush1.bf16.msra.mxu0 0
  %2644 = vmatprep.subr.bf16.mxu0 0
  %2645 = vmatpush1.bf16.msra.mxu0 0
  %2646 = vmatprep.subr.bf16.mxu0 0
  %2647 = vmatpush1.bf16.msra.mxu0 0
  %2648 = vmatprep.subr.bf16.mxu0 %v2442
  %2649 = vmatpush1.bf16.msra.mxu0 %v2439
  %2650 = vmatprep.subr.bf16.mxu0 0
  %2651 = vmatpush2.bf16.msra.mxu0 0
  %2652 = vmatprep.subr.bf16.mxu0 0
  %2653 = vmatpush2.bf16.msra.mxu0 0
  %2654 = vmatprep.subr.bf16.mxu0 0
  %2655 = vmatpush2.bf16.msra.mxu0 0
  %2656 = vmatprep.subr.bf16.mxu0 0
  %2657 = vmatpush2.bf16.msra.mxu0 0
  %2658 = vmatprep.subr.bf16.mxu0 0
  %2659 = vmatpush2.bf16.msra.mxu0 0
  %2660 = vmatprep.subr.bf16.mxu0 0
  %2661 = vmatpush2.bf16.msra.mxu0 0
  %2662 = vmatprep.subr.bf16.mxu0 0
  %2663 = vmatpush2.bf16.msra.mxu0 0
  %2664 = vmatprep.subr.bf16.mxu0 0
  %2665 = vmatpush2.bf16.msra.mxu0 0
  %2666 = vmatprep.mubr.bf16.mxu0 0
  %2667 = vmatmul.mubr.bf16.gmra.mxu0 %v2409
  %v2668 = vpop.f32.mrf.mxu0
  %v2669 = vadd.f32 %v2299, %v2668
  %v2670 = vpop.f32.mrf.mxu0
  %v2671 = vadd.f32 %v2303, %v2670
  %v2672 = vpop.f32.mrf.mxu0
  %v2673 = vadd.f32 %v2299, %v2672
  %v2674 = vpop.f32.mrf.mxu0
  %v2675 = vadd.f32 %v2303, %v2674
  %2676 = vdwg.mxu0
  %2677 = vmatprep.subr.bf16.mxu0 0
  %2678 = vmatpush1.bf16.msra.mxu0 0
  %2679 = vmatprep.subr.bf16.mxu0 0
  %2680 = vmatpush1.bf16.msra.mxu0 0
  %2681 = vmatprep.subr.bf16.mxu0 0
  %2682 = vmatpush1.bf16.msra.mxu0 0
  %2683 = vmatprep.subr.bf16.mxu0 0
  %2684 = vmatpush1.bf16.msra.mxu0 0
  %2685 = vmatprep.subr.bf16.mxu0 0
  %2686 = vmatpush1.bf16.msra.mxu0 0
  %2687 = vmatprep.subr.bf16.mxu0 0
  %2688 = vmatpush1.bf16.msra.mxu0 0
  %2689 = vmatprep.subr.bf16.mxu0 0
  %2690 = vmatpush1.bf16.msra.mxu0 0
  %2691 = vmatprep.subr.bf16.mxu0 %v2448
  %2692 = vmatpush1.bf16.msra.mxu0 %v2445
  %2693 = vmatprep.subr.bf16.mxu0 0
  %2694 = vmatpush2.bf16.msra.mxu0 0
  %2695 = vmatprep.subr.bf16.mxu0 0
  %2696 = vmatpush2.bf16.msra.mxu0 0
  %2697 = vmatprep.subr.bf16.mxu0 0
  %2698 = vmatpush2.bf16.msra.mxu0 0
  %2699 = vmatprep.subr.bf16.mxu0 0
  %2700 = vmatpush2.bf16.msra.mxu0 0
  %2701 = vmatprep.subr.bf16.mxu0 0
  %2702 = vmatpush2.bf16.msra.mxu0 0
  %2703 = vmatprep.subr.bf16.mxu0 0
  %2704 = vmatpush2.bf16.msra.mxu0 0
  %2705 = vmatprep.subr.bf16.mxu0 0
  %2706 = vmatpush2.bf16.msra.mxu0 0
  %2707 = vmatprep.subr.bf16.mxu0 0
  %2708 = vmatpush2.bf16.msra.mxu0 0
  %2709 = vmatprep.mubr.bf16.mxu0 0
  %2710 = vmatmul.mubr.bf16.gmra.mxu0 %v2409
  %v2711 = vpop.f32.mrf.mxu0
  %v2712 = vadd.f32 %v2307, %v2711
  %v2713 = vpop.f32.mrf.mxu0
  %v2714 = vadd.f32 %v2311, %v2713
  %v2715 = vpop.f32.mrf.mxu0
  %v2716 = vadd.f32 %v2307, %v2715
  %v2717 = vpop.f32.mrf.mxu0
  %v2718 = vadd.f32 %v2311, %v2717
  %2719 = vdwg.mxu0
  %2720 = vmatprep.subr.bf16.mxu0 0
  %2721 = vmatpush1.bf16.msra.mxu0 0
  %2722 = vmatprep.subr.bf16.mxu0 0
  %2723 = vmatpush1.bf16.msra.mxu0 0
  %2724 = vmatprep.subr.bf16.mxu0 0
  %2725 = vmatpush1.bf16.msra.mxu0 0
  %2726 = vmatprep.subr.bf16.mxu0 0
  %2727 = vmatpush1.bf16.msra.mxu0 0
  %2728 = vmatprep.subr.bf16.mxu0 0
  %2729 = vmatpush1.bf16.msra.mxu0 0
  %2730 = vmatprep.subr.bf16.mxu0 0
  %2731 = vmatpush1.bf16.msra.mxu0 0
  %2732 = vmatprep.subr.bf16.mxu0 0
  %2733 = vmatpush1.bf16.msra.mxu0 0
  %2734 = vmatprep.subr.bf16.mxu0 %v2454
  %2735 = vmatpush1.bf16.msra.mxu0 %v2451
  %2736 = vmatprep.subr.bf16.mxu0 0
  %2737 = vmatpush2.bf16.msra.mxu0 0
  %2738 = vmatprep.subr.bf16.mxu0 0
  %2739 = vmatpush2.bf16.msra.mxu0 0
  %2740 = vmatprep.subr.bf16.mxu0 0
  %2741 = vmatpush2.bf16.msra.mxu0 0
  %2742 = vmatprep.subr.bf16.mxu0 0
  %2743 = vmatpush2.bf16.msra.mxu0 0
  %2744 = vmatprep.subr.bf16.mxu0 0
  %2745 = vmatpush2.bf16.msra.mxu0 0
  %2746 = vmatprep.subr.bf16.mxu0 0
  %2747 = vmatpush2.bf16.msra.mxu0 0
  %2748 = vmatprep.subr.bf16.mxu0 0
  %2749 = vmatpush2.bf16.msra.mxu0 0
  %2750 = vmatprep.subr.bf16.mxu0 0
  %2751 = vmatpush2.bf16.msra.mxu0 0
  %2752 = vmatprep.mubr.bf16.mxu0 0
  %2753 = vmatmul.mubr.bf16.gmra.mxu0 %v2409
  %v2754 = vpop.f32.mrf.mxu0
  %v2755 = vadd.f32 %v2315, %v2754
  %v2756 = vpop.f32.mrf.mxu0
  %v2757 = vadd.f32 %v2319, %v2756
  %v2758 = vpop.f32.mrf.mxu0
  %v2759 = vadd.f32 %v2315, %v2758
  %v2760 = vpop.f32.mrf.mxu0
  %v2761 = vadd.f32 %v2319, %v2760
  %2762 = vdwg.mxu0
  %2763 = vmatprep.subr.bf16.mxu0 0
  %2764 = vmatpush1.bf16.msra.mxu0 0
  %2765 = vmatprep.subr.bf16.mxu0 0
  %2766 = vmatpush1.bf16.msra.mxu0 0
  %2767 = vmatprep.subr.bf16.mxu0 0
  %2768 = vmatpush1.bf16.msra.mxu0 0
  %2769 = vmatprep.subr.bf16.mxu0 0
  %2770 = vmatpush1.bf16.msra.mxu0 0
  %2771 = vmatprep.subr.bf16.mxu0 0
  %2772 = vmatpush1.bf16.msra.mxu0 0
  %2773 = vmatprep.subr.bf16.mxu0 0
  %2774 = vmatpush1.bf16.msra.mxu0 0
  %2775 = vmatprep.subr.bf16.mxu0 0
  %2776 = vmatpush1.bf16.msra.mxu0 0
  %2777 = vmatprep.subr.bf16.mxu0 %v2460
  %2778 = vmatpush1.bf16.msra.mxu0 %v2457
  %2779 = vmatprep.subr.bf16.mxu0 0
  %2780 = vmatpush2.bf16.msra.mxu0 0
  %2781 = vmatprep.subr.bf16.mxu0 0
  %2782 = vmatpush2.bf16.msra.mxu0 0
  %2783 = vmatprep.subr.bf16.mxu0 0
  %2784 = vmatpush2.bf16.msra.mxu0 0
  %2785 = vmatprep.subr.bf16.mxu0 0
  %2786 = vmatpush2.bf16.msra.mxu0 0
  %2787 = vmatprep.subr.bf16.mxu0 0
  %2788 = vmatpush2.bf16.msra.mxu0 0
  %2789 = vmatprep.subr.bf16.mxu0 0
  %2790 = vmatpush2.bf16.msra.mxu0 0
  %2791 = vmatprep.subr.bf16.mxu0 0
  %2792 = vmatpush2.bf16.msra.mxu0 0
  %2793 = vmatprep.subr.bf16.mxu0 0
  %2794 = vmatpush2.bf16.msra.mxu0 0
  %2795 = vmatprep.mubr.bf16.mxu0 0
  %2796 = vmatmul.mubr.bf16.gmra.mxu0 %v2409
  %v2797 = vpop.f32.mrf.mxu0
  %v2798 = vadd.f32 %v2323, %v2797
  %v2799 = vpop.f32.mrf.mxu0
  %v2800 = vadd.f32 %v2327, %v2799
  %v2801 = vpop.f32.mrf.mxu0
  %v2802 = vadd.f32 %v2323, %v2801
  %v2803 = vpop.f32.mrf.mxu0
  %v2804 = vadd.f32 %v2327, %v2803
  %2805 = vdwg.mxu0
  %v2806 = vmax.f32 %v2497, 0.0
  %v2807 = vmax.f32 %v2499, 0.0
  %v2808 = vmax.f32 %v2540, 0.0
  %v2809 = vmax.f32 %v2542, 0.0
  %v2810 = vmax.f32 %v2583, 0.0
  %v2811 = vmax.f32 %v2585, 0.0
  %v2812 = vmax.f32 %v2626, 0.0
  %v2813 = vmax.f32 %v2628, 0.0
  %v2814 = vmax.f32 %v2669, 0.0
  %v2815 = vmax.f32 %v2671, 0.0
  %v2816 = vmax.f32 %v2712, 0.0
  %v2817 = vmax.f32 %v2714, 0.0
  %v2818 = vmax.f32 %v2755, 0.0
  %v2819 = vmax.f32 %v2757, 0.0
  %v2820 = vmax.f32 %v2798, 0.0
  %v2821 = vmax.f32 %v2800, 0.0
  %v2822 = vmax.f32 %v2501, 0.0
  %v2823 = vmax.f32 %v2503, 0.0
  %v2824 = vmax.f32 %v2544, 0.0
  %v2825 = vmax.f32 %v2546, 0.0
  %v2826 = vmax.f32 %v2587, 0.0
  %v2827 = vmax.f32 %v2589, 0.0
  %v2828 = vmax.f32 %v2630, 0.0
  %v2829 = vmax.f32 %v2632, 0.0
  %v2830 = vmax.f32 %v2673, 0.0
  %v2831 = vmax.f32 %v2675, 0.0
  %v2832 = vmax.f32 %v2716, 0.0
  %v2833 = vmax.f32 %v2718, 0.0
  %v2834 = vmax.f32 %v2759, 0.0
  %v2835 = vmax.f32 %v2761, 0.0
  %v2836 = vmax.f32 %v2802, 0.0
  %v2837 = vmax.f32 %v2804, 0.0
  %v2838 = vpack.c.bf16 %v2822, %v2806
  %v2839 = vpack.c.bf16 %v2823, %v2807
  %v2840 = vpack.c.bf16 %v2824, %v2808
  %v2841 = vpack.c.bf16 %v2825, %v2809
  %v2842 = vpack.c.bf16 %v2826, %v2810
  %v2843 = vpack.c.bf16 %v2827, %v2811
  %v2844 = vpack.c.bf16 %v2828, %v2812
  %v2845 = vpack.c.bf16 %v2829, %v2813
  %v2846 = vpack.c.bf16 %v2830, %v2814
  %v2847 = vpack.c.bf16 %v2831, %v2815
  %v2848 = vpack.c.bf16 %v2832, %v2816
  %v2849 = vpack.c.bf16 %v2833, %v2817
  %v2850 = vpack.c.bf16 %v2834, %v2818
  %v2851 = vpack.c.bf16 %v2835, %v2819
  %v2852 = vpack.c.bf16 %v2836, %v2820
  %v2853 = vpack.c.bf16 %v2837, %v2821
  %v2854 = vld [vmem:[%s14] sm:$0xf]
  %v2855 = vld [vmem:[%s14 + $0x4] sm:$0xf]
  %v2856 = vld [vmem:[%s14 + $0x8] sm:$0xf]
  %v2857 = vld [vmem:[%s14 + $0xc] sm:$0xf]
  %v2858 = vld [vmem:[%s14 + $0x10] sm:$0xf]
  %v2859 = vld [vmem:[%s14 + $0x14] sm:$0xf]
  %v2860 = vld [vmem:[%s14 + $0x18] sm:$0xf]
  %v2861 = vld [vmem:[%s14 + $0x1c] sm:$0xf]
  %v2862 = vld [vmem:[%s14 + $0x20] sm:$0xf]
  %v2863 = vld [vmem:[%s14 + $0x24] sm:$0xf]
  %v2864 = vld [vmem:[%s14 + $0x28] sm:$0xf]
  %v2865 = vld [vmem:[%s14 + $0x2c] sm:$0xf]
  %v2866 = vld [vmem:[%s14 + $0x30] sm:$0xf]
  %v2867 = vld [vmem:[%s14 + $0x34] sm:$0xf]
  %v2868 = vld [vmem:[%s14 + $0x38] sm:$0xf]
  %v2869 = vld [vmem:[%s14 + $0x3c] sm:$0xf]
  %v2870 = vld [vmem:[%s14 + $0x40] sm:$0xf]
  %v2871 = vld [vmem:[%s14 + $0x44] sm:$0xf]
  %v2872 = vld [vmem:[%s14 + $0x48] sm:$0xf]
  %v2873 = vld [vmem:[%s14 + $0x4c] sm:$0xf]
  %v2874 = vld [vmem:[%s14 + $0x50] sm:$0xf]
  %v2875 = vld [vmem:[%s14 + $0x54] sm:$0xf]
  %v2876 = vld [vmem:[%s14 + $0x58] sm:$0xf]
  %v2877 = vld [vmem:[%s14 + $0x5c] sm:$0xf]
  %v2878 = vld [vmem:[%s14 + $0x60] sm:$0xf]
  %v2879 = vld [vmem:[%s14 + $0x64] sm:$0xf]
  %v2880 = vld [vmem:[%s14 + $0x68] sm:$0xf]
  %v2881 = vld [vmem:[%s14 + $0x6c] sm:$0xf]
  %v2882 = vld [vmem:[%s14 + $0x70] sm:$0xf]
  %v2883 = vld [vmem:[%s14 + $0x74] sm:$0xf]
  %v2884 = vld [vmem:[%s14 + $0x78] sm:$0xf]
  %v2885 = vld [vmem:[%s14 + $0x7c] sm:$0xf]
  %v2886 = vld [vmem:[%s14 + $0x80] sm:$0xf]
  %v2887 = vld [vmem:[%s14 + $0x84] sm:$0xf]
  %v2888 = vld [vmem:[%s14 + $0x88] sm:$0xf]
  %v2889 = vld [vmem:[%s14 + $0x8c] sm:$0xf]
  %v2890 = vld [vmem:[%s14 + $0x90] sm:$0xf]
  %v2891 = vld [vmem:[%s14 + $0x94] sm:$0xf]
  %v2892 = vld [vmem:[%s14 + $0x98] sm:$0xf]
  %v2893 = vld [vmem:[%s14 + $0x9c] sm:$0xf]
  %v2894 = vld [vmem:[%s14 + $0xa0] sm:$0xf]
  %v2895 = vld [vmem:[%s14 + $0xa4] sm:$0xf]
  %v2896 = vld [vmem:[%s14 + $0xa8] sm:$0xf]
  %v2897 = vld [vmem:[%s14 + $0xac] sm:$0xf]
  %v2898 = vld [vmem:[%s14 + $0xb0] sm:$0xf]
  %v2899 = vld [vmem:[%s14 + $0xb4] sm:$0xf]
  %v2900 = vld [vmem:[%s14 + $0xb8] sm:$0xf]
  %v2901 = vld [vmem:[%s14 + $0xbc] sm:$0xf]
  %v2902 = vld [vmem:[%s14 + $0xc0] sm:$0xf]
  %v2903 = vld [vmem:[%s14 + $0xc4] sm:$0xf]
  %v2904 = vld [vmem:[%s14 + $0xc8] sm:$0xf]
  %v2905 = vld [vmem:[%s14 + $0xcc] sm:$0xf]
  %v2906 = vld [vmem:[%s14 + $0xd0] sm:$0xf]
  %v2907 = vld [vmem:[%s14 + $0xd4] sm:$0xf]
  %v2908 = vld [vmem:[%s14 + $0xd8] sm:$0xf]
  %v2909 = vld [vmem:[%s14 + $0xdc] sm:$0xf]
  %v2910 = vld [vmem:[%s14 + $0xe0] sm:$0xf]
  %v2911 = vld [vmem:[%s14 + $0xe4] sm:$0xf]
  %v2912 = vld [vmem:[%s14 + $0xe8] sm:$0xf]
  %v2913 = vld [vmem:[%s14 + $0xec] sm:$0xf]
  %v2914 = vld [vmem:[%s14 + $0xf0] sm:$0xf]
  %v2915 = vld [vmem:[%s14 + $0xf4] sm:$0xf]
  %v2916 = vld [vmem:[%s14 + $0xf8] sm:$0xf]
  %v2917 = vld [vmem:[%s14 + $0xfc] sm:$0xf]
  %v2918 = vld [vmem:[%s14 + $0x100] sm:$0xf]
  %v2919 = vld [vmem:[%s14 + $0x104] sm:$0xf]
  %v2920 = vld [vmem:[%s14 + $0x108] sm:$0xf]
  %v2921 = vld [vmem:[%s14 + $0x10c] sm:$0xf]
  %v2922 = vld [vmem:[%s14 + $0x110] sm:$0xf]
  %v2923 = vld [vmem:[%s14 + $0x114] sm:$0xf]
  %v2924 = vld [vmem:[%s14 + $0x118] sm:$0xf]
  %v2925 = vld [vmem:[%s14 + $0x11c] sm:$0xf]
  %v2926 = vld [vmem:[%s14 + $0x120] sm:$0xf]
  %v2927 = vld [vmem:[%s14 + $0x124] sm:$0xf]
  %v2928 = vld [vmem:[%s14 + $0x128] sm:$0xf]
  %v2929 = vld [vmem:[%s14 + $0x12c] sm:$0xf]
  %v2930 = vld [vmem:[%s14 + $0x130] sm:$0xf]
  %v2931 = vld [vmem:[%s14 + $0x134] sm:$0xf]
  %v2932 = vld [vmem:[%s14 + $0x138] sm:$0xf]
  %v2933 = vld [vmem:[%s14 + $0x13c] sm:$0xf]
  %v2934 = vld [vmem:[%s14 + $0x140] sm:$0xf]
  %v2935 = vld [vmem:[%s14 + $0x144] sm:$0xf]
  %v2936 = vld [vmem:[%s14 + $0x148] sm:$0xf]
  %v2937 = vld [vmem:[%s14 + $0x14c] sm:$0xf]
  %v2938 = vld [vmem:[%s14 + $0x150] sm:$0xf]
  %v2939 = vld [vmem:[%s14 + $0x154] sm:$0xf]
  %v2940 = vld [vmem:[%s14 + $0x158] sm:$0xf]
  %v2941 = vld [vmem:[%s14 + $0x15c] sm:$0xf]
  %v2942 = vld [vmem:[%s14 + $0x160] sm:$0xf]
  %v2943 = vld [vmem:[%s14 + $0x164] sm:$0xf]
  %v2944 = vld [vmem:[%s14 + $0x168] sm:$0xf]
  %v2945 = vld [vmem:[%s14 + $0x16c] sm:$0xf]
  %v2946 = vld [vmem:[%s14 + $0x170] sm:$0xf]
  %v2947 = vld [vmem:[%s14 + $0x174] sm:$0xf]
  %v2948 = vld [vmem:[%s14 + $0x178] sm:$0xf]
  %v2949 = vld [vmem:[%s14 + $0x17c] sm:$0xf]
  %v2950 = vld [vmem:[%s14 + $0x180] sm:$0xf]
  %v2951 = vld [vmem:[%s14 + $0x184] sm:$0xf]
  %v2952 = vld [vmem:[%s14 + $0x188] sm:$0xf]
  %v2953 = vld [vmem:[%s14 + $0x18c] sm:$0xf]
  %v2954 = vld [vmem:[%s14 + $0x190] sm:$0xf]
  %v2955 = vld [vmem:[%s14 + $0x194] sm:$0xf]
  %v2956 = vld [vmem:[%s14 + $0x198] sm:$0xf]
  %v2957 = vld [vmem:[%s14 + $0x19c] sm:$0xf]
  %v2958 = vld [vmem:[%s14 + $0x1a0] sm:$0xf]
  %v2959 = vld [vmem:[%s14 + $0x1a4] sm:$0xf]
  %v2960 = vld [vmem:[%s14 + $0x1a8] sm:$0xf]
  %v2961 = vld [vmem:[%s14 + $0x1ac] sm:$0xf]
  %v2962 = vld [vmem:[%s14 + $0x1b0] sm:$0xf]
  %v2963 = vld [vmem:[%s14 + $0x1b4] sm:$0xf]
  %v2964 = vld [vmem:[%s14 + $0x1b8] sm:$0xf]
  %v2965 = vld [vmem:[%s14 + $0x1bc] sm:$0xf]
  %v2966 = vld [vmem:[%s14 + $0x1c0] sm:$0xf]
  %v2967 = vld [vmem:[%s14 + $0x1c4] sm:$0xf]
  %v2968 = vld [vmem:[%s14 + $0x1c8] sm:$0xf]
  %v2969 = vld [vmem:[%s14 + $0x1cc] sm:$0xf]
  %v2970 = vld [vmem:[%s14 + $0x1d0] sm:$0xf]
  %v2971 = vld [vmem:[%s14 + $0x1d4] sm:$0xf]
  %v2972 = vld [vmem:[%s14 + $0x1d8] sm:$0xf]
  %v2973 = vld [vmem:[%s14 + $0x1dc] sm:$0xf]
  %v2974 = vld [vmem:[%s14 + $0x1e0] sm:$0xf]
  %v2975 = vld [vmem:[%s14 + $0x1e4] sm:$0xf]
  %v2976 = vld [vmem:[%s14 + $0x1e8] sm:$0xf]
  %v2977 = vld [vmem:[%s14 + $0x1ec] sm:$0xf]
  %v2978 = vld [vmem:[%s14 + $0x1f0] sm:$0xf]
  %v2979 = vld [vmem:[%s14 + $0x1f4] sm:$0xf]
  %v2980 = vld [vmem:[%s14 + $0x1f8] sm:$0xf]
  %v2981 = vld [vmem:[%s14 + $0x1fc] sm:$0xf]
  %v2982 = vld [vmem:[%s14 + $0x200] sm:$0xf]
  %v2983 = vld [vmem:[%s14 + $0x204] sm:$0xf]
  %v2984 = vld [vmem:[%s14 + $0x208] sm:$0xf]
  %v2985 = vld [vmem:[%s14 + $0x20c] sm:$0xf]
  %v2986 = vld [vmem:[%s14 + $0x210] sm:$0xf]
  %v2987 = vld [vmem:[%s14 + $0x214] sm:$0xf]
  %v2988 = vld [vmem:[%s14 + $0x218] sm:$0xf]
  %v2989 = vld [vmem:[%s14 + $0x21c] sm:$0xf]
  %v2990 = vld [vmem:[%s14 + $0x220] sm:$0xf]
  %v2991 = vld [vmem:[%s14 + $0x224] sm:$0xf]
  %v2992 = vld [vmem:[%s14 + $0x228] sm:$0xf]
  %v2993 = vld [vmem:[%s14 + $0x22c] sm:$0xf]
  %v2994 = vld [vmem:[%s14 + $0x230] sm:$0xf]
  %v2995 = vld [vmem:[%s14 + $0x234] sm:$0xf]
  %v2996 = vld [vmem:[%s14 + $0x238] sm:$0xf]
  %v2997 = vld [vmem:[%s14 + $0x23c] sm:$0xf]
  %v2998 = vld [vmem:[%s14 + $0x240] sm:$0xf]
  %v2999 = vld [vmem:[%s14 + $0x244] sm:$0xf]
  %v3000 = vld [vmem:[%s14 + $0x248] sm:$0xf]
  %v3001 = vld [vmem:[%s14 + $0x24c] sm:$0xf]
  %v3002 = vld [vmem:[%s14 + $0x250] sm:$0xf]
  %v3003 = vld [vmem:[%s14 + $0x254] sm:$0xf]
  %v3004 = vld [vmem:[%s14 + $0x258] sm:$0xf]
  %v3005 = vld [vmem:[%s14 + $0x25c] sm:$0xf]
  %v3006 = vld [vmem:[%s14 + $0x260] sm:$0xf]
  %v3007 = vld [vmem:[%s14 + $0x264] sm:$0xf]
  %v3008 = vld [vmem:[%s14 + $0x268] sm:$0xf]
  %v3009 = vld [vmem:[%s14 + $0x26c] sm:$0xf]
  %v3010 = vld [vmem:[%s14 + $0x270] sm:$0xf]
  %v3011 = vld [vmem:[%s14 + $0x274] sm:$0xf]
  %v3012 = vld [vmem:[%s14 + $0x278] sm:$0xf]
  %v3013 = vld [vmem:[%s14 + $0x27c] sm:$0xf]
  %v3014 = vld [vmem:[%s14 + $0x280] sm:$0xf]
  %v3015 = vld [vmem:[%s14 + $0x284] sm:$0xf]
  %v3016 = vld [vmem:[%s14 + $0x288] sm:$0xf]
  %v3017 = vld [vmem:[%s14 + $0x28c] sm:$0xf]
  %v3018 = vld [vmem:[%s14 + $0x290] sm:$0xf]
  %v3019 = vld [vmem:[%s14 + $0x294] sm:$0xf]
  %v3020 = vld [vmem:[%s14 + $0x298] sm:$0xf]
  %v3021 = vld [vmem:[%s14 + $0x29c] sm:$0xf]
  %v3022 = vld [vmem:[%s14 + $0x2a0] sm:$0xf]
  %v3023 = vld [vmem:[%s14 + $0x2a4] sm:$0xf]
  %v3024 = vld [vmem:[%s14 + $0x2a8] sm:$0xf]
  %v3025 = vld [vmem:[%s14 + $0x2ac] sm:$0xf]
  %v3026 = vld [vmem:[%s14 + $0x2b0] sm:$0xf]
  %v3027 = vld [vmem:[%s14 + $0x2b4] sm:$0xf]
  %v3028 = vld [vmem:[%s14 + $0x2b8] sm:$0xf]
  %v3029 = vld [vmem:[%s14 + $0x2bc] sm:$0xf]
  %v3030 = vld [vmem:[%s14 + $0x2c0] sm:$0xf]
  %v3031 = vld [vmem:[%s14 + $0x2c4] sm:$0xf]
  %v3032 = vld [vmem:[%s14 + $0x2c8] sm:$0xf]
  %v3033 = vld [vmem:[%s14 + $0x2cc] sm:$0xf]
  %v3034 = vld [vmem:[%s14 + $0x2d0] sm:$0xf]
  %v3035 = vld [vmem:[%s14 + $0x2d4] sm:$0xf]
  %v3036 = vld [vmem:[%s14 + $0x2d8] sm:$0xf]
  %v3037 = vld [vmem:[%s14 + $0x2dc] sm:$0xf]
  %v3038 = vld [vmem:[%s14 + $0x2e0] sm:$0xf]
  %v3039 = vld [vmem:[%s14 + $0x2e4] sm:$0xf]
  %v3040 = vld [vmem:[%s14 + $0x2e8] sm:$0xf]
  %v3041 = vld [vmem:[%s14 + $0x2ec] sm:$0xf]
  %v3042 = vld [vmem:[%s14 + $0x2f0] sm:$0xf]
  %v3043 = vld [vmem:[%s14 + $0x2f4] sm:$0xf]
  %v3044 = vld [vmem:[%s14 + $0x2f8] sm:$0xf]
  %v3045 = vld [vmem:[%s14 + $0x2fc] sm:$0xf]
  %v3046 = vld [vmem:[%s14 + $0x300] sm:$0xf]
  %v3047 = vld [vmem:[%s14 + $0x304] sm:$0xf]
  %v3048 = vld [vmem:[%s14 + $0x308] sm:$0xf]
  %v3049 = vld [vmem:[%s14 + $0x30c] sm:$0xf]
  %v3050 = vld [vmem:[%s14 + $0x310] sm:$0xf]
  %v3051 = vld [vmem:[%s14 + $0x314] sm:$0xf]
  %v3052 = vld [vmem:[%s14 + $0x318] sm:$0xf]
  %v3053 = vld [vmem:[%s14 + $0x31c] sm:$0xf]
  %v3054 = vld [vmem:[%s14 + $0x320] sm:$0xf]
  %v3055 = vld [vmem:[%s14 + $0x324] sm:$0xf]
  %v3056 = vld [vmem:[%s14 + $0x328] sm:$0xf]
  %v3057 = vld [vmem:[%s14 + $0x32c] sm:$0xf]
  %v3058 = vld [vmem:[%s14 + $0x330] sm:$0xf]
  %v3059 = vld [vmem:[%s14 + $0x334] sm:$0xf]
  %v3060 = vld [vmem:[%s14 + $0x338] sm:$0xf]
  %v3061 = vld [vmem:[%s14 + $0x33c] sm:$0xf]
  %v3062 = vld [vmem:[%s14 + $0x340] sm:$0xf]
  %v3063 = vld [vmem:[%s14 + $0x344] sm:$0xf]
  %v3064 = vld [vmem:[%s14 + $0x348] sm:$0xf]
  %v3065 = vld [vmem:[%s14 + $0x34c] sm:$0xf]
  %v3066 = vld [vmem:[%s14 + $0x350] sm:$0xf]
  %v3067 = vld [vmem:[%s14 + $0x354] sm:$0xf]
  %v3068 = vld [vmem:[%s14 + $0x358] sm:$0xf]
  %v3069 = vld [vmem:[%s14 + $0x35c] sm:$0xf]
  %v3070 = vld [vmem:[%s14 + $0x360] sm:$0xf]
  %v3071 = vld [vmem:[%s14 + $0x364] sm:$0xf]
  %v3072 = vld [vmem:[%s14 + $0x368] sm:$0xf]
  %v3073 = vld [vmem:[%s14 + $0x36c] sm:$0xf]
  %v3074 = vld [vmem:[%s14 + $0x370] sm:$0xf]
  %v3075 = vld [vmem:[%s14 + $0x374] sm:$0xf]
  %v3076 = vld [vmem:[%s14 + $0x378] sm:$0xf]
  %v3077 = vld [vmem:[%s14 + $0x37c] sm:$0xf]
  %v3078 = vld [vmem:[%s14 + $0x380] sm:$0xf]
  %v3079 = vld [vmem:[%s14 + $0x384] sm:$0xf]
  %v3080 = vld [vmem:[%s14 + $0x388] sm:$0xf]
  %v3081 = vld [vmem:[%s14 + $0x38c] sm:$0xf]
  %v3082 = vld [vmem:[%s14 + $0x390] sm:$0xf]
  %v3083 = vld [vmem:[%s14 + $0x394] sm:$0xf]
  %v3084 = vld [vmem:[%s14 + $0x398] sm:$0xf]
  %v3085 = vld [vmem:[%s14 + $0x39c] sm:$0xf]
  %v3086 = vld [vmem:[%s14 + $0x3a0] sm:$0xf]
  %v3087 = vld [vmem:[%s14 + $0x3a4] sm:$0xf]
  %v3088 = vld [vmem:[%s14 + $0x3a8] sm:$0xf]
  %v3089 = vld [vmem:[%s14 + $0x3ac] sm:$0xf]
  %v3090 = vld [vmem:[%s14 + $0x3b0] sm:$0xf]
  %v3091 = vld [vmem:[%s14 + $0x3b4] sm:$0xf]
  %v3092 = vld [vmem:[%s14 + $0x3b8] sm:$0xf]
  %v3093 = vld [vmem:[%s14 + $0x3bc] sm:$0xf]
  %v3094 = vld [vmem:[%s14 + $0x3c0] sm:$0xf]
  %v3095 = vld [vmem:[%s14 + $0x3c4] sm:$0xf]
  %v3096 = vld [vmem:[%s14 + $0x3c8] sm:$0xf]
  %v3097 = vld [vmem:[%s14 + $0x3cc] sm:$0xf]
  %v3098 = vld [vmem:[%s14 + $0x3d0] sm:$0xf]
  %v3099 = vld [vmem:[%s14 + $0x3d4] sm:$0xf]
  %v3100 = vld [vmem:[%s14 + $0x3d8] sm:$0xf]
  %v3101 = vld [vmem:[%s14 + $0x3dc] sm:$0xf]
  %v3102 = vld [vmem:[%s14 + $0x3e0] sm:$0xf]
  %v3103 = vld [vmem:[%s14 + $0x3e4] sm:$0xf]
  %v3104 = vld [vmem:[%s14 + $0x3e8] sm:$0xf]
  %v3105 = vld [vmem:[%s14 + $0x3ec] sm:$0xf]
  %v3106 = vld [vmem:[%s14 + $0x3f0] sm:$0xf]
  %v3107 = vld [vmem:[%s14 + $0x3f4] sm:$0xf]
  %v3108 = vld [vmem:[%s14 + $0x3f8] sm:$0xf]
  %v3109 = vld [vmem:[%s14 + $0x3fc] sm:$0xf]
  %v3110 = vld [vmem:[%s15] sm:$0x1]
  %v3112 = vlaneseq
  %v3113 = vshrl.u32 %v3112, 7
  %v3114 = vsub.s32 0, %v3113
  %v3115 = vrot.slane %v3110, %v3114
  %v3373 = vunpack.c.l.b16 %v2854
  %v3374 = vunpack.c.l.b16 %v2855
  %v3375 = vunpack.c.l.b16 %v2856
  %v3376 = vunpack.c.l.b16 %v2857
  %v3377 = vunpack.c.l.b16 %v2858
  %v3378 = vunpack.c.l.b16 %v2859
  %v3379 = vunpack.c.l.b16 %v2860
  %v3380 = vunpack.c.l.b16 %v2861
  %v3381 = vunpack.c.l.b16 %v2862
  %v3382 = vunpack.c.l.b16 %v2863
  %v3383 = vunpack.c.l.b16 %v2864
  %v3384 = vunpack.c.l.b16 %v2865
  %v3385 = vunpack.c.l.b16 %v2866
  %v3386 = vunpack.c.l.b16 %v2867
  %v3387 = vunpack.c.l.b16 %v2868
  %v3388 = vunpack.c.l.b16 %v2869
  %v3389 = vunpack.c.l.b16 %v2870
  %v3390 = vunpack.c.l.b16 %v2871
  %v3391 = vunpack.c.l.b16 %v2872
  %v3392 = vunpack.c.l.b16 %v2873
  %v3393 = vunpack.c.l.b16 %v2874
  %v3394 = vunpack.c.l.b16 %v2875
  %v3395 = vunpack.c.l.b16 %v2876
  %v3396 = vunpack.c.l.b16 %v2877
  %v3397 = vunpack.c.l.b16 %v2878
  %v3398 = vunpack.c.l.b16 %v2879
  %v3399 = vunpack.c.l.b16 %v2880
  %v3400 = vunpack.c.l.b16 %v2881
  %v3401 = vunpack.c.l.b16 %v2882
  %v3402 = vunpack.c.l.b16 %v2883
  %v3403 = vunpack.c.l.b16 %v2884
  %v3404 = vunpack.c.l.b16 %v2885
  %v3405 = vunpack.c.l.b16 %v2886
  %v3406 = vunpack.c.l.b16 %v2887
  %v3407 = vunpack.c.l.b16 %v2888
  %v3408 = vunpack.c.l.b16 %v2889
  %v3409 = vunpack.c.l.b16 %v2890
  %v3410 = vunpack.c.l.b16 %v2891
  %v3411 = vunpack.c.l.b16 %v2892
  %v3412 = vunpack.c.l.b16 %v2893
  %v3413 = vunpack.c.l.b16 %v2894
  %v3414 = vunpack.c.l.b16 %v2895
  %v3415 = vunpack.c.l.b16 %v2896
  %v3416 = vunpack.c.l.b16 %v2897
  %v3417 = vunpack.c.l.b16 %v2898
  %v3418 = vunpack.c.l.b16 %v2899
  %v3419 = vunpack.c.l.b16 %v2900
  %v3420 = vunpack.c.l.b16 %v2901
  %v3421 = vunpack.c.l.b16 %v2902
  %v3422 = vunpack.c.l.b16 %v2903
  %v3423 = vunpack.c.l.b16 %v2904
  %v3424 = vunpack.c.l.b16 %v2905
  %v3425 = vunpack.c.l.b16 %v2906
  %v3426 = vunpack.c.l.b16 %v2907
  %v3427 = vunpack.c.l.b16 %v2908
  %v3428 = vunpack.c.l.b16 %v2909
  %v3429 = vunpack.c.l.b16 %v2910
  %v3430 = vunpack.c.l.b16 %v2911
  %v3431 = vunpack.c.l.b16 %v2912
  %v3432 = vunpack.c.l.b16 %v2913
  %v3433 = vunpack.c.l.b16 %v2914
  %v3434 = vunpack.c.l.b16 %v2915
  %v3435 = vunpack.c.l.b16 %v2916
  %v3436 = vunpack.c.l.b16 %v2917
  %v3437 = vunpack.c.l.b16 %v2918
  %v3438 = vunpack.c.l.b16 %v2919
  %v3439 = vunpack.c.l.b16 %v2920
  %v3440 = vunpack.c.l.b16 %v2921
  %v3441 = vunpack.c.l.b16 %v2922
  %v3442 = vunpack.c.l.b16 %v2923
  %v3443 = vunpack.c.l.b16 %v2924
  %v3444 = vunpack.c.l.b16 %v2925
  %v3445 = vunpack.c.l.b16 %v2926
  %v3446 = vunpack.c.l.b16 %v2927
  %v3447 = vunpack.c.l.b16 %v2928
  %v3448 = vunpack.c.l.b16 %v2929
  %v3449 = vunpack.c.l.b16 %v2930
  %v3450 = vunpack.c.l.b16 %v2931
  %v3451 = vunpack.c.l.b16 %v2932
  %v3452 = vunpack.c.l.b16 %v2933
  %v3453 = vunpack.c.l.b16 %v2934
  %v3454 = vunpack.c.l.b16 %v2935
  %v3455 = vunpack.c.l.b16 %v2936
  %v3456 = vunpack.c.l.b16 %v2937
  %v3457 = vunpack.c.l.b16 %v2938
  %v3458 = vunpack.c.l.b16 %v2939
  %v3459 = vunpack.c.l.b16 %v2940
  %v3460 = vunpack.c.l.b16 %v2941
  %v3461 = vunpack.c.l.b16 %v2942
  %v3462 = vunpack.c.l.b16 %v2943
  %v3463 = vunpack.c.l.b16 %v2944
  %v3464 = vunpack.c.l.b16 %v2945
  %v3465 = vunpack.c.l.b16 %v2946
  %v3466 = vunpack.c.l.b16 %v2947
  %v3467 = vunpack.c.l.b16 %v2948
  %v3468 = vunpack.c.l.b16 %v2949
  %v3469 = vunpack.c.l.b16 %v2950
  %v3470 = vunpack.c.l.b16 %v2951
  %v3471 = vunpack.c.l.b16 %v2952
  %v3472 = vunpack.c.l.b16 %v2953
  %v3473 = vunpack.c.l.b16 %v2954
  %v3474 = vunpack.c.l.b16 %v2955
  %v3475 = vunpack.c.l.b16 %v2956
  %v3476 = vunpack.c.l.b16 %v2957
  %v3477 = vunpack.c.l.b16 %v2958
  %v3478 = vunpack.c.l.b16 %v2959
  %v3479 = vunpack.c.l.b16 %v2960
  %v3480 = vunpack.c.l.b16 %v2961
  %v3481 = vunpack.c.l.b16 %v2962
  %v3482 = vunpack.c.l.b16 %v2963
  %v3483 = vunpack.c.l.b16 %v2964
  %v3484 = vunpack.c.l.b16 %v2965
  %v3485 = vunpack.c.l.b16 %v2966
  %v3486 = vunpack.c.l.b16 %v2967
  %v3487 = vunpack.c.l.b16 %v2968
  %v3488 = vunpack.c.l.b16 %v2969
  %v3489 = vunpack.c.l.b16 %v2970
  %v3490 = vunpack.c.l.b16 %v2971
  %v3491 = vunpack.c.l.b16 %v2972
  %v3492 = vunpack.c.l.b16 %v2973
  %v3493 = vunpack.c.l.b16 %v2974
  %v3494 = vunpack.c.l.b16 %v2975
  %v3495 = vunpack.c.l.b16 %v2976
  %v3496 = vunpack.c.l.b16 %v2977
  %v3497 = vunpack.c.l.b16 %v2978
  %v3498 = vunpack.c.l.b16 %v2979
  %v3499 = vunpack.c.l.b16 %v2980
  %v3500 = vunpack.c.l.b16 %v2981
  %v3501 = vunpack.c.l.b16 %v2982
  %v3502 = vunpack.c.l.b16 %v2983
  %v3503 = vunpack.c.l.b16 %v2984
  %v3504 = vunpack.c.l.b16 %v2985
  %v3505 = vunpack.c.l.b16 %v2986
  %v3506 = vunpack.c.l.b16 %v2987
  %v3507 = vunpack.c.l.b16 %v2988
  %v3508 = vunpack.c.l.b16 %v2989
  %v3509 = vunpack.c.l.b16 %v2990
  %v3510 = vunpack.c.l.b16 %v2991
  %v3511 = vunpack.c.l.b16 %v2992
  %v3512 = vunpack.c.l.b16 %v2993
  %v3513 = vunpack.c.l.b16 %v2994
  %v3514 = vunpack.c.l.b16 %v2995
  %v3515 = vunpack.c.l.b16 %v2996
  %v3516 = vunpack.c.l.b16 %v2997
  %v3517 = vunpack.c.l.b16 %v2998
  %v3518 = vunpack.c.l.b16 %v2999
  %v3519 = vunpack.c.l.b16 %v3000
  %v3520 = vunpack.c.l.b16 %v3001
  %v3521 = vunpack.c.l.b16 %v3002
  %v3522 = vunpack.c.l.b16 %v3003
  %v3523 = vunpack.c.l.b16 %v3004
  %v3524 = vunpack.c.l.b16 %v3005
  %v3525 = vunpack.c.l.b16 %v3006
  %v3526 = vunpack.c.l.b16 %v3007
  %v3527 = vunpack.c.l.b16 %v3008
  %v3528 = vunpack.c.l.b16 %v3009
  %v3529 = vunpack.c.l.b16 %v3010
  %v3530 = vunpack.c.l.b16 %v3011
  %v3531 = vunpack.c.l.b16 %v3012
  %v3532 = vunpack.c.l.b16 %v3013
  %v3533 = vunpack.c.l.b16 %v3014
  %v3534 = vunpack.c.l.b16 %v3015
  %v3535 = vunpack.c.l.b16 %v3016
  %v3536 = vunpack.c.l.b16 %v3017
  %v3537 = vunpack.c.l.b16 %v3018
  %v3538 = vunpack.c.l.b16 %v3019
  %v3539 = vunpack.c.l.b16 %v3020
  %v3540 = vunpack.c.l.b16 %v3021
  %v3541 = vunpack.c.l.b16 %v3022
  %v3542 = vunpack.c.l.b16 %v3023
  %v3543 = vunpack.c.l.b16 %v3024
  %v3544 = vunpack.c.l.b16 %v3025
  %v3545 = vunpack.c.l.b16 %v3026
  %v3546 = vunpack.c.l.b16 %v3027
  %v3547 = vunpack.c.l.b16 %v3028
  %v3548 = vunpack.c.l.b16 %v3029
  %v3549 = vunpack.c.l.b16 %v3030
  %v3550 = vunpack.c.l.b16 %v3031
  %v3551 = vunpack.c.l.b16 %v3032
  %v3552 = vunpack.c.l.b16 %v3033
  %v3553 = vunpack.c.l.b16 %v3034
  %v3554 = vunpack.c.l.b16 %v3035
  %v3555 = vunpack.c.l.b16 %v3036
  %v3556 = vunpack.c.l.b16 %v3037
  %v3557 = vunpack.c.l.b16 %v3038
  %v3558 = vunpack.c.l.b16 %v3039
  %v3559 = vunpack.c.l.b16 %v3040
  %v3560 = vunpack.c.l.b16 %v3041
  %v3561 = vunpack.c.l.b16 %v3042
  %v3562 = vunpack.c.l.b16 %v3043
  %v3563 = vunpack.c.l.b16 %v3044
  %v3564 = vunpack.c.l.b16 %v3045
  %v3565 = vunpack.c.l.b16 %v3046
  %v3566 = vunpack.c.l.b16 %v3047
  %v3567 = vunpack.c.l.b16 %v3048
  %v3568 = vunpack.c.l.b16 %v3049
  %v3569 = vunpack.c.l.b16 %v3050
  %v3570 = vunpack.c.l.b16 %v3051
  %v3571 = vunpack.c.l.b16 %v3052
  %v3572 = vunpack.c.l.b16 %v3053
  %v3573 = vunpack.c.l.b16 %v3054
  %v3574 = vunpack.c.l.b16 %v3055
  %v3575 = vunpack.c.l.b16 %v3056
  %v3576 = vunpack.c.l.b16 %v3057
  %v3577 = vunpack.c.l.b16 %v3058
  %v3578 = vunpack.c.l.b16 %v3059
  %v3579 = vunpack.c.l.b16 %v3060
  %v3580 = vunpack.c.l.b16 %v3061
  %v3581 = vunpack.c.l.b16 %v3062
  %v3582 = vunpack.c.l.b16 %v3063
  %v3583 = vunpack.c.l.b16 %v3064
  %v3584 = vunpack.c.l.b16 %v3065
  %v3585 = vunpack.c.l.b16 %v3066
  %v3586 = vunpack.c.l.b16 %v3067
  %v3587 = vunpack.c.l.b16 %v3068
  %v3588 = vunpack.c.l.b16 %v3069
  %v3589 = vunpack.c.l.b16 %v3070
  %v3590 = vunpack.c.l.b16 %v3071
  %v3591 = vunpack.c.l.b16 %v3072
  %v3592 = vunpack.c.l.b16 %v3073
  %v3593 = vunpack.c.l.b16 %v3074
  %v3594 = vunpack.c.l.b16 %v3075
  %v3595 = vunpack.c.l.b16 %v3076
  %v3596 = vunpack.c.l.b16 %v3077
  %v3597 = vunpack.c.l.b16 %v3078
  %v3598 = vunpack.c.l.b16 %v3079
  %v3599 = vunpack.c.l.b16 %v3080
  %v3600 = vunpack.c.l.b16 %v3081
  %v3601 = vunpack.c.l.b16 %v3082
  %v3602 = vunpack.c.l.b16 %v3083
  %v3603 = vunpack.c.l.b16 %v3084
  %v3604 = vunpack.c.l.b16 %v3085
  %v3605 = vunpack.c.l.b16 %v3086
  %v3606 = vunpack.c.l.b16 %v3087
  %v3607 = vunpack.c.l.b16 %v3088
  %v3608 = vunpack.c.l.b16 %v3089
  %v3609 = vunpack.c.l.b16 %v3090
  %v3610 = vunpack.c.l.b16 %v3091
  %v3611 = vunpack.c.l.b16 %v3092
  %v3612 = vunpack.c.l.b16 %v3093
  %v3613 = vunpack.c.l.b16 %v3094
  %v3614 = vunpack.c.l.b16 %v3095
  %v3615 = vunpack.c.l.b16 %v3096
  %v3616 = vunpack.c.l.b16 %v3097
  %v3617 = vunpack.c.l.b16 %v3098
  %v3618 = vunpack.c.l.b16 %v3099
  %v3619 = vunpack.c.l.b16 %v3100
  %v3620 = vunpack.c.l.b16 %v3101
  %v3621 = vunpack.c.l.b16 %v3102
  %v3622 = vunpack.c.l.b16 %v3103
  %v3623 = vunpack.c.l.b16 %v3104
  %v3624 = vunpack.c.l.b16 %v3105
  %v3625 = vunpack.c.l.b16 %v3106
  %v3626 = vunpack.c.l.b16 %v3107
  %v3627 = vunpack.c.l.b16 %v3108
  %v3628 = vunpack.c.l.b16 %v3109
  %v3629 = vpack.c.b16 %v3374, %v3373
  %v3630 = vpack.c.b16 %v3376, %v3375
  %v3631 = vpack.c.b16 %v3378, %v3377
  %v3632 = vpack.c.b16 %v3380, %v3379
  %v3633 = vpack.c.b16 %v3382, %v3381
  %v3634 = vpack.c.b16 %v3384, %v3383
  %v3635 = vpack.c.b16 %v3386, %v3385
  %v3636 = vpack.c.b16 %v3388, %v3387
  %v3637 = vpack.c.b16 %v3390, %v3389
  %v3638 = vpack.c.b16 %v3392, %v3391
  %v3639 = vpack.c.b16 %v3394, %v3393
  %v3640 = vpack.c.b16 %v3396, %v3395
  %v3641 = vpack.c.b16 %v3398, %v3397
  %v3642 = vpack.c.b16 %v3400, %v3399
  %v3643 = vpack.c.b16 %v3402, %v3401
  %v3644 = vpack.c.b16 %v3404, %v3403
  %v3645 = vpack.c.b16 %v3406, %v3405
  %v3646 = vpack.c.b16 %v3408, %v3407
  %v3647 = vpack.c.b16 %v3410, %v3409
  %v3648 = vpack.c.b16 %v3412, %v3411
  %v3649 = vpack.c.b16 %v3414, %v3413
  %v3650 = vpack.c.b16 %v3416, %v3415
  %v3651 = vpack.c.b16 %v3418, %v3417
  %v3652 = vpack.c.b16 %v3420, %v3419
  %v3653 = vpack.c.b16 %v3422, %v3421
  %v3654 = vpack.c.b16 %v3424, %v3423
  %v3655 = vpack.c.b16 %v3426, %v3425
  %v3656 = vpack.c.b16 %v3428, %v3427
  %v3657 = vpack.c.b16 %v3430, %v3429
  %v3658 = vpack.c.b16 %v3432, %v3431
  %v3659 = vpack.c.b16 %v3434, %v3433
  %v3660 = vpack.c.b16 %v3436, %v3435
  %v3661 = vpack.c.b16 %v3438, %v3437
  %v3662 = vpack.c.b16 %v3440, %v3439
  %v3663 = vpack.c.b16 %v3442, %v3441
  %v3664 = vpack.c.b16 %v3444, %v3443
  %v3665 = vpack.c.b16 %v3446, %v3445
  %v3666 = vpack.c.b16 %v3448, %v3447
  %v3667 = vpack.c.b16 %v3450, %v3449
  %v3668 = vpack.c.b16 %v3452, %v3451
  %v3669 = vpack.c.b16 %v3454, %v3453
  %v3670 = vpack.c.b16 %v3456, %v3455
  %v3671 = vpack.c.b16 %v3458, %v3457
  %v3672 = vpack.c.b16 %v3460, %v3459
  %v3673 = vpack.c.b16 %v3462, %v3461
  %v3674 = vpack.c.b16 %v3464, %v3463
  %v3675 = vpack.c.b16 %v3466, %v3465
  %v3676 = vpack.c.b16 %v3468, %v3467
  %v3677 = vpack.c.b16 %v3470, %v3469
  %v3678 = vpack.c.b16 %v3472, %v3471
  %v3679 = vpack.c.b16 %v3474, %v3473
  %v3680 = vpack.c.b16 %v3476, %v3475
  %v3681 = vpack.c.b16 %v3478, %v3477
  %v3682 = vpack.c.b16 %v3480, %v3479
  %v3683 = vpack.c.b16 %v3482, %v3481
  %v3684 = vpack.c.b16 %v3484, %v3483
  %v3685 = vpack.c.b16 %v3486, %v3485
  %v3686 = vpack.c.b16 %v3488, %v3487
  %v3687 = vpack.c.b16 %v3490, %v3489
  %v3688 = vpack.c.b16 %v3492, %v3491
  %v3689 = vpack.c.b16 %v3494, %v3493
  %v3690 = vpack.c.b16 %v3496, %v3495
  %v3691 = vpack.c.b16 %v3498, %v3497
  %v3692 = vpack.c.b16 %v3500, %v3499
  %v3693 = vpack.c.b16 %v3502, %v3501
  %v3694 = vpack.c.b16 %v3504, %v3503
  %v3695 = vpack.c.b16 %v3506, %v3505
  %v3696 = vpack.c.b16 %v3508, %v3507
  %v3697 = vpack.c.b16 %v3510, %v3509
  %v3698 = vpack.c.b16 %v3512, %v3511
  %v3699 = vpack.c.b16 %v3514, %v3513
  %v3700 = vpack.c.b16 %v3516, %v3515
  %v3701 = vpack.c.b16 %v3518, %v3517
  %v3702 = vpack.c.b16 %v3520, %v3519
  %v3703 = vpack.c.b16 %v3522, %v3521
  %v3704 = vpack.c.b16 %v3524, %v3523
  %v3705 = vpack.c.b16 %v3526, %v3525
  %v3706 = vpack.c.b16 %v3528, %v3527
  %v3707 = vpack.c.b16 %v3530, %v3529
  %v3708 = vpack.c.b16 %v3532, %v3531
  %v3709 = vpack.c.b16 %v3534, %v3533
  %v3710 = vpack.c.b16 %v3536, %v3535
  %v3711 = vpack.c.b16 %v3538, %v3537
  %v3712 = vpack.c.b16 %v3540, %v3539
  %v3713 = vpack.c.b16 %v3542, %v3541
  %v3714 = vpack.c.b16 %v3544, %v3543
  %v3715 = vpack.c.b16 %v3546, %v3545
  %v3716 = vpack.c.b16 %v3548, %v3547
  %v3717 = vpack.c.b16 %v3550, %v3549
  %v3718 = vpack.c.b16 %v3552, %v3551
  %v3719 = vpack.c.b16 %v3554, %v3553
  %v3720 = vpack.c.b16 %v3556, %v3555
  %v3721 = vpack.c.b16 %v3558, %v3557
  %v3722 = vpack.c.b16 %v3560, %v3559
  %v3723 = vpack.c.b16 %v3562, %v3561
  %v3724 = vpack.c.b16 %v3564, %v3563
  %v3725 = vpack.c.b16 %v3566, %v3565
  %v3726 = vpack.c.b16 %v3568, %v3567
  %v3727 = vpack.c.b16 %v3570, %v3569
  %v3728 = vpack.c.b16 %v3572, %v3571
  %v3729 = vpack.c.b16 %v3574, %v3573
  %v3730 = vpack.c.b16 %v3576, %v3575
  %v3731 = vpack.c.b16 %v3578, %v3577
  %v3732 = vpack.c.b16 %v3580, %v3579
  %v3733 = vpack.c.b16 %v3582, %v3581
  %v3734 = vpack.c.b16 %v3584, %v3583
  %v3735 = vpack.c.b16 %v3586, %v3585
  %v3736 = vpack.c.b16 %v3588, %v3587
  %v3737 = vpack.c.b16 %v3590, %v3589
  %v3738 = vpack.c.b16 %v3592, %v3591
  %v3739 = vpack.c.b16 %v3594, %v3593
  %v3740 = vpack.c.b16 %v3596, %v3595
  %v3741 = vpack.c.b16 %v3598, %v3597
  %v3742 = vpack.c.b16 %v3600, %v3599
  %v3743 = vpack.c.b16 %v3602, %v3601
  %v3744 = vpack.c.b16 %v3604, %v3603
  %v3745 = vpack.c.b16 %v3606, %v3605
  %v3746 = vpack.c.b16 %v3608, %v3607
  %v3747 = vpack.c.b16 %v3610, %v3609
  %v3748 = vpack.c.b16 %v3612, %v3611
  %v3749 = vpack.c.b16 %v3614, %v3613
  %v3750 = vpack.c.b16 %v3616, %v3615
  %v3751 = vpack.c.b16 %v3618, %v3617
  %v3752 = vpack.c.b16 %v3620, %v3619
  %v3753 = vpack.c.b16 %v3622, %v3621
  %v3754 = vpack.c.b16 %v3624, %v3623
  %v3755 = vpack.c.b16 %v3626, %v3625
  %v3756 = vpack.c.b16 %v3628, %v3627
  %3885 = vmatprep.subr.bf16.mxu0 0
  %3886 = vmatpush1.bf16.msra.mxu0 %v3636
  %3887 = vmatprep.subr.bf16.mxu0 0
  %3888 = vmatpush1.bf16.msra.mxu0 %v3635
  %3889 = vmatprep.subr.bf16.mxu0 0
  %3890 = vmatpush1.bf16.msra.mxu0 %v3634
  %3891 = vmatprep.subr.bf16.mxu0 0
  %3892 = vmatpush1.bf16.msra.mxu0 %v3633
  %3893 = vmatprep.subr.bf16.mxu0 0
  %3894 = vmatpush1.bf16.msra.mxu0 %v3632
  %3895 = vmatprep.subr.bf16.mxu0 0
  %3896 = vmatpush1.bf16.msra.mxu0 %v3631
  %3897 = vmatprep.subr.bf16.mxu0 0
  %3898 = vmatpush1.bf16.msra.mxu0 %v3630
  %3899 = vmatprep.subr.bf16.mxu0 0
  %3900 = vmatpush1.bf16.msra.mxu0 %v3629
  %3901 = vmatprep.subr.bf16.mxu0 0
  %3902 = vmatpush2.bf16.msra.mxu0 %v3644
  %3903 = vmatprep.subr.bf16.mxu0 0
  %3904 = vmatpush2.bf16.msra.mxu0 %v3643
  %3905 = vmatprep.subr.bf16.mxu0 0
  %3906 = vmatpush2.bf16.msra.mxu0 %v3642
  %3907 = vmatprep.subr.bf16.mxu0 0
  %3908 = vmatpush2.bf16.msra.mxu0 %v3641
  %3909 = vmatprep.subr.bf16.mxu0 0
  %3910 = vmatpush2.bf16.msra.mxu0 %v3640
  %3911 = vmatprep.subr.bf16.mxu0 0
  %3912 = vmatpush2.bf16.msra.mxu0 %v3639
  %3913 = vmatprep.subr.bf16.mxu0 0
  %3914 = vmatpush2.bf16.msra.mxu0 %v3638
  %3915 = vmatprep.subr.bf16.mxu0 0
  %3916 = vmatpush2.bf16.msra.mxu0 %v3637
  %3917 = vmatprep.mubr.bf16.mxu0 %v2839
  %3918 = vmatmul.mubr.bf16.gmra.mxu0 %v2838
  %v3919 = vpop.f32.mrf.mxu0
  %v3920 = vadd.f32 %v3115, %v3919
  %v3921 = vpop.f32.mrf.mxu0
  %v3922 = vpop.f32.mrf.mxu0
  %v3923 = vadd.f32 %v3115, %v3922
  %v3924 = vpop.f32.mrf.mxu0
  %3925 = vdwg.mxu0
  %3926 = vmatprep.subr.bf16.mxu0 0
  %3927 = vmatpush1.bf16.msra.mxu0 %v3652
  %3928 = vmatprep.subr.bf16.mxu0 0
  %3929 = vmatpush1.bf16.msra.mxu0 %v3651
  %3930 = vmatprep.subr.bf16.mxu0 0
  %3931 = vmatpush1.bf16.msra.mxu0 %v3650
  %3932 = vmatprep.subr.bf16.mxu0 0
  %3933 = vmatpush1.bf16.msra.mxu0 %v3649
  %3934 = vmatprep.subr.bf16.mxu0 0
  %3935 = vmatpush1.bf16.msra.mxu0 %v3648
  %3936 = vmatprep.subr.bf16.mxu0 0
  %3937 = vmatpush1.bf16.msra.mxu0 %v3647
  %3938 = vmatprep.subr.bf16.mxu0 0
  %3939 = vmatpush1.bf16.msra.mxu0 %v3646
  %3940 = vmatprep.subr.bf16.mxu0 0
  %3941 = vmatpush1.bf16.msra.mxu0 %v3645
  %3942 = vmatprep.subr.bf16.mxu0 0
  %3943 = vmatpush2.bf16.msra.mxu0 %v3660
  %3944 = vmatprep.subr.bf16.mxu0 0
  %3945 = vmatpush2.bf16.msra.mxu0 %v3659
  %3946 = vmatprep.subr.bf16.mxu0 0
  %3947 = vmatpush2.bf16.msra.mxu0 %v3658
  %3948 = vmatprep.subr.bf16.mxu0 0
  %3949 = vmatpush2.bf16.msra.mxu0 %v3657
  %3950 = vmatprep.subr.bf16.mxu0 0
  %3951 = vmatpush2.bf16.msra.mxu0 %v3656
  %3952 = vmatprep.subr.bf16.mxu0 0
  %3953 = vmatpush2.bf16.msra.mxu0 %v3655
  %3954 = vmatprep.subr.bf16.mxu0 0
  %3955 = vmatpush2.bf16.msra.mxu0 %v3654
  %3956 = vmatprep.subr.bf16.mxu0 0
  %3957 = vmatpush2.bf16.msra.mxu0 %v3653
  %3958 = vmatprep.mubr.bf16.mxu0 %v2841
  %3959 = vmatmul.mubr.bf16.gmra.mxu0 %v2840
  %v3960 = vpop.f32.mrf.mxu0
  %v3961 = vadd.f32 %v3920, %v3960
  %v3962 = vpop.f32.mrf.mxu0
  %v3963 = vpop.f32.mrf.mxu0
  %v3964 = vadd.f32 %v3923, %v3963
  %v3965 = vpop.f32.mrf.mxu0
  %3966 = vdwg.mxu0
  %3967 = vmatprep.subr.bf16.mxu0 0
  %3968 = vmatpush1.bf16.msra.mxu0 %v3668
  %3969 = vmatprep.subr.bf16.mxu0 0
  %3970 = vmatpush1.bf16.msra.mxu0 %v3667
  %3971 = vmatprep.subr.bf16.mxu0 0
  %3972 = vmatpush1.bf16.msra.mxu0 %v3666
  %3973 = vmatprep.subr.bf16.mxu0 0
  %3974 = vmatpush1.bf16.msra.mxu0 %v3665
  %3975 = vmatprep.subr.bf16.mxu0 0
  %3976 = vmatpush1.bf16.msra.mxu0 %v3664
  %3977 = vmatprep.subr.bf16.mxu0 0
  %3978 = vmatpush1.bf16.msra.mxu0 %v3663
  %3979 = vmatprep.subr.bf16.mxu0 0
  %3980 = vmatpush1.bf16.msra.mxu0 %v3662
  %3981 = vmatprep.subr.bf16.mxu0 0
  %3982 = vmatpush1.bf16.msra.mxu0 %v3661
  %3983 = vmatprep.subr.bf16.mxu0 0
  %3984 = vmatpush2.bf16.msra.mxu0 %v3676
  %3985 = vmatprep.subr.bf16.mxu0 0
  %3986 = vmatpush2.bf16.msra.mxu0 %v3675
  %3987 = vmatprep.subr.bf16.mxu0 0
  %3988 = vmatpush2.bf16.msra.mxu0 %v3674
  %3989 = vmatprep.subr.bf16.mxu0 0
  %3990 = vmatpush2.bf16.msra.mxu0 %v3673
  %3991 = vmatprep.subr.bf16.mxu0 0
  %3992 = vmatpush2.bf16.msra.mxu0 %v3672
  %3993 = vmatprep.subr.bf16.mxu0 0
  %3994 = vmatpush2.bf16.msra.mxu0 %v3671
  %3995 = vmatprep.subr.bf16.mxu0 0
  %3996 = vmatpush2.bf16.msra.mxu0 %v3670
  %3997 = vmatprep.subr.bf16.mxu0 0
  %3998 = vmatpush2.bf16.msra.mxu0 %v3669
  %3999 = vmatprep.mubr.bf16.mxu0 %v2843
  %4000 = vmatmul.mubr.bf16.gmra.mxu0 %v2842
  %v4001 = vpop.f32.mrf.mxu0
  %v4002 = vadd.f32 %v3961, %v4001
  %v4003 = vpop.f32.mrf.mxu0
  %v4004 = vpop.f32.mrf.mxu0
  %v4005 = vadd.f32 %v3964, %v4004
  %v4006 = vpop.f32.mrf.mxu0
  %4007 = vdwg.mxu0
  %4008 = vmatprep.subr.bf16.mxu0 0
  %4009 = vmatpush1.bf16.msra.mxu0 %v3684
  %4010 = vmatprep.subr.bf16.mxu0 0
  %4011 = vmatpush1.bf16.msra.mxu0 %v3683
  %4012 = vmatprep.subr.bf16.mxu0 0
  %4013 = vmatpush1.bf16.msra.mxu0 %v3682
  %4014 = vmatprep.subr.bf16.mxu0 0
  %4015 = vmatpush1.bf16.msra.mxu0 %v3681
  %4016 = vmatprep.subr.bf16.mxu0 0
  %4017 = vmatpush1.bf16.msra.mxu0 %v3680
  %4018 = vmatprep.subr.bf16.mxu0 0
  %4019 = vmatpush1.bf16.msra.mxu0 %v3679
  %4020 = vmatprep.subr.bf16.mxu0 0
  %4021 = vmatpush1.bf16.msra.mxu0 %v3678
  %4022 = vmatprep.subr.bf16.mxu0 0
  %4023 = vmatpush1.bf16.msra.mxu0 %v3677
  %4024 = vmatprep.subr.bf16.mxu0 0
  %4025 = vmatpush2.bf16.msra.mxu0 %v3692
  %4026 = vmatprep.subr.bf16.mxu0 0
  %4027 = vmatpush2.bf16.msra.mxu0 %v3691
  %4028 = vmatprep.subr.bf16.mxu0 0
  %4029 = vmatpush2.bf16.msra.mxu0 %v3690
  %4030 = vmatprep.subr.bf16.mxu0 0
  %4031 = vmatpush2.bf16.msra.mxu0 %v3689
  %4032 = vmatprep.subr.bf16.mxu0 0
  %4033 = vmatpush2.bf16.msra.mxu0 %v3688
  %4034 = vmatprep.subr.bf16.mxu0 0
  %4035 = vmatpush2.bf16.msra.mxu0 %v3687
  %4036 = vmatprep.subr.bf16.mxu0 0
  %4037 = vmatpush2.bf16.msra.mxu0 %v3686
  %4038 = vmatprep.subr.bf16.mxu0 0
  %4039 = vmatpush2.bf16.msra.mxu0 %v3685
  %4040 = vmatprep.mubr.bf16.mxu0 %v2845
  %4041 = vmatmul.mubr.bf16.gmra.mxu0 %v2844
  %v4042 = vpop.f32.mrf.mxu0
  %v4043 = vadd.f32 %v4002, %v4042
  %v4044 = vpop.f32.mrf.mxu0
  %v4045 = vpop.f32.mrf.mxu0
  %v4046 = vadd.f32 %v4005, %v4045
  %v4047 = vpop.f32.mrf.mxu0
  %4048 = vdwg.mxu0
  %4049 = vmatprep.subr.bf16.mxu0 0
  %4050 = vmatpush1.bf16.msra.mxu0 %v3700
  %4051 = vmatprep.subr.bf16.mxu0 0
  %4052 = vmatpush1.bf16.msra.mxu0 %v3699
  %4053 = vmatprep.subr.bf16.mxu0 0
  %4054 = vmatpush1.bf16.msra.mxu0 %v3698
  %4055 = vmatprep.subr.bf16.mxu0 0
  %4056 = vmatpush1.bf16.msra.mxu0 %v3697
  %4057 = vmatprep.subr.bf16.mxu0 0
  %4058 = vmatpush1.bf16.msra.mxu0 %v3696
  %4059 = vmatprep.subr.bf16.mxu0 0
  %4060 = vmatpush1.bf16.msra.mxu0 %v3695
  %4061 = vmatprep.subr.bf16.mxu0 0
  %4062 = vmatpush1.bf16.msra.mxu0 %v3694
  %4063 = vmatprep.subr.bf16.mxu0 0
  %4064 = vmatpush1.bf16.msra.mxu0 %v3693
  %4065 = vmatprep.subr.bf16.mxu0 0
  %4066 = vmatpush2.bf16.msra.mxu0 %v3708
  %4067 = vmatprep.subr.bf16.mxu0 0
  %4068 = vmatpush2.bf16.msra.mxu0 %v3707
  %4069 = vmatprep.subr.bf16.mxu0 0
  %4070 = vmatpush2.bf16.msra.mxu0 %v3706
  %4071 = vmatprep.subr.bf16.mxu0 0
  %4072 = vmatpush2.bf16.msra.mxu0 %v3705
  %4073 = vmatprep.subr.bf16.mxu0 0
  %4074 = vmatpush2.bf16.msra.mxu0 %v3704
  %4075 = vmatprep.subr.bf16.mxu0 0
  %4076 = vmatpush2.bf16.msra.mxu0 %v3703
  %4077 = vmatprep.subr.bf16.mxu0 0
  %4078 = vmatpush2.bf16.msra.mxu0 %v3702
  %4079 = vmatprep.subr.bf16.mxu0 0
  %4080 = vmatpush2.bf16.msra.mxu0 %v3701
  %4081 = vmatprep.mubr.bf16.mxu0 %v2847
  %4082 = vmatmul.mubr.bf16.gmra.mxu0 %v2846
  %v4083 = vpop.f32.mrf.mxu0
  %v4084 = vadd.f32 %v4043, %v4083
  %v4085 = vpop.f32.mrf.mxu0
  %v4086 = vpop.f32.mrf.mxu0
  %v4087 = vadd.f32 %v4046, %v4086
  %v4088 = vpop.f32.mrf.mxu0
  %4089 = vdwg.mxu0
  %4090 = vmatprep.subr.bf16.mxu0 0
  %4091 = vmatpush1.bf16.msra.mxu0 %v3716
  %4092 = vmatprep.subr.bf16.mxu0 0
  %4093 = vmatpush1.bf16.msra.mxu0 %v3715
  %4094 = vmatprep.subr.bf16.mxu0 0
  %4095 = vmatpush1.bf16.msra.mxu0 %v3714
  %4096 = vmatprep.subr.bf16.mxu0 0
  %4097 = vmatpush1.bf16.msra.mxu0 %v3713
  %4098 = vmatprep.subr.bf16.mxu0 0
  %4099 = vmatpush1.bf16.msra.mxu0 %v3712
  %4100 = vmatprep.subr.bf16.mxu0 0
  %4101 = vmatpush1.bf16.msra.mxu0 %v3711
  %4102 = vmatprep.subr.bf16.mxu0 0
  %4103 = vmatpush1.bf16.msra.mxu0 %v3710
  %4104 = vmatprep.subr.bf16.mxu0 0
  %4105 = vmatpush1.bf16.msra.mxu0 %v3709
  %4106 = vmatprep.subr.bf16.mxu0 0
  %4107 = vmatpush2.bf16.msra.mxu0 %v3724
  %4108 = vmatprep.subr.bf16.mxu0 0
  %4109 = vmatpush2.bf16.msra.mxu0 %v3723
  %4110 = vmatprep.subr.bf16.mxu0 0
  %4111 = vmatpush2.bf16.msra.mxu0 %v3722
  %4112 = vmatprep.subr.bf16.mxu0 0
  %4113 = vmatpush2.bf16.msra.mxu0 %v3721
  %4114 = vmatprep.subr.bf16.mxu0 0
  %4115 = vmatpush2.bf16.msra.mxu0 %v3720
  %4116 = vmatprep.subr.bf16.mxu0 0
  %4117 = vmatpush2.bf16.msra.mxu0 %v3719
  %4118 = vmatprep.subr.bf16.mxu0 0
  %4119 = vmatpush2.bf16.msra.mxu0 %v3718
  %4120 = vmatprep.subr.bf16.mxu0 0
  %4121 = vmatpush2.bf16.msra.mxu0 %v3717
  %4122 = vmatprep.mubr.bf16.mxu0 %v2849
  %4123 = vmatmul.mubr.bf16.gmra.mxu0 %v2848
  %v4124 = vpop.f32.mrf.mxu0
  %v4125 = vadd.f32 %v4084, %v4124
  %v4126 = vpop.f32.mrf.mxu0
  %v4127 = vpop.f32.mrf.mxu0
  %v4128 = vadd.f32 %v4087, %v4127
  %v4129 = vpop.f32.mrf.mxu0
  %4130 = vdwg.mxu0
  %4131 = vmatprep.subr.bf16.mxu0 0
  %4132 = vmatpush1.bf16.msra.mxu0 %v3732
  %4133 = vmatprep.subr.bf16.mxu0 0
  %4134 = vmatpush1.bf16.msra.mxu0 %v3731
  %4135 = vmatprep.subr.bf16.mxu0 0
  %4136 = vmatpush1.bf16.msra.mxu0 %v3730
  %4137 = vmatprep.subr.bf16.mxu0 0
  %4138 = vmatpush1.bf16.msra.mxu0 %v3729
  %4139 = vmatprep.subr.bf16.mxu0 0
  %4140 = vmatpush1.bf16.msra.mxu0 %v3728
  %4141 = vmatprep.subr.bf16.mxu0 0
  %4142 = vmatpush1.bf16.msra.mxu0 %v3727
  %4143 = vmatprep.subr.bf16.mxu0 0
  %4144 = vmatpush1.bf16.msra.mxu0 %v3726
  %4145 = vmatprep.subr.bf16.mxu0 0
  %4146 = vmatpush1.bf16.msra.mxu0 %v3725
  %4147 = vmatprep.subr.bf16.mxu0 0
  %4148 = vmatpush2.bf16.msra.mxu0 %v3740
  %4149 = vmatprep.subr.bf16.mxu0 0
  %4150 = vmatpush2.bf16.msra.mxu0 %v3739
  %4151 = vmatprep.subr.bf16.mxu0 0
  %4152 = vmatpush2.bf16.msra.mxu0 %v3738
  %4153 = vmatprep.subr.bf16.mxu0 0
  %4154 = vmatpush2.bf16.msra.mxu0 %v3737
  %4155 = vmatprep.subr.bf16.mxu0 0
  %4156 = vmatpush2.bf16.msra.mxu0 %v3736
  %4157 = vmatprep.subr.bf16.mxu0 0
  %4158 = vmatpush2.bf16.msra.mxu0 %v3735
  %4159 = vmatprep.subr.bf16.mxu0 0
  %4160 = vmatpush2.bf16.msra.mxu0 %v3734
  %4161 = vmatprep.subr.bf16.mxu0 0
  %4162 = vmatpush2.bf16.msra.mxu0 %v3733
  %4163 = vmatprep.mubr.bf16.mxu0 %v2851
  %4164 = vmatmul.mubr.bf16.gmra.mxu0 %v2850
  %v4165 = vpop.f32.mrf.mxu0
  %v4166 = vadd.f32 %v4125, %v4165
  %v4167 = vpop.f32.mrf.mxu0
  %v4168 = vpop.f32.mrf.mxu0
  %v4169 = vadd.f32 %v4128, %v4168
  %v4170 = vpop.f32.mrf.mxu0
  %4171 = vdwg.mxu0
  %4172 = vmatprep.subr.bf16.mxu0 0
  %4173 = vmatpush1.bf16.msra.mxu0 %v3748
  %4174 = vmatprep.subr.bf16.mxu0 0
  %4175 = vmatpush1.bf16.msra.mxu0 %v3747
  %4176 = vmatprep.subr.bf16.mxu0 0
  %4177 = vmatpush1.bf16.msra.mxu0 %v3746
  %4178 = vmatprep.subr.bf16.mxu0 0
  %4179 = vmatpush1.bf16.msra.mxu0 %v3745
  %4180 = vmatprep.subr.bf16.mxu0 0
  %4181 = vmatpush1.bf16.msra.mxu0 %v3744
  %4182 = vmatprep.subr.bf16.mxu0 0
  %4183 = vmatpush1.bf16.msra.mxu0 %v3743
  %4184 = vmatprep.subr.bf16.mxu0 0
  %4185 = vmatpush1.bf16.msra.mxu0 %v3742
  %4186 = vmatprep.subr.bf16.mxu0 0
  %4187 = vmatpush1.bf16.msra.mxu0 %v3741
  %4188 = vmatprep.subr.bf16.mxu0 0
  %4189 = vmatpush2.bf16.msra.mxu0 %v3756
  %4190 = vmatprep.subr.bf16.mxu0 0
  %4191 = vmatpush2.bf16.msra.mxu0 %v3755
  %4192 = vmatprep.subr.bf16.mxu0 0
  %4193 = vmatpush2.bf16.msra.mxu0 %v3754
  %4194 = vmatprep.subr.bf16.mxu0 0
  %4195 = vmatpush2.bf16.msra.mxu0 %v3753
  %4196 = vmatprep.subr.bf16.mxu0 0
  %4197 = vmatpush2.bf16.msra.mxu0 %v3752
  %4198 = vmatprep.subr.bf16.mxu0 0
  %4199 = vmatpush2.bf16.msra.mxu0 %v3751
  %4200 = vmatprep.subr.bf16.mxu0 0
  %4201 = vmatpush2.bf16.msra.mxu0 %v3750
  %4202 = vmatprep.subr.bf16.mxu0 0
  %4203 = vmatpush2.bf16.msra.mxu0 %v3749
  %4204 = vmatprep.mubr.bf16.mxu0 %v2853
  %4205 = vmatmul.mubr.bf16.gmra.mxu0 %v2852
  %v4206 = vpop.f32.mrf.mxu0
  %v4207 = vadd.f32 %v4166, %v4206
  %v4208 = vpop.f32.mrf.mxu0
  %v4209 = vpop.f32.mrf.mxu0
  %v4210 = vadd.f32 %v4169, %v4209
  %v4211 = vpop.f32.mrf.mxu0
  %4212 = vdwg.mxu0
  %v4213 = vadd.f32 %v2241, %v4207
  %v4214 = vadd.f32 %v2242, %v4210
  %v4215 = vld [vmem:[%s16] sm:$0x1]
  %v4216 = vld [vmem:[%s17] sm:$0x1]
  %v4217 = vsel %vm167, %v4213, 0.0
  %4218 = vadd.xlane.f32.xlu0 %v4217
  %v4219 = vpop.xlane.xlu0 %4218
  %v4220 = vsel %vm167, %v4214, 0.0
  %4221 = vadd.xlane.f32.xlu0 %v4220
  %v4222 = vpop.xlane.xlu0 %4221
  %v4223 = vmul.f32 %v4219, 0.11111111
  %v4224 = vmul.f32 %v4222, 0.11111111
  %v4225 = vmul.f32 %v4213, %v4213
  %v4226 = vmul.f32 %v4214, %v4214
  %v4227 = vsel %vm167, %v4225, 0.0
  %4228 = vadd.xlane.f32.xlu0 %v4227
  %v4229 = vpop.xlane.xlu0 %4228
  %v4230 = vsel %vm167, %v4226, 0.0
  %4231 = vadd.xlane.f32.xlu0 %v4230
  %v4232 = vpop.xlane.xlu0 %4231
  %v4233 = vmul.f32 %v4229, 0.11111111
  %v4234 = vmul.f32 %v4232, 0.11111111
  %v4235 = vmul.f32 %v4223, %v4223
  %v4236 = vmul.f32 %v4224, %v4224
  %v4237 = vsub.f32 %v4233, %v4235
  %v4238 = vsub.f32 %v4234, %v4236
  %v4239 = vsub.f32 %v4213, %v4223
  %v4240 = vsub.f32 %v4214, %v4224
  %v4241 = vadd.f32 %v4237, 1e-05
  %v4242 = vadd.f32 %v4238, 1e-05
  %v4243 = vrsqrt.pop %v4241
  %v4244 = vrsqrt.pop %v4242
  %v4245 = vmul.f32 %v4239, %v4243
  %v4246 = vmul.f32 %v4240, %v4244
  %v4248 = vlaneseq
  %v4249 = vshrl.u32 %v4248, 7
  %v4250 = vsub.s32 0, %v4249
  %v4251 = vrot.slane %v4215, %v4250
  %v4253 = vmul.f32 %v4245, %v4251
  %v4254 = vmul.f32 %v4246, %v4251
  %v4256 = vlaneseq
  %v4257 = vshrl.u32 %v4256, 7
  %v4258 = vsub.s32 0, %v4257
  %v4259 = vrot.slane %v4216, %v4258
  %v4261 = vadd.f32 %v4253, %v4259
  %v4262 = vadd.f32 %v4254, %v4259
  %s4263 = scalar_lea.vmem %s9, 1
  %v4264 = vld [vmem:[%s4263] sm:$0x1]
  %s4265 = scalar_lea.vmem %s2, 48
  %v4266 = vld [vmem:[%s4265] sm:$0xff]
  %v4267 = vld [vmem:[%s4265 + $0x8] sm:$0x1]
  %s4268 = scalar_lea.vmem %s3, 3
  %v4269 = vld [vmem:[%s4268] sm:$0x1]
  %v4271 = vlaneseq
  %v4272 = vshrl.u32 %v4271, 7
  %v4273 = vsub.s32 0, %v4272
  %v4274 = vrot.slane %v4269, %v4273
  %v4277 = vsel %vm167, %v4261, 0
  %v4280 = vsel %vm167, %v4262, 0
  %v4283 = vsel %vm174, %v4267, 0
  %4285 = vmatprep.subr.mxu0 0.0
  %4286 = vmatpush1.msra.mxu0 0.0
  %4287 = vmatprep.subr.mxu0 0.0
  %4288 = vmatpush1.msra.mxu0 0.0
  %4289 = vmatprep.subr.mxu0 0.0
  %4290 = vmatpush1.msra.mxu0 0.0
  %4291 = vmatprep.subr.mxu0 0.0
  %4292 = vmatpush1.msra.mxu0 0.0
  %4293 = vmatprep.subr.mxu0 0.0
  %4294 = vmatpush1.msra.mxu0 0.0
  %4295 = vmatprep.subr.mxu0 0.0
  %4296 = vmatpush1.msra.mxu0 0.0
  %4297 = vmatprep.subr.mxu0 0.0
  %4298 = vmatpush1.msra.mxu0 0.0
  %4299 = vmatprep.subr.mxu0 0.0
  %4300 = vmatpush1.msra.mxu0 0.0
  %4301 = vmatprep.subr.mxu0 0.0
  %4302 = vmatpush1.msra.mxu0 0.0
  %4303 = vmatprep.subr.mxu0 0.0
  %4304 = vmatpush1.msra.mxu0 0.0
  %4305 = vmatprep.subr.mxu0 0.0
  %4306 = vmatpush1.msra.mxu0 0.0
  %4307 = vmatprep.subr.mxu0 0.0
  %4308 = vmatpush1.msra.mxu0 0.0
  %4309 = vmatprep.subr.mxu0 0.0
  %4310 = vmatpush1.msra.mxu0 0.0
  %4311 = vmatprep.subr.mxu0 0.0
  %4312 = vmatpush1.msra.mxu0 0.0
  %4313 = vmatprep.subr.mxu0 0.0
  %4314 = vmatpush1.msra.mxu0 %v4283
  %4315 = vmatprep.subr.mxu0 0.0
  %4316 = vmatpush1.msra.mxu0 %v4266
  %4317 = vmatprep.subr.mxu0 0.0
  %4318 = vmatpush2.msra.mxu0 0.0
  %4319 = vmatprep.subr.mxu0 0.0
  %4320 = vmatpush2.msra.mxu0 0.0
  %4321 = vmatprep.subr.mxu0 0.0
  %4322 = vmatpush2.msra.mxu0 0.0
  %4323 = vmatprep.subr.mxu0 0.0
  %4324 = vmatpush2.msra.mxu0 0.0
  %4325 = vmatprep.subr.mxu0 0.0
  %4326 = vmatpush2.msra.mxu0 0.0
  %4327 = vmatprep.subr.mxu0 0.0
  %4328 = vmatpush2.msra.mxu0 0.0
  %4329 = vmatprep.subr.mxu0 0.0
  %4330 = vmatpush2.msra.mxu0 0.0
  %4331 = vmatprep.subr.mxu0 0.0
  %4332 = vmatpush2.msra.mxu0 0.0
  %4333 = vmatprep.subr.mxu0 0.0
  %4334 = vmatpush2.msra.mxu0 0.0
  %4335 = vmatprep.subr.mxu0 0.0
  %4336 = vmatpush2.msra.mxu0 0.0
  %4337 = vmatprep.subr.mxu0 0.0
  %4338 = vmatpush2.msra.mxu0 0.0
  %4339 = vmatprep.subr.mxu0 0.0
  %4340 = vmatpush2.msra.mxu0 0.0
  %4341 = vmatprep.subr.mxu0 0.0
  %4342 = vmatpush2.msra.mxu0 0.0
  %4343 = vmatprep.subr.mxu0 0.0
  %4344 = vmatpush2.msra.mxu0 0.0
  %4345 = vmatprep.subr.mxu0 0.0
  %4346 = vmatpush2.msra.mxu0 0.0
  %4347 = vmatprep.subr.mxu0 0.0
  %4348 = vmatpush2.msra.mxu0 0.0
  %4349 = vmatprep.mubr.f32.mxu0 0.0
  %4350 = vmatmul.mubr.f32.gmra.mxu0 %v4277
  %v4351 = vpop.f32.mrf.mxu0
  %v4352 = vadd.f32 %v4274, %v4351
  %v4353 = vpop.f32.mrf.mxu0
  %4354 = vmatprep.mubr.f32.mxu0 0.0
  %4355 = vmatmul.mubr.f32.gmra.mxu0 %v4280
  %v4356 = vpop.f32.mrf.mxu0
  %v4357 = vadd.f32 %v4274, %v4356
  %v4358 = vpop.f32.mrf.mxu0
  %4359 = vdwg.mxu0
  %s4360 = scalar_lea.vmem %s4, 48
  %v4361 = vld [vmem:[%s4360] sm:$0xff]
  %v4362 = vld [vmem:[%s4360 + $0x8] sm:$0x1]
  %s4363 = scalar_lea.vmem %s5, 3
  %v4364 = vld [vmem:[%s4363] sm:$0x1]
  %v4366 = vlaneseq
  %v4367 = vshrl.u32 %v4366, 7
  %v4368 = vsub.s32 0, %v4367
  %v4369 = vrot.slane %v4364, %v4368
  %v4372 = vsel %vm174, %v4362, 0
  %4374 = vmatprep.subr.mxu0 0.0
  %4375 = vmatpush1.msra.mxu0 0.0
  %4376 = vmatprep.subr.mxu0 0.0
  %4377 = vmatpush1.msra.mxu0 0.0
  %4378 = vmatprep.subr.mxu0 0.0
  %4379 = vmatpush1.msra.mxu0 0.0
  %4380 = vmatprep.subr.mxu0 0.0
  %4381 = vmatpush1.msra.mxu0 0.0
  %4382 = vmatprep.subr.mxu0 0.0
  %4383 = vmatpush1.msra.mxu0 0.0
  %4384 = vmatprep.subr.mxu0 0.0
  %4385 = vmatpush1.msra.mxu0 0.0
  %4386 = vmatprep.subr.mxu0 0.0
  %4387 = vmatpush1.msra.mxu0 0.0
  %4388 = vmatprep.subr.mxu0 0.0
  %4389 = vmatpush1.msra.mxu0 0.0
  %4390 = vmatprep.subr.mxu0 0.0
  %4391 = vmatpush1.msra.mxu0 0.0
  %4392 = vmatprep.subr.mxu0 0.0
  %4393 = vmatpush1.msra.mxu0 0.0
  %4394 = vmatprep.subr.mxu0 0.0
  %4395 = vmatpush1.msra.mxu0 0.0
  %4396 = vmatprep.subr.mxu0 0.0
  %4397 = vmatpush1.msra.mxu0 0.0
  %4398 = vmatprep.subr.mxu0 0.0
  %4399 = vmatpush1.msra.mxu0 0.0
  %4400 = vmatprep.subr.mxu0 0.0
  %4401 = vmatpush1.msra.mxu0 0.0
  %4402 = vmatprep.subr.mxu0 0.0
  %4403 = vmatpush1.msra.mxu0 %v4372
  %4404 = vmatprep.subr.mxu0 0.0
  %4405 = vmatpush1.msra.mxu0 %v4361
  %4406 = vmatprep.subr.mxu0 0.0
  %4407 = vmatpush2.msra.mxu0 0.0
  %4408 = vmatprep.subr.mxu0 0.0
  %4409 = vmatpush2.msra.mxu0 0.0
  %4410 = vmatprep.subr.mxu0 0.0
  %4411 = vmatpush2.msra.mxu0 0.0
  %4412 = vmatprep.subr.mxu0 0.0
  %4413 = vmatpush2.msra.mxu0 0.0
  %4414 = vmatprep.subr.mxu0 0.0
  %4415 = vmatpush2.msra.mxu0 0.0
  %4416 = vmatprep.subr.mxu0 0.0
  %4417 = vmatpush2.msra.mxu0 0.0
  %4418 = vmatprep.subr.mxu0 0.0
  %4419 = vmatpush2.msra.mxu0 0.0
  %4420 = vmatprep.subr.mxu0 0.0
  %4421 = vmatpush2.msra.mxu0 0.0
  %4422 = vmatprep.subr.mxu0 0.0
  %4423 = vmatpush2.msra.mxu0 0.0
  %4424 = vmatprep.subr.mxu0 0.0
  %4425 = vmatpush2.msra.mxu0 0.0
  %4426 = vmatprep.subr.mxu0 0.0
  %4427 = vmatpush2.msra.mxu0 0.0
  %4428 = vmatprep.subr.mxu0 0.0
  %4429 = vmatpush2.msra.mxu0 0.0
  %4430 = vmatprep.subr.mxu0 0.0
  %4431 = vmatpush2.msra.mxu0 0.0
  %4432 = vmatprep.subr.mxu0 0.0
  %4433 = vmatpush2.msra.mxu0 0.0
  %4434 = vmatprep.subr.mxu0 0.0
  %4435 = vmatpush2.msra.mxu0 0.0
  %4436 = vmatprep.subr.mxu0 0.0
  %4437 = vmatpush2.msra.mxu0 0.0
  %4438 = vmatprep.mubr.f32.mxu0 0.0
  %4439 = vmatmul.mubr.f32.gmra.mxu0 %v4277
  %v4440 = vpop.f32.mrf.mxu0
  %v4441 = vadd.f32 %v4369, %v4440
  %v4442 = vpop.f32.mrf.mxu0
  %4443 = vmatprep.mubr.f32.mxu0 0.0
  %4444 = vmatmul.mubr.f32.gmra.mxu0 %v4280
  %v4445 = vpop.f32.mrf.mxu0
  %v4446 = vadd.f32 %v4369, %v4445
  %v4447 = vpop.f32.mrf.mxu0
  %4448 = vdwg.mxu0
  %s4449 = scalar_lea.vmem %s6, 48
  %v4450 = vld [vmem:[%s4449] sm:$0xff]
  %v4451 = vld [vmem:[%s4449 + $0x8] sm:$0x1]
  %s4452 = scalar_lea.vmem %s7, 3
  %v4453 = vld [vmem:[%s4452] sm:$0x1]
  %v4455 = vlaneseq
  %v4456 = vshrl.u32 %v4455, 7
  %v4457 = vsub.s32 0, %v4456
  %v4458 = vrot.slane %v4453, %v4457
  %v4461 = vsel %vm174, %v4451, 0
  %4463 = vmatprep.subr.mxu0 0.0
  %4464 = vmatpush1.msra.mxu0 0.0
  %4465 = vmatprep.subr.mxu0 0.0
  %4466 = vmatpush1.msra.mxu0 0.0
  %4467 = vmatprep.subr.mxu0 0.0
  %4468 = vmatpush1.msra.mxu0 0.0
  %4469 = vmatprep.subr.mxu0 0.0
  %4470 = vmatpush1.msra.mxu0 0.0
  %4471 = vmatprep.subr.mxu0 0.0
  %4472 = vmatpush1.msra.mxu0 0.0
  %4473 = vmatprep.subr.mxu0 0.0
  %4474 = vmatpush1.msra.mxu0 0.0
  %4475 = vmatprep.subr.mxu0 0.0
  %4476 = vmatpush1.msra.mxu0 0.0
  %4477 = vmatprep.subr.mxu0 0.0
  %4478 = vmatpush1.msra.mxu0 0.0
  %4479 = vmatprep.subr.mxu0 0.0
  %4480 = vmatpush1.msra.mxu0 0.0
  %4481 = vmatprep.subr.mxu0 0.0
  %4482 = vmatpush1.msra.mxu0 0.0
  %4483 = vmatprep.subr.mxu0 0.0
  %4484 = vmatpush1.msra.mxu0 0.0
  %4485 = vmatprep.subr.mxu0 0.0
  %4486 = vmatpush1.msra.mxu0 0.0
  %4487 = vmatprep.subr.mxu0 0.0
  %4488 = vmatpush1.msra.mxu0 0.0
  %4489 = vmatprep.subr.mxu0 0.0
  %4490 = vmatpush1.msra.mxu0 0.0
  %4491 = vmatprep.subr.mxu0 0.0
  %4492 = vmatpush1.msra.mxu0 %v4461
  %4493 = vmatprep.subr.mxu0 0.0
  %4494 = vmatpush1.msra.mxu0 %v4450
  %4495 = vmatprep.subr.mxu0 0.0
  %4496 = vmatpush2.msra.mxu0 0.0
  %4497 = vmatprep.subr.mxu0 0.0
  %4498 = vmatpush2.msra.mxu0 0.0
  %4499 = vmatprep.subr.mxu0 0.0
  %4500 = vmatpush2.msra.mxu0 0.0
  %4501 = vmatprep.subr.mxu0 0.0
  %4502 = vmatpush2.msra.mxu0 0.0
  %4503 = vmatprep.subr.mxu0 0.0
  %4504 = vmatpush2.msra.mxu0 0.0
  %4505 = vmatprep.subr.mxu0 0.0
  %4506 = vmatpush2.msra.mxu0 0.0
  %4507 = vmatprep.subr.mxu0 0.0
  %4508 = vmatpush2.msra.mxu0 0.0
  %4509 = vmatprep.subr.mxu0 0.0
  %4510 = vmatpush2.msra.mxu0 0.0
  %4511 = vmatprep.subr.mxu0 0.0
  %4512 = vmatpush2.msra.mxu0 0.0
  %4513 = vmatprep.subr.mxu0 0.0
  %4514 = vmatpush2.msra.mxu0 0.0
  %4515 = vmatprep.subr.mxu0 0.0
  %4516 = vmatpush2.msra.mxu0 0.0
  %4517 = vmatprep.subr.mxu0 0.0
  %4518 = vmatpush2.msra.mxu0 0.0
  %4519 = vmatprep.subr.mxu0 0.0
  %4520 = vmatpush2.msra.mxu0 0.0
  %4521 = vmatprep.subr.mxu0 0.0
  %4522 = vmatpush2.msra.mxu0 0.0
  %4523 = vmatprep.subr.mxu0 0.0
  %4524 = vmatpush2.msra.mxu0 0.0
  %4525 = vmatprep.subr.mxu0 0.0
  %4526 = vmatpush2.msra.mxu0 0.0
  %4527 = vmatprep.mubr.f32.mxu0 0.0
  %4528 = vmatmul.mubr.f32.gmra.mxu0 %v4277
  %v4529 = vpop.f32.mrf.mxu0
  %v4530 = vadd.f32 %v4458, %v4529
  %v4531 = vpop.f32.mrf.mxu0
  %4532 = vmatprep.mubr.f32.mxu0 0.0
  %4533 = vmatmul.mubr.f32.gmra.mxu0 %v4280
  %v4534 = vpop.f32.mrf.mxu0
  %v4535 = vadd.f32 %v4458, %v4534
  %v4536 = vpop.f32.mrf.mxu0
  %4537 = vdwg.mxu0
  %v4539 = vsel %vm427, %v4352, 0
  %v4542 = vsel %vm427, %v4441, 0
  %4544 = vmatprep.subr.mxu0 0.0
  %4545 = vmatpush1.xpose.msra.mxu0 0.0
  %4546 = vmatprep.subr.mxu0 0.0
  %4547 = vmatpush1.xpose.msra.mxu0 0.0
  %4548 = vmatprep.subr.mxu0 0.0
  %4549 = vmatpush1.xpose.msra.mxu0 0.0
  %4550 = vmatprep.subr.mxu0 0.0
  %4551 = vmatpush1.xpose.msra.mxu0 0.0
  %4552 = vmatprep.subr.mxu0 0.0
  %4553 = vmatpush1.xpose.msra.mxu0 0.0
  %4554 = vmatprep.subr.mxu0 0.0
  %4555 = vmatpush1.xpose.msra.mxu0 0.0
  %4556 = vmatprep.subr.mxu0 0.0
  %4557 = vmatpush1.xpose.msra.mxu0 0.0
  %4558 = vmatprep.subr.mxu0 0.0
  %4559 = vmatpush1.xpose.msra.mxu0 0.0
  %4560 = vmatprep.subr.mxu0 0.0
  %4561 = vmatpush1.xpose.msra.mxu0 0.0
  %4562 = vmatprep.subr.mxu0 0.0
  %4563 = vmatpush1.xpose.msra.mxu0 0.0
  %4564 = vmatprep.subr.mxu0 0.0
  %4565 = vmatpush1.xpose.msra.mxu0 0.0
  %4566 = vmatprep.subr.mxu0 0.0
  %4567 = vmatpush1.xpose.msra.mxu0 0.0
  %4568 = vmatprep.subr.mxu0 0.0
  %4569 = vmatpush1.xpose.msra.mxu0 0.0
  %4570 = vmatprep.subr.mxu0 0.0
  %4571 = vmatpush1.xpose.msra.mxu0 0.0
  %4572 = vmatprep.subr.mxu0 0.0
  %4573 = vmatpush1.xpose.msra.mxu0 0.0
  %4574 = vmatprep.subr.mxu0 0.0
  %4575 = vmatpush1.xpose.msra.mxu0 %v4542
  %4576 = vmatprep.subr.mxu0 0.0
  %4577 = vmatpush2.xpose.msra.mxu0 0.0
  %4578 = vmatprep.subr.mxu0 0.0
  %4579 = vmatpush2.xpose.msra.mxu0 0.0
  %4580 = vmatprep.subr.mxu0 0.0
  %4581 = vmatpush2.xpose.msra.mxu0 0.0
  %4582 = vmatprep.subr.mxu0 0.0
  %4583 = vmatpush2.xpose.msra.mxu0 0.0
  %4584 = vmatprep.subr.mxu0 0.0
  %4585 = vmatpush2.xpose.msra.mxu0 0.0
  %4586 = vmatprep.subr.mxu0 0.0
  %4587 = vmatpush2.xpose.msra.mxu0 0.0
  %4588 = vmatprep.subr.mxu0 0.0
  %4589 = vmatpush2.xpose.msra.mxu0 0.0
  %4590 = vmatprep.subr.mxu0 0.0
  %4591 = vmatpush2.xpose.msra.mxu0 0.0
  %4592 = vmatprep.subr.mxu0 0.0
  %4593 = vmatpush2.xpose.msra.mxu0 0.0
  %4594 = vmatprep.subr.mxu0 0.0
  %4595 = vmatpush2.xpose.msra.mxu0 0.0
  %4596 = vmatprep.subr.mxu0 0.0
  %4597 = vmatpush2.xpose.msra.mxu0 0.0
  %4598 = vmatprep.subr.mxu0 0.0
  %4599 = vmatpush2.xpose.msra.mxu0 0.0
  %4600 = vmatprep.subr.mxu0 0.0
  %4601 = vmatpush2.xpose.msra.mxu0 0.0
  %4602 = vmatprep.subr.mxu0 0.0
  %4603 = vmatpush2.xpose.msra.mxu0 0.0
  %4604 = vmatprep.subr.mxu0 0.0
  %4605 = vmatpush2.xpose.msra.mxu0 0.0
  %4606 = vmatprep.subr.mxu0 0.0
  %4607 = vmatpush2.xpose.msra.mxu0 0.0
  %4608 = vmatprep.mubr.f32.mxu0 0.0
  %4609 = vmatmul.mubr.f32.gmra.mxu0 %v4539
  %v4610 = vpop.f32.mrf.mxu0
  %v4611 = vadd.f32 0.0, %v4610
  %v4612 = vpop.f32.mrf.mxu0
  %4613 = vdwg.mxu0
  %v4615 = vsel %vm427, %v4357, 0
  %v4618 = vsel %vm427, %v4446, 0
  %4620 = vmatprep.subr.mxu0 0.0
  %4621 = vmatpush1.xpose.msra.mxu0 0.0
  %4622 = vmatprep.subr.mxu0 0.0
  %4623 = vmatpush1.xpose.msra.mxu0 0.0
  %4624 = vmatprep.subr.mxu0 0.0
  %4625 = vmatpush1.xpose.msra.mxu0 0.0
  %4626 = vmatprep.subr.mxu0 0.0
  %4627 = vmatpush1.xpose.msra.mxu0 0.0
  %4628 = vmatprep.subr.mxu0 0.0
  %4629 = vmatpush1.xpose.msra.mxu0 0.0
  %4630 = vmatprep.subr.mxu0 0.0
  %4631 = vmatpush1.xpose.msra.mxu0 0.0
  %4632 = vmatprep.subr.mxu0 0.0
  %4633 = vmatpush1.xpose.msra.mxu0 0.0
  %4634 = vmatprep.subr.mxu0 0.0
  %4635 = vmatpush1.xpose.msra.mxu0 0.0
  %4636 = vmatprep.subr.mxu0 0.0
  %4637 = vmatpush1.xpose.msra.mxu0 0.0
  %4638 = vmatprep.subr.mxu0 0.0
  %4639 = vmatpush1.xpose.msra.mxu0 0.0
  %4640 = vmatprep.subr.mxu0 0.0
  %4641 = vmatpush1.xpose.msra.mxu0 0.0
  %4642 = vmatprep.subr.mxu0 0.0
  %4643 = vmatpush1.xpose.msra.mxu0 0.0
  %4644 = vmatprep.subr.mxu0 0.0
  %4645 = vmatpush1.xpose.msra.mxu0 0.0
  %4646 = vmatprep.subr.mxu0 0.0
  %4647 = vmatpush1.xpose.msra.mxu0 0.0
  %4648 = vmatprep.subr.mxu0 0.0
  %4649 = vmatpush1.xpose.msra.mxu0 0.0
  %4650 = vmatprep.subr.mxu0 0.0
  %4651 = vmatpush1.xpose.msra.mxu0 %v4618
  %4652 = vmatprep.subr.mxu0 0.0
  %4653 = vmatpush2.xpose.msra.mxu0 0.0
  %4654 = vmatprep.subr.mxu0 0.0
  %4655 = vmatpush2.xpose.msra.mxu0 0.0
  %4656 = vmatprep.subr.mxu0 0.0
  %4657 = vmatpush2.xpose.msra.mxu0 0.0
  %4658 = vmatprep.subr.mxu0 0.0
  %4659 = vmatpush2.xpose.msra.mxu0 0.0
  %4660 = vmatprep.subr.mxu0 0.0
  %4661 = vmatpush2.xpose.msra.mxu0 0.0
  %4662 = vmatprep.subr.mxu0 0.0
  %4663 = vmatpush2.xpose.msra.mxu0 0.0
  %4664 = vmatprep.subr.mxu0 0.0
  %4665 = vmatpush2.xpose.msra.mxu0 0.0
  %4666 = vmatprep.subr.mxu0 0.0
  %4667 = vmatpush2.xpose.msra.mxu0 0.0
  %4668 = vmatprep.subr.mxu0 0.0
  %4669 = vmatpush2.xpose.msra.mxu0 0.0
  %4670 = vmatprep.subr.mxu0 0.0
  %4671 = vmatpush2.xpose.msra.mxu0 0.0
  %4672 = vmatprep.subr.mxu0 0.0
  %4673 = vmatpush2.xpose.msra.mxu0 0.0
  %4674 = vmatprep.subr.mxu0 0.0
  %4675 = vmatpush2.xpose.msra.mxu0 0.0
  %4676 = vmatprep.subr.mxu0 0.0
  %4677 = vmatpush2.xpose.msra.mxu0 0.0
  %4678 = vmatprep.subr.mxu0 0.0
  %4679 = vmatpush2.xpose.msra.mxu0 0.0
  %4680 = vmatprep.subr.mxu0 0.0
  %4681 = vmatpush2.xpose.msra.mxu0 0.0
  %4682 = vmatprep.subr.mxu0 0.0
  %4683 = vmatpush2.xpose.msra.mxu0 0.0
  %4684 = vmatprep.mubr.f32.mxu0 0.0
  %4685 = vmatmul.mubr.f32.gmra.mxu0 %v4615
  %v4686 = vpop.f32.mrf.mxu0
  %v4687 = vadd.f32 0.0, %v4686
  %v4688 = vpop.f32.mrf.mxu0
  %4689 = vdwg.mxu0
  %v4690 = vsel %vm580, %v4611, -inf
  %4691 = vmax.xlane.f32.xlu0 %v4690
  %v4692 = vpop.xlane.xlu0 %4691
  %v4693 = vsel %vm580, %v4687, -inf
  %4694 = vmax.xlane.f32.xlu0 %v4693
  %v4695 = vpop.xlane.xlu0 %4694
  %v4696 = vsub.f32 %v4611, %v4692
  %v4697 = vsub.f32 %v4687, %v4695
  %v4698 = vmul.f32 %v4696, 1.442695
  %v4699 = vpow.pop %v4698
  %v4700 = vmul.f32 %v4697, 1.442695
  %v4701 = vpow.pop %v4700
  %v4702 = vsel %vm580, %v4699, 0.0
  %4703 = vadd.xlane.f32.xlu0 %v4702
  %v4704 = vpop.xlane.xlu0 %4703
  %v4705 = vsel %vm580, %v4701, 0.0
  %4706 = vadd.xlane.f32.xlu0 %v4705
  %v4707 = vpop.xlane.xlu0 %4706
  %v4708 = vrcp.pop %v4704
  %v4709 = vmul.f32 %v4699, %v4708
  %v4710 = vrcp.pop %v4707
  %v4711 = vmul.f32 %v4701, %v4710
  %v4713 = vsel %vm580, %v4709, 0
  %4715 = vmatprep.subr.mxu0 0.0
  %4716 = vmatpush1.msra.mxu0 0.0
  %4717 = vmatprep.subr.mxu0 0.0
  %4718 = vmatpush1.msra.mxu0 0.0
  %4719 = vmatprep.subr.mxu0 0.0
  %4720 = vmatpush1.msra.mxu0 0.0
  %4721 = vmatprep.subr.mxu0 0.0
  %4722 = vmatpush1.msra.mxu0 0.0
  %4723 = vmatprep.subr.mxu0 0.0
  %4724 = vmatpush1.msra.mxu0 0.0
  %4725 = vmatprep.subr.mxu0 0.0
  %4726 = vmatpush1.msra.mxu0 0.0
  %4727 = vmatprep.subr.mxu0 0.0
  %4728 = vmatpush1.msra.mxu0 0.0
  %4729 = vmatprep.subr.mxu0 0.0
  %4730 = vmatpush1.msra.mxu0 0.0
  %4731 = vmatprep.subr.mxu0 0.0
  %4732 = vmatpush1.msra.mxu0 0.0
  %4733 = vmatprep.subr.mxu0 0.0
  %4734 = vmatpush1.msra.mxu0 0.0
  %4735 = vmatprep.subr.mxu0 0.0
  %4736 = vmatpush1.msra.mxu0 0.0
  %4737 = vmatprep.subr.mxu0 0.0
  %4738 = vmatpush1.msra.mxu0 0.0
  %4739 = vmatprep.subr.mxu0 0.0
  %4740 = vmatpush1.msra.mxu0 0.0
  %4741 = vmatprep.subr.mxu0 0.0
  %4742 = vmatpush1.msra.mxu0 0.0
  %4743 = vmatprep.subr.mxu0 0.0
  %4744 = vmatpush1.msra.mxu0 0.0
  %4745 = vmatprep.subr.mxu0 0.0
  %4746 = vmatpush1.msra.mxu0 %v4530
  %4747 = vmatprep.subr.mxu0 0.0
  %4748 = vmatpush2.msra.mxu0 0.0
  %4749 = vmatprep.subr.mxu0 0.0
  %4750 = vmatpush2.msra.mxu0 0.0
  %4751 = vmatprep.subr.mxu0 0.0
  %4752 = vmatpush2.msra.mxu0 0.0
  %4753 = vmatprep.subr.mxu0 0.0
  %4754 = vmatpush2.msra.mxu0 0.0
  %4755 = vmatprep.subr.mxu0 0.0
  %4756 = vmatpush2.msra.mxu0 0.0
  %4757 = vmatprep.subr.mxu0 0.0
  %4758 = vmatpush2.msra.mxu0 0.0
  %4759 = vmatprep.subr.mxu0 0.0
  %4760 = vmatpush2.msra.mxu0 0.0
  %4761 = vmatprep.subr.mxu0 0.0
  %4762 = vmatpush2.msra.mxu0 0.0
  %4763 = vmatprep.subr.mxu0 0.0
  %4764 = vmatpush2.msra.mxu0 0.0
  %4765 = vmatprep.subr.mxu0 0.0
  %4766 = vmatpush2.msra.mxu0 0.0
  %4767 = vmatprep.subr.mxu0 0.0
  %4768 = vmatpush2.msra.mxu0 0.0
  %4769 = vmatprep.subr.mxu0 0.0
  %4770 = vmatpush2.msra.mxu0 0.0
  %4771 = vmatprep.subr.mxu0 0.0
  %4772 = vmatpush2.msra.mxu0 0.0
  %4773 = vmatprep.subr.mxu0 0.0
  %4774 = vmatpush2.msra.mxu0 0.0
  %4775 = vmatprep.subr.mxu0 0.0
  %4776 = vmatpush2.msra.mxu0 0.0
  %4777 = vmatprep.subr.mxu0 0.0
  %4778 = vmatpush2.msra.mxu0 0.0
  %4779 = vmatprep.mubr.f32.mxu0 0.0
  %4780 = vmatmul.mubr.f32.gmra.mxu0 %v4713
  %v4781 = vpop.f32.mrf.mxu0
  %v4782 = vadd.f32 0.0, %v4781
  %v4783 = vpop.f32.mrf.mxu0
  %4784 = vdwg.mxu0
  %v4786 = vsel %vm580, %v4711, 0
  %4788 = vmatprep.subr.mxu0 0.0
  %4789 = vmatpush1.msra.mxu0 0.0
  %4790 = vmatprep.subr.mxu0 0.0
  %4791 = vmatpush1.msra.mxu0 0.0
  %4792 = vmatprep.subr.mxu0 0.0
  %4793 = vmatpush1.msra.mxu0 0.0
  %4794 = vmatprep.subr.mxu0 0.0
  %4795 = vmatpush1.msra.mxu0 0.0
  %4796 = vmatprep.subr.mxu0 0.0
  %4797 = vmatpush1.msra.mxu0 0.0
  %4798 = vmatprep.subr.mxu0 0.0
  %4799 = vmatpush1.msra.mxu0 0.0
  %4800 = vmatprep.subr.mxu0 0.0
  %4801 = vmatpush1.msra.mxu0 0.0
  %4802 = vmatprep.subr.mxu0 0.0
  %4803 = vmatpush1.msra.mxu0 0.0
  %4804 = vmatprep.subr.mxu0 0.0
  %4805 = vmatpush1.msra.mxu0 0.0
  %4806 = vmatprep.subr.mxu0 0.0
  %4807 = vmatpush1.msra.mxu0 0.0
  %4808 = vmatprep.subr.mxu0 0.0
  %4809 = vmatpush1.msra.mxu0 0.0
  %4810 = vmatprep.subr.mxu0 0.0
  %4811 = vmatpush1.msra.mxu0 0.0
  %4812 = vmatprep.subr.mxu0 0.0
  %4813 = vmatpush1.msra.mxu0 0.0
  %4814 = vmatprep.subr.mxu0 0.0
  %4815 = vmatpush1.msra.mxu0 0.0
  %4816 = vmatprep.subr.mxu0 0.0
  %4817 = vmatpush1.msra.mxu0 0.0
  %4818 = vmatprep.subr.mxu0 0.0
  %4819 = vmatpush1.msra.mxu0 %v4535
  %4820 = vmatprep.subr.mxu0 0.0
  %4821 = vmatpush2.msra.mxu0 0.0
  %4822 = vmatprep.subr.mxu0 0.0
  %4823 = vmatpush2.msra.mxu0 0.0
  %4824 = vmatprep.subr.mxu0 0.0
  %4825 = vmatpush2.msra.mxu0 0.0
  %4826 = vmatprep.subr.mxu0 0.0
  %4827 = vmatpush2.msra.mxu0 0.0
  %4828 = vmatprep.subr.mxu0 0.0
  %4829 = vmatpush2.msra.mxu0 0.0
  %4830 = vmatprep.subr.mxu0 0.0
  %4831 = vmatpush2.msra.mxu0 0.0
  %4832 = vmatprep.subr.mxu0 0.0
  %4833 = vmatpush2.msra.mxu0 0.0
  %4834 = vmatprep.subr.mxu0 0.0
  %4835 = vmatpush2.msra.mxu0 0.0
  %4836 = vmatprep.subr.mxu0 0.0
  %4837 = vmatpush2.msra.mxu0 0.0
  %4838 = vmatprep.subr.mxu0 0.0
  %4839 = vmatpush2.msra.mxu0 0.0
  %4840 = vmatprep.subr.mxu0 0.0
  %4841 = vmatpush2.msra.mxu0 0.0
  %4842 = vmatprep.subr.mxu0 0.0
  %4843 = vmatpush2.msra.mxu0 0.0
  %4844 = vmatprep.subr.mxu0 0.0
  %4845 = vmatpush2.msra.mxu0 0.0
  %4846 = vmatprep.subr.mxu0 0.0
  %4847 = vmatpush2.msra.mxu0 0.0
  %4848 = vmatprep.subr.mxu0 0.0
  %4849 = vmatpush2.msra.mxu0 0.0
  %4850 = vmatprep.subr.mxu0 0.0
  %4851 = vmatpush2.msra.mxu0 0.0
  %4852 = vmatprep.mubr.f32.mxu0 0.0
  %4853 = vmatmul.mubr.f32.gmra.mxu0 %v4786
  %v4854 = vpop.f32.mrf.mxu0
  %v4855 = vadd.f32 0.0, %v4854
  %v4856 = vpop.f32.mrf.mxu0
  %4857 = vdwg.mxu0
  %s4858 = scalar_lea.vmem %s8, 12
  %v4859 = vld [vmem:[%s4858] sm:$0x7]
  %v4861 = vsel %vm427, %v4782, 0
  %v4864 = vsel %vm427, %v4855, 0
  %v4867 = vsel %vm756, %v4859, 0
  %4869 = vmatprep.subr.mxu0 0.0
  %4870 = vmatpush1.msra.mxu0 0.0
  %4871 = vmatprep.subr.mxu0 0.0
  %4872 = vmatpush1.msra.mxu0 0.0
  %4873 = vmatprep.subr.mxu0 0.0
  %4874 = vmatpush1.msra.mxu0 0.0
  %4875 = vmatprep.subr.mxu0 0.0
  %4876 = vmatpush1.msra.mxu0 0.0
  %4877 = vmatprep.subr.mxu0 0.0
  %4878 = vmatpush1.msra.mxu0 0.0
  %4879 = vmatprep.subr.mxu0 0.0
  %4880 = vmatpush1.msra.mxu0 0.0
  %4881 = vmatprep.subr.mxu0 0.0
  %4882 = vmatpush1.msra.mxu0 0.0
  %4883 = vmatprep.subr.mxu0 0.0
  %4884 = vmatpush1.msra.mxu0 0.0
  %4885 = vmatprep.subr.mxu0 0.0
  %4886 = vmatpush1.msra.mxu0 0.0
  %4887 = vmatprep.subr.mxu0 0.0
  %4888 = vmatpush1.msra.mxu0 0.0
  %4889 = vmatprep.subr.mxu0 0.0
  %4890 = vmatpush1.msra.mxu0 0.0
  %4891 = vmatprep.subr.mxu0 0.0
  %4892 = vmatpush1.msra.mxu0 0.0
  %4893 = vmatprep.subr.mxu0 0.0
  %4894 = vmatpush1.msra.mxu0 0.0
  %4895 = vmatprep.subr.mxu0 0.0
  %4896 = vmatpush1.msra.mxu0 0.0
  %4897 = vmatprep.subr.mxu0 0.0
  %4898 = vmatpush1.msra.mxu0 0.0
  %4899 = vmatprep.subr.mxu0 0.0
  %4900 = vmatpush1.msra.mxu0 %v4867
  %4901 = vmatprep.subr.mxu0 0.0
  %4902 = vmatpush2.msra.mxu0 0.0
  %4903 = vmatprep.subr.mxu0 0.0
  %4904 = vmatpush2.msra.mxu0 0.0
  %4905 = vmatprep.subr.mxu0 0.0
  %4906 = vmatpush2.msra.mxu0 0.0
  %4907 = vmatprep.subr.mxu0 0.0
  %4908 = vmatpush2.msra.mxu0 0.0
  %4909 = vmatprep.subr.mxu0 0.0
  %4910 = vmatpush2.msra.mxu0 0.0
  %4911 = vmatprep.subr.mxu0 0.0
  %4912 = vmatpush2.msra.mxu0 0.0
  %4913 = vmatprep.subr.mxu0 0.0
  %4914 = vmatpush2.msra.mxu0 0.0
  %4915 = vmatprep.subr.mxu0 0.0
  %4916 = vmatpush2.msra.mxu0 0.0
  %4917 = vmatprep.subr.mxu0 0.0
  %4918 = vmatpush2.msra.mxu0 0.0
  %4919 = vmatprep.subr.mxu0 0.0
  %4920 = vmatpush2.msra.mxu0 0.0
  %4921 = vmatprep.subr.mxu0 0.0
  %4922 = vmatpush2.msra.mxu0 0.0
  %4923 = vmatprep.subr.mxu0 0.0
  %4924 = vmatpush2.msra.mxu0 0.0
  %4925 = vmatprep.subr.mxu0 0.0
  %4926 = vmatpush2.msra.mxu0 0.0
  %4927 = vmatprep.subr.mxu0 0.0
  %4928 = vmatpush2.msra.mxu0 0.0
  %4929 = vmatprep.subr.mxu0 0.0
  %4930 = vmatpush2.msra.mxu0 0.0
  %4931 = vmatprep.subr.mxu0 0.0
  %4932 = vmatpush2.msra.mxu0 0.0
  %4933 = vmatprep.mubr.f32.mxu0 0.0
  %4934 = vmatmul.mubr.f32.gmra.mxu0 %v4861
  %v4935 = vpop.f32.mrf.mxu0
  %v4936 = vadd.f32 0.0, %v4935
  %v4937 = vpop.f32.mrf.mxu0
  %4938 = vmatprep.mubr.f32.mxu0 0.0
  %4939 = vmatmul.mubr.f32.gmra.mxu0 %v4864
  %v4940 = vpop.f32.mrf.mxu0
  %v4941 = vadd.f32 0.0, %v4940
  %v4942 = vpop.f32.mrf.mxu0
  %4943 = vdwg.mxu0
  %v4945 = vlaneseq
  %v4946 = vshrl.u32 %v4945, 7
  %v4947 = vsub.s32 0, %v4946
  %v4948 = vrot.slane %v4264, %v4947
  %v4950 = vadd.f32 %v4948, %v4936
  %v4951 = vadd.f32 %v4948, %v4941
  %s4952 = scalar_lea.vmem %s2, 64
  %v4953 = vld [vmem:[%s4952] sm:$0xff]
  %v4954 = vld [vmem:[%s4952 + $0x8] sm:$0x1]
  %s4955 = scalar_lea.vmem %s3, 4
  %v4956 = vld [vmem:[%s4955] sm:$0x1]
  %v4958 = vlaneseq
  %v4959 = vshrl.u32 %v4958, 7
  %v4960 = vsub.s32 0, %v4959
  %v4961 = vrot.slane %v4956, %v4960
  %v4964 = vsel %vm174, %v4954, 0
  %4966 = vmatprep.subr.mxu0 0.0
  %4967 = vmatpush1.msra.mxu0 0.0
  %4968 = vmatprep.subr.mxu0 0.0
  %4969 = vmatpush1.msra.mxu0 0.0
  %4970 = vmatprep.subr.mxu0 0.0
  %4971 = vmatpush1.msra.mxu0 0.0
  %4972 = vmatprep.subr.mxu0 0.0
  %4973 = vmatpush1.msra.mxu0 0.0
  %4974 = vmatprep.subr.mxu0 0.0
  %4975 = vmatpush1.msra.mxu0 0.0
  %4976 = vmatprep.subr.mxu0 0.0
  %4977 = vmatpush1.msra.mxu0 0.0
  %4978 = vmatprep.subr.mxu0 0.0
  %4979 = vmatpush1.msra.mxu0 0.0
  %4980 = vmatprep.subr.mxu0 0.0
  %4981 = vmatpush1.msra.mxu0 0.0
  %4982 = vmatprep.subr.mxu0 0.0
  %4983 = vmatpush1.msra.mxu0 0.0
  %4984 = vmatprep.subr.mxu0 0.0
  %4985 = vmatpush1.msra.mxu0 0.0
  %4986 = vmatprep.subr.mxu0 0.0
  %4987 = vmatpush1.msra.mxu0 0.0
  %4988 = vmatprep.subr.mxu0 0.0
  %4989 = vmatpush1.msra.mxu0 0.0
  %4990 = vmatprep.subr.mxu0 0.0
  %4991 = vmatpush1.msra.mxu0 0.0
  %4992 = vmatprep.subr.mxu0 0.0
  %4993 = vmatpush1.msra.mxu0 0.0
  %4994 = vmatprep.subr.mxu0 0.0
  %4995 = vmatpush1.msra.mxu0 %v4964
  %4996 = vmatprep.subr.mxu0 0.0
  %4997 = vmatpush1.msra.mxu0 %v4953
  %4998 = vmatprep.subr.mxu0 0.0
  %4999 = vmatpush2.msra.mxu0 0.0
  %5000 = vmatprep.subr.mxu0 0.0
  %5001 = vmatpush2.msra.mxu0 0.0
  %5002 = vmatprep.subr.mxu0 0.0
  %5003 = vmatpush2.msra.mxu0 0.0
  %5004 = vmatprep.subr.mxu0 0.0
  %5005 = vmatpush2.msra.mxu0 0.0
  %5006 = vmatprep.subr.mxu0 0.0
  %5007 = vmatpush2.msra.mxu0 0.0
  %5008 = vmatprep.subr.mxu0 0.0
  %5009 = vmatpush2.msra.mxu0 0.0
  %5010 = vmatprep.subr.mxu0 0.0
  %5011 = vmatpush2.msra.mxu0 0.0
  %5012 = vmatprep.subr.mxu0 0.0
  %5013 = vmatpush2.msra.mxu0 0.0
  %5014 = vmatprep.subr.mxu0 0.0
  %5015 = vmatpush2.msra.mxu0 0.0
  %5016 = vmatprep.subr.mxu0 0.0
  %5017 = vmatpush2.msra.mxu0 0.0
  %5018 = vmatprep.subr.mxu0 0.0
  %5019 = vmatpush2.msra.mxu0 0.0
  %5020 = vmatprep.subr.mxu0 0.0
  %5021 = vmatpush2.msra.mxu0 0.0
  %5022 = vmatprep.subr.mxu0 0.0
  %5023 = vmatpush2.msra.mxu0 0.0
  %5024 = vmatprep.subr.mxu0 0.0
  %5025 = vmatpush2.msra.mxu0 0.0
  %5026 = vmatprep.subr.mxu0 0.0
  %5027 = vmatpush2.msra.mxu0 0.0
  %5028 = vmatprep.subr.mxu0 0.0
  %5029 = vmatpush2.msra.mxu0 0.0
  %5030 = vmatprep.mubr.f32.mxu0 0.0
  %5031 = vmatmul.mubr.f32.gmra.mxu0 %v4277
  %v5032 = vpop.f32.mrf.mxu0
  %v5033 = vadd.f32 %v4961, %v5032
  %v5034 = vpop.f32.mrf.mxu0
  %5035 = vmatprep.mubr.f32.mxu0 0.0
  %5036 = vmatmul.mubr.f32.gmra.mxu0 %v4280
  %v5037 = vpop.f32.mrf.mxu0
  %v5038 = vadd.f32 %v4961, %v5037
  %v5039 = vpop.f32.mrf.mxu0
  %5040 = vdwg.mxu0
  %s5041 = scalar_lea.vmem %s4, 64
  %v5042 = vld [vmem:[%s5041] sm:$0xff]
  %v5043 = vld [vmem:[%s5041 + $0x8] sm:$0x1]
  %s5044 = scalar_lea.vmem %s5, 4
  %v5045 = vld [vmem:[%s5044] sm:$0x1]
  %v5047 = vlaneseq
  %v5048 = vshrl.u32 %v5047, 7
  %v5049 = vsub.s32 0, %v5048
  %v5050 = vrot.slane %v5045, %v5049
  %v5053 = vsel %vm174, %v5043, 0
  %5055 = vmatprep.subr.mxu0 0.0
  %5056 = vmatpush1.msra.mxu0 0.0
  %5057 = vmatprep.subr.mxu0 0.0
  %5058 = vmatpush1.msra.mxu0 0.0
  %5059 = vmatprep.subr.mxu0 0.0
  %5060 = vmatpush1.msra.mxu0 0.0
  %5061 = vmatprep.subr.mxu0 0.0
  %5062 = vmatpush1.msra.mxu0 0.0
  %5063 = vmatprep.subr.mxu0 0.0
  %5064 = vmatpush1.msra.mxu0 0.0
  %5065 = vmatprep.subr.mxu0 0.0
  %5066 = vmatpush1.msra.mxu0 0.0
  %5067 = vmatprep.subr.mxu0 0.0
  %5068 = vmatpush1.msra.mxu0 0.0
  %5069 = vmatprep.subr.mxu0 0.0
  %5070 = vmatpush1.msra.mxu0 0.0
  %5071 = vmatprep.subr.mxu0 0.0
  %5072 = vmatpush1.msra.mxu0 0.0
  %5073 = vmatprep.subr.mxu0 0.0
  %5074 = vmatpush1.msra.mxu0 0.0
  %5075 = vmatprep.subr.mxu0 0.0
  %5076 = vmatpush1.msra.mxu0 0.0
  %5077 = vmatprep.subr.mxu0 0.0
  %5078 = vmatpush1.msra.mxu0 0.0
  %5079 = vmatprep.subr.mxu0 0.0
  %5080 = vmatpush1.msra.mxu0 0.0
  %5081 = vmatprep.subr.mxu0 0.0
  %5082 = vmatpush1.msra.mxu0 0.0
  %5083 = vmatprep.subr.mxu0 0.0
  %5084 = vmatpush1.msra.mxu0 %v5053
  %5085 = vmatprep.subr.mxu0 0.0
  %5086 = vmatpush1.msra.mxu0 %v5042
  %5087 = vmatprep.subr.mxu0 0.0
  %5088 = vmatpush2.msra.mxu0 0.0
  %5089 = vmatprep.subr.mxu0 0.0
  %5090 = vmatpush2.msra.mxu0 0.0
  %5091 = vmatprep.subr.mxu0 0.0
  %5092 = vmatpush2.msra.mxu0 0.0
  %5093 = vmatprep.subr.mxu0 0.0
  %5094 = vmatpush2.msra.mxu0 0.0
  %5095 = vmatprep.subr.mxu0 0.0
  %5096 = vmatpush2.msra.mxu0 0.0
  %5097 = vmatprep.subr.mxu0 0.0
  %5098 = vmatpush2.msra.mxu0 0.0
  %5099 = vmatprep.subr.mxu0 0.0
  %5100 = vmatpush2.msra.mxu0 0.0
  %5101 = vmatprep.subr.mxu0 0.0
  %5102 = vmatpush2.msra.mxu0 0.0
  %5103 = vmatprep.subr.mxu0 0.0
  %5104 = vmatpush2.msra.mxu0 0.0
  %5105 = vmatprep.subr.mxu0 0.0
  %5106 = vmatpush2.msra.mxu0 0.0
  %5107 = vmatprep.subr.mxu0 0.0
  %5108 = vmatpush2.msra.mxu0 0.0
  %5109 = vmatprep.subr.mxu0 0.0
  %5110 = vmatpush2.msra.mxu0 0.0
  %5111 = vmatprep.subr.mxu0 0.0
  %5112 = vmatpush2.msra.mxu0 0.0
  %5113 = vmatprep.subr.mxu0 0.0
  %5114 = vmatpush2.msra.mxu0 0.0
  %5115 = vmatprep.subr.mxu0 0.0
  %5116 = vmatpush2.msra.mxu0 0.0
  %5117 = vmatprep.subr.mxu0 0.0
  %5118 = vmatpush2.msra.mxu0 0.0
  %5119 = vmatprep.mubr.f32.mxu0 0.0
  %5120 = vmatmul.mubr.f32.gmra.mxu0 %v4277
  %v5121 = vpop.f32.mrf.mxu0
  %v5122 = vadd.f32 %v5050, %v5121
  %v5123 = vpop.f32.mrf.mxu0
  %5124 = vmatprep.mubr.f32.mxu0 0.0
  %5125 = vmatmul.mubr.f32.gmra.mxu0 %v4280
  %v5126 = vpop.f32.mrf.mxu0
  %v5127 = vadd.f32 %v5050, %v5126
  %v5128 = vpop.f32.mrf.mxu0
  %5129 = vdwg.mxu0
  %s5130 = scalar_lea.vmem %s6, 64
  %v5131 = vld [vmem:[%s5130] sm:$0xff]
  %v5132 = vld [vmem:[%s5130 + $0x8] sm:$0x1]
  %s5133 = scalar_lea.vmem %s7, 4
  %v5134 = vld [vmem:[%s5133] sm:$0x1]
  %v5136 = vlaneseq
  %v5137 = vshrl.u32 %v5136, 7
  %v5138 = vsub.s32 0, %v5137
  %v5139 = vrot.slane %v5134, %v5138
  %v5142 = vsel %vm174, %v5132, 0
  %5144 = vmatprep.subr.mxu0 0.0
  %5145 = vmatpush1.msra.mxu0 0.0
  %5146 = vmatprep.subr.mxu0 0.0
  %5147 = vmatpush1.msra.mxu0 0.0
  %5148 = vmatprep.subr.mxu0 0.0
  %5149 = vmatpush1.msra.mxu0 0.0
  %5150 = vmatprep.subr.mxu0 0.0
  %5151 = vmatpush1.msra.mxu0 0.0
  %5152 = vmatprep.subr.mxu0 0.0
  %5153 = vmatpush1.msra.mxu0 0.0
  %5154 = vmatprep.subr.mxu0 0.0
  %5155 = vmatpush1.msra.mxu0 0.0
  %5156 = vmatprep.subr.mxu0 0.0
  %5157 = vmatpush1.msra.mxu0 0.0
  %5158 = vmatprep.subr.mxu0 0.0
  %5159 = vmatpush1.msra.mxu0 0.0
  %5160 = vmatprep.subr.mxu0 0.0
  %5161 = vmatpush1.msra.mxu0 0.0
  %5162 = vmatprep.subr.mxu0 0.0
  %5163 = vmatpush1.msra.mxu0 0.0
  %5164 = vmatprep.subr.mxu0 0.0
  %5165 = vmatpush1.msra.mxu0 0.0
  %5166 = vmatprep.subr.mxu0 0.0
  %5167 = vmatpush1.msra.mxu0 0.0
  %5168 = vmatprep.subr.mxu0 0.0
  %5169 = vmatpush1.msra.mxu0 0.0
  %5170 = vmatprep.subr.mxu0 0.0
  %5171 = vmatpush1.msra.mxu0 0.0
  %5172 = vmatprep.subr.mxu0 0.0
  %5173 = vmatpush1.msra.mxu0 %v5142
  %5174 = vmatprep.subr.mxu0 0.0
  %5175 = vmatpush1.msra.mxu0 %v5131
  %5176 = vmatprep.subr.mxu0 0.0
  %5177 = vmatpush2.msra.mxu0 0.0
  %5178 = vmatprep.subr.mxu0 0.0
  %5179 = vmatpush2.msra.mxu0 0.0
  %5180 = vmatprep.subr.mxu0 0.0
  %5181 = vmatpush2.msra.mxu0 0.0
  %5182 = vmatprep.subr.mxu0 0.0
  %5183 = vmatpush2.msra.mxu0 0.0
  %5184 = vmatprep.subr.mxu0 0.0
  %5185 = vmatpush2.msra.mxu0 0.0
  %5186 = vmatprep.subr.mxu0 0.0
  %5187 = vmatpush2.msra.mxu0 0.0
  %5188 = vmatprep.subr.mxu0 0.0
  %5189 = vmatpush2.msra.mxu0 0.0
  %5190 = vmatprep.subr.mxu0 0.0
  %5191 = vmatpush2.msra.mxu0 0.0
  %5192 = vmatprep.subr.mxu0 0.0
  %5193 = vmatpush2.msra.mxu0 0.0
  %5194 = vmatprep.subr.mxu0 0.0
  %5195 = vmatpush2.msra.mxu0 0.0
  %5196 = vmatprep.subr.mxu0 0.0
  %5197 = vmatpush2.msra.mxu0 0.0
  %5198 = vmatprep.subr.mxu0 0.0
  %5199 = vmatpush2.msra.mxu0 0.0
  %5200 = vmatprep.subr.mxu0 0.0
  %5201 = vmatpush2.msra.mxu0 0.0
  %5202 = vmatprep.subr.mxu0 0.0
  %5203 = vmatpush2.msra.mxu0 0.0
  %5204 = vmatprep.subr.mxu0 0.0
  %5205 = vmatpush2.msra.mxu0 0.0
  %5206 = vmatprep.subr.mxu0 0.0
  %5207 = vmatpush2.msra.mxu0 0.0
  %5208 = vmatprep.mubr.f32.mxu0 0.0
  %5209 = vmatmul.mubr.f32.gmra.mxu0 %v4277
  %v5210 = vpop.f32.mrf.mxu0
  %v5211 = vadd.f32 %v5139, %v5210
  %v5212 = vpop.f32.mrf.mxu0
  %5213 = vmatprep.mubr.f32.mxu0 0.0
  %5214 = vmatmul.mubr.f32.gmra.mxu0 %v4280
  %v5215 = vpop.f32.mrf.mxu0
  %v5216 = vadd.f32 %v5139, %v5215
  %v5217 = vpop.f32.mrf.mxu0
  %5218 = vdwg.mxu0
  %v5220 = vsel %vm427, %v5033, 0
  %v5223 = vsel %vm427, %v5122, 0
  %5225 = vmatprep.subr.mxu0 0.0
  %5226 = vmatpush1.xpose.msra.mxu0 0.0
  %5227 = vmatprep.subr.mxu0 0.0
  %5228 = vmatpush1.xpose.msra.mxu0 0.0
  %5229 = vmatprep.subr.mxu0 0.0
  %5230 = vmatpush1.xpose.msra.mxu0 0.0
  %5231 = vmatprep.subr.mxu0 0.0
  %5232 = vmatpush1.xpose.msra.mxu0 0.0
  %5233 = vmatprep.subr.mxu0 0.0
  %5234 = vmatpush1.xpose.msra.mxu0 0.0
  %5235 = vmatprep.subr.mxu0 0.0
  %5236 = vmatpush1.xpose.msra.mxu0 0.0
  %5237 = vmatprep.subr.mxu0 0.0
  %5238 = vmatpush1.xpose.msra.mxu0 0.0
  %5239 = vmatprep.subr.mxu0 0.0
  %5240 = vmatpush1.xpose.msra.mxu0 0.0
  %5241 = vmatprep.subr.mxu0 0.0
  %5242 = vmatpush1.xpose.msra.mxu0 0.0
  %5243 = vmatprep.subr.mxu0 0.0
  %5244 = vmatpush1.xpose.msra.mxu0 0.0
  %5245 = vmatprep.subr.mxu0 0.0
  %5246 = vmatpush1.xpose.msra.mxu0 0.0
  %5247 = vmatprep.subr.mxu0 0.0
  %5248 = vmatpush1.xpose.msra.mxu0 0.0
  %5249 = vmatprep.subr.mxu0 0.0
  %5250 = vmatpush1.xpose.msra.mxu0 0.0
  %5251 = vmatprep.subr.mxu0 0.0
  %5252 = vmatpush1.xpose.msra.mxu0 0.0
  %5253 = vmatprep.subr.mxu0 0.0
  %5254 = vmatpush1.xpose.msra.mxu0 0.0
  %5255 = vmatprep.subr.mxu0 0.0
  %5256 = vmatpush1.xpose.msra.mxu0 %v5223
  %5257 = vmatprep.subr.mxu0 0.0
  %5258 = vmatpush2.xpose.msra.mxu0 0.0
  %5259 = vmatprep.subr.mxu0 0.0
  %5260 = vmatpush2.xpose.msra.mxu0 0.0
  %5261 = vmatprep.subr.mxu0 0.0
  %5262 = vmatpush2.xpose.msra.mxu0 0.0
  %5263 = vmatprep.subr.mxu0 0.0
  %5264 = vmatpush2.xpose.msra.mxu0 0.0
  %5265 = vmatprep.subr.mxu0 0.0
  %5266 = vmatpush2.xpose.msra.mxu0 0.0
  %5267 = vmatprep.subr.mxu0 0.0
  %5268 = vmatpush2.xpose.msra.mxu0 0.0
  %5269 = vmatprep.subr.mxu0 0.0
  %5270 = vmatpush2.xpose.msra.mxu0 0.0
  %5271 = vmatprep.subr.mxu0 0.0
  %5272 = vmatpush2.xpose.msra.mxu0 0.0
  %5273 = vmatprep.subr.mxu0 0.0
  %5274 = vmatpush2.xpose.msra.mxu0 0.0
  %5275 = vmatprep.subr.mxu0 0.0
  %5276 = vmatpush2.xpose.msra.mxu0 0.0
  %5277 = vmatprep.subr.mxu0 0.0
  %5278 = vmatpush2.xpose.msra.mxu0 0.0
  %5279 = vmatprep.subr.mxu0 0.0
  %5280 = vmatpush2.xpose.msra.mxu0 0.0
  %5281 = vmatprep.subr.mxu0 0.0
  %5282 = vmatpush2.xpose.msra.mxu0 0.0
  %5283 = vmatprep.subr.mxu0 0.0
  %5284 = vmatpush2.xpose.msra.mxu0 0.0
  %5285 = vmatprep.subr.mxu0 0.0
  %5286 = vmatpush2.xpose.msra.mxu0 0.0
  %5287 = vmatprep.subr.mxu0 0.0
  %5288 = vmatpush2.xpose.msra.mxu0 0.0
  %5289 = vmatprep.mubr.f32.mxu0 0.0
  %5290 = vmatmul.mubr.f32.gmra.mxu0 %v5220
  %v5291 = vpop.f32.mrf.mxu0
  %v5292 = vadd.f32 0.0, %v5291
  %v5293 = vpop.f32.mrf.mxu0
  %5294 = vdwg.mxu0
  %v5296 = vsel %vm427, %v5038, 0
  %v5299 = vsel %vm427, %v5127, 0
  %5301 = vmatprep.subr.mxu0 0.0
  %5302 = vmatpush1.xpose.msra.mxu0 0.0
  %5303 = vmatprep.subr.mxu0 0.0
  %5304 = vmatpush1.xpose.msra.mxu0 0.0
  %5305 = vmatprep.subr.mxu0 0.0
  %5306 = vmatpush1.xpose.msra.mxu0 0.0
  %5307 = vmatprep.subr.mxu0 0.0
  %5308 = vmatpush1.xpose.msra.mxu0 0.0
  %5309 = vmatprep.subr.mxu0 0.0
  %5310 = vmatpush1.xpose.msra.mxu0 0.0
  %5311 = vmatprep.subr.mxu0 0.0
  %5312 = vmatpush1.xpose.msra.mxu0 0.0
  %5313 = vmatprep.subr.mxu0 0.0
  %5314 = vmatpush1.xpose.msra.mxu0 0.0
  %5315 = vmatprep.subr.mxu0 0.0
  %5316 = vmatpush1.xpose.msra.mxu0 0.0
  %5317 = vmatprep.subr.mxu0 0.0
  %5318 = vmatpush1.xpose.msra.mxu0 0.0
  %5319 = vmatprep.subr.mxu0 0.0
  %5320 = vmatpush1.xpose.msra.mxu0 0.0
  %5321 = vmatprep.subr.mxu0 0.0
  %5322 = vmatpush1.xpose.msra.mxu0 0.0
  %5323 = vmatprep.subr.mxu0 0.0
  %5324 = vmatpush1.xpose.msra.mxu0 0.0
  %5325 = vmatprep.subr.mxu0 0.0
  %5326 = vmatpush1.xpose.msra.mxu0 0.0
  %5327 = vmatprep.subr.mxu0 0.0
  %5328 = vmatpush1.xpose.msra.mxu0 0.0
  %5329 = vmatprep.subr.mxu0 0.0
  %5330 = vmatpush1.xpose.msra.mxu0 0.0
  %5331 = vmatprep.subr.mxu0 0.0
  %5332 = vmatpush1.xpose.msra.mxu0 %v5299
  %5333 = vmatprep.subr.mxu0 0.0
  %5334 = vmatpush2.xpose.msra.mxu0 0.0
  %5335 = vmatprep.subr.mxu0 0.0
  %5336 = vmatpush2.xpose.msra.mxu0 0.0
  %5337 = vmatprep.subr.mxu0 0.0
  %5338 = vmatpush2.xpose.msra.mxu0 0.0
  %5339 = vmatprep.subr.mxu0 0.0
  %5340 = vmatpush2.xpose.msra.mxu0 0.0
  %5341 = vmatprep.subr.mxu0 0.0
  %5342 = vmatpush2.xpose.msra.mxu0 0.0
  %5343 = vmatprep.subr.mxu0 0.0
  %5344 = vmatpush2.xpose.msra.mxu0 0.0
  %5345 = vmatprep.subr.mxu0 0.0
  %5346 = vmatpush2.xpose.msra.mxu0 0.0
  %5347 = vmatprep.subr.mxu0 0.0
  %5348 = vmatpush2.xpose.msra.mxu0 0.0
  %5349 = vmatprep.subr.mxu0 0.0
  %5350 = vmatpush2.xpose.msra.mxu0 0.0
  %5351 = vmatprep.subr.mxu0 0.0
  %5352 = vmatpush2.xpose.msra.mxu0 0.0
  %5353 = vmatprep.subr.mxu0 0.0
  %5354 = vmatpush2.xpose.msra.mxu0 0.0
  %5355 = vmatprep.subr.mxu0 0.0
  %5356 = vmatpush2.xpose.msra.mxu0 0.0
  %5357 = vmatprep.subr.mxu0 0.0
  %5358 = vmatpush2.xpose.msra.mxu0 0.0
  %5359 = vmatprep.subr.mxu0 0.0
  %5360 = vmatpush2.xpose.msra.mxu0 0.0
  %5361 = vmatprep.subr.mxu0 0.0
  %5362 = vmatpush2.xpose.msra.mxu0 0.0
  %5363 = vmatprep.subr.mxu0 0.0
  %5364 = vmatpush2.xpose.msra.mxu0 0.0
  %5365 = vmatprep.mubr.f32.mxu0 0.0
  %5366 = vmatmul.mubr.f32.gmra.mxu0 %v5296
  %v5367 = vpop.f32.mrf.mxu0
  %v5368 = vadd.f32 0.0, %v5367
  %v5369 = vpop.f32.mrf.mxu0
  %5370 = vdwg.mxu0
  %v5371 = vsel %vm580, %v5292, -inf
  %5372 = vmax.xlane.f32.xlu0 %v5371
  %v5373 = vpop.xlane.xlu0 %5372
  %v5374 = vsel %vm580, %v5368, -inf
  %5375 = vmax.xlane.f32.xlu0 %v5374
  %v5376 = vpop.xlane.xlu0 %5375
  %v5377 = vsub.f32 %v5292, %v5373
  %v5378 = vsub.f32 %v5368, %v5376
  %v5379 = vmul.f32 %v5377, 1.442695
  %v5380 = vpow.pop %v5379
  %v5381 = vmul.f32 %v5378, 1.442695
  %v5382 = vpow.pop %v5381
  %v5383 = vsel %vm580, %v5380, 0.0
  %5384 = vadd.xlane.f32.xlu0 %v5383
  %v5385 = vpop.xlane.xlu0 %5384
  %v5386 = vsel %vm580, %v5382, 0.0
  %5387 = vadd.xlane.f32.xlu0 %v5386
  %v5388 = vpop.xlane.xlu0 %5387
  %v5389 = vrcp.pop %v5385
  %v5390 = vmul.f32 %v5380, %v5389
  %v5391 = vrcp.pop %v5388
  %v5392 = vmul.f32 %v5382, %v5391
  %v5394 = vsel %vm580, %v5390, 0
  %5396 = vmatprep.subr.mxu0 0.0
  %5397 = vmatpush1.msra.mxu0 0.0
  %5398 = vmatprep.subr.mxu0 0.0
  %5399 = vmatpush1.msra.mxu0 0.0
  %5400 = vmatprep.subr.mxu0 0.0
  %5401 = vmatpush1.msra.mxu0 0.0
  %5402 = vmatprep.subr.mxu0 0.0
  %5403 = vmatpush1.msra.mxu0 0.0
  %5404 = vmatprep.subr.mxu0 0.0
  %5405 = vmatpush1.msra.mxu0 0.0
  %5406 = vmatprep.subr.mxu0 0.0
  %5407 = vmatpush1.msra.mxu0 0.0
  %5408 = vmatprep.subr.mxu0 0.0
  %5409 = vmatpush1.msra.mxu0 0.0
  %5410 = vmatprep.subr.mxu0 0.0
  %5411 = vmatpush1.msra.mxu0 0.0
  %5412 = vmatprep.subr.mxu0 0.0
  %5413 = vmatpush1.msra.mxu0 0.0
  %5414 = vmatprep.subr.mxu0 0.0
  %5415 = vmatpush1.msra.mxu0 0.0
  %5416 = vmatprep.subr.mxu0 0.0
  %5417 = vmatpush1.msra.mxu0 0.0
  %5418 = vmatprep.subr.mxu0 0.0
  %5419 = vmatpush1.msra.mxu0 0.0
  %5420 = vmatprep.subr.mxu0 0.0
  %5421 = vmatpush1.msra.mxu0 0.0
  %5422 = vmatprep.subr.mxu0 0.0
  %5423 = vmatpush1.msra.mxu0 0.0
  %5424 = vmatprep.subr.mxu0 0.0
  %5425 = vmatpush1.msra.mxu0 0.0
  %5426 = vmatprep.subr.mxu0 0.0
  %5427 = vmatpush1.msra.mxu0 %v5211
  %5428 = vmatprep.subr.mxu0 0.0
  %5429 = vmatpush2.msra.mxu0 0.0
  %5430 = vmatprep.subr.mxu0 0.0
  %5431 = vmatpush2.msra.mxu0 0.0
  %5432 = vmatprep.subr.mxu0 0.0
  %5433 = vmatpush2.msra.mxu0 0.0
  %5434 = vmatprep.subr.mxu0 0.0
  %5435 = vmatpush2.msra.mxu0 0.0
  %5436 = vmatprep.subr.mxu0 0.0
  %5437 = vmatpush2.msra.mxu0 0.0
  %5438 = vmatprep.subr.mxu0 0.0
  %5439 = vmatpush2.msra.mxu0 0.0
  %5440 = vmatprep.subr.mxu0 0.0
  %5441 = vmatpush2.msra.mxu0 0.0
  %5442 = vmatprep.subr.mxu0 0.0
  %5443 = vmatpush2.msra.mxu0 0.0
  %5444 = vmatprep.subr.mxu0 0.0
  %5445 = vmatpush2.msra.mxu0 0.0
  %5446 = vmatprep.subr.mxu0 0.0
  %5447 = vmatpush2.msra.mxu0 0.0
  %5448 = vmatprep.subr.mxu0 0.0
  %5449 = vmatpush2.msra.mxu0 0.0
  %5450 = vmatprep.subr.mxu0 0.0
  %5451 = vmatpush2.msra.mxu0 0.0
  %5452 = vmatprep.subr.mxu0 0.0
  %5453 = vmatpush2.msra.mxu0 0.0
  %5454 = vmatprep.subr.mxu0 0.0
  %5455 = vmatpush2.msra.mxu0 0.0
  %5456 = vmatprep.subr.mxu0 0.0
  %5457 = vmatpush2.msra.mxu0 0.0
  %5458 = vmatprep.subr.mxu0 0.0
  %5459 = vmatpush2.msra.mxu0 0.0
  %5460 = vmatprep.mubr.f32.mxu0 0.0
  %5461 = vmatmul.mubr.f32.gmra.mxu0 %v5394
  %v5462 = vpop.f32.mrf.mxu0
  %v5463 = vadd.f32 0.0, %v5462
  %v5464 = vpop.f32.mrf.mxu0
  %5465 = vdwg.mxu0
  %v5467 = vsel %vm580, %v5392, 0
  %5469 = vmatprep.subr.mxu0 0.0
  %5470 = vmatpush1.msra.mxu0 0.0
  %5471 = vmatprep.subr.mxu0 0.0
  %5472 = vmatpush1.msra.mxu0 0.0
  %5473 = vmatprep.subr.mxu0 0.0
  %5474 = vmatpush1.msra.mxu0 0.0
  %5475 = vmatprep.subr.mxu0 0.0
  %5476 = vmatpush1.msra.mxu0 0.0
  %5477 = vmatprep.subr.mxu0 0.0
  %5478 = vmatpush1.msra.mxu0 0.0
  %5479 = vmatprep.subr.mxu0 0.0
  %5480 = vmatpush1.msra.mxu0 0.0
  %5481 = vmatprep.subr.mxu0 0.0
  %5482 = vmatpush1.msra.mxu0 0.0
  %5483 = vmatprep.subr.mxu0 0.0
  %5484 = vmatpush1.msra.mxu0 0.0
  %5485 = vmatprep.subr.mxu0 0.0
  %5486 = vmatpush1.msra.mxu0 0.0
  %5487 = vmatprep.subr.mxu0 0.0
  %5488 = vmatpush1.msra.mxu0 0.0
  %5489 = vmatprep.subr.mxu0 0.0
  %5490 = vmatpush1.msra.mxu0 0.0
  %5491 = vmatprep.subr.mxu0 0.0
  %5492 = vmatpush1.msra.mxu0 0.0
  %5493 = vmatprep.subr.mxu0 0.0
  %5494 = vmatpush1.msra.mxu0 0.0
  %5495 = vmatprep.subr.mxu0 0.0
  %5496 = vmatpush1.msra.mxu0 0.0
  %5497 = vmatprep.subr.mxu0 0.0
  %5498 = vmatpush1.msra.mxu0 0.0
  %5499 = vmatprep.subr.mxu0 0.0
  %5500 = vmatpush1.msra.mxu0 %v5216
  %5501 = vmatprep.subr.mxu0 0.0
  %5502 = vmatpush2.msra.mxu0 0.0
  %5503 = vmatprep.subr.mxu0 0.0
  %5504 = vmatpush2.msra.mxu0 0.0
  %5505 = vmatprep.subr.mxu0 0.0
  %5506 = vmatpush2.msra.mxu0 0.0
  %5507 = vmatprep.subr.mxu0 0.0
  %5508 = vmatpush2.msra.mxu0 0.0
  %5509 = vmatprep.subr.mxu0 0.0
  %5510 = vmatpush2.msra.mxu0 0.0
  %5511 = vmatprep.subr.mxu0 0.0
  %5512 = vmatpush2.msra.mxu0 0.0
  %5513 = vmatprep.subr.mxu0 0.0
  %5514 = vmatpush2.msra.mxu0 0.0
  %5515 = vmatprep.subr.mxu0 0.0
  %5516 = vmatpush2.msra.mxu0 0.0
  %5517 = vmatprep.subr.mxu0 0.0
  %5518 = vmatpush2.msra.mxu0 0.0
  %5519 = vmatprep.subr.mxu0 0.0
  %5520 = vmatpush2.msra.mxu0 0.0
  %5521 = vmatprep.subr.mxu0 0.0
  %5522 = vmatpush2.msra.mxu0 0.0
  %5523 = vmatprep.subr.mxu0 0.0
  %5524 = vmatpush2.msra.mxu0 0.0
  %5525 = vmatprep.subr.mxu0 0.0
  %5526 = vmatpush2.msra.mxu0 0.0
  %5527 = vmatprep.subr.mxu0 0.0
  %5528 = vmatpush2.msra.mxu0 0.0
  %5529 = vmatprep.subr.mxu0 0.0
  %5530 = vmatpush2.msra.mxu0 0.0
  %5531 = vmatprep.subr.mxu0 0.0
  %5532 = vmatpush2.msra.mxu0 0.0
  %5533 = vmatprep.mubr.f32.mxu0 0.0
  %5534 = vmatmul.mubr.f32.gmra.mxu0 %v5467
  %v5535 = vpop.f32.mrf.mxu0
  %v5536 = vadd.f32 0.0, %v5535
  %v5537 = vpop.f32.mrf.mxu0
  %5538 = vdwg.mxu0
  %s5539 = scalar_lea.vmem %s8, 16
  %v5540 = vld [vmem:[%s5539] sm:$0x7]
  %v5542 = vsel %vm427, %v5463, 0
  %v5545 = vsel %vm427, %v5536, 0
  %v5548 = vsel %vm756, %v5540, 0
  %5550 = vmatprep.subr.mxu0 0.0
  %5551 = vmatpush1.msra.mxu0 0.0
  %5552 = vmatprep.subr.mxu0 0.0
  %5553 = vmatpush1.msra.mxu0 0.0
  %5554 = vmatprep.subr.mxu0 0.0
  %5555 = vmatpush1.msra.mxu0 0.0
  %5556 = vmatprep.subr.mxu0 0.0
  %5557 = vmatpush1.msra.mxu0 0.0
  %5558 = vmatprep.subr.mxu0 0.0
  %5559 = vmatpush1.msra.mxu0 0.0
  %5560 = vmatprep.subr.mxu0 0.0
  %5561 = vmatpush1.msra.mxu0 0.0
  %5562 = vmatprep.subr.mxu0 0.0
  %5563 = vmatpush1.msra.mxu0 0.0
  %5564 = vmatprep.subr.mxu0 0.0
  %5565 = vmatpush1.msra.mxu0 0.0
  %5566 = vmatprep.subr.mxu0 0.0
  %5567 = vmatpush1.msra.mxu0 0.0
  %5568 = vmatprep.subr.mxu0 0.0
  %5569 = vmatpush1.msra.mxu0 0.0
  %5570 = vmatprep.subr.mxu0 0.0
  %5571 = vmatpush1.msra.mxu0 0.0
  %5572 = vmatprep.subr.mxu0 0.0
  %5573 = vmatpush1.msra.mxu0 0.0
  %5574 = vmatprep.subr.mxu0 0.0
  %5575 = vmatpush1.msra.mxu0 0.0
  %5576 = vmatprep.subr.mxu0 0.0
  %5577 = vmatpush1.msra.mxu0 0.0
  %5578 = vmatprep.subr.mxu0 0.0
  %5579 = vmatpush1.msra.mxu0 0.0
  %5580 = vmatprep.subr.mxu0 0.0
  %5581 = vmatpush1.msra.mxu0 %v5548
  %5582 = vmatprep.subr.mxu0 0.0
  %5583 = vmatpush2.msra.mxu0 0.0
  %5584 = vmatprep.subr.mxu0 0.0
  %5585 = vmatpush2.msra.mxu0 0.0
  %5586 = vmatprep.subr.mxu0 0.0
  %5587 = vmatpush2.msra.mxu0 0.0
  %5588 = vmatprep.subr.mxu0 0.0
  %5589 = vmatpush2.msra.mxu0 0.0
  %5590 = vmatprep.subr.mxu0 0.0
  %5591 = vmatpush2.msra.mxu0 0.0
  %5592 = vmatprep.subr.mxu0 0.0
  %5593 = vmatpush2.msra.mxu0 0.0
  %5594 = vmatprep.subr.mxu0 0.0
  %5595 = vmatpush2.msra.mxu0 0.0
  %5596 = vmatprep.subr.mxu0 0.0
  %5597 = vmatpush2.msra.mxu0 0.0
  %5598 = vmatprep.subr.mxu0 0.0
  %5599 = vmatpush2.msra.mxu0 0.0
  %5600 = vmatprep.subr.mxu0 0.0
  %5601 = vmatpush2.msra.mxu0 0.0
  %5602 = vmatprep.subr.mxu0 0.0
  %5603 = vmatpush2.msra.mxu0 0.0
  %5604 = vmatprep.subr.mxu0 0.0
  %5605 = vmatpush2.msra.mxu0 0.0
  %5606 = vmatprep.subr.mxu0 0.0
  %5607 = vmatpush2.msra.mxu0 0.0
  %5608 = vmatprep.subr.mxu0 0.0
  %5609 = vmatpush2.msra.mxu0 0.0
  %5610 = vmatprep.subr.mxu0 0.0
  %5611 = vmatpush2.msra.mxu0 0.0
  %5612 = vmatprep.subr.mxu0 0.0
  %5613 = vmatpush2.msra.mxu0 0.0
  %5614 = vmatprep.mubr.f32.mxu0 0.0
  %5615 = vmatmul.mubr.f32.gmra.mxu0 %v5542
  %v5616 = vpop.f32.mrf.mxu0
  %v5617 = vadd.f32 0.0, %v5616
  %v5618 = vpop.f32.mrf.mxu0
  %5619 = vmatprep.mubr.f32.mxu0 0.0
  %5620 = vmatmul.mubr.f32.gmra.mxu0 %v5545
  %v5621 = vpop.f32.mrf.mxu0
  %v5622 = vadd.f32 0.0, %v5621
  %v5623 = vpop.f32.mrf.mxu0
  %5624 = vdwg.mxu0
  %v5625 = vadd.f32 %v4950, %v5617
  %v5626 = vadd.f32 %v4951, %v5622
  %s5627 = scalar_lea.vmem %s2, 80
  %v5628 = vld [vmem:[%s5627] sm:$0xff]
  %v5629 = vld [vmem:[%s5627 + $0x8] sm:$0x1]
  %s5630 = scalar_lea.vmem %s3, 5
  %v5631 = vld [vmem:[%s5630] sm:$0x1]
  %v5633 = vlaneseq
  %v5634 = vshrl.u32 %v5633, 7
  %v5635 = vsub.s32 0, %v5634
  %v5636 = vrot.slane %v5631, %v5635
  %v5639 = vsel %vm174, %v5629, 0
  %5641 = vmatprep.subr.mxu0 0.0
  %5642 = vmatpush1.msra.mxu0 0.0
  %5643 = vmatprep.subr.mxu0 0.0
  %5644 = vmatpush1.msra.mxu0 0.0
  %5645 = vmatprep.subr.mxu0 0.0
  %5646 = vmatpush1.msra.mxu0 0.0
  %5647 = vmatprep.subr.mxu0 0.0
  %5648 = vmatpush1.msra.mxu0 0.0
  %5649 = vmatprep.subr.mxu0 0.0
  %5650 = vmatpush1.msra.mxu0 0.0
  %5651 = vmatprep.subr.mxu0 0.0
  %5652 = vmatpush1.msra.mxu0 0.0
  %5653 = vmatprep.subr.mxu0 0.0
  %5654 = vmatpush1.msra.mxu0 0.0
  %5655 = vmatprep.subr.mxu0 0.0
  %5656 = vmatpush1.msra.mxu0 0.0
  %5657 = vmatprep.subr.mxu0 0.0
  %5658 = vmatpush1.msra.mxu0 0.0
  %5659 = vmatprep.subr.mxu0 0.0
  %5660 = vmatpush1.msra.mxu0 0.0
  %5661 = vmatprep.subr.mxu0 0.0
  %5662 = vmatpush1.msra.mxu0 0.0
  %5663 = vmatprep.subr.mxu0 0.0
  %5664 = vmatpush1.msra.mxu0 0.0
  %5665 = vmatprep.subr.mxu0 0.0
  %5666 = vmatpush1.msra.mxu0 0.0
  %5667 = vmatprep.subr.mxu0 0.0
  %5668 = vmatpush1.msra.mxu0 0.0
  %5669 = vmatprep.subr.mxu0 0.0
  %5670 = vmatpush1.msra.mxu0 %v5639
  %5671 = vmatprep.subr.mxu0 0.0
  %5672 = vmatpush1.msra.mxu0 %v5628
  %5673 = vmatprep.subr.mxu0 0.0
  %5674 = vmatpush2.msra.mxu0 0.0
  %5675 = vmatprep.subr.mxu0 0.0
  %5676 = vmatpush2.msra.mxu0 0.0
  %5677 = vmatprep.subr.mxu0 0.0
  %5678 = vmatpush2.msra.mxu0 0.0
  %5679 = vmatprep.subr.mxu0 0.0
  %5680 = vmatpush2.msra.mxu0 0.0
  %5681 = vmatprep.subr.mxu0 0.0
  %5682 = vmatpush2.msra.mxu0 0.0
  %5683 = vmatprep.subr.mxu0 0.0
  %5684 = vmatpush2.msra.mxu0 0.0
  %5685 = vmatprep.subr.mxu0 0.0
  %5686 = vmatpush2.msra.mxu0 0.0
  %5687 = vmatprep.subr.mxu0 0.0
  %5688 = vmatpush2.msra.mxu0 0.0
  %5689 = vmatprep.subr.mxu0 0.0
  %5690 = vmatpush2.msra.mxu0 0.0
  %5691 = vmatprep.subr.mxu0 0.0
  %5692 = vmatpush2.msra.mxu0 0.0
  %5693 = vmatprep.subr.mxu0 0.0
  %5694 = vmatpush2.msra.mxu0 0.0
  %5695 = vmatprep.subr.mxu0 0.0
  %5696 = vmatpush2.msra.mxu0 0.0
  %5697 = vmatprep.subr.mxu0 0.0
  %5698 = vmatpush2.msra.mxu0 0.0
  %5699 = vmatprep.subr.mxu0 0.0
  %5700 = vmatpush2.msra.mxu0 0.0
  %5701 = vmatprep.subr.mxu0 0.0
  %5702 = vmatpush2.msra.mxu0 0.0
  %5703 = vmatprep.subr.mxu0 0.0
  %5704 = vmatpush2.msra.mxu0 0.0
  %5705 = vmatprep.mubr.f32.mxu0 0.0
  %5706 = vmatmul.mubr.f32.gmra.mxu0 %v4277
  %v5707 = vpop.f32.mrf.mxu0
  %v5708 = vadd.f32 %v5636, %v5707
  %v5709 = vpop.f32.mrf.mxu0
  %5710 = vmatprep.mubr.f32.mxu0 0.0
  %5711 = vmatmul.mubr.f32.gmra.mxu0 %v4280
  %v5712 = vpop.f32.mrf.mxu0
  %v5713 = vadd.f32 %v5636, %v5712
  %v5714 = vpop.f32.mrf.mxu0
  %5715 = vdwg.mxu0
  %s5716 = scalar_lea.vmem %s4, 80
  %v5717 = vld [vmem:[%s5716] sm:$0xff]
  %v5718 = vld [vmem:[%s5716 + $0x8] sm:$0x1]
  %s5719 = scalar_lea.vmem %s5, 5
  %v5720 = vld [vmem:[%s5719] sm:$0x1]
  %v5722 = vlaneseq
  %v5723 = vshrl.u32 %v5722, 7
  %v5724 = vsub.s32 0, %v5723
  %v5725 = vrot.slane %v5720, %v5724
  %v5728 = vsel %vm174, %v5718, 0
  %5730 = vmatprep.subr.mxu0 0.0
  %5731 = vmatpush1.msra.mxu0 0.0
  %5732 = vmatprep.subr.mxu0 0.0
  %5733 = vmatpush1.msra.mxu0 0.0
  %5734 = vmatprep.subr.mxu0 0.0
  %5735 = vmatpush1.msra.mxu0 0.0
  %5736 = vmatprep.subr.mxu0 0.0
  %5737 = vmatpush1.msra.mxu0 0.0
  %5738 = vmatprep.subr.mxu0 0.0
  %5739 = vmatpush1.msra.mxu0 0.0
  %5740 = vmatprep.subr.mxu0 0.0
  %5741 = vmatpush1.msra.mxu0 0.0
  %5742 = vmatprep.subr.mxu0 0.0
  %5743 = vmatpush1.msra.mxu0 0.0
  %5744 = vmatprep.subr.mxu0 0.0
  %5745 = vmatpush1.msra.mxu0 0.0
  %5746 = vmatprep.subr.mxu0 0.0
  %5747 = vmatpush1.msra.mxu0 0.0
  %5748 = vmatprep.subr.mxu0 0.0
  %5749 = vmatpush1.msra.mxu0 0.0
  %5750 = vmatprep.subr.mxu0 0.0
  %5751 = vmatpush1.msra.mxu0 0.0
  %5752 = vmatprep.subr.mxu0 0.0
  %5753 = vmatpush1.msra.mxu0 0.0
  %5754 = vmatprep.subr.mxu0 0.0
  %5755 = vmatpush1.msra.mxu0 0.0
  %5756 = vmatprep.subr.mxu0 0.0
  %5757 = vmatpush1.msra.mxu0 0.0
  %5758 = vmatprep.subr.mxu0 0.0
  %5759 = vmatpush1.msra.mxu0 %v5728
  %5760 = vmatprep.subr.mxu0 0.0
  %5761 = vmatpush1.msra.mxu0 %v5717
  %5762 = vmatprep.subr.mxu0 0.0
  %5763 = vmatpush2.msra.mxu0 0.0
  %5764 = vmatprep.subr.mxu0 0.0
  %5765 = vmatpush2.msra.mxu0 0.0
  %5766 = vmatprep.subr.mxu0 0.0
  %5767 = vmatpush2.msra.mxu0 0.0
  %5768 = vmatprep.subr.mxu0 0.0
  %5769 = vmatpush2.msra.mxu0 0.0
  %5770 = vmatprep.subr.mxu0 0.0
  %5771 = vmatpush2.msra.mxu0 0.0
  %5772 = vmatprep.subr.mxu0 0.0
  %5773 = vmatpush2.msra.mxu0 0.0
  %5774 = vmatprep.subr.mxu0 0.0
  %5775 = vmatpush2.msra.mxu0 0.0
  %5776 = vmatprep.subr.mxu0 0.0
  %5777 = vmatpush2.msra.mxu0 0.0
  %5778 = vmatprep.subr.mxu0 0.0
  %5779 = vmatpush2.msra.mxu0 0.0
  %5780 = vmatprep.subr.mxu0 0.0
  %5781 = vmatpush2.msra.mxu0 0.0
  %5782 = vmatprep.subr.mxu0 0.0
  %5783 = vmatpush2.msra.mxu0 0.0
  %5784 = vmatprep.subr.mxu0 0.0
  %5785 = vmatpush2.msra.mxu0 0.0
  %5786 = vmatprep.subr.mxu0 0.0
  %5787 = vmatpush2.msra.mxu0 0.0
  %5788 = vmatprep.subr.mxu0 0.0
  %5789 = vmatpush2.msra.mxu0 0.0
  %5790 = vmatprep.subr.mxu0 0.0
  %5791 = vmatpush2.msra.mxu0 0.0
  %5792 = vmatprep.subr.mxu0 0.0
  %5793 = vmatpush2.msra.mxu0 0.0
  %5794 = vmatprep.mubr.f32.mxu0 0.0
  %5795 = vmatmul.mubr.f32.gmra.mxu0 %v4277
  %v5796 = vpop.f32.mrf.mxu0
  %v5797 = vadd.f32 %v5725, %v5796
  %v5798 = vpop.f32.mrf.mxu0
  %5799 = vmatprep.mubr.f32.mxu0 0.0
  %5800 = vmatmul.mubr.f32.gmra.mxu0 %v4280
  %v5801 = vpop.f32.mrf.mxu0
  %v5802 = vadd.f32 %v5725, %v5801
  %v5803 = vpop.f32.mrf.mxu0
  %5804 = vdwg.mxu0
  %s5805 = scalar_lea.vmem %s6, 80
  %v5806 = vld [vmem:[%s5805] sm:$0xff]
  %v5807 = vld [vmem:[%s5805 + $0x8] sm:$0x1]
  %s5808 = scalar_lea.vmem %s7, 5
  %v5809 = vld [vmem:[%s5808] sm:$0x1]
  %v5811 = vlaneseq
  %v5812 = vshrl.u32 %v5811, 7
  %v5813 = vsub.s32 0, %v5812
  %v5814 = vrot.slane %v5809, %v5813
  %v5817 = vsel %vm174, %v5807, 0
  %5819 = vmatprep.subr.mxu0 0.0
  %5820 = vmatpush1.msra.mxu0 0.0
  %5821 = vmatprep.subr.mxu0 0.0
  %5822 = vmatpush1.msra.mxu0 0.0
  %5823 = vmatprep.subr.mxu0 0.0
  %5824 = vmatpush1.msra.mxu0 0.0
  %5825 = vmatprep.subr.mxu0 0.0
  %5826 = vmatpush1.msra.mxu0 0.0
  %5827 = vmatprep.subr.mxu0 0.0
  %5828 = vmatpush1.msra.mxu0 0.0
  %5829 = vmatprep.subr.mxu0 0.0
  %5830 = vmatpush1.msra.mxu0 0.0
  %5831 = vmatprep.subr.mxu0 0.0
  %5832 = vmatpush1.msra.mxu0 0.0
  %5833 = vmatprep.subr.mxu0 0.0
  %5834 = vmatpush1.msra.mxu0 0.0
  %5835 = vmatprep.subr.mxu0 0.0
  %5836 = vmatpush1.msra.mxu0 0.0
  %5837 = vmatprep.subr.mxu0 0.0
  %5838 = vmatpush1.msra.mxu0 0.0
  %5839 = vmatprep.subr.mxu0 0.0
  %5840 = vmatpush1.msra.mxu0 0.0
  %5841 = vmatprep.subr.mxu0 0.0
  %5842 = vmatpush1.msra.mxu0 0.0
  %5843 = vmatprep.subr.mxu0 0.0
  %5844 = vmatpush1.msra.mxu0 0.0
  %5845 = vmatprep.subr.mxu0 0.0
  %5846 = vmatpush1.msra.mxu0 0.0
  %5847 = vmatprep.subr.mxu0 0.0
  %5848 = vmatpush1.msra.mxu0 %v5817
  %5849 = vmatprep.subr.mxu0 0.0
  %5850 = vmatpush1.msra.mxu0 %v5806
  %5851 = vmatprep.subr.mxu0 0.0
  %5852 = vmatpush2.msra.mxu0 0.0
  %5853 = vmatprep.subr.mxu0 0.0
  %5854 = vmatpush2.msra.mxu0 0.0
  %5855 = vmatprep.subr.mxu0 0.0
  %5856 = vmatpush2.msra.mxu0 0.0
  %5857 = vmatprep.subr.mxu0 0.0
  %5858 = vmatpush2.msra.mxu0 0.0
  %5859 = vmatprep.subr.mxu0 0.0
  %5860 = vmatpush2.msra.mxu0 0.0
  %5861 = vmatprep.subr.mxu0 0.0
  %5862 = vmatpush2.msra.mxu0 0.0
  %5863 = vmatprep.subr.mxu0 0.0
  %5864 = vmatpush2.msra.mxu0 0.0
  %5865 = vmatprep.subr.mxu0 0.0
  %5866 = vmatpush2.msra.mxu0 0.0
  %5867 = vmatprep.subr.mxu0 0.0
  %5868 = vmatpush2.msra.mxu0 0.0
  %5869 = vmatprep.subr.mxu0 0.0
  %5870 = vmatpush2.msra.mxu0 0.0
  %5871 = vmatprep.subr.mxu0 0.0
  %5872 = vmatpush2.msra.mxu0 0.0
  %5873 = vmatprep.subr.mxu0 0.0
  %5874 = vmatpush2.msra.mxu0 0.0
  %5875 = vmatprep.subr.mxu0 0.0
  %5876 = vmatpush2.msra.mxu0 0.0
  %5877 = vmatprep.subr.mxu0 0.0
  %5878 = vmatpush2.msra.mxu0 0.0
  %5879 = vmatprep.subr.mxu0 0.0
  %5880 = vmatpush2.msra.mxu0 0.0
  %5881 = vmatprep.subr.mxu0 0.0
  %5882 = vmatpush2.msra.mxu0 0.0
  %5883 = vmatprep.mubr.f32.mxu0 0.0
  %5884 = vmatmul.mubr.f32.gmra.mxu0 %v4277
  %v5885 = vpop.f32.mrf.mxu0
  %v5886 = vadd.f32 %v5814, %v5885
  %v5887 = vpop.f32.mrf.mxu0
  %5888 = vmatprep.mubr.f32.mxu0 0.0
  %5889 = vmatmul.mubr.f32.gmra.mxu0 %v4280
  %v5890 = vpop.f32.mrf.mxu0
  %v5891 = vadd.f32 %v5814, %v5890
  %v5892 = vpop.f32.mrf.mxu0
  %5893 = vdwg.mxu0
  %v5895 = vsel %vm427, %v5708, 0
  %v5898 = vsel %vm427, %v5797, 0
  %5900 = vmatprep.subr.mxu0 0.0
  %5901 = vmatpush1.xpose.msra.mxu0 0.0
  %5902 = vmatprep.subr.mxu0 0.0
  %5903 = vmatpush1.xpose.msra.mxu0 0.0
  %5904 = vmatprep.subr.mxu0 0.0
  %5905 = vmatpush1.xpose.msra.mxu0 0.0
  %5906 = vmatprep.subr.mxu0 0.0
  %5907 = vmatpush1.xpose.msra.mxu0 0.0
  %5908 = vmatprep.subr.mxu0 0.0
  %5909 = vmatpush1.xpose.msra.mxu0 0.0
  %5910 = vmatprep.subr.mxu0 0.0
  %5911 = vmatpush1.xpose.msra.mxu0 0.0
  %5912 = vmatprep.subr.mxu0 0.0
  %5913 = vmatpush1.xpose.msra.mxu0 0.0
  %5914 = vmatprep.subr.mxu0 0.0
  %5915 = vmatpush1.xpose.msra.mxu0 0.0
  %5916 = vmatprep.subr.mxu0 0.0
  %5917 = vmatpush1.xpose.msra.mxu0 0.0
  %5918 = vmatprep.subr.mxu0 0.0
  %5919 = vmatpush1.xpose.msra.mxu0 0.0
  %5920 = vmatprep.subr.mxu0 0.0
  %5921 = vmatpush1.xpose.msra.mxu0 0.0
  %5922 = vmatprep.subr.mxu0 0.0
  %5923 = vmatpush1.xpose.msra.mxu0 0.0
  %5924 = vmatprep.subr.mxu0 0.0
  %5925 = vmatpush1.xpose.msra.mxu0 0.0
  %5926 = vmatprep.subr.mxu0 0.0
  %5927 = vmatpush1.xpose.msra.mxu0 0.0
  %5928 = vmatprep.subr.mxu0 0.0
  %5929 = vmatpush1.xpose.msra.mxu0 0.0
  %5930 = vmatprep.subr.mxu0 0.0
  %5931 = vmatpush1.xpose.msra.mxu0 %v5898
  %5932 = vmatprep.subr.mxu0 0.0
  %5933 = vmatpush2.xpose.msra.mxu0 0.0
  %5934 = vmatprep.subr.mxu0 0.0
  %5935 = vmatpush2.xpose.msra.mxu0 0.0
  %5936 = vmatprep.subr.mxu0 0.0
  %5937 = vmatpush2.xpose.msra.mxu0 0.0
  %5938 = vmatprep.subr.mxu0 0.0
  %5939 = vmatpush2.xpose.msra.mxu0 0.0
  %5940 = vmatprep.subr.mxu0 0.0
  %5941 = vmatpush2.xpose.msra.mxu0 0.0
  %5942 = vmatprep.subr.mxu0 0.0
  %5943 = vmatpush2.xpose.msra.mxu0 0.0
  %5944 = vmatprep.subr.mxu0 0.0
  %5945 = vmatpush2.xpose.msra.mxu0 0.0
  %5946 = vmatprep.subr.mxu0 0.0
  %5947 = vmatpush2.xpose.msra.mxu0 0.0
  %5948 = vmatprep.subr.mxu0 0.0
  %5949 = vmatpush2.xpose.msra.mxu0 0.0
  %5950 = vmatprep.subr.mxu0 0.0
  %5951 = vmatpush2.xpose.msra.mxu0 0.0
  %5952 = vmatprep.subr.mxu0 0.0
  %5953 = vmatpush2.xpose.msra.mxu0 0.0
  %5954 = vmatprep.subr.mxu0 0.0
  %5955 = vmatpush2.xpose.msra.mxu0 0.0
  %5956 = vmatprep.subr.mxu0 0.0
  %5957 = vmatpush2.xpose.msra.mxu0 0.0
  %5958 = vmatprep.subr.mxu0 0.0
  %5959 = vmatpush2.xpose.msra.mxu0 0.0
  %5960 = vmatprep.subr.mxu0 0.0
  %5961 = vmatpush2.xpose.msra.mxu0 0.0
  %5962 = vmatprep.subr.mxu0 0.0
  %5963 = vmatpush2.xpose.msra.mxu0 0.0
  %5964 = vmatprep.mubr.f32.mxu0 0.0
  %5965 = vmatmul.mubr.f32.gmra.mxu0 %v5895
  %v5966 = vpop.f32.mrf.mxu0
  %v5967 = vadd.f32 0.0, %v5966
  %v5968 = vpop.f32.mrf.mxu0
  %5969 = vdwg.mxu0
  %v5971 = vsel %vm427, %v5713, 0
  %v5974 = vsel %vm427, %v5802, 0
  %5976 = vmatprep.subr.mxu0 0.0
  %5977 = vmatpush1.xpose.msra.mxu0 0.0
  %5978 = vmatprep.subr.mxu0 0.0
  %5979 = vmatpush1.xpose.msra.mxu0 0.0
  %5980 = vmatprep.subr.mxu0 0.0
  %5981 = vmatpush1.xpose.msra.mxu0 0.0
  %5982 = vmatprep.subr.mxu0 0.0
  %5983 = vmatpush1.xpose.msra.mxu0 0.0
  %5984 = vmatprep.subr.mxu0 0.0
  %5985 = vmatpush1.xpose.msra.mxu0 0.0
  %5986 = vmatprep.subr.mxu0 0.0
  %5987 = vmatpush1.xpose.msra.mxu0 0.0
  %5988 = vmatprep.subr.mxu0 0.0
  %5989 = vmatpush1.xpose.msra.mxu0 0.0
  %5990 = vmatprep.subr.mxu0 0.0
  %5991 = vmatpush1.xpose.msra.mxu0 0.0
  %5992 = vmatprep.subr.mxu0 0.0
  %5993 = vmatpush1.xpose.msra.mxu0 0.0
  %5994 = vmatprep.subr.mxu0 0.0
  %5995 = vmatpush1.xpose.msra.mxu0 0.0
  %5996 = vmatprep.subr.mxu0 0.0
  %5997 = vmatpush1.xpose.msra.mxu0 0.0
  %5998 = vmatprep.subr.mxu0 0.0
  %5999 = vmatpush1.xpose.msra.mxu0 0.0
  %6000 = vmatprep.subr.mxu0 0.0
  %6001 = vmatpush1.xpose.msra.mxu0 0.0
  %6002 = vmatprep.subr.mxu0 0.0
  %6003 = vmatpush1.xpose.msra.mxu0 0.0
  %6004 = vmatprep.subr.mxu0 0.0
  %6005 = vmatpush1.xpose.msra.mxu0 0.0
  %6006 = vmatprep.subr.mxu0 0.0
  %6007 = vmatpush1.xpose.msra.mxu0 %v5974
  %6008 = vmatprep.subr.mxu0 0.0
  %6009 = vmatpush2.xpose.msra.mxu0 0.0
  %6010 = vmatprep.subr.mxu0 0.0
  %6011 = vmatpush2.xpose.msra.mxu0 0.0
  %6012 = vmatprep.subr.mxu0 0.0
  %6013 = vmatpush2.xpose.msra.mxu0 0.0
  %6014 = vmatprep.subr.mxu0 0.0
  %6015 = vmatpush2.xpose.msra.mxu0 0.0
  %6016 = vmatprep.subr.mxu0 0.0
  %6017 = vmatpush2.xpose.msra.mxu0 0.0
  %6018 = vmatprep.subr.mxu0 0.0
  %6019 = vmatpush2.xpose.msra.mxu0 0.0
  %6020 = vmatprep.subr.mxu0 0.0
  %6021 = vmatpush2.xpose.msra.mxu0 0.0
  %6022 = vmatprep.subr.mxu0 0.0
  %6023 = vmatpush2.xpose.msra.mxu0 0.0
  %6024 = vmatprep.subr.mxu0 0.0
  %6025 = vmatpush2.xpose.msra.mxu0 0.0
  %6026 = vmatprep.subr.mxu0 0.0
  %6027 = vmatpush2.xpose.msra.mxu0 0.0
  %6028 = vmatprep.subr.mxu0 0.0
  %6029 = vmatpush2.xpose.msra.mxu0 0.0
  %6030 = vmatprep.subr.mxu0 0.0
  %6031 = vmatpush2.xpose.msra.mxu0 0.0
  %6032 = vmatprep.subr.mxu0 0.0
  %6033 = vmatpush2.xpose.msra.mxu0 0.0
  %6034 = vmatprep.subr.mxu0 0.0
  %6035 = vmatpush2.xpose.msra.mxu0 0.0
  %6036 = vmatprep.subr.mxu0 0.0
  %6037 = vmatpush2.xpose.msra.mxu0 0.0
  %6038 = vmatprep.subr.mxu0 0.0
  %6039 = vmatpush2.xpose.msra.mxu0 0.0
  %6040 = vmatprep.mubr.f32.mxu0 0.0
  %6041 = vmatmul.mubr.f32.gmra.mxu0 %v5971
  %v6042 = vpop.f32.mrf.mxu0
  %v6043 = vadd.f32 0.0, %v6042
  %v6044 = vpop.f32.mrf.mxu0
  %6045 = vdwg.mxu0
  %v6046 = vsel %vm580, %v5967, -inf
  %6047 = vmax.xlane.f32.xlu0 %v6046
  %v6048 = vpop.xlane.xlu0 %6047
  %v6049 = vsel %vm580, %v6043, -inf
  %6050 = vmax.xlane.f32.xlu0 %v6049
  %v6051 = vpop.xlane.xlu0 %6050
  %v6052 = vsub.f32 %v5967, %v6048
  %v6053 = vsub.f32 %v6043, %v6051
  %v6054 = vmul.f32 %v6052, 1.442695
  %v6055 = vpow.pop %v6054
  %v6056 = vmul.f32 %v6053, 1.442695
  %v6057 = vpow.pop %v6056
  %v6058 = vsel %vm580, %v6055, 0.0
  %6059 = vadd.xlane.f32.xlu0 %v6058
  %v6060 = vpop.xlane.xlu0 %6059
  %v6061 = vsel %vm580, %v6057, 0.0
  %6062 = vadd.xlane.f32.xlu0 %v6061
  %v6063 = vpop.xlane.xlu0 %6062
  %v6064 = vrcp.pop %v6060
  %v6065 = vmul.f32 %v6055, %v6064
  %v6066 = vrcp.pop %v6063
  %v6067 = vmul.f32 %v6057, %v6066
  %v6069 = vsel %vm580, %v6065, 0
  %6071 = vmatprep.subr.mxu0 0.0
  %6072 = vmatpush1.msra.mxu0 0.0
  %6073 = vmatprep.subr.mxu0 0.0
  %6074 = vmatpush1.msra.mxu0 0.0
  %6075 = vmatprep.subr.mxu0 0.0
  %6076 = vmatpush1.msra.mxu0 0.0
  %6077 = vmatprep.subr.mxu0 0.0
  %6078 = vmatpush1.msra.mxu0 0.0
  %6079 = vmatprep.subr.mxu0 0.0
  %6080 = vmatpush1.msra.mxu0 0.0
  %6081 = vmatprep.subr.mxu0 0.0
  %6082 = vmatpush1.msra.mxu0 0.0
  %6083 = vmatprep.subr.mxu0 0.0
  %6084 = vmatpush1.msra.mxu0 0.0
  %6085 = vmatprep.subr.mxu0 0.0
  %6086 = vmatpush1.msra.mxu0 0.0
  %6087 = vmatprep.subr.mxu0 0.0
  %6088 = vmatpush1.msra.mxu0 0.0
  %6089 = vmatprep.subr.mxu0 0.0
  %6090 = vmatpush1.msra.mxu0 0.0
  %6091 = vmatprep.subr.mxu0 0.0
  %6092 = vmatpush1.msra.mxu0 0.0
  %6093 = vmatprep.subr.mxu0 0.0
  %6094 = vmatpush1.msra.mxu0 0.0
  %6095 = vmatprep.subr.mxu0 0.0
  %6096 = vmatpush1.msra.mxu0 0.0
  %6097 = vmatprep.subr.mxu0 0.0
  %6098 = vmatpush1.msra.mxu0 0.0
  %6099 = vmatprep.subr.mxu0 0.0
  %6100 = vmatpush1.msra.mxu0 0.0
  %6101 = vmatprep.subr.mxu0 0.0
  %6102 = vmatpush1.msra.mxu0 %v5886
  %6103 = vmatprep.subr.mxu0 0.0
  %6104 = vmatpush2.msra.mxu0 0.0
  %6105 = vmatprep.subr.mxu0 0.0
  %6106 = vmatpush2.msra.mxu0 0.0
  %6107 = vmatprep.subr.mxu0 0.0
  %6108 = vmatpush2.msra.mxu0 0.0
  %6109 = vmatprep.subr.mxu0 0.0
  %6110 = vmatpush2.msra.mxu0 0.0
  %6111 = vmatprep.subr.mxu0 0.0
  %6112 = vmatpush2.msra.mxu0 0.0
  %6113 = vmatprep.subr.mxu0 0.0
  %6114 = vmatpush2.msra.mxu0 0.0
  %6115 = vmatprep.subr.mxu0 0.0
  %6116 = vmatpush2.msra.mxu0 0.0
  %6117 = vmatprep.subr.mxu0 0.0
  %6118 = vmatpush2.msra.mxu0 0.0
  %6119 = vmatprep.subr.mxu0 0.0
  %6120 = vmatpush2.msra.mxu0 0.0
  %6121 = vmatprep.subr.mxu0 0.0
  %6122 = vmatpush2.msra.mxu0 0.0
  %6123 = vmatprep.subr.mxu0 0.0
  %6124 = vmatpush2.msra.mxu0 0.0
  %6125 = vmatprep.subr.mxu0 0.0
  %6126 = vmatpush2.msra.mxu0 0.0
  %6127 = vmatprep.subr.mxu0 0.0
  %6128 = vmatpush2.msra.mxu0 0.0
  %6129 = vmatprep.subr.mxu0 0.0
  %6130 = vmatpush2.msra.mxu0 0.0
  %6131 = vmatprep.subr.mxu0 0.0
  %6132 = vmatpush2.msra.mxu0 0.0
  %6133 = vmatprep.subr.mxu0 0.0
  %6134 = vmatpush2.msra.mxu0 0.0
  %6135 = vmatprep.mubr.f32.mxu0 0.0
  %6136 = vmatmul.mubr.f32.gmra.mxu0 %v6069
  %v6137 = vpop.f32.mrf.mxu0
  %v6138 = vadd.f32 0.0, %v6137
  %v6139 = vpop.f32.mrf.mxu0
  %6140 = vdwg.mxu0
  %v6142 = vsel %vm580, %v6067, 0
  %6144 = vmatprep.subr.mxu0 0.0
  %6145 = vmatpush1.msra.mxu0 0.0
  %6146 = vmatprep.subr.mxu0 0.0
  %6147 = vmatpush1.msra.mxu0 0.0
  %6148 = vmatprep.subr.mxu0 0.0
  %6149 = vmatpush1.msra.mxu0 0.0
  %6150 = vmatprep.subr.mxu0 0.0
  %6151 = vmatpush1.msra.mxu0 0.0
  %6152 = vmatprep.subr.mxu0 0.0
  %6153 = vmatpush1.msra.mxu0 0.0
  %6154 = vmatprep.subr.mxu0 0.0
  %6155 = vmatpush1.msra.mxu0 0.0
  %6156 = vmatprep.subr.mxu0 0.0
  %6157 = vmatpush1.msra.mxu0 0.0
  %6158 = vmatprep.subr.mxu0 0.0
  %6159 = vmatpush1.msra.mxu0 0.0
  %6160 = vmatprep.subr.mxu0 0.0
  %6161 = vmatpush1.msra.mxu0 0.0
  %6162 = vmatprep.subr.mxu0 0.0
  %6163 = vmatpush1.msra.mxu0 0.0
  %6164 = vmatprep.subr.mxu0 0.0
  %6165 = vmatpush1.msra.mxu0 0.0
  %6166 = vmatprep.subr.mxu0 0.0
  %6167 = vmatpush1.msra.mxu0 0.0
  %6168 = vmatprep.subr.mxu0 0.0
  %6169 = vmatpush1.msra.mxu0 0.0
  %6170 = vmatprep.subr.mxu0 0.0
  %6171 = vmatpush1.msra.mxu0 0.0
  %6172 = vmatprep.subr.mxu0 0.0
  %6173 = vmatpush1.msra.mxu0 0.0
  %6174 = vmatprep.subr.mxu0 0.0
  %6175 = vmatpush1.msra.mxu0 %v5891
  %6176 = vmatprep.subr.mxu0 0.0
  %6177 = vmatpush2.msra.mxu0 0.0
  %6178 = vmatprep.subr.mxu0 0.0
  %6179 = vmatpush2.msra.mxu0 0.0
  %6180 = vmatprep.subr.mxu0 0.0
  %6181 = vmatpush2.msra.mxu0 0.0
  %6182 = vmatprep.subr.mxu0 0.0
  %6183 = vmatpush2.msra.mxu0 0.0
  %6184 = vmatprep.subr.mxu0 0.0
  %6185 = vmatpush2.msra.mxu0 0.0
  %6186 = vmatprep.subr.mxu0 0.0
  %6187 = vmatpush2.msra.mxu0 0.0
  %6188 = vmatprep.subr.mxu0 0.0
  %6189 = vmatpush2.msra.mxu0 0.0
  %6190 = vmatprep.subr.mxu0 0.0
  %6191 = vmatpush2.msra.mxu0 0.0
  %6192 = vmatprep.subr.mxu0 0.0
  %6193 = vmatpush2.msra.mxu0 0.0
  %6194 = vmatprep.subr.mxu0 0.0
  %6195 = vmatpush2.msra.mxu0 0.0
  %6196 = vmatprep.subr.mxu0 0.0
  %6197 = vmatpush2.msra.mxu0 0.0
  %6198 = vmatprep.subr.mxu0 0.0
  %6199 = vmatpush2.msra.mxu0 0.0
  %6200 = vmatprep.subr.mxu0 0.0
  %6201 = vmatpush2.msra.mxu0 0.0
  %6202 = vmatprep.subr.mxu0 0.0
  %6203 = vmatpush2.msra.mxu0 0.0
  %6204 = vmatprep.subr.mxu0 0.0
  %6205 = vmatpush2.msra.mxu0 0.0
  %6206 = vmatprep.subr.mxu0 0.0
  %6207 = vmatpush2.msra.mxu0 0.0
  %6208 = vmatprep.mubr.f32.mxu0 0.0
  %6209 = vmatmul.mubr.f32.gmra.mxu0 %v6142
  %v6210 = vpop.f32.mrf.mxu0
  %v6211 = vadd.f32 0.0, %v6210
  %v6212 = vpop.f32.mrf.mxu0
  %6213 = vdwg.mxu0
  %s6214 = scalar_lea.vmem %s8, 20
  %v6215 = vld [vmem:[%s6214] sm:$0x7]
  %v6217 = vsel %vm427, %v6138, 0
  %v6220 = vsel %vm427, %v6211, 0
  %v6223 = vsel %vm756, %v6215, 0
  %6225 = vmatprep.subr.mxu0 0.0
  %6226 = vmatpush1.msra.mxu0 0.0
  %6227 = vmatprep.subr.mxu0 0.0
  %6228 = vmatpush1.msra.mxu0 0.0
  %6229 = vmatprep.subr.mxu0 0.0
  %6230 = vmatpush1.msra.mxu0 0.0
  %6231 = vmatprep.subr.mxu0 0.0
  %6232 = vmatpush1.msra.mxu0 0.0
  %6233 = vmatprep.subr.mxu0 0.0
  %6234 = vmatpush1.msra.mxu0 0.0
  %6235 = vmatprep.subr.mxu0 0.0
  %6236 = vmatpush1.msra.mxu0 0.0
  %6237 = vmatprep.subr.mxu0 0.0
  %6238 = vmatpush1.msra.mxu0 0.0
  %6239 = vmatprep.subr.mxu0 0.0
  %6240 = vmatpush1.msra.mxu0 0.0
  %6241 = vmatprep.subr.mxu0 0.0
  %6242 = vmatpush1.msra.mxu0 0.0
  %6243 = vmatprep.subr.mxu0 0.0
  %6244 = vmatpush1.msra.mxu0 0.0
  %6245 = vmatprep.subr.mxu0 0.0
  %6246 = vmatpush1.msra.mxu0 0.0
  %6247 = vmatprep.subr.mxu0 0.0
  %6248 = vmatpush1.msra.mxu0 0.0
  %6249 = vmatprep.subr.mxu0 0.0
  %6250 = vmatpush1.msra.mxu0 0.0
  %6251 = vmatprep.subr.mxu0 0.0
  %6252 = vmatpush1.msra.mxu0 0.0
  %6253 = vmatprep.subr.mxu0 0.0
  %6254 = vmatpush1.msra.mxu0 0.0
  %6255 = vmatprep.subr.mxu0 0.0
  %6256 = vmatpush1.msra.mxu0 %v6223
  %6257 = vmatprep.subr.mxu0 0.0
  %6258 = vmatpush2.msra.mxu0 0.0
  %6259 = vmatprep.subr.mxu0 0.0
  %6260 = vmatpush2.msra.mxu0 0.0
  %6261 = vmatprep.subr.mxu0 0.0
  %6262 = vmatpush2.msra.mxu0 0.0
  %6263 = vmatprep.subr.mxu0 0.0
  %6264 = vmatpush2.msra.mxu0 0.0
  %6265 = vmatprep.subr.mxu0 0.0
  %6266 = vmatpush2.msra.mxu0 0.0
  %6267 = vmatprep.subr.mxu0 0.0
  %6268 = vmatpush2.msra.mxu0 0.0
  %6269 = vmatprep.subr.mxu0 0.0
  %6270 = vmatpush2.msra.mxu0 0.0
  %6271 = vmatprep.subr.mxu0 0.0
  %6272 = vmatpush2.msra.mxu0 0.0
  %6273 = vmatprep.subr.mxu0 0.0
  %6274 = vmatpush2.msra.mxu0 0.0
  %6275 = vmatprep.subr.mxu0 0.0
  %6276 = vmatpush2.msra.mxu0 0.0
  %6277 = vmatprep.subr.mxu0 0.0
  %6278 = vmatpush2.msra.mxu0 0.0
  %6279 = vmatprep.subr.mxu0 0.0
  %6280 = vmatpush2.msra.mxu0 0.0
  %6281 = vmatprep.subr.mxu0 0.0
  %6282 = vmatpush2.msra.mxu0 0.0
  %6283 = vmatprep.subr.mxu0 0.0
  %6284 = vmatpush2.msra.mxu0 0.0
  %6285 = vmatprep.subr.mxu0 0.0
  %6286 = vmatpush2.msra.mxu0 0.0
  %6287 = vmatprep.subr.mxu0 0.0
  %6288 = vmatpush2.msra.mxu0 0.0
  %6289 = vmatprep.mubr.f32.mxu0 0.0
  %6290 = vmatmul.mubr.f32.gmra.mxu0 %v6217
  %v6291 = vpop.f32.mrf.mxu0
  %v6292 = vadd.f32 0.0, %v6291
  %v6293 = vpop.f32.mrf.mxu0
  %6294 = vmatprep.mubr.f32.mxu0 0.0
  %6295 = vmatmul.mubr.f32.gmra.mxu0 %v6220
  %v6296 = vpop.f32.mrf.mxu0
  %v6297 = vadd.f32 0.0, %v6296
  %v6298 = vpop.f32.mrf.mxu0
  %6299 = vdwg.mxu0
  %v6300 = vadd.f32 %v5625, %v6292
  %v6301 = vadd.f32 %v5626, %v6297
  %v6302 = vadd.f32 %v4261, %v6300
  %v6303 = vadd.f32 %v4262, %v6301
  %s6304 = scalar_lea.vmem %s10, 1
  %v6305 = vld [vmem:[%s6304] sm:$0x1]
  %s6306 = scalar_lea.vmem %s11, 1
  %v6307 = vld [vmem:[%s6306] sm:$0x1]
  %v6308 = vsel %vm167, %v6302, 0.0
  %6309 = vadd.xlane.f32.xlu0 %v6308
  %v6310 = vpop.xlane.xlu0 %6309
  %v6311 = vsel %vm167, %v6303, 0.0
  %6312 = vadd.xlane.f32.xlu0 %v6311
  %v6313 = vpop.xlane.xlu0 %6312
  %v6314 = vmul.f32 %v6310, 0.11111111
  %v6315 = vmul.f32 %v6313, 0.11111111
  %v6316 = vmul.f32 %v6302, %v6302
  %v6317 = vmul.f32 %v6303, %v6303
  %v6318 = vsel %vm167, %v6316, 0.0
  %6319 = vadd.xlane.f32.xlu0 %v6318
  %v6320 = vpop.xlane.xlu0 %6319
  %v6321 = vsel %vm167, %v6317, 0.0
  %6322 = vadd.xlane.f32.xlu0 %v6321
  %v6323 = vpop.xlane.xlu0 %6322
  %v6324 = vmul.f32 %v6320, 0.11111111
  %v6325 = vmul.f32 %v6323, 0.11111111
  %v6326 = vmul.f32 %v6314, %v6314
  %v6327 = vmul.f32 %v6315, %v6315
  %v6328 = vsub.f32 %v6324, %v6326
  %v6329 = vsub.f32 %v6325, %v6327
  %v6330 = vsub.f32 %v6302, %v6314
  %v6331 = vsub.f32 %v6303, %v6315
  %v6332 = vadd.f32 %v6328, 1e-05
  %v6333 = vadd.f32 %v6329, 1e-05
  %v6334 = vrsqrt.pop %v6332
  %v6335 = vrsqrt.pop %v6333
  %v6336 = vmul.f32 %v6330, %v6334
  %v6337 = vmul.f32 %v6331, %v6335
  %v6339 = vlaneseq
  %v6340 = vshrl.u32 %v6339, 7
  %v6341 = vsub.s32 0, %v6340
  %v6342 = vrot.slane %v6305, %v6341
  %v6344 = vmul.f32 %v6336, %v6342
  %v6345 = vmul.f32 %v6337, %v6342
  %v6347 = vlaneseq
  %v6348 = vshrl.u32 %v6347, 7
  %v6349 = vsub.s32 0, %v6348
  %v6350 = vrot.slane %v6307, %v6349
  %v6352 = vadd.f32 %v6344, %v6350
  %v6353 = vadd.f32 %v6345, %v6350
  %v6354 = vpack.c.bf16 %v6353, %v6352
  %s6355 = scalar_lea.vmem %s12, 128
  %v6356 = vld [vmem:[%s6355] sm:$0xff]
  %v6357 = vld [vmem:[%s6355 + $0x8] sm:$0xff]
  %v6358 = vld [vmem:[%s6355 + $0x10] sm:$0xff]
  %v6359 = vld [vmem:[%s6355 + $0x18] sm:$0xff]
  %v6360 = vld [vmem:[%s6355 + $0x20] sm:$0xff]
  %v6361 = vld [vmem:[%s6355 + $0x28] sm:$0xff]
  %v6362 = vld [vmem:[%s6355 + $0x30] sm:$0xff]
  %v6363 = vld [vmem:[%s6355 + $0x38] sm:$0xff]
  %v6364 = vld [vmem:[%s6355 + $0x40] sm:$0x11]
  %v6365 = vld [vmem:[%s6355 + $0x48] sm:$0x11]
  %v6366 = vld [vmem:[%s6355 + $0x50] sm:$0x11]
  %v6367 = vld [vmem:[%s6355 + $0x58] sm:$0x11]
  %v6368 = vld [vmem:[%s6355 + $0x60] sm:$0x11]
  %v6369 = vld [vmem:[%s6355 + $0x68] sm:$0x11]
  %v6370 = vld [vmem:[%s6355 + $0x70] sm:$0x11]
  %v6371 = vld [vmem:[%s6355 + $0x78] sm:$0x11]
  %s6372 = scalar_lea.vmem %s13, 16
  %v6373 = vld [vmem:[%s6372] sm:$0xff]
  %v6374 = vld [vmem:[%s6372 + $0x8] sm:$0xff]
  %v6377 = vlaneseq
  %v6378 = vshrl.u32 %v6377, 7
  %v6379 = vsub.s32 0, %v6378
  %v6380 = vrot.slane %v6373, %v6379
  %v6381 = vlaneseq
  %v6382 = vshrl.u32 %v6381, 7
  %v6383 = vsub.s32 1, %v6382
  %v6384 = vrot.slane %v6373, %v6383
  %v6385 = vlaneseq
  %v6386 = vshrl.u32 %v6385, 7
  %v6387 = vsub.s32 2, %v6386
  %v6388 = vrot.slane %v6373, %v6387
  %v6389 = vlaneseq
  %v6390 = vshrl.u32 %v6389, 7
  %v6391 = vsub.s32 3, %v6390
  %v6392 = vrot.slane %v6373, %v6391
  %v6393 = vlaneseq
  %v6394 = vshrl.u32 %v6393, 7
  %v6395 = vsub.s32 4, %v6394
  %v6396 = vrot.slane %v6373, %v6395
  %v6397 = vlaneseq
  %v6398 = vshrl.u32 %v6397, 7
  %v6399 = vsub.s32 5, %v6398
  %v6400 = vrot.slane %v6373, %v6399
  %v6401 = vlaneseq
  %v6402 = vshrl.u32 %v6401, 7
  %v6403 = vsub.s32 6, %v6402
  %v6404 = vrot.slane %v6373, %v6403
  %v6405 = vlaneseq
  %v6406 = vshrl.u32 %v6405, 7
  %v6407 = vsub.s32 7, %v6406
  %v6408 = vrot.slane %v6373, %v6407
  %v6409 = vlaneseq
  %v6410 = vshrl.u32 %v6409, 7
  %v6411 = vsub.s32 0, %v6410
  %v6412 = vrot.slane %v6374, %v6411
  %v6413 = vlaneseq
  %v6414 = vshrl.u32 %v6413, 7
  %v6415 = vsub.s32 1, %v6414
  %v6416 = vrot.slane %v6374, %v6415
  %v6417 = vlaneseq
  %v6418 = vshrl.u32 %v6417, 7
  %v6419 = vsub.s32 2, %v6418
  %v6420 = vrot.slane %v6374, %v6419
  %v6421 = vlaneseq
  %v6422 = vshrl.u32 %v6421, 7
  %v6423 = vsub.s32 3, %v6422
  %v6424 = vrot.slane %v6374, %v6423
  %v6425 = vlaneseq
  %v6426 = vshrl.u32 %v6425, 7
  %v6427 = vsub.s32 4, %v6426
  %v6428 = vrot.slane %v6374, %v6427
  %v6429 = vlaneseq
  %v6430 = vshrl.u32 %v6429, 7
  %v6431 = vsub.s32 5, %v6430
  %v6432 = vrot.slane %v6374, %v6431
  %v6433 = vlaneseq
  %v6434 = vshrl.u32 %v6433, 7
  %v6435 = vsub.s32 6, %v6434
  %v6436 = vrot.slane %v6374, %v6435
  %v6437 = vlaneseq
  %v6438 = vshrl.u32 %v6437, 7
  %v6439 = vsub.s32 7, %v6438
  %v6440 = vrot.slane %v6374, %v6439
  %v6473 = vunpack.c.l.b16 %v6356
  %v6474 = vunpack.c.h.b16 %v6356
  %v6475 = vunpack.c.l.b16 %v6357
  %v6476 = vunpack.c.h.b16 %v6357
  %v6477 = vunpack.c.l.b16 %v6358
  %v6478 = vunpack.c.h.b16 %v6358
  %v6479 = vunpack.c.l.b16 %v6359
  %v6480 = vunpack.c.h.b16 %v6359
  %v6481 = vunpack.c.l.b16 %v6360
  %v6482 = vunpack.c.h.b16 %v6360
  %v6483 = vunpack.c.l.b16 %v6361
  %v6484 = vunpack.c.h.b16 %v6361
  %v6485 = vunpack.c.l.b16 %v6362
  %v6486 = vunpack.c.h.b16 %v6362
  %v6487 = vunpack.c.l.b16 %v6363
  %v6488 = vunpack.c.h.b16 %v6363
  %v6489 = vunpack.c.l.b16 %v6364
  %v6490 = vunpack.c.h.b16 %v6364
  %v6491 = vunpack.c.l.b16 %v6365
  %v6492 = vunpack.c.h.b16 %v6365
  %v6493 = vunpack.c.l.b16 %v6366
  %v6494 = vunpack.c.h.b16 %v6366
  %v6495 = vunpack.c.l.b16 %v6367
  %v6496 = vunpack.c.h.b16 %v6367
  %v6497 = vunpack.c.l.b16 %v6368
  %v6498 = vunpack.c.h.b16 %v6368
  %v6499 = vunpack.c.l.b16 %v6369
  %v6500 = vunpack.c.h.b16 %v6369
  %v6501 = vunpack.c.l.b16 %v6370
  %v6502 = vunpack.c.h.b16 %v6370
  %v6503 = vunpack.c.l.b16 %v6371
  %v6504 = vunpack.c.h.b16 %v6371
  %v6505 = vpack.c.b16 %v6489, %v6473
  %v6506 = vpack.c.b16 %v6490, %v6474
  %v6507 = vpack.c.b16 %v6491, %v6475
  %v6508 = vpack.c.b16 %v6492, %v6476
  %v6509 = vpack.c.b16 %v6493, %v6477
  %v6510 = vpack.c.b16 %v6494, %v6478
  %v6511 = vpack.c.b16 %v6495, %v6479
  %v6512 = vpack.c.b16 %v6496, %v6480
  %v6513 = vpack.c.b16 %v6497, %v6481
  %v6514 = vpack.c.b16 %v6498, %v6482
  %v6515 = vpack.c.b16 %v6499, %v6483
  %v6516 = vpack.c.b16 %v6500, %v6484
  %v6517 = vpack.c.b16 %v6501, %v6485
  %v6518 = vpack.c.b16 %v6502, %v6486
  %v6519 = vpack.c.b16 %v6503, %v6487
  %v6520 = vpack.c.b16 %v6504, %v6488
  %v6522 = vsel %vm167, %v6354, 0
  %v6525 = vand.u32 %v6505, %v2413
  %v6528 = vand.u32 %v6506, %v2413
  %v6531 = vand.u32 %v6507, %v2413
  %v6534 = vand.u32 %v6508, %v2413
  %v6537 = vand.u32 %v6509, %v2413
  %v6540 = vand.u32 %v6510, %v2413
  %v6543 = vand.u32 %v6511, %v2413
  %v6546 = vand.u32 %v6512, %v2413
  %v6549 = vand.u32 %v6513, %v2413
  %v6552 = vand.u32 %v6514, %v2413
  %v6555 = vand.u32 %v6515, %v2413
  %v6558 = vand.u32 %v6516, %v2413
  %v6561 = vand.u32 %v6517, %v2413
  %v6564 = vand.u32 %v6518, %v2413
  %v6567 = vand.u32 %v6519, %v2413
  %v6570 = vand.u32 %v6520, %v2413
  %6572 = vmatprep.subr.bf16.mxu0 0
  %6573 = vmatpush1.bf16.msra.mxu0 0
  %6574 = vmatprep.subr.bf16.mxu0 0
  %6575 = vmatpush1.bf16.msra.mxu0 0
  %6576 = vmatprep.subr.bf16.mxu0 0
  %6577 = vmatpush1.bf16.msra.mxu0 0
  %6578 = vmatprep.subr.bf16.mxu0 0
  %6579 = vmatpush1.bf16.msra.mxu0 0
  %6580 = vmatprep.subr.bf16.mxu0 0
  %6581 = vmatpush1.bf16.msra.mxu0 0
  %6582 = vmatprep.subr.bf16.mxu0 0
  %6583 = vmatpush1.bf16.msra.mxu0 0
  %6584 = vmatprep.subr.bf16.mxu0 0
  %6585 = vmatpush1.bf16.msra.mxu0 0
  %6586 = vmatprep.subr.bf16.mxu0 %v6528
  %6587 = vmatpush1.bf16.msra.mxu0 %v6525
  %6588 = vmatprep.subr.bf16.mxu0 0
  %6589 = vmatpush2.bf16.msra.mxu0 0
  %6590 = vmatprep.subr.bf16.mxu0 0
  %6591 = vmatpush2.bf16.msra.mxu0 0
  %6592 = vmatprep.subr.bf16.mxu0 0
  %6593 = vmatpush2.bf16.msra.mxu0 0
  %6594 = vmatprep.subr.bf16.mxu0 0
  %6595 = vmatpush2.bf16.msra.mxu0 0
  %6596 = vmatprep.subr.bf16.mxu0 0
  %6597 = vmatpush2.bf16.msra.mxu0 0
  %6598 = vmatprep.subr.bf16.mxu0 0
  %6599 = vmatpush2.bf16.msra.mxu0 0
  %6600 = vmatprep.subr.bf16.mxu0 0
  %6601 = vmatpush2.bf16.msra.mxu0 0
  %6602 = vmatprep.subr.bf16.mxu0 0
  %6603 = vmatpush2.bf16.msra.mxu0 0
  %6604 = vmatprep.mubr.bf16.mxu0 0
  %6605 = vmatmul.mubr.bf16.gmra.mxu0 %v6522
  %v6606 = vpop.f32.mrf.mxu0
  %v6607 = vadd.f32 %v6380, %v6606
  %v6608 = vpop.f32.mrf.mxu0
  %v6609 = vadd.f32 %v6384, %v6608
  %v6610 = vpop.f32.mrf.mxu0
  %v6611 = vadd.f32 %v6380, %v6610
  %v6612 = vpop.f32.mrf.mxu0
  %v6613 = vadd.f32 %v6384, %v6612
  %6614 = vdwg.mxu0
  %6615 = vmatprep.subr.bf16.mxu0 0
  %6616 = vmatpush1.bf16.msra.mxu0 0
  %6617 = vmatprep.subr.bf16.mxu0 0
  %6618 = vmatpush1.bf16.msra.mxu0 0
  %6619 = vmatprep.subr.bf16.mxu0 0
  %6620 = vmatpush1.bf16.msra.mxu0 0
  %6621 = vmatprep.subr.bf16.mxu0 0
  %6622 = vmatpush1.bf16.msra.mxu0 0
  %6623 = vmatprep.subr.bf16.mxu0 0
  %6624 = vmatpush1.bf16.msra.mxu0 0
  %6625 = vmatprep.subr.bf16.mxu0 0
  %6626 = vmatpush1.bf16.msra.mxu0 0
  %6627 = vmatprep.subr.bf16.mxu0 0
  %6628 = vmatpush1.bf16.msra.mxu0 0
  %6629 = vmatprep.subr.bf16.mxu0 %v6534
  %6630 = vmatpush1.bf16.msra.mxu0 %v6531
  %6631 = vmatprep.subr.bf16.mxu0 0
  %6632 = vmatpush2.bf16.msra.mxu0 0
  %6633 = vmatprep.subr.bf16.mxu0 0
  %6634 = vmatpush2.bf16.msra.mxu0 0
  %6635 = vmatprep.subr.bf16.mxu0 0
  %6636 = vmatpush2.bf16.msra.mxu0 0
  %6637 = vmatprep.subr.bf16.mxu0 0
  %6638 = vmatpush2.bf16.msra.mxu0 0
  %6639 = vmatprep.subr.bf16.mxu0 0
  %6640 = vmatpush2.bf16.msra.mxu0 0
  %6641 = vmatprep.subr.bf16.mxu0 0
  %6642 = vmatpush2.bf16.msra.mxu0 0
  %6643 = vmatprep.subr.bf16.mxu0 0
  %6644 = vmatpush2.bf16.msra.mxu0 0
  %6645 = vmatprep.subr.bf16.mxu0 0
  %6646 = vmatpush2.bf16.msra.mxu0 0
  %6647 = vmatprep.mubr.bf16.mxu0 0
  %6648 = vmatmul.mubr.bf16.gmra.mxu0 %v6522
  %v6649 = vpop.f32.mrf.mxu0
  %v6650 = vadd.f32 %v6388, %v6649
  %v6651 = vpop.f32.mrf.mxu0
  %v6652 = vadd.f32 %v6392, %v6651
  %v6653 = vpop.f32.mrf.mxu0
  %v6654 = vadd.f32 %v6388, %v6653
  %v6655 = vpop.f32.mrf.mxu0
  %v6656 = vadd.f32 %v6392, %v6655
  %6657 = vdwg.mxu0
  %6658 = vmatprep.subr.bf16.mxu0 0
  %6659 = vmatpush1.bf16.msra.mxu0 0
  %6660 = vmatprep.subr.bf16.mxu0 0
  %6661 = vmatpush1.bf16.msra.mxu0 0
  %6662 = vmatprep.subr.bf16.mxu0 0
  %6663 = vmatpush1.bf16.msra.mxu0 0
  %6664 = vmatprep.subr.bf16.mxu0 0
  %6665 = vmatpush1.bf16.msra.mxu0 0
  %6666 = vmatprep.subr.bf16.mxu0 0
  %6667 = vmatpush1.bf16.msra.mxu0 0
  %6668 = vmatprep.subr.bf16.mxu0 0
  %6669 = vmatpush1.bf16.msra.mxu0 0
  %6670 = vmatprep.subr.bf16.mxu0 0
  %6671 = vmatpush1.bf16.msra.mxu0 0
  %6672 = vmatprep.subr.bf16.mxu0 %v6540
  %6673 = vmatpush1.bf16.msra.mxu0 %v6537
  %6674 = vmatprep.subr.bf16.mxu0 0
  %6675 = vmatpush2.bf16.msra.mxu0 0
  %6676 = vmatprep.subr.bf16.mxu0 0
  %6677 = vmatpush2.bf16.msra.mxu0 0
  %6678 = vmatprep.subr.bf16.mxu0 0
  %6679 = vmatpush2.bf16.msra.mxu0 0
  %6680 = vmatprep.subr.bf16.mxu0 0
  %6681 = vmatpush2.bf16.msra.mxu0 0
  %6682 = vmatprep.subr.bf16.mxu0 0
  %6683 = vmatpush2.bf16.msra.mxu0 0
  %6684 = vmatprep.subr.bf16.mxu0 0
  %6685 = vmatpush2.bf16.msra.mxu0 0
  %6686 = vmatprep.subr.bf16.mxu0 0
  %6687 = vmatpush2.bf16.msra.mxu0 0
  %6688 = vmatprep.subr.bf16.mxu0 0
  %6689 = vmatpush2.bf16.msra.mxu0 0
  %6690 = vmatprep.mubr.bf16.mxu0 0
  %6691 = vmatmul.mubr.bf16.gmra.mxu0 %v6522
  %v6692 = vpop.f32.mrf.mxu0
  %v6693 = vadd.f32 %v6396, %v6692
  %v6694 = vpop.f32.mrf.mxu0
  %v6695 = vadd.f32 %v6400, %v6694
  %v6696 = vpop.f32.mrf.mxu0
  %v6697 = vadd.f32 %v6396, %v6696
  %v6698 = vpop.f32.mrf.mxu0
  %v6699 = vadd.f32 %v6400, %v6698
  %6700 = vdwg.mxu0
  %6701 = vmatprep.subr.bf16.mxu0 0
  %6702 = vmatpush1.bf16.msra.mxu0 0
  %6703 = vmatprep.subr.bf16.mxu0 0
  %6704 = vmatpush1.bf16.msra.mxu0 0
  %6705 = vmatprep.subr.bf16.mxu0 0
  %6706 = vmatpush1.bf16.msra.mxu0 0
  %6707 = vmatprep.subr.bf16.mxu0 0
  %6708 = vmatpush1.bf16.msra.mxu0 0
  %6709 = vmatprep.subr.bf16.mxu0 0
  %6710 = vmatpush1.bf16.msra.mxu0 0
  %6711 = vmatprep.subr.bf16.mxu0 0
  %6712 = vmatpush1.bf16.msra.mxu0 0
  %6713 = vmatprep.subr.bf16.mxu0 0
  %6714 = vmatpush1.bf16.msra.mxu0 0
  %6715 = vmatprep.subr.bf16.mxu0 %v6546
  %6716 = vmatpush1.bf16.msra.mxu0 %v6543
  %6717 = vmatprep.subr.bf16.mxu0 0
  %6718 = vmatpush2.bf16.msra.mxu0 0
  %6719 = vmatprep.subr.bf16.mxu0 0
  %6720 = vmatpush2.bf16.msra.mxu0 0
  %6721 = vmatprep.subr.bf16.mxu0 0
  %6722 = vmatpush2.bf16.msra.mxu0 0
  %6723 = vmatprep.subr.bf16.mxu0 0
  %6724 = vmatpush2.bf16.msra.mxu0 0
  %6725 = vmatprep.subr.bf16.mxu0 0
  %6726 = vmatpush2.bf16.msra.mxu0 0
  %6727 = vmatprep.subr.bf16.mxu0 0
  %6728 = vmatpush2.bf16.msra.mxu0 0
  %6729 = vmatprep.subr.bf16.mxu0 0
  %6730 = vmatpush2.bf16.msra.mxu0 0
  %6731 = vmatprep.subr.bf16.mxu0 0
  %6732 = vmatpush2.bf16.msra.mxu0 0
  %6733 = vmatprep.mubr.bf16.mxu0 0
  %6734 = vmatmul.mubr.bf16.gmra.mxu0 %v6522
  %v6735 = vpop.f32.mrf.mxu0
  %v6736 = vadd.f32 %v6404, %v6735
  %v6737 = vpop.f32.mrf.mxu0
  %v6738 = vadd.f32 %v6408, %v6737
  %v6739 = vpop.f32.mrf.mxu0
  %v6740 = vadd.f32 %v6404, %v6739
  %v6741 = vpop.f32.mrf.mxu0
  %v6742 = vadd.f32 %v6408, %v6741
  %6743 = vdwg.mxu0
  %6744 = vmatprep.subr.bf16.mxu0 0
  %6745 = vmatpush1.bf16.msra.mxu0 0
  %6746 = vmatprep.subr.bf16.mxu0 0
  %6747 = vmatpush1.bf16.msra.mxu0 0
  %6748 = vmatprep.subr.bf16.mxu0 0
  %6749 = vmatpush1.bf16.msra.mxu0 0
  %6750 = vmatprep.subr.bf16.mxu0 0
  %6751 = vmatpush1.bf16.msra.mxu0 0
  %6752 = vmatprep.subr.bf16.mxu0 0
  %6753 = vmatpush1.bf16.msra.mxu0 0
  %6754 = vmatprep.subr.bf16.mxu0 0
  %6755 = vmatpush1.bf16.msra.mxu0 0
  %6756 = vmatprep.subr.bf16.mxu0 0
  %6757 = vmatpush1.bf16.msra.mxu0 0
  %6758 = vmatprep.subr.bf16.mxu0 %v6552
  %6759 = vmatpush1.bf16.msra.mxu0 %v6549
  %6760 = vmatprep.subr.bf16.mxu0 0
  %6761 = vmatpush2.bf16.msra.mxu0 0
  %6762 = vmatprep.subr.bf16.mxu0 0
  %6763 = vmatpush2.bf16.msra.mxu0 0
  %6764 = vmatprep.subr.bf16.mxu0 0
  %6765 = vmatpush2.bf16.msra.mxu0 0
  %6766 = vmatprep.subr.bf16.mxu0 0
  %6767 = vmatpush2.bf16.msra.mxu0 0
  %6768 = vmatprep.subr.bf16.mxu0 0
  %6769 = vmatpush2.bf16.msra.mxu0 0
  %6770 = vmatprep.subr.bf16.mxu0 0
  %6771 = vmatpush2.bf16.msra.mxu0 0
  %6772 = vmatprep.subr.bf16.mxu0 0
  %6773 = vmatpush2.bf16.msra.mxu0 0
  %6774 = vmatprep.subr.bf16.mxu0 0
  %6775 = vmatpush2.bf16.msra.mxu0 0
  %6776 = vmatprep.mubr.bf16.mxu0 0
  %6777 = vmatmul.mubr.bf16.gmra.mxu0 %v6522
  %v6778 = vpop.f32.mrf.mxu0
  %v6779 = vadd.f32 %v6412, %v6778
  %v6780 = vpop.f32.mrf.mxu0
  %v6781 = vadd.f32 %v6416, %v6780
  %v6782 = vpop.f32.mrf.mxu0
  %v6783 = vadd.f32 %v6412, %v6782
  %v6784 = vpop.f32.mrf.mxu0
  %v6785 = vadd.f32 %v6416, %v6784
  %6786 = vdwg.mxu0
  %6787 = vmatprep.subr.bf16.mxu0 0
  %6788 = vmatpush1.bf16.msra.mxu0 0
  %6789 = vmatprep.subr.bf16.mxu0 0
  %6790 = vmatpush1.bf16.msra.mxu0 0
  %6791 = vmatprep.subr.bf16.mxu0 0
  %6792 = vmatpush1.bf16.msra.mxu0 0
  %6793 = vmatprep.subr.bf16.mxu0 0
  %6794 = vmatpush1.bf16.msra.mxu0 0
  %6795 = vmatprep.subr.bf16.mxu0 0
  %6796 = vmatpush1.bf16.msra.mxu0 0
  %6797 = vmatprep.subr.bf16.mxu0 0
  %6798 = vmatpush1.bf16.msra.mxu0 0
  %6799 = vmatprep.subr.bf16.mxu0 0
  %6800 = vmatpush1.bf16.msra.mxu0 0
  %6801 = vmatprep.subr.bf16.mxu0 %v6558
  %6802 = vmatpush1.bf16.msra.mxu0 %v6555
  %6803 = vmatprep.subr.bf16.mxu0 0
  %6804 = vmatpush2.bf16.msra.mxu0 0
  %6805 = vmatprep.subr.bf16.mxu0 0
  %6806 = vmatpush2.bf16.msra.mxu0 0
  %6807 = vmatprep.subr.bf16.mxu0 0
  %6808 = vmatpush2.bf16.msra.mxu0 0
  %6809 = vmatprep.subr.bf16.mxu0 0
  %6810 = vmatpush2.bf16.msra.mxu0 0
  %6811 = vmatprep.subr.bf16.mxu0 0
  %6812 = vmatpush2.bf16.msra.mxu0 0
  %6813 = vmatprep.subr.bf16.mxu0 0
  %6814 = vmatpush2.bf16.msra.mxu0 0
  %6815 = vmatprep.subr.bf16.mxu0 0
  %6816 = vmatpush2.bf16.msra.mxu0 0
  %6817 = vmatprep.subr.bf16.mxu0 0
  %6818 = vmatpush2.bf16.msra.mxu0 0
  %6819 = vmatprep.mubr.bf16.mxu0 0
  %6820 = vmatmul.mubr.bf16.gmra.mxu0 %v6522
  %v6821 = vpop.f32.mrf.mxu0
  %v6822 = vadd.f32 %v6420, %v6821
  %v6823 = vpop.f32.mrf.mxu0
  %v6824 = vadd.f32 %v6424, %v6823
  %v6825 = vpop.f32.mrf.mxu0
  %v6826 = vadd.f32 %v6420, %v6825
  %v6827 = vpop.f32.mrf.mxu0
  %v6828 = vadd.f32 %v6424, %v6827
  %6829 = vdwg.mxu0
  %6830 = vmatprep.subr.bf16.mxu0 0
  %6831 = vmatpush1.bf16.msra.mxu0 0
  %6832 = vmatprep.subr.bf16.mxu0 0
  %6833 = vmatpush1.bf16.msra.mxu0 0
  %6834 = vmatprep.subr.bf16.mxu0 0
  %6835 = vmatpush1.bf16.msra.mxu0 0
  %6836 = vmatprep.subr.bf16.mxu0 0
  %6837 = vmatpush1.bf16.msra.mxu0 0
  %6838 = vmatprep.subr.bf16.mxu0 0
  %6839 = vmatpush1.bf16.msra.mxu0 0
  %6840 = vmatprep.subr.bf16.mxu0 0
  %6841 = vmatpush1.bf16.msra.mxu0 0
  %6842 = vmatprep.subr.bf16.mxu0 0
  %6843 = vmatpush1.bf16.msra.mxu0 0
  %6844 = vmatprep.subr.bf16.mxu0 %v6564
  %6845 = vmatpush1.bf16.msra.mxu0 %v6561
  %6846 = vmatprep.subr.bf16.mxu0 0
  %6847 = vmatpush2.bf16.msra.mxu0 0
  %6848 = vmatprep.subr.bf16.mxu0 0
  %6849 = vmatpush2.bf16.msra.mxu0 0
  %6850 = vmatprep.subr.bf16.mxu0 0
  %6851 = vmatpush2.bf16.msra.mxu0 0
  %6852 = vmatprep.subr.bf16.mxu0 0
  %6853 = vmatpush2.bf16.msra.mxu0 0
  %6854 = vmatprep.subr.bf16.mxu0 0
  %6855 = vmatpush2.bf16.msra.mxu0 0
  %6856 = vmatprep.subr.bf16.mxu0 0
  %6857 = vmatpush2.bf16.msra.mxu0 0
  %6858 = vmatprep.subr.bf16.mxu0 0
  %6859 = vmatpush2.bf16.msra.mxu0 0
  %6860 = vmatprep.subr.bf16.mxu0 0
  %6861 = vmatpush2.bf16.msra.mxu0 0
  %6862 = vmatprep.mubr.bf16.mxu0 0
  %6863 = vmatmul.mubr.bf16.gmra.mxu0 %v6522
  %v6864 = vpop.f32.mrf.mxu0
  %v6865 = vadd.f32 %v6428, %v6864
  %v6866 = vpop.f32.mrf.mxu0
  %v6867 = vadd.f32 %v6432, %v6866
  %v6868 = vpop.f32.mrf.mxu0
  %v6869 = vadd.f32 %v6428, %v6868
  %v6870 = vpop.f32.mrf.mxu0
  %v6871 = vadd.f32 %v6432, %v6870
  %6872 = vdwg.mxu0
  %6873 = vmatprep.subr.bf16.mxu0 0
  %6874 = vmatpush1.bf16.msra.mxu0 0
  %6875 = vmatprep.subr.bf16.mxu0 0
  %6876 = vmatpush1.bf16.msra.mxu0 0
  %6877 = vmatprep.subr.bf16.mxu0 0
  %6878 = vmatpush1.bf16.msra.mxu0 0
  %6879 = vmatprep.subr.bf16.mxu0 0
  %6880 = vmatpush1.bf16.msra.mxu0 0
  %6881 = vmatprep.subr.bf16.mxu0 0
  %6882 = vmatpush1.bf16.msra.mxu0 0
  %6883 = vmatprep.subr.bf16.mxu0 0
  %6884 = vmatpush1.bf16.msra.mxu0 0
  %6885 = vmatprep.subr.bf16.mxu0 0
  %6886 = vmatpush1.bf16.msra.mxu0 0
  %6887 = vmatprep.subr.bf16.mxu0 %v6570
  %6888 = vmatpush1.bf16.msra.mxu0 %v6567
  %6889 = vmatprep.subr.bf16.mxu0 0
  %6890 = vmatpush2.bf16.msra.mxu0 0
  %6891 = vmatprep.subr.bf16.mxu0 0
  %6892 = vmatpush2.bf16.msra.mxu0 0
  %6893 = vmatprep.subr.bf16.mxu0 0
  %6894 = vmatpush2.bf16.msra.mxu0 0
  %6895 = vmatprep.subr.bf16.mxu0 0
  %6896 = vmatpush2.bf16.msra.mxu0 0
  %6897 = vmatprep.subr.bf16.mxu0 0
  %6898 = vmatpush2.bf16.msra.mxu0 0
  %6899 = vmatprep.subr.bf16.mxu0 0
  %6900 = vmatpush2.bf16.msra.mxu0 0
  %6901 = vmatprep.subr.bf16.mxu0 0
  %6902 = vmatpush2.bf16.msra.mxu0 0
  %6903 = vmatprep.subr.bf16.mxu0 0
  %6904 = vmatpush2.bf16.msra.mxu0 0
  %6905 = vmatprep.mubr.bf16.mxu0 0
  %6906 = vmatmul.mubr.bf16.gmra.mxu0 %v6522
  %v6907 = vpop.f32.mrf.mxu0
  %v6908 = vadd.f32 %v6436, %v6907
  %v6909 = vpop.f32.mrf.mxu0
  %v6910 = vadd.f32 %v6440, %v6909
  %v6911 = vpop.f32.mrf.mxu0
  %v6912 = vadd.f32 %v6436, %v6911
  %v6913 = vpop.f32.mrf.mxu0
  %v6914 = vadd.f32 %v6440, %v6913
  %6915 = vdwg.mxu0
  %v6916 = vmax.f32 %v6607, 0.0
  %v6917 = vmax.f32 %v6609, 0.0
  %v6918 = vmax.f32 %v6650, 0.0
  %v6919 = vmax.f32 %v6652, 0.0
  %v6920 = vmax.f32 %v6693, 0.0
  %v6921 = vmax.f32 %v6695, 0.0
  %v6922 = vmax.f32 %v6736, 0.0
  %v6923 = vmax.f32 %v6738, 0.0
  %v6924 = vmax.f32 %v6779, 0.0
  %v6925 = vmax.f32 %v6781, 0.0
  %v6926 = vmax.f32 %v6822, 0.0
  %v6927 = vmax.f32 %v6824, 0.0
  %v6928 = vmax.f32 %v6865, 0.0
  %v6929 = vmax.f32 %v6867, 0.0
  %v6930 = vmax.f32 %v6908, 0.0
  %v6931 = vmax.f32 %v6910, 0.0
  %v6932 = vmax.f32 %v6611, 0.0
  %v6933 = vmax.f32 %v6613, 0.0
  %v6934 = vmax.f32 %v6654, 0.0
  %v6935 = vmax.f32 %v6656, 0.0
  %v6936 = vmax.f32 %v6697, 0.0
  %v6937 = vmax.f32 %v6699, 0.0
  %v6938 = vmax.f32 %v6740, 0.0
  %v6939 = vmax.f32 %v6742, 0.0
  %v6940 = vmax.f32 %v6783, 0.0
  %v6941 = vmax.f32 %v6785, 0.0
  %v6942 = vmax.f32 %v6826, 0.0
  %v6943 = vmax.f32 %v6828, 0.0
  %v6944 = vmax.f32 %v6869, 0.0
  %v6945 = vmax.f32 %v6871, 0.0
  %v6946 = vmax.f32 %v6912, 0.0
  %v6947 = vmax.f32 %v6914, 0.0
  %v6948 = vpack.c.bf16 %v6932, %v6916
  %v6949 = vpack.c.bf16 %v6933, %v6917
  %v6950 = vpack.c.bf16 %v6934, %v6918
  %v6951 = vpack.c.bf16 %v6935, %v6919
  %v6952 = vpack.c.bf16 %v6936, %v6920
  %v6953 = vpack.c.bf16 %v6937, %v6921
  %v6954 = vpack.c.bf16 %v6938, %v6922
  %v6955 = vpack.c.bf16 %v6939, %v6923
  %v6956 = vpack.c.bf16 %v6940, %v6924
  %v6957 = vpack.c.bf16 %v6941, %v6925
  %v6958 = vpack.c.bf16 %v6942, %v6926
  %v6959 = vpack.c.bf16 %v6943, %v6927
  %v6960 = vpack.c.bf16 %v6944, %v6928
  %v6961 = vpack.c.bf16 %v6945, %v6929
  %v6962 = vpack.c.bf16 %v6946, %v6930
  %v6963 = vpack.c.bf16 %v6947, %v6931
  %s6964 = scalar_lea.vmem %s14, 1024
  %v6965 = vld [vmem:[%s6964] sm:$0xf]
  %v6966 = vld [vmem:[%s6964 + $0x4] sm:$0xf]
  %v6967 = vld [vmem:[%s6964 + $0x8] sm:$0xf]
  %v6968 = vld [vmem:[%s6964 + $0xc] sm:$0xf]
  %v6969 = vld [vmem:[%s6964 + $0x10] sm:$0xf]
  %v6970 = vld [vmem:[%s6964 + $0x14] sm:$0xf]
  %v6971 = vld [vmem:[%s6964 + $0x18] sm:$0xf]
  %v6972 = vld [vmem:[%s6964 + $0x1c] sm:$0xf]
  %v6973 = vld [vmem:[%s6964 + $0x20] sm:$0xf]
  %v6974 = vld [vmem:[%s6964 + $0x24] sm:$0xf]
  %v6975 = vld [vmem:[%s6964 + $0x28] sm:$0xf]
  %v6976 = vld [vmem:[%s6964 + $0x2c] sm:$0xf]
  %v6977 = vld [vmem:[%s6964 + $0x30] sm:$0xf]
  %v6978 = vld [vmem:[%s6964 + $0x34] sm:$0xf]
  %v6979 = vld [vmem:[%s6964 + $0x38] sm:$0xf]
  %v6980 = vld [vmem:[%s6964 + $0x3c] sm:$0xf]
  %v6981 = vld [vmem:[%s6964 + $0x40] sm:$0xf]
  %v6982 = vld [vmem:[%s6964 + $0x44] sm:$0xf]
  %v6983 = vld [vmem:[%s6964 + $0x48] sm:$0xf]
  %v6984 = vld [vmem:[%s6964 + $0x4c] sm:$0xf]
  %v6985 = vld [vmem:[%s6964 + $0x50] sm:$0xf]
  %v6986 = vld [vmem:[%s6964 + $0x54] sm:$0xf]
  %v6987 = vld [vmem:[%s6964 + $0x58] sm:$0xf]
  %v6988 = vld [vmem:[%s6964 + $0x5c] sm:$0xf]
  %v6989 = vld [vmem:[%s6964 + $0x60] sm:$0xf]
  %v6990 = vld [vmem:[%s6964 + $0x64] sm:$0xf]
  %v6991 = vld [vmem:[%s6964 + $0x68] sm:$0xf]
  %v6992 = vld [vmem:[%s6964 + $0x6c] sm:$0xf]
  %v6993 = vld [vmem:[%s6964 + $0x70] sm:$0xf]
  %v6994 = vld [vmem:[%s6964 + $0x74] sm:$0xf]
  %v6995 = vld [vmem:[%s6964 + $0x78] sm:$0xf]
  %v6996 = vld [vmem:[%s6964 + $0x7c] sm:$0xf]
  %v6997 = vld [vmem:[%s6964 + $0x80] sm:$0xf]
  %v6998 = vld [vmem:[%s6964 + $0x84] sm:$0xf]
  %v6999 = vld [vmem:[%s6964 + $0x88] sm:$0xf]
  %v7000 = vld [vmem:[%s6964 + $0x8c] sm:$0xf]
  %v7001 = vld [vmem:[%s6964 + $0x90] sm:$0xf]
  %v7002 = vld [vmem:[%s6964 + $0x94] sm:$0xf]
  %v7003 = vld [vmem:[%s6964 + $0x98] sm:$0xf]
  %v7004 = vld [vmem:[%s6964 + $0x9c] sm:$0xf]
  %v7005 = vld [vmem:[%s6964 + $0xa0] sm:$0xf]
  %v7006 = vld [vmem:[%s6964 + $0xa4] sm:$0xf]
  %v7007 = vld [vmem:[%s6964 + $0xa8] sm:$0xf]
  %v7008 = vld [vmem:[%s6964 + $0xac] sm:$0xf]
  %v7009 = vld [vmem:[%s6964 + $0xb0] sm:$0xf]
  %v7010 = vld [vmem:[%s6964 + $0xb4] sm:$0xf]
  %v7011 = vld [vmem:[%s6964 + $0xb8] sm:$0xf]
  %v7012 = vld [vmem:[%s6964 + $0xbc] sm:$0xf]
  %v7013 = vld [vmem:[%s6964 + $0xc0] sm:$0xf]
  %v7014 = vld [vmem:[%s6964 + $0xc4] sm:$0xf]
  %v7015 = vld [vmem:[%s6964 + $0xc8] sm:$0xf]
  %v7016 = vld [vmem:[%s6964 + $0xcc] sm:$0xf]
  %v7017 = vld [vmem:[%s6964 + $0xd0] sm:$0xf]
  %v7018 = vld [vmem:[%s6964 + $0xd4] sm:$0xf]
  %v7019 = vld [vmem:[%s6964 + $0xd8] sm:$0xf]
  %v7020 = vld [vmem:[%s6964 + $0xdc] sm:$0xf]
  %v7021 = vld [vmem:[%s6964 + $0xe0] sm:$0xf]
  %v7022 = vld [vmem:[%s6964 + $0xe4] sm:$0xf]
  %v7023 = vld [vmem:[%s6964 + $0xe8] sm:$0xf]
  %v7024 = vld [vmem:[%s6964 + $0xec] sm:$0xf]
  %v7025 = vld [vmem:[%s6964 + $0xf0] sm:$0xf]
  %v7026 = vld [vmem:[%s6964 + $0xf4] sm:$0xf]
  %v7027 = vld [vmem:[%s6964 + $0xf8] sm:$0xf]
  %v7028 = vld [vmem:[%s6964 + $0xfc] sm:$0xf]
  %v7029 = vld [vmem:[%s6964 + $0x100] sm:$0xf]
  %v7030 = vld [vmem:[%s6964 + $0x104] sm:$0xf]
  %v7031 = vld [vmem:[%s6964 + $0x108] sm:$0xf]
  %v7032 = vld [vmem:[%s6964 + $0x10c] sm:$0xf]
  %v7033 = vld [vmem:[%s6964 + $0x110] sm:$0xf]
  %v7034 = vld [vmem:[%s6964 + $0x114] sm:$0xf]
  %v7035 = vld [vmem:[%s6964 + $0x118] sm:$0xf]
  %v7036 = vld [vmem:[%s6964 + $0x11c] sm:$0xf]
  %v7037 = vld [vmem:[%s6964 + $0x120] sm:$0xf]
  %v7038 = vld [vmem:[%s6964 + $0x124] sm:$0xf]
  %v7039 = vld [vmem:[%s6964 + $0x128] sm:$0xf]
  %v7040 = vld [vmem:[%s6964 + $0x12c] sm:$0xf]
  %v7041 = vld [vmem:[%s6964 + $0x130] sm:$0xf]
  %v7042 = vld [vmem:[%s6964 + $0x134] sm:$0xf]
  %v7043 = vld [vmem:[%s6964 + $0x138] sm:$0xf]
  %v7044 = vld [vmem:[%s6964 + $0x13c] sm:$0xf]
  %v7045 = vld [vmem:[%s6964 + $0x140] sm:$0xf]
  %v7046 = vld [vmem:[%s6964 + $0x144] sm:$0xf]
  %v7047 = vld [vmem:[%s6964 + $0x148] sm:$0xf]
  %v7048 = vld [vmem:[%s6964 + $0x14c] sm:$0xf]
  %v7049 = vld [vmem:[%s6964 + $0x150] sm:$0xf]
  %v7050 = vld [vmem:[%s6964 + $0x154] sm:$0xf]
  %v7051 = vld [vmem:[%s6964 + $0x158] sm:$0xf]
  %v7052 = vld [vmem:[%s6964 + $0x15c] sm:$0xf]
  %v7053 = vld [vmem:[%s6964 + $0x160] sm:$0xf]
  %v7054 = vld [vmem:[%s6964 + $0x164] sm:$0xf]
  %v7055 = vld [vmem:[%s6964 + $0x168] sm:$0xf]
  %v7056 = vld [vmem:[%s6964 + $0x16c] sm:$0xf]
  %v7057 = vld [vmem:[%s6964 + $0x170] sm:$0xf]
  %v7058 = vld [vmem:[%s6964 + $0x174] sm:$0xf]
  %v7059 = vld [vmem:[%s6964 + $0x178] sm:$0xf]
  %v7060 = vld [vmem:[%s6964 + $0x17c] sm:$0xf]
  %v7061 = vld [vmem:[%s6964 + $0x180] sm:$0xf]
  %v7062 = vld [vmem:[%s6964 + $0x184] sm:$0xf]
  %v7063 = vld [vmem:[%s6964 + $0x188] sm:$0xf]
  %v7064 = vld [vmem:[%s6964 + $0x18c] sm:$0xf]
  %v7065 = vld [vmem:[%s6964 + $0x190] sm:$0xf]
  %v7066 = vld [vmem:[%s6964 + $0x194] sm:$0xf]
  %v7067 = vld [vmem:[%s6964 + $0x198] sm:$0xf]
  %v7068 = vld [vmem:[%s6964 + $0x19c] sm:$0xf]
  %v7069 = vld [vmem:[%s6964 + $0x1a0] sm:$0xf]
  %v7070 = vld [vmem:[%s6964 + $0x1a4] sm:$0xf]
  %v7071 = vld [vmem:[%s6964 + $0x1a8] sm:$0xf]
  %v7072 = vld [vmem:[%s6964 + $0x1ac] sm:$0xf]
  %v7073 = vld [vmem:[%s6964 + $0x1b0] sm:$0xf]
  %v7074 = vld [vmem:[%s6964 + $0x1b4] sm:$0xf]
  %v7075 = vld [vmem:[%s6964 + $0x1b8] sm:$0xf]
  %v7076 = vld [vmem:[%s6964 + $0x1bc] sm:$0xf]
  %v7077 = vld [vmem:[%s6964 + $0x1c0] sm:$0xf]
  %v7078 = vld [vmem:[%s6964 + $0x1c4] sm:$0xf]
  %v7079 = vld [vmem:[%s6964 + $0x1c8] sm:$0xf]
  %v7080 = vld [vmem:[%s6964 + $0x1cc] sm:$0xf]
  %v7081 = vld [vmem:[%s6964 + $0x1d0] sm:$0xf]
  %v7082 = vld [vmem:[%s6964 + $0x1d4] sm:$0xf]
  %v7083 = vld [vmem:[%s6964 + $0x1d8] sm:$0xf]
  %v7084 = vld [vmem:[%s6964 + $0x1dc] sm:$0xf]
  %v7085 = vld [vmem:[%s6964 + $0x1e0] sm:$0xf]
  %v7086 = vld [vmem:[%s6964 + $0x1e4] sm:$0xf]
  %v7087 = vld [vmem:[%s6964 + $0x1e8] sm:$0xf]
  %v7088 = vld [vmem:[%s6964 + $0x1ec] sm:$0xf]
  %v7089 = vld [vmem:[%s6964 + $0x1f0] sm:$0xf]
  %v7090 = vld [vmem:[%s6964 + $0x1f4] sm:$0xf]
  %v7091 = vld [vmem:[%s6964 + $0x1f8] sm:$0xf]
  %v7092 = vld [vmem:[%s6964 + $0x1fc] sm:$0xf]
  %v7093 = vld [vmem:[%s6964 + $0x200] sm:$0xf]
  %v7094 = vld [vmem:[%s6964 + $0x204] sm:$0xf]
  %v7095 = vld [vmem:[%s6964 + $0x208] sm:$0xf]
  %v7096 = vld [vmem:[%s6964 + $0x20c] sm:$0xf]
  %v7097 = vld [vmem:[%s6964 + $0x210] sm:$0xf]
  %v7098 = vld [vmem:[%s6964 + $0x214] sm:$0xf]
  %v7099 = vld [vmem:[%s6964 + $0x218] sm:$0xf]
  %v7100 = vld [vmem:[%s6964 + $0x21c] sm:$0xf]
  %v7101 = vld [vmem:[%s6964 + $0x220] sm:$0xf]
  %v7102 = vld [vmem:[%s6964 + $0x224] sm:$0xf]
  %v7103 = vld [vmem:[%s6964 + $0x228] sm:$0xf]
  %v7104 = vld [vmem:[%s6964 + $0x22c] sm:$0xf]
  %v7105 = vld [vmem:[%s6964 + $0x230] sm:$0xf]
  %v7106 = vld [vmem:[%s6964 + $0x234] sm:$0xf]
  %v7107 = vld [vmem:[%s6964 + $0x238] sm:$0xf]
  %v7108 = vld [vmem:[%s6964 + $0x23c] sm:$0xf]
  %v7109 = vld [vmem:[%s6964 + $0x240] sm:$0xf]
  %v7110 = vld [vmem:[%s6964 + $0x244] sm:$0xf]
  %v7111 = vld [vmem:[%s6964 + $0x248] sm:$0xf]
  %v7112 = vld [vmem:[%s6964 + $0x24c] sm:$0xf]
  %v7113 = vld [vmem:[%s6964 + $0x250] sm:$0xf]
  %v7114 = vld [vmem:[%s6964 + $0x254] sm:$0xf]
  %v7115 = vld [vmem:[%s6964 + $0x258] sm:$0xf]
  %v7116 = vld [vmem:[%s6964 + $0x25c] sm:$0xf]
  %v7117 = vld [vmem:[%s6964 + $0x260] sm:$0xf]
  %v7118 = vld [vmem:[%s6964 + $0x264] sm:$0xf]
  %v7119 = vld [vmem:[%s6964 + $0x268] sm:$0xf]
  %v7120 = vld [vmem:[%s6964 + $0x26c] sm:$0xf]
  %v7121 = vld [vmem:[%s6964 + $0x270] sm:$0xf]
  %v7122 = vld [vmem:[%s6964 + $0x274] sm:$0xf]
  %v7123 = vld [vmem:[%s6964 + $0x278] sm:$0xf]
  %v7124 = vld [vmem:[%s6964 + $0x27c] sm:$0xf]
  %v7125 = vld [vmem:[%s6964 + $0x280] sm:$0xf]
  %v7126 = vld [vmem:[%s6964 + $0x284] sm:$0xf]
  %v7127 = vld [vmem:[%s6964 + $0x288] sm:$0xf]
  %v7128 = vld [vmem:[%s6964 + $0x28c] sm:$0xf]
  %v7129 = vld [vmem:[%s6964 + $0x290] sm:$0xf]
  %v7130 = vld [vmem:[%s6964 + $0x294] sm:$0xf]
  %v7131 = vld [vmem:[%s6964 + $0x298] sm:$0xf]
  %v7132 = vld [vmem:[%s6964 + $0x29c] sm:$0xf]
  %v7133 = vld [vmem:[%s6964 + $0x2a0] sm:$0xf]
  %v7134 = vld [vmem:[%s6964 + $0x2a4] sm:$0xf]
  %v7135 = vld [vmem:[%s6964 + $0x2a8] sm:$0xf]
  %v7136 = vld [vmem:[%s6964 + $0x2ac] sm:$0xf]
  %v7137 = vld [vmem:[%s6964 + $0x2b0] sm:$0xf]
  %v7138 = vld [vmem:[%s6964 + $0x2b4] sm:$0xf]
  %v7139 = vld [vmem:[%s6964 + $0x2b8] sm:$0xf]
  %v7140 = vld [vmem:[%s6964 + $0x2bc] sm:$0xf]
  %v7141 = vld [vmem:[%s6964 + $0x2c0] sm:$0xf]
  %v7142 = vld [vmem:[%s6964 + $0x2c4] sm:$0xf]
  %v7143 = vld [vmem:[%s6964 + $0x2c8] sm:$0xf]
  %v7144 = vld [vmem:[%s6964 + $0x2cc] sm:$0xf]
  %v7145 = vld [vmem:[%s6964 + $0x2d0] sm:$0xf]
  %v7146 = vld [vmem:[%s6964 + $0x2d4] sm:$0xf]
  %v7147 = vld [vmem:[%s6964 + $0x2d8] sm:$0xf]
  %v7148 = vld [vmem:[%s6964 + $0x2dc] sm:$0xf]
  %v7149 = vld [vmem:[%s6964 + $0x2e0] sm:$0xf]
  %v7150 = vld [vmem:[%s6964 + $0x2e4] sm:$0xf]
  %v7151 = vld [vmem:[%s6964 + $0x2e8] sm:$0xf]
  %v7152 = vld [vmem:[%s6964 + $0x2ec] sm:$0xf]
  %v7153 = vld [vmem:[%s6964 + $0x2f0] sm:$0xf]
  %v7154 = vld [vmem:[%s6964 + $0x2f4] sm:$0xf]
  %v7155 = vld [vmem:[%s6964 + $0x2f8] sm:$0xf]
  %v7156 = vld [vmem:[%s6964 + $0x2fc] sm:$0xf]
  %v7157 = vld [vmem:[%s6964 + $0x300] sm:$0xf]
  %v7158 = vld [vmem:[%s6964 + $0x304] sm:$0xf]
  %v7159 = vld [vmem:[%s6964 + $0x308] sm:$0xf]
  %v7160 = vld [vmem:[%s6964 + $0x30c] sm:$0xf]
  %v7161 = vld [vmem:[%s6964 + $0x310] sm:$0xf]
  %v7162 = vld [vmem:[%s6964 + $0x314] sm:$0xf]
  %v7163 = vld [vmem:[%s6964 + $0x318] sm:$0xf]
  %v7164 = vld [vmem:[%s6964 + $0x31c] sm:$0xf]
  %v7165 = vld [vmem:[%s6964 + $0x320] sm:$0xf]
  %v7166 = vld [vmem:[%s6964 + $0x324] sm:$0xf]
  %v7167 = vld [vmem:[%s6964 + $0x328] sm:$0xf]
  %v7168 = vld [vmem:[%s6964 + $0x32c] sm:$0xf]
  %v7169 = vld [vmem:[%s6964 + $0x330] sm:$0xf]
  %v7170 = vld [vmem:[%s6964 + $0x334] sm:$0xf]
  %v7171 = vld [vmem:[%s6964 + $0x338] sm:$0xf]
  %v7172 = vld [vmem:[%s6964 + $0x33c] sm:$0xf]
  %v7173 = vld [vmem:[%s6964 + $0x340] sm:$0xf]
  %v7174 = vld [vmem:[%s6964 + $0x344] sm:$0xf]
  %v7175 = vld [vmem:[%s6964 + $0x348] sm:$0xf]
  %v7176 = vld [vmem:[%s6964 + $0x34c] sm:$0xf]
  %v7177 = vld [vmem:[%s6964 + $0x350] sm:$0xf]
  %v7178 = vld [vmem:[%s6964 + $0x354] sm:$0xf]
  %v7179 = vld [vmem:[%s6964 + $0x358] sm:$0xf]
  %v7180 = vld [vmem:[%s6964 + $0x35c] sm:$0xf]
  %v7181 = vld [vmem:[%s6964 + $0x360] sm:$0xf]
  %v7182 = vld [vmem:[%s6964 + $0x364] sm:$0xf]
  %v7183 = vld [vmem:[%s6964 + $0x368] sm:$0xf]
  %v7184 = vld [vmem:[%s6964 + $0x36c] sm:$0xf]
  %v7185 = vld [vmem:[%s6964 + $0x370] sm:$0xf]
  %v7186 = vld [vmem:[%s6964 + $0x374] sm:$0xf]
  %v7187 = vld [vmem:[%s6964 + $0x378] sm:$0xf]
  %v7188 = vld [vmem:[%s6964 + $0x37c] sm:$0xf]
  %v7189 = vld [vmem:[%s6964 + $0x380] sm:$0xf]
  %v7190 = vld [vmem:[%s6964 + $0x384] sm:$0xf]
  %v7191 = vld [vmem:[%s6964 + $0x388] sm:$0xf]
  %v7192 = vld [vmem:[%s6964 + $0x38c] sm:$0xf]
  %v7193 = vld [vmem:[%s6964 + $0x390] sm:$0xf]
  %v7194 = vld [vmem:[%s6964 + $0x394] sm:$0xf]
  %v7195 = vld [vmem:[%s6964 + $0x398] sm:$0xf]
  %v7196 = vld [vmem:[%s6964 + $0x39c] sm:$0xf]
  %v7197 = vld [vmem:[%s6964 + $0x3a0] sm:$0xf]
  %v7198 = vld [vmem:[%s6964 + $0x3a4] sm:$0xf]
  %v7199 = vld [vmem:[%s6964 + $0x3a8] sm:$0xf]
  %v7200 = vld [vmem:[%s6964 + $0x3ac] sm:$0xf]
  %v7201 = vld [vmem:[%s6964 + $0x3b0] sm:$0xf]
  %v7202 = vld [vmem:[%s6964 + $0x3b4] sm:$0xf]
  %v7203 = vld [vmem:[%s6964 + $0x3b8] sm:$0xf]
  %v7204 = vld [vmem:[%s6964 + $0x3bc] sm:$0xf]
  %v7205 = vld [vmem:[%s6964 + $0x3c0] sm:$0xf]
  %v7206 = vld [vmem:[%s6964 + $0x3c4] sm:$0xf]
  %v7207 = vld [vmem:[%s6964 + $0x3c8] sm:$0xf]
  %v7208 = vld [vmem:[%s6964 + $0x3cc] sm:$0xf]
  %v7209 = vld [vmem:[%s6964 + $0x3d0] sm:$0xf]
  %v7210 = vld [vmem:[%s6964 + $0x3d4] sm:$0xf]
  %v7211 = vld [vmem:[%s6964 + $0x3d8] sm:$0xf]
  %v7212 = vld [vmem:[%s6964 + $0x3dc] sm:$0xf]
  %v7213 = vld [vmem:[%s6964 + $0x3e0] sm:$0xf]
  %v7214 = vld [vmem:[%s6964 + $0x3e4] sm:$0xf]
  %v7215 = vld [vmem:[%s6964 + $0x3e8] sm:$0xf]
  %v7216 = vld [vmem:[%s6964 + $0x3ec] sm:$0xf]
  %v7217 = vld [vmem:[%s6964 + $0x3f0] sm:$0xf]
  %v7218 = vld [vmem:[%s6964 + $0x3f4] sm:$0xf]
  %v7219 = vld [vmem:[%s6964 + $0x3f8] sm:$0xf]
  %v7220 = vld [vmem:[%s6964 + $0x3fc] sm:$0xf]
  %s7221 = scalar_lea.vmem %s15, 1
  %v7222 = vld [vmem:[%s7221] sm:$0x1]
  %v7224 = vlaneseq
  %v7225 = vshrl.u32 %v7224, 7
  %v7226 = vsub.s32 0, %v7225
  %v7227 = vrot.slane %v7222, %v7226
  %v7485 = vunpack.c.l.b16 %v6965
  %v7486 = vunpack.c.l.b16 %v6966
  %v7487 = vunpack.c.l.b16 %v6967
  %v7488 = vunpack.c.l.b16 %v6968
  %v7489 = vunpack.c.l.b16 %v6969
  %v7490 = vunpack.c.l.b16 %v6970
  %v7491 = vunpack.c.l.b16 %v6971
  %v7492 = vunpack.c.l.b16 %v6972
  %v7493 = vunpack.c.l.b16 %v6973
  %v7494 = vunpack.c.l.b16 %v6974
  %v7495 = vunpack.c.l.b16 %v6975
  %v7496 = vunpack.c.l.b16 %v6976
  %v7497 = vunpack.c.l.b16 %v6977
  %v7498 = vunpack.c.l.b16 %v6978
  %v7499 = vunpack.c.l.b16 %v6979
  %v7500 = vunpack.c.l.b16 %v6980
  %v7501 = vunpack.c.l.b16 %v6981
  %v7502 = vunpack.c.l.b16 %v6982
  %v7503 = vunpack.c.l.b16 %v6983
  %v7504 = vunpack.c.l.b16 %v6984
  %v7505 = vunpack.c.l.b16 %v6985
  %v7506 = vunpack.c.l.b16 %v6986
  %v7507 = vunpack.c.l.b16 %v6987
  %v7508 = vunpack.c.l.b16 %v6988
  %v7509 = vunpack.c.l.b16 %v6989
  %v7510 = vunpack.c.l.b16 %v6990
  %v7511 = vunpack.c.l.b16 %v6991
  %v7512 = vunpack.c.l.b16 %v6992
  %v7513 = vunpack.c.l.b16 %v6993
  %v7514 = vunpack.c.l.b16 %v6994
  %v7515 = vunpack.c.l.b16 %v6995
  %v7516 = vunpack.c.l.b16 %v6996
  %v7517 = vunpack.c.l.b16 %v6997
  %v7518 = vunpack.c.l.b16 %v6998
  %v7519 = vunpack.c.l.b16 %v6999
  %v7520 = vunpack.c.l.b16 %v7000
  %v7521 = vunpack.c.l.b16 %v7001
  %v7522 = vunpack.c.l.b16 %v7002
  %v7523 = vunpack.c.l.b16 %v7003
  %v7524 = vunpack.c.l.b16 %v7004
  %v7525 = vunpack.c.l.b16 %v7005
  %v7526 = vunpack.c.l.b16 %v7006
  %v7527 = vunpack.c.l.b16 %v7007
  %v7528 = vunpack.c.l.b16 %v7008
  %v7529 = vunpack.c.l.b16 %v7009
  %v7530 = vunpack.c.l.b16 %v7010
  %v7531 = vunpack.c.l.b16 %v7011
  %v7532 = vunpack.c.l.b16 %v7012
  %v7533 = vunpack.c.l.b16 %v7013
  %v7534 = vunpack.c.l.b16 %v7014
  %v7535 = vunpack.c.l.b16 %v7015
  %v7536 = vunpack.c.l.b16 %v7016
  %v7537 = vunpack.c.l.b16 %v7017
  %v7538 = vunpack.c.l.b16 %v7018
  %v7539 = vunpack.c.l.b16 %v7019
  %v7540 = vunpack.c.l.b16 %v7020
  %v7541 = vunpack.c.l.b16 %v7021
  %v7542 = vunpack.c.l.b16 %v7022
  %v7543 = vunpack.c.l.b16 %v7023
  %v7544 = vunpack.c.l.b16 %v7024
  %v7545 = vunpack.c.l.b16 %v7025
  %v7546 = vunpack.c.l.b16 %v7026
  %v7547 = vunpack.c.l.b16 %v7027
  %v7548 = vunpack.c.l.b16 %v7028
  %v7549 = vunpack.c.l.b16 %v7029
  %v7550 = vunpack.c.l.b16 %v7030
  %v7551 = vunpack.c.l.b16 %v7031
  %v7552 = vunpack.c.l.b16 %v7032
  %v7553 = vunpack.c.l.b16 %v7033
  %v7554 = vunpack.c.l.b16 %v7034
  %v7555 = vunpack.c.l.b16 %v7035
  %v7556 = vunpack.c.l.b16 %v7036
  %v7557 = vunpack.c.l.b16 %v7037
  %v7558 = vunpack.c.l.b16 %v7038
  %v7559 = vunpack.c.l.b16 %v7039
  %v7560 = vunpack.c.l.b16 %v7040
  %v7561 = vunpack.c.l.b16 %v7041
  %v7562 = vunpack.c.l.b16 %v7042
  %v7563 = vunpack.c.l.b16 %v7043
  %v7564 = vunpack.c.l.b16 %v7044
  %v7565 = vunpack.c.l.b16 %v7045
  %v7566 = vunpack.c.l.b16 %v7046
  %v7567 = vunpack.c.l.b16 %v7047
  %v7568 = vunpack.c.l.b16 %v7048
  %v7569 = vunpack.c.l.b16 %v7049
  %v7570 = vunpack.c.l.b16 %v7050
  %v7571 = vunpack.c.l.b16 %v7051
  %v7572 = vunpack.c.l.b16 %v7052
  %v7573 = vunpack.c.l.b16 %v7053
  %v7574 = vunpack.c.l.b16 %v7054
  %v7575 = vunpack.c.l.b16 %v7055
  %v7576 = vunpack.c.l.b16 %v7056
  %v7577 = vunpack.c.l.b16 %v7057
  %v7578 = vunpack.c.l.b16 %v7058
  %v7579 = vunpack.c.l.b16 %v7059
  %v7580 = vunpack.c.l.b16 %v7060
  %v7581 = vunpack.c.l.b16 %v7061
  %v7582 = vunpack.c.l.b16 %v7062
  %v7583 = vunpack.c.l.b16 %v7063
  %v7584 = vunpack.c.l.b16 %v7064
  %v7585 = vunpack.c.l.b16 %v7065
  %v7586 = vunpack.c.l.b16 %v7066
  %v7587 = vunpack.c.l.b16 %v7067
  %v7588 = vunpack.c.l.b16 %v7068
  %v7589 = vunpack.c.l.b16 %v7069
  %v7590 = vunpack.c.l.b16 %v7070
  %v7591 = vunpack.c.l.b16 %v7071
  %v7592 = vunpack.c.l.b16 %v7072
  %v7593 = vunpack.c.l.b16 %v7073
  %v7594 = vunpack.c.l.b16 %v7074
  %v7595 = vunpack.c.l.b16 %v7075
  %v7596 = vunpack.c.l.b16 %v7076
  %v7597 = vunpack.c.l.b16 %v7077
  %v7598 = vunpack.c.l.b16 %v7078
  %v7599 = vunpack.c.l.b16 %v7079
  %v7600 = vunpack.c.l.b16 %v7080
  %v7601 = vunpack.c.l.b16 %v7081
  %v7602 = vunpack.c.l.b16 %v7082
  %v7603 = vunpack.c.l.b16 %v7083
  %v7604 = vunpack.c.l.b16 %v7084
  %v7605 = vunpack.c.l.b16 %v7085
  %v7606 = vunpack.c.l.b16 %v7086
  %v7607 = vunpack.c.l.b16 %v7087
  %v7608 = vunpack.c.l.b16 %v7088
  %v7609 = vunpack.c.l.b16 %v7089
  %v7610 = vunpack.c.l.b16 %v7090
  %v7611 = vunpack.c.l.b16 %v7091
  %v7612 = vunpack.c.l.b16 %v7092
  %v7613 = vunpack.c.l.b16 %v7093
  %v7614 = vunpack.c.l.b16 %v7094
  %v7615 = vunpack.c.l.b16 %v7095
  %v7616 = vunpack.c.l.b16 %v7096
  %v7617 = vunpack.c.l.b16 %v7097
  %v7618 = vunpack.c.l.b16 %v7098
  %v7619 = vunpack.c.l.b16 %v7099
  %v7620 = vunpack.c.l.b16 %v7100
  %v7621 = vunpack.c.l.b16 %v7101
  %v7622 = vunpack.c.l.b16 %v7102
  %v7623 = vunpack.c.l.b16 %v7103
  %v7624 = vunpack.c.l.b16 %v7104
  %v7625 = vunpack.c.l.b16 %v7105
  %v7626 = vunpack.c.l.b16 %v7106
  %v7627 = vunpack.c.l.b16 %v7107
  %v7628 = vunpack.c.l.b16 %v7108
  %v7629 = vunpack.c.l.b16 %v7109
  %v7630 = vunpack.c.l.b16 %v7110
  %v7631 = vunpack.c.l.b16 %v7111
  %v7632 = vunpack.c.l.b16 %v7112
  %v7633 = vunpack.c.l.b16 %v7113
  %v7634 = vunpack.c.l.b16 %v7114
  %v7635 = vunpack.c.l.b16 %v7115
  %v7636 = vunpack.c.l.b16 %v7116
  %v7637 = vunpack.c.l.b16 %v7117
  %v7638 = vunpack.c.l.b16 %v7118
  %v7639 = vunpack.c.l.b16 %v7119
  %v7640 = vunpack.c.l.b16 %v7120
  %v7641 = vunpack.c.l.b16 %v7121
  %v7642 = vunpack.c.l.b16 %v7122
  %v7643 = vunpack.c.l.b16 %v7123
  %v7644 = vunpack.c.l.b16 %v7124
  %v7645 = vunpack.c.l.b16 %v7125
  %v7646 = vunpack.c.l.b16 %v7126
  %v7647 = vunpack.c.l.b16 %v7127
  %v7648 = vunpack.c.l.b16 %v7128
  %v7649 = vunpack.c.l.b16 %v7129
  %v7650 = vunpack.c.l.b16 %v7130
  %v7651 = vunpack.c.l.b16 %v7131
  %v7652 = vunpack.c.l.b16 %v7132
  %v7653 = vunpack.c.l.b16 %v7133
  %v7654 = vunpack.c.l.b16 %v7134
  %v7655 = vunpack.c.l.b16 %v7135
  %v7656 = vunpack.c.l.b16 %v7136
  %v7657 = vunpack.c.l.b16 %v7137
  %v7658 = vunpack.c.l.b16 %v7138
  %v7659 = vunpack.c.l.b16 %v7139
  %v7660 = vunpack.c.l.b16 %v7140
  %v7661 = vunpack.c.l.b16 %v7141
  %v7662 = vunpack.c.l.b16 %v7142
  %v7663 = vunpack.c.l.b16 %v7143
  %v7664 = vunpack.c.l.b16 %v7144
  %v7665 = vunpack.c.l.b16 %v7145
  %v7666 = vunpack.c.l.b16 %v7146
  %v7667 = vunpack.c.l.b16 %v7147
  %v7668 = vunpack.c.l.b16 %v7148
  %v7669 = vunpack.c.l.b16 %v7149
  %v7670 = vunpack.c.l.b16 %v7150
  %v7671 = vunpack.c.l.b16 %v7151
  %v7672 = vunpack.c.l.b16 %v7152
  %v7673 = vunpack.c.l.b16 %v7153
  %v7674 = vunpack.c.l.b16 %v7154
  %v7675 = vunpack.c.l.b16 %v7155
  %v7676 = vunpack.c.l.b16 %v7156
  %v7677 = vunpack.c.l.b16 %v7157
  %v7678 = vunpack.c.l.b16 %v7158
  %v7679 = vunpack.c.l.b16 %v7159
  %v7680 = vunpack.c.l.b16 %v7160
  %v7681 = vunpack.c.l.b16 %v7161
  %v7682 = vunpack.c.l.b16 %v7162
  %v7683 = vunpack.c.l.b16 %v7163
  %v7684 = vunpack.c.l.b16 %v7164
  %v7685 = vunpack.c.l.b16 %v7165
  %v7686 = vunpack.c.l.b16 %v7166
  %v7687 = vunpack.c.l.b16 %v7167
  %v7688 = vunpack.c.l.b16 %v7168
  %v7689 = vunpack.c.l.b16 %v7169
  %v7690 = vunpack.c.l.b16 %v7170
  %v7691 = vunpack.c.l.b16 %v7171
  %v7692 = vunpack.c.l.b16 %v7172
  %v7693 = vunpack.c.l.b16 %v7173
  %v7694 = vunpack.c.l.b16 %v7174
  %v7695 = vunpack.c.l.b16 %v7175
  %v7696 = vunpack.c.l.b16 %v7176
  %v7697 = vunpack.c.l.b16 %v7177
  %v7698 = vunpack.c.l.b16 %v7178
  %v7699 = vunpack.c.l.b16 %v7179
  %v7700 = vunpack.c.l.b16 %v7180
  %v7701 = vunpack.c.l.b16 %v7181
  %v7702 = vunpack.c.l.b16 %v7182
  %v7703 = vunpack.c.l.b16 %v7183
  %v7704 = vunpack.c.l.b16 %v7184
  %v7705 = vunpack.c.l.b16 %v7185
  %v7706 = vunpack.c.l.b16 %v7186
  %v7707 = vunpack.c.l.b16 %v7187
  %v7708 = vunpack.c.l.b16 %v7188
  %v7709 = vunpack.c.l.b16 %v7189
  %v7710 = vunpack.c.l.b16 %v7190
  %v7711 = vunpack.c.l.b16 %v7191
  %v7712 = vunpack.c.l.b16 %v7192
  %v7713 = vunpack.c.l.b16 %v7193
  %v7714 = vunpack.c.l.b16 %v7194
  %v7715 = vunpack.c.l.b16 %v7195
  %v7716 = vunpack.c.l.b16 %v7196
  %v7717 = vunpack.c.l.b16 %v7197
  %v7718 = vunpack.c.l.b16 %v7198
  %v7719 = vunpack.c.l.b16 %v7199
  %v7720 = vunpack.c.l.b16 %v7200
  %v7721 = vunpack.c.l.b16 %v7201
  %v7722 = vunpack.c.l.b16 %v7202
  %v7723 = vunpack.c.l.b16 %v7203
  %v7724 = vunpack.c.l.b16 %v7204
  %v7725 = vunpack.c.l.b16 %v7205
  %v7726 = vunpack.c.l.b16 %v7206
  %v7727 = vunpack.c.l.b16 %v7207
  %v7728 = vunpack.c.l.b16 %v7208
  %v7729 = vunpack.c.l.b16 %v7209
  %v7730 = vunpack.c.l.b16 %v7210
  %v7731 = vunpack.c.l.b16 %v7211
  %v7732 = vunpack.c.l.b16 %v7212
  %v7733 = vunpack.c.l.b16 %v7213
  %v7734 = vunpack.c.l.b16 %v7214
  %v7735 = vunpack.c.l.b16 %v7215
  %v7736 = vunpack.c.l.b16 %v7216
  %v7737 = vunpack.c.l.b16 %v7217
  %v7738 = vunpack.c.l.b16 %v7218
  %v7739 = vunpack.c.l.b16 %v7219
  %v7740 = vunpack.c.l.b16 %v7220
  %v7741 = vpack.c.b16 %v7486, %v7485
  %v7742 = vpack.c.b16 %v7488, %v7487
  %v7743 = vpack.c.b16 %v7490, %v7489
  %v7744 = vpack.c.b16 %v7492, %v7491
  %v7745 = vpack.c.b16 %v7494, %v7493
  %v7746 = vpack.c.b16 %v7496, %v7495
  %v7747 = vpack.c.b16 %v7498, %v7497
  %v7748 = vpack.c.b16 %v7500, %v7499
  %v7749 = vpack.c.b16 %v7502, %v7501
  %v7750 = vpack.c.b16 %v7504, %v7503
  %v7751 = vpack.c.b16 %v7506, %v7505
  %v7752 = vpack.c.b16 %v7508, %v7507
  %v7753 = vpack.c.b16 %v7510, %v7509
  %v7754 = vpack.c.b16 %v7512, %v7511
  %v7755 = vpack.c.b16 %v7514, %v7513
  %v7756 = vpack.c.b16 %v7516, %v7515
  %v7757 = vpack.c.b16 %v7518, %v7517
  %v7758 = vpack.c.b16 %v7520, %v7519
  %v7759 = vpack.c.b16 %v7522, %v7521
  %v7760 = vpack.c.b16 %v7524, %v7523
  %v7761 = vpack.c.b16 %v7526, %v7525
  %v7762 = vpack.c.b16 %v7528, %v7527
  %v7763 = vpack.c.b16 %v7530, %v7529
  %v7764 = vpack.c.b16 %v7532, %v7531
  %v7765 = vpack.c.b16 %v7534, %v7533
  %v7766 = vpack.c.b16 %v7536, %v7535
  %v7767 = vpack.c.b16 %v7538, %v7537
  %v7768 = vpack.c.b16 %v7540, %v7539
  %v7769 = vpack.c.b16 %v7542, %v7541
  %v7770 = vpack.c.b16 %v7544, %v7543
  %v7771 = vpack.c.b16 %v7546, %v7545
  %v7772 = vpack.c.b16 %v7548, %v7547
  %v7773 = vpack.c.b16 %v7550, %v7549
  %v7774 = vpack.c.b16 %v7552, %v7551
  %v7775 = vpack.c.b16 %v7554, %v7553
  %v7776 = vpack.c.b16 %v7556, %v7555
  %v7777 = vpack.c.b16 %v7558, %v7557
  %v7778 = vpack.c.b16 %v7560, %v7559
  %v7779 = vpack.c.b16 %v7562, %v7561
  %v7780 = vpack.c.b16 %v7564, %v7563
  %v7781 = vpack.c.b16 %v7566, %v7565
  %v7782 = vpack.c.b16 %v7568, %v7567
  %v7783 = vpack.c.b16 %v7570, %v7569
  %v7784 = vpack.c.b16 %v7572, %v7571
  %v7785 = vpack.c.b16 %v7574, %v7573
  %v7786 = vpack.c.b16 %v7576, %v7575
  %v7787 = vpack.c.b16 %v7578, %v7577
  %v7788 = vpack.c.b16 %v7580, %v7579
  %v7789 = vpack.c.b16 %v7582, %v7581
  %v7790 = vpack.c.b16 %v7584, %v7583
  %v7791 = vpack.c.b16 %v7586, %v7585
  %v7792 = vpack.c.b16 %v7588, %v7587
  %v7793 = vpack.c.b16 %v7590, %v7589
  %v7794 = vpack.c.b16 %v7592, %v7591
  %v7795 = vpack.c.b16 %v7594, %v7593
  %v7796 = vpack.c.b16 %v7596, %v7595
  %v7797 = vpack.c.b16 %v7598, %v7597
  %v7798 = vpack.c.b16 %v7600, %v7599
  %v7799 = vpack.c.b16 %v7602, %v7601
  %v7800 = vpack.c.b16 %v7604, %v7603
  %v7801 = vpack.c.b16 %v7606, %v7605
  %v7802 = vpack.c.b16 %v7608, %v7607
  %v7803 = vpack.c.b16 %v7610, %v7609
  %v7804 = vpack.c.b16 %v7612, %v7611
  %v7805 = vpack.c.b16 %v7614, %v7613
  %v7806 = vpack.c.b16 %v7616, %v7615
  %v7807 = vpack.c.b16 %v7618, %v7617
  %v7808 = vpack.c.b16 %v7620, %v7619
  %v7809 = vpack.c.b16 %v7622, %v7621
  %v7810 = vpack.c.b16 %v7624, %v7623
  %v7811 = vpack.c.b16 %v7626, %v7625
  %v7812 = vpack.c.b16 %v7628, %v7627
  %v7813 = vpack.c.b16 %v7630, %v7629
  %v7814 = vpack.c.b16 %v7632, %v7631
  %v7815 = vpack.c.b16 %v7634, %v7633
  %v7816 = vpack.c.b16 %v7636, %v7635
  %v7817 = vpack.c.b16 %v7638, %v7637
  %v7818 = vpack.c.b16 %v7640, %v7639
  %v7819 = vpack.c.b16 %v7642, %v7641
  %v7820 = vpack.c.b16 %v7644, %v7643
  %v7821 = vpack.c.b16 %v7646, %v7645
  %v7822 = vpack.c.b16 %v7648, %v7647
  %v7823 = vpack.c.b16 %v7650, %v7649
  %v7824 = vpack.c.b16 %v7652, %v7651
  %v7825 = vpack.c.b16 %v7654, %v7653
  %v7826 = vpack.c.b16 %v7656, %v7655
  %v7827 = vpack.c.b16 %v7658, %v7657
  %v7828 = vpack.c.b16 %v7660, %v7659
  %v7829 = vpack.c.b16 %v7662, %v7661
  %v7830 = vpack.c.b16 %v7664, %v7663
  %v7831 = vpack.c.b16 %v7666, %v7665
  %v7832 = vpack.c.b16 %v7668, %v7667
  %v7833 = vpack.c.b16 %v7670, %v7669
  %v7834 = vpack.c.b16 %v7672, %v7671
  %v7835 = vpack.c.b16 %v7674, %v7673
  %v7836 = vpack.c.b16 %v7676, %v7675
  %v7837 = vpack.c.b16 %v7678, %v7677
  %v7838 = vpack.c.b16 %v7680, %v7679
  %v7839 = vpack.c.b16 %v7682, %v7681
  %v7840 = vpack.c.b16 %v7684, %v7683
  %v7841 = vpack.c.b16 %v7686, %v7685
  %v7842 = vpack.c.b16 %v7688, %v7687
  %v7843 = vpack.c.b16 %v7690, %v7689
  %v7844 = vpack.c.b16 %v7692, %v7691
  %v7845 = vpack.c.b16 %v7694, %v7693
  %v7846 = vpack.c.b16 %v7696, %v7695
  %v7847 = vpack.c.b16 %v7698, %v7697
  %v7848 = vpack.c.b16 %v7700, %v7699
  %v7849 = vpack.c.b16 %v7702, %v7701
  %v7850 = vpack.c.b16 %v7704, %v7703
  %v7851 = vpack.c.b16 %v7706, %v7705
  %v7852 = vpack.c.b16 %v7708, %v7707
  %v7853 = vpack.c.b16 %v7710, %v7709
  %v7854 = vpack.c.b16 %v7712, %v7711
  %v7855 = vpack.c.b16 %v7714, %v7713
  %v7856 = vpack.c.b16 %v7716, %v7715
  %v7857 = vpack.c.b16 %v7718, %v7717
  %v7858 = vpack.c.b16 %v7720, %v7719
  %v7859 = vpack.c.b16 %v7722, %v7721
  %v7860 = vpack.c.b16 %v7724, %v7723
  %v7861 = vpack.c.b16 %v7726, %v7725
  %v7862 = vpack.c.b16 %v7728, %v7727
  %v7863 = vpack.c.b16 %v7730, %v7729
  %v7864 = vpack.c.b16 %v7732, %v7731
  %v7865 = vpack.c.b16 %v7734, %v7733
  %v7866 = vpack.c.b16 %v7736, %v7735
  %v7867 = vpack.c.b16 %v7738, %v7737
  %v7868 = vpack.c.b16 %v7740, %v7739
  %7997 = vmatprep.subr.bf16.mxu0 0
  %7998 = vmatpush1.bf16.msra.mxu0 %v7748
  %7999 = vmatprep.subr.bf16.mxu0 0
  %8000 = vmatpush1.bf16.msra.mxu0 %v7747
  %8001 = vmatprep.subr.bf16.mxu0 0
  %8002 = vmatpush1.bf16.msra.mxu0 %v7746
  %8003 = vmatprep.subr.bf16.mxu0 0
  %8004 = vmatpush1.bf16.msra.mxu0 %v7745
  %8005 = vmatprep.subr.bf16.mxu0 0
  %8006 = vmatpush1.bf16.msra.mxu0 %v7744
  %8007 = vmatprep.subr.bf16.mxu0 0
  %8008 = vmatpush1.bf16.msra.mxu0 %v7743
  %8009 = vmatprep.subr.bf16.mxu0 0
  %8010 = vmatpush1.bf16.msra.mxu0 %v7742
  %8011 = vmatprep.subr.bf16.mxu0 0
  %8012 = vmatpush1.bf16.msra.mxu0 %v7741
  %8013 = vmatprep.subr.bf16.mxu0 0
  %8014 = vmatpush2.bf16.msra.mxu0 %v7756
  %8015 = vmatprep.subr.bf16.mxu0 0
  %8016 = vmatpush2.bf16.msra.mxu0 %v7755
  %8017 = vmatprep.subr.bf16.mxu0 0
  %8018 = vmatpush2.bf16.msra.mxu0 %v7754
  %8019 = vmatprep.subr.bf16.mxu0 0
  %8020 = vmatpush2.bf16.msra.mxu0 %v7753
  %8021 = vmatprep.subr.bf16.mxu0 0
  %8022 = vmatpush2.bf16.msra.mxu0 %v7752
  %8023 = vmatprep.subr.bf16.mxu0 0
  %8024 = vmatpush2.bf16.msra.mxu0 %v7751
  %8025 = vmatprep.subr.bf16.mxu0 0
  %8026 = vmatpush2.bf16.msra.mxu0 %v7750
  %8027 = vmatprep.subr.bf16.mxu0 0
  %8028 = vmatpush2.bf16.msra.mxu0 %v7749
  %8029 = vmatprep.mubr.bf16.mxu0 %v6949
  %8030 = vmatmul.mubr.bf16.gmra.mxu0 %v6948
  %v8031 = vpop.f32.mrf.mxu0
  %v8032 = vadd.f32 %v7227, %v8031
  %v8033 = vpop.f32.mrf.mxu0
  %v8034 = vpop.f32.mrf.mxu0
  %v8035 = vadd.f32 %v7227, %v8034
  %v8036 = vpop.f32.mrf.mxu0
  %8037 = vdwg.mxu0
  %8038 = vmatprep.subr.bf16.mxu0 0
  %8039 = vmatpush1.bf16.msra.mxu0 %v7764
  %8040 = vmatprep.subr.bf16.mxu0 0
  %8041 = vmatpush1.bf16.msra.mxu0 %v7763
  %8042 = vmatprep.subr.bf16.mxu0 0
  %8043 = vmatpush1.bf16.msra.mxu0 %v7762
  %8044 = vmatprep.subr.bf16.mxu0 0
  %8045 = vmatpush1.bf16.msra.mxu0 %v7761
  %8046 = vmatprep.subr.bf16.mxu0 0
  %8047 = vmatpush1.bf16.msra.mxu0 %v7760
  %8048 = vmatprep.subr.bf16.mxu0 0
  %8049 = vmatpush1.bf16.msra.mxu0 %v7759
  %8050 = vmatprep.subr.bf16.mxu0 0
  %8051 = vmatpush1.bf16.msra.mxu0 %v7758
  %8052 = vmatprep.subr.bf16.mxu0 0
  %8053 = vmatpush1.bf16.msra.mxu0 %v7757
  %8054 = vmatprep.subr.bf16.mxu0 0
  %8055 = vmatpush2.bf16.msra.mxu0 %v7772
  %8056 = vmatprep.subr.bf16.mxu0 0
  %8057 = vmatpush2.bf16.msra.mxu0 %v7771
  %8058 = vmatprep.subr.bf16.mxu0 0
  %8059 = vmatpush2.bf16.msra.mxu0 %v7770
  %8060 = vmatprep.subr.bf16.mxu0 0
  %8061 = vmatpush2.bf16.msra.mxu0 %v7769
  %8062 = vmatprep.subr.bf16.mxu0 0
  %8063 = vmatpush2.bf16.msra.mxu0 %v7768
  %8064 = vmatprep.subr.bf16.mxu0 0
  %8065 = vmatpush2.bf16.msra.mxu0 %v7767
  %8066 = vmatprep.subr.bf16.mxu0 0
  %8067 = vmatpush2.bf16.msra.mxu0 %v7766
  %8068 = vmatprep.subr.bf16.mxu0 0
  %8069 = vmatpush2.bf16.msra.mxu0 %v7765
  %8070 = vmatprep.mubr.bf16.mxu0 %v6951
  %8071 = vmatmul.mubr.bf16.gmra.mxu0 %v6950
  %v8072 = vpop.f32.mrf.mxu0
  %v8073 = vadd.f32 %v8032, %v8072
  %v8074 = vpop.f32.mrf.mxu0
  %v8075 = vpop.f32.mrf.mxu0
  %v8076 = vadd.f32 %v8035, %v8075
  %v8077 = vpop.f32.mrf.mxu0
  %8078 = vdwg.mxu0
  %8079 = vmatprep.subr.bf16.mxu0 0
  %8080 = vmatpush1.bf16.msra.mxu0 %v7780
  %8081 = vmatprep.subr.bf16.mxu0 0
  %8082 = vmatpush1.bf16.msra.mxu0 %v7779
  %8083 = vmatprep.subr.bf16.mxu0 0
  %8084 = vmatpush1.bf16.msra.mxu0 %v7778
  %8085 = vmatprep.subr.bf16.mxu0 0
  %8086 = vmatpush1.bf16.msra.mxu0 %v7777
  %8087 = vmatprep.subr.bf16.mxu0 0
  %8088 = vmatpush1.bf16.msra.mxu0 %v7776
  %8089 = vmatprep.subr.bf16.mxu0 0
  %8090 = vmatpush1.bf16.msra.mxu0 %v7775
  %8091 = vmatprep.subr.bf16.mxu0 0
  %8092 = vmatpush1.bf16.msra.mxu0 %v7774
  %8093 = vmatprep.subr.bf16.mxu0 0
  %8094 = vmatpush1.bf16.msra.mxu0 %v7773
  %8095 = vmatprep.subr.bf16.mxu0 0
  %8096 = vmatpush2.bf16.msra.mxu0 %v7788
  %8097 = vmatprep.subr.bf16.mxu0 0
  %8098 = vmatpush2.bf16.msra.mxu0 %v7787
  %8099 = vmatprep.subr.bf16.mxu0 0
  %8100 = vmatpush2.bf16.msra.mxu0 %v7786
  %8101 = vmatprep.subr.bf16.mxu0 0
  %8102 = vmatpush2.bf16.msra.mxu0 %v7785
  %8103 = vmatprep.subr.bf16.mxu0 0
  %8104 = vmatpush2.bf16.msra.mxu0 %v7784
  %8105 = vmatprep.subr.bf16.mxu0 0
  %8106 = vmatpush2.bf16.msra.mxu0 %v7783
  %8107 = vmatprep.subr.bf16.mxu0 0
  %8108 = vmatpush2.bf16.msra.mxu0 %v7782
  %8109 = vmatprep.subr.bf16.mxu0 0
  %8110 = vmatpush2.bf16.msra.mxu0 %v7781
  %8111 = vmatprep.mubr.bf16.mxu0 %v6953
  %8112 = vmatmul.mubr.bf16.gmra.mxu0 %v6952
  %v8113 = vpop.f32.mrf.mxu0
  %v8114 = vadd.f32 %v8073, %v8113
  %v8115 = vpop.f32.mrf.mxu0
  %v8116 = vpop.f32.mrf.mxu0
  %v8117 = vadd.f32 %v8076, %v8116
  %v8118 = vpop.f32.mrf.mxu0
  %8119 = vdwg.mxu0
  %8120 = vmatprep.subr.bf16.mxu0 0
  %8121 = vmatpush1.bf16.msra.mxu0 %v7796
  %8122 = vmatprep.subr.bf16.mxu0 0
  %8123 = vmatpush1.bf16.msra.mxu0 %v7795
  %8124 = vmatprep.subr.bf16.mxu0 0
  %8125 = vmatpush1.bf16.msra.mxu0 %v7794
  %8126 = vmatprep.subr.bf16.mxu0 0
  %8127 = vmatpush1.bf16.msra.mxu0 %v7793
  %8128 = vmatprep.subr.bf16.mxu0 0
  %8129 = vmatpush1.bf16.msra.mxu0 %v7792
  %8130 = vmatprep.subr.bf16.mxu0 0
  %8131 = vmatpush1.bf16.msra.mxu0 %v7791
  %8132 = vmatprep.subr.bf16.mxu0 0
  %8133 = vmatpush1.bf16.msra.mxu0 %v7790
  %8134 = vmatprep.subr.bf16.mxu0 0
  %8135 = vmatpush1.bf16.msra.mxu0 %v7789
  %8136 = vmatprep.subr.bf16.mxu0 0
  %8137 = vmatpush2.bf16.msra.mxu0 %v7804
  %8138 = vmatprep.subr.bf16.mxu0 0
  %8139 = vmatpush2.bf16.msra.mxu0 %v7803
  %8140 = vmatprep.subr.bf16.mxu0 0
  %8141 = vmatpush2.bf16.msra.mxu0 %v7802
  %8142 = vmatprep.subr.bf16.mxu0 0
  %8143 = vmatpush2.bf16.msra.mxu0 %v7801
  %8144 = vmatprep.subr.bf16.mxu0 0
  %8145 = vmatpush2.bf16.msra.mxu0 %v7800
  %8146 = vmatprep.subr.bf16.mxu0 0
  %8147 = vmatpush2.bf16.msra.mxu0 %v7799
  %8148 = vmatprep.subr.bf16.mxu0 0
  %8149 = vmatpush2.bf16.msra.mxu0 %v7798
  %8150 = vmatprep.subr.bf16.mxu0 0
  %8151 = vmatpush2.bf16.msra.mxu0 %v7797
  %8152 = vmatprep.mubr.bf16.mxu0 %v6955
  %8153 = vmatmul.mubr.bf16.gmra.mxu0 %v6954
  %v8154 = vpop.f32.mrf.mxu0
  %v8155 = vadd.f32 %v8114, %v8154
  %v8156 = vpop.f32.mrf.mxu0
  %v8157 = vpop.f32.mrf.mxu0
  %v8158 = vadd.f32 %v8117, %v8157
  %v8159 = vpop.f32.mrf.mxu0
  %8160 = vdwg.mxu0
  %8161 = vmatprep.subr.bf16.mxu0 0
  %8162 = vmatpush1.bf16.msra.mxu0 %v7812
  %8163 = vmatprep.subr.bf16.mxu0 0
  %8164 = vmatpush1.bf16.msra.mxu0 %v7811
  %8165 = vmatprep.subr.bf16.mxu0 0
  %8166 = vmatpush1.bf16.msra.mxu0 %v7810
  %8167 = vmatprep.subr.bf16.mxu0 0
  %8168 = vmatpush1.bf16.msra.mxu0 %v7809
  %8169 = vmatprep.subr.bf16.mxu0 0
  %8170 = vmatpush1.bf16.msra.mxu0 %v7808
  %8171 = vmatprep.subr.bf16.mxu0 0
  %8172 = vmatpush1.bf16.msra.mxu0 %v7807
  %8173 = vmatprep.subr.bf16.mxu0 0
  %8174 = vmatpush1.bf16.msra.mxu0 %v7806
  %8175 = vmatprep.subr.bf16.mxu0 0
  %8176 = vmatpush1.bf16.msra.mxu0 %v7805
  %8177 = vmatprep.subr.bf16.mxu0 0
  %8178 = vmatpush2.bf16.msra.mxu0 %v7820
  %8179 = vmatprep.subr.bf16.mxu0 0
  %8180 = vmatpush2.bf16.msra.mxu0 %v7819
  %8181 = vmatprep.subr.bf16.mxu0 0
  %8182 = vmatpush2.bf16.msra.mxu0 %v7818
  %8183 = vmatprep.subr.bf16.mxu0 0
  %8184 = vmatpush2.bf16.msra.mxu0 %v7817
  %8185 = vmatprep.subr.bf16.mxu0 0
  %8186 = vmatpush2.bf16.msra.mxu0 %v7816
  %8187 = vmatprep.subr.bf16.mxu0 0
  %8188 = vmatpush2.bf16.msra.mxu0 %v7815
  %8189 = vmatprep.subr.bf16.mxu0 0
  %8190 = vmatpush2.bf16.msra.mxu0 %v7814
  %8191 = vmatprep.subr.bf16.mxu0 0
  %8192 = vmatpush2.bf16.msra.mxu0 %v7813
  %8193 = vmatprep.mubr.bf16.mxu0 %v6957
  %8194 = vmatmul.mubr.bf16.gmra.mxu0 %v6956
  %v8195 = vpop.f32.mrf.mxu0
  %v8196 = vadd.f32 %v8155, %v8195
  %v8197 = vpop.f32.mrf.mxu0
  %v8198 = vpop.f32.mrf.mxu0
  %v8199 = vadd.f32 %v8158, %v8198
  %v8200 = vpop.f32.mrf.mxu0
  %8201 = vdwg.mxu0
  %8202 = vmatprep.subr.bf16.mxu0 0
  %8203 = vmatpush1.bf16.msra.mxu0 %v7828
  %8204 = vmatprep.subr.bf16.mxu0 0
  %8205 = vmatpush1.bf16.msra.mxu0 %v7827
  %8206 = vmatprep.subr.bf16.mxu0 0
  %8207 = vmatpush1.bf16.msra.mxu0 %v7826
  %8208 = vmatprep.subr.bf16.mxu0 0
  %8209 = vmatpush1.bf16.msra.mxu0 %v7825
  %8210 = vmatprep.subr.bf16.mxu0 0
  %8211 = vmatpush1.bf16.msra.mxu0 %v7824
  %8212 = vmatprep.subr.bf16.mxu0 0
  %8213 = vmatpush1.bf16.msra.mxu0 %v7823
  %8214 = vmatprep.subr.bf16.mxu0 0
  %8215 = vmatpush1.bf16.msra.mxu0 %v7822
  %8216 = vmatprep.subr.bf16.mxu0 0
  %8217 = vmatpush1.bf16.msra.mxu0 %v7821
  %8218 = vmatprep.subr.bf16.mxu0 0
  %8219 = vmatpush2.bf16.msra.mxu0 %v7836
  %8220 = vmatprep.subr.bf16.mxu0 0
  %8221 = vmatpush2.bf16.msra.mxu0 %v7835
  %8222 = vmatprep.subr.bf16.mxu0 0
  %8223 = vmatpush2.bf16.msra.mxu0 %v7834
  %8224 = vmatprep.subr.bf16.mxu0 0
  %8225 = vmatpush2.bf16.msra.mxu0 %v7833
  %8226 = vmatprep.subr.bf16.mxu0 0
  %8227 = vmatpush2.bf16.msra.mxu0 %v7832
  %8228 = vmatprep.subr.bf16.mxu0 0
  %8229 = vmatpush2.bf16.msra.mxu0 %v7831
  %8230 = vmatprep.subr.bf16.mxu0 0
  %8231 = vmatpush2.bf16.msra.mxu0 %v7830
  %8232 = vmatprep.subr.bf16.mxu0 0
  %8233 = vmatpush2.bf16.msra.mxu0 %v7829
  %8234 = vmatprep.mubr.bf16.mxu0 %v6959
  %8235 = vmatmul.mubr.bf16.gmra.mxu0 %v6958
  %v8236 = vpop.f32.mrf.mxu0
  %v8237 = vadd.f32 %v8196, %v8236
  %v8238 = vpop.f32.mrf.mxu0
  %v8239 = vpop.f32.mrf.mxu0
  %v8240 = vadd.f32 %v8199, %v8239
  %v8241 = vpop.f32.mrf.mxu0
  %8242 = vdwg.mxu0
  %8243 = vmatprep.subr.bf16.mxu0 0
  %8244 = vmatpush1.bf16.msra.mxu0 %v7844
  %8245 = vmatprep.subr.bf16.mxu0 0
  %8246 = vmatpush1.bf16.msra.mxu0 %v7843
  %8247 = vmatprep.subr.bf16.mxu0 0
  %8248 = vmatpush1.bf16.msra.mxu0 %v7842
  %8249 = vmatprep.subr.bf16.mxu0 0
  %8250 = vmatpush1.bf16.msra.mxu0 %v7841
  %8251 = vmatprep.subr.bf16.mxu0 0
  %8252 = vmatpush1.bf16.msra.mxu0 %v7840
  %8253 = vmatprep.subr.bf16.mxu0 0
  %8254 = vmatpush1.bf16.msra.mxu0 %v7839
  %8255 = vmatprep.subr.bf16.mxu0 0
  %8256 = vmatpush1.bf16.msra.mxu0 %v7838
  %8257 = vmatprep.subr.bf16.mxu0 0
  %8258 = vmatpush1.bf16.msra.mxu0 %v7837
  %8259 = vmatprep.subr.bf16.mxu0 0
  %8260 = vmatpush2.bf16.msra.mxu0 %v7852
  %8261 = vmatprep.subr.bf16.mxu0 0
  %8262 = vmatpush2.bf16.msra.mxu0 %v7851
  %8263 = vmatprep.subr.bf16.mxu0 0
  %8264 = vmatpush2.bf16.msra.mxu0 %v7850
  %8265 = vmatprep.subr.bf16.mxu0 0
  %8266 = vmatpush2.bf16.msra.mxu0 %v7849
  %8267 = vmatprep.subr.bf16.mxu0 0
  %8268 = vmatpush2.bf16.msra.mxu0 %v7848
  %8269 = vmatprep.subr.bf16.mxu0 0
  %8270 = vmatpush2.bf16.msra.mxu0 %v7847
  %8271 = vmatprep.subr.bf16.mxu0 0
  %8272 = vmatpush2.bf16.msra.mxu0 %v7846
  %8273 = vmatprep.subr.bf16.mxu0 0
  %8274 = vmatpush2.bf16.msra.mxu0 %v7845
  %8275 = vmatprep.mubr.bf16.mxu0 %v6961
  %8276 = vmatmul.mubr.bf16.gmra.mxu0 %v6960
  %v8277 = vpop.f32.mrf.mxu0
  %v8278 = vadd.f32 %v8237, %v8277
  %v8279 = vpop.f32.mrf.mxu0
  %v8280 = vpop.f32.mrf.mxu0
  %v8281 = vadd.f32 %v8240, %v8280
  %v8282 = vpop.f32.mrf.mxu0
  %8283 = vdwg.mxu0
  %8284 = vmatprep.subr.bf16.mxu0 0
  %8285 = vmatpush1.bf16.msra.mxu0 %v7860
  %8286 = vmatprep.subr.bf16.mxu0 0
  %8287 = vmatpush1.bf16.msra.mxu0 %v7859
  %8288 = vmatprep.subr.bf16.mxu0 0
  %8289 = vmatpush1.bf16.msra.mxu0 %v7858
  %8290 = vmatprep.subr.bf16.mxu0 0
  %8291 = vmatpush1.bf16.msra.mxu0 %v7857
  %8292 = vmatprep.subr.bf16.mxu0 0
  %8293 = vmatpush1.bf16.msra.mxu0 %v7856
  %8294 = vmatprep.subr.bf16.mxu0 0
  %8295 = vmatpush1.bf16.msra.mxu0 %v7855
  %8296 = vmatprep.subr.bf16.mxu0 0
  %8297 = vmatpush1.bf16.msra.mxu0 %v7854
  %8298 = vmatprep.subr.bf16.mxu0 0
  %8299 = vmatpush1.bf16.msra.mxu0 %v7853
  %8300 = vmatprep.subr.bf16.mxu0 0
  %8301 = vmatpush2.bf16.msra.mxu0 %v7868
  %8302 = vmatprep.subr.bf16.mxu0 0
  %8303 = vmatpush2.bf16.msra.mxu0 %v7867
  %8304 = vmatprep.subr.bf16.mxu0 0
  %8305 = vmatpush2.bf16.msra.mxu0 %v7866
  %8306 = vmatprep.subr.bf16.mxu0 0
  %8307 = vmatpush2.bf16.msra.mxu0 %v7865
  %8308 = vmatprep.subr.bf16.mxu0 0
  %8309 = vmatpush2.bf16.msra.mxu0 %v7864
  %8310 = vmatprep.subr.bf16.mxu0 0
  %8311 = vmatpush2.bf16.msra.mxu0 %v7863
  %8312 = vmatprep.subr.bf16.mxu0 0
  %8313 = vmatpush2.bf16.msra.mxu0 %v7862
  %8314 = vmatprep.subr.bf16.mxu0 0
  %8315 = vmatpush2.bf16.msra.mxu0 %v7861
  %8316 = vmatprep.mubr.bf16.mxu0 %v6963
  %8317 = vmatmul.mubr.bf16.gmra.mxu0 %v6962
  %v8318 = vpop.f32.mrf.mxu0
  %v8319 = vadd.f32 %v8278, %v8318
  %v8320 = vpop.f32.mrf.mxu0
  %v8321 = vpop.f32.mrf.mxu0
  %v8322 = vadd.f32 %v8281, %v8321
  %v8323 = vpop.f32.mrf.mxu0
  %8324 = vdwg.mxu0
  %v8325 = vadd.f32 %v6352, %v8319
  %v8326 = vadd.f32 %v6353, %v8322
  %s8327 = scalar_lea.vmem %s16, 1
  %v8328 = vld [vmem:[%s8327] sm:$0x1]
  %s8329 = scalar_lea.vmem %s17, 1
  %v8330 = vld [vmem:[%s8329] sm:$0x1]
  %v8331 = vsel %vm167, %v8325, 0.0
  %8332 = vadd.xlane.f32.xlu0 %v8331
  %v8333 = vpop.xlane.xlu0 %8332
  %v8334 = vsel %vm167, %v8326, 0.0
  %8335 = vadd.xlane.f32.xlu0 %v8334
  %v8336 = vpop.xlane.xlu0 %8335
  %v8337 = vmul.f32 %v8333, 0.11111111
  %v8338 = vmul.f32 %v8336, 0.11111111
  %v8339 = vmul.f32 %v8325, %v8325
  %v8340 = vmul.f32 %v8326, %v8326
  %v8341 = vsel %vm167, %v8339, 0.0
  %8342 = vadd.xlane.f32.xlu0 %v8341
  %v8343 = vpop.xlane.xlu0 %8342
  %v8344 = vsel %vm167, %v8340, 0.0
  %8345 = vadd.xlane.f32.xlu0 %v8344
  %v8346 = vpop.xlane.xlu0 %8345
  %v8347 = vmul.f32 %v8343, 0.11111111
  %v8348 = vmul.f32 %v8346, 0.11111111
  %v8349 = vmul.f32 %v8337, %v8337
  %v8350 = vmul.f32 %v8338, %v8338
  %v8351 = vsub.f32 %v8347, %v8349
  %v8352 = vsub.f32 %v8348, %v8350
  %v8353 = vsub.f32 %v8325, %v8337
  %v8354 = vsub.f32 %v8326, %v8338
  %v8355 = vadd.f32 %v8351, 1e-05
  %v8356 = vadd.f32 %v8352, 1e-05
  %v8357 = vrsqrt.pop %v8355
  %v8358 = vrsqrt.pop %v8356
  %v8359 = vmul.f32 %v8353, %v8357
  %v8360 = vmul.f32 %v8354, %v8358
  %v8362 = vlaneseq
  %v8363 = vshrl.u32 %v8362, 7
  %v8364 = vsub.s32 0, %v8363
  %v8365 = vrot.slane %v8328, %v8364
  %v8367 = vmul.f32 %v8359, %v8365
  %v8368 = vmul.f32 %v8360, %v8365
  %v8370 = vlaneseq
  %v8371 = vshrl.u32 %v8370, 7
  %v8372 = vsub.s32 0, %v8371
  %v8373 = vrot.slane %v8330, %v8372
  %v8375 = vadd.f32 %v8367, %v8373
  %v8376 = vadd.f32 %v8368, %v8373
  %s8377 = scalar_lea.vmem %s9, 2
  %v8378 = vld [vmem:[%s8377] sm:$0x1]
  %s8379 = scalar_lea.vmem %s2, 96
  %v8380 = vld [vmem:[%s8379] sm:$0xff]
  %v8381 = vld [vmem:[%s8379 + $0x8] sm:$0x1]
  %s8382 = scalar_lea.vmem %s3, 6
  %v8383 = vld [vmem:[%s8382] sm:$0x1]
  %v8385 = vlaneseq
  %v8386 = vshrl.u32 %v8385, 7
  %v8387 = vsub.s32 0, %v8386
  %v8388 = vrot.slane %v8383, %v8387
  %v8392 = vrot.slane %v8375, 7
  %v8393 = vrot.slane %v8376, 6
  %vm8394 = vcmask 1041409
  %v8395 = vsel %vm8394, %v8393, %v8392
  %v8396 = vsel %vm167, %v8395, 0
  %v8399 = vsel %vm174, %v8381, 0
  %8401 = vmatprep.subr.mxu0 0.0
  %8402 = vmatpush1.msra.mxu0 0.0
  %8403 = vmatprep.subr.mxu0 0.0
  %8404 = vmatpush1.msra.mxu0 0.0
  %8405 = vmatprep.subr.mxu0 0.0
  %8406 = vmatpush1.msra.mxu0 0.0
  %8407 = vmatprep.subr.mxu0 0.0
  %8408 = vmatpush1.msra.mxu0 0.0
  %8409 = vmatprep.subr.mxu0 0.0
  %8410 = vmatpush1.msra.mxu0 0.0
  %8411 = vmatprep.subr.mxu0 0.0
  %8412 = vmatpush1.msra.mxu0 0.0
  %8413 = vmatprep.subr.mxu0 0.0
  %8414 = vmatpush1.msra.mxu0 0.0
  %8415 = vmatprep.subr.mxu0 0.0
  %8416 = vmatpush1.msra.mxu0 0.0
  %8417 = vmatprep.subr.mxu0 0.0
  %8418 = vmatpush1.msra.mxu0 0.0
  %8419 = vmatprep.subr.mxu0 0.0
  %8420 = vmatpush1.msra.mxu0 0.0
  %8421 = vmatprep.subr.mxu0 0.0
  %8422 = vmatpush1.msra.mxu0 0.0
  %8423 = vmatprep.subr.mxu0 0.0
  %8424 = vmatpush1.msra.mxu0 0.0
  %8425 = vmatprep.subr.mxu0 0.0
  %8426 = vmatpush1.msra.mxu0 0.0
  %8427 = vmatprep.subr.mxu0 0.0
  %8428 = vmatpush1.msra.mxu0 0.0
  %8429 = vmatprep.subr.mxu0 0.0
  %8430 = vmatpush1.msra.mxu0 %v8399
  %8431 = vmatprep.subr.mxu0 0.0
  %8432 = vmatpush1.msra.mxu0 %v8380
  %8433 = vmatprep.subr.mxu0 0.0
  %8434 = vmatpush2.msra.mxu0 0.0
  %8435 = vmatprep.subr.mxu0 0.0
  %8436 = vmatpush2.msra.mxu0 0.0
  %8437 = vmatprep.subr.mxu0 0.0
  %8438 = vmatpush2.msra.mxu0 0.0
  %8439 = vmatprep.subr.mxu0 0.0
  %8440 = vmatpush2.msra.mxu0 0.0
  %8441 = vmatprep.subr.mxu0 0.0
  %8442 = vmatpush2.msra.mxu0 0.0
  %8443 = vmatprep.subr.mxu0 0.0
  %8444 = vmatpush2.msra.mxu0 0.0
  %8445 = vmatprep.subr.mxu0 0.0
  %8446 = vmatpush2.msra.mxu0 0.0
  %8447 = vmatprep.subr.mxu0 0.0
  %8448 = vmatpush2.msra.mxu0 0.0
  %8449 = vmatprep.subr.mxu0 0.0
  %8450 = vmatpush2.msra.mxu0 0.0
  %8451 = vmatprep.subr.mxu0 0.0
  %8452 = vmatpush2.msra.mxu0 0.0
  %8453 = vmatprep.subr.mxu0 0.0
  %8454 = vmatpush2.msra.mxu0 0.0
  %8455 = vmatprep.subr.mxu0 0.0
  %8456 = vmatpush2.msra.mxu0 0.0
  %8457 = vmatprep.subr.mxu0 0.0
  %8458 = vmatpush2.msra.mxu0 0.0
  %8459 = vmatprep.subr.mxu0 0.0
  %8460 = vmatpush2.msra.mxu0 0.0
  %8461 = vmatprep.subr.mxu0 0.0
  %8462 = vmatpush2.msra.mxu0 0.0
  %8463 = vmatprep.subr.mxu0 0.0
  %8464 = vmatpush2.msra.mxu0 0.0
  %8465 = vmatprep.mubr.f32.mxu0 0.0
  %8466 = vmatmul.mubr.f32.gmra.mxu0 %v8396
  %v8467 = vpop.f32.mrf.mxu0
  %v8468 = vadd.f32 %v8388, %v8467
  %v8469 = vpop.f32.mrf.mxu0
  %8470 = vdwg.mxu0
  %v8473 = vunpack.c.l.s4 1966171168
  %v8474 = vunpack.c.0.s8 %v8473
  %v8475 = vlaneseq
  %v8476 = vshrl.u32 %v8475, 7
  %v8477 = vsub.s32 %v8474, %v8476
  %v8478 = vrot.slane %v8468, %v8477
  %v8479 = vcombine.high %v8478, %v8478
  %v8481 = vunpack.c.l.s4 1966171168
  %v8482 = vunpack.c.0.s8 %v8481
  %v8483 = vlaneseq
  %v8484 = vshrl.u32 %v8483, 7
  %v8485 = vsub.s32 %v8482, %v8484
  %v8486 = vrot.slane %v8478, %v8485
  %v8488 = vunpack.c.l.s4 1966171168
  %v8489 = vunpack.c.0.s8 %v8488
  %v8490 = vlaneseq
  %v8491 = vshrl.u32 %v8490, 7
  %v8492 = vsub.s32 %v8489, %v8491
  %v8493 = vrot.slane %v8479, %v8492
  %s8494 = scalar_lea.vmem %s4, 96
  %v8495 = vld [vmem:[%s8494] sm:$0xff]
  %v8496 = vld [vmem:[%s8494 + $0x8] sm:$0x1]
  %s8497 = scalar_lea.vmem %s5, 6
  %v8498 = vld [vmem:[%s8497] sm:$0x1]
  %v8500 = vlaneseq
  %v8501 = vshrl.u32 %v8500, 7
  %v8502 = vsub.s32 0, %v8501
  %v8503 = vrot.slane %v8498, %v8502
  %v8505 = vsel %vm167, %v8375, 0
  %v8507 = vsel %vm167, %v8376, 0
  %v8510 = vsel %vm174, %v8496, 0
  %8512 = vmatprep.subr.mxu0 0.0
  %8513 = vmatpush1.msra.mxu0 0.0
  %8514 = vmatprep.subr.mxu0 0.0
  %8515 = vmatpush1.msra.mxu0 0.0
  %8516 = vmatprep.subr.mxu0 0.0
  %8517 = vmatpush1.msra.mxu0 0.0
  %8518 = vmatprep.subr.mxu0 0.0
  %8519 = vmatpush1.msra.mxu0 0.0
  %8520 = vmatprep.subr.mxu0 0.0
  %8521 = vmatpush1.msra.mxu0 0.0
  %8522 = vmatprep.subr.mxu0 0.0
  %8523 = vmatpush1.msra.mxu0 0.0
  %8524 = vmatprep.subr.mxu0 0.0
  %8525 = vmatpush1.msra.mxu0 0.0
  %8526 = vmatprep.subr.mxu0 0.0
  %8527 = vmatpush1.msra.mxu0 0.0
  %8528 = vmatprep.subr.mxu0 0.0
  %8529 = vmatpush1.msra.mxu0 0.0
  %8530 = vmatprep.subr.mxu0 0.0
  %8531 = vmatpush1.msra.mxu0 0.0
  %8532 = vmatprep.subr.mxu0 0.0
  %8533 = vmatpush1.msra.mxu0 0.0
  %8534 = vmatprep.subr.mxu0 0.0
  %8535 = vmatpush1.msra.mxu0 0.0
  %8536 = vmatprep.subr.mxu0 0.0
  %8537 = vmatpush1.msra.mxu0 0.0
  %8538 = vmatprep.subr.mxu0 0.0
  %8539 = vmatpush1.msra.mxu0 0.0
  %8540 = vmatprep.subr.mxu0 0.0
  %8541 = vmatpush1.msra.mxu0 %v8510
  %8542 = vmatprep.subr.mxu0 0.0
  %8543 = vmatpush1.msra.mxu0 %v8495
  %8544 = vmatprep.subr.mxu0 0.0
  %8545 = vmatpush2.msra.mxu0 0.0
  %8546 = vmatprep.subr.mxu0 0.0
  %8547 = vmatpush2.msra.mxu0 0.0
  %8548 = vmatprep.subr.mxu0 0.0
  %8549 = vmatpush2.msra.mxu0 0.0
  %8550 = vmatprep.subr.mxu0 0.0
  %8551 = vmatpush2.msra.mxu0 0.0
  %8552 = vmatprep.subr.mxu0 0.0
  %8553 = vmatpush2.msra.mxu0 0.0
  %8554 = vmatprep.subr.mxu0 0.0
  %8555 = vmatpush2.msra.mxu0 0.0
  %8556 = vmatprep.subr.mxu0 0.0
  %8557 = vmatpush2.msra.mxu0 0.0
  %8558 = vmatprep.subr.mxu0 0.0
  %8559 = vmatpush2.msra.mxu0 0.0
  %8560 = vmatprep.subr.mxu0 0.0
  %8561 = vmatpush2.msra.mxu0 0.0
  %8562 = vmatprep.subr.mxu0 0.0
  %8563 = vmatpush2.msra.mxu0 0.0
  %8564 = vmatprep.subr.mxu0 0.0
  %8565 = vmatpush2.msra.mxu0 0.0
  %8566 = vmatprep.subr.mxu0 0.0
  %8567 = vmatpush2.msra.mxu0 0.0
  %8568 = vmatprep.subr.mxu0 0.0
  %8569 = vmatpush2.msra.mxu0 0.0
  %8570 = vmatprep.subr.mxu0 0.0
  %8571 = vmatpush2.msra.mxu0 0.0
  %8572 = vmatprep.subr.mxu0 0.0
  %8573 = vmatpush2.msra.mxu0 0.0
  %8574 = vmatprep.subr.mxu0 0.0
  %8575 = vmatpush2.msra.mxu0 0.0
  %8576 = vmatprep.mubr.f32.mxu0 0.0
  %8577 = vmatmul.mubr.f32.gmra.mxu0 %v8505
  %v8578 = vpop.f32.mrf.mxu0
  %v8579 = vadd.f32 %v8503, %v8578
  %v8580 = vpop.f32.mrf.mxu0
  %8581 = vmatprep.mubr.f32.mxu0 0.0
  %8582 = vmatmul.mubr.f32.gmra.mxu0 %v8507
  %v8583 = vpop.f32.mrf.mxu0
  %v8584 = vadd.f32 %v8503, %v8583
  %v8585 = vpop.f32.mrf.mxu0
  %8586 = vdwg.mxu0
  %s8587 = scalar_lea.vmem %s6, 96
  %v8588 = vld [vmem:[%s8587] sm:$0xff]
  %v8589 = vld [vmem:[%s8587 + $0x8] sm:$0x1]
  %s8590 = scalar_lea.vmem %s7, 6
  %v8591 = vld [vmem:[%s8590] sm:$0x1]
  %v8593 = vlaneseq
  %v8594 = vshrl.u32 %v8593, 7
  %v8595 = vsub.s32 0, %v8594
  %v8596 = vrot.slane %v8591, %v8595
  %v8599 = vsel %vm174, %v8589, 0
  %8601 = vmatprep.subr.mxu0 0.0
  %8602 = vmatpush1.msra.mxu0 0.0
  %8603 = vmatprep.subr.mxu0 0.0
  %8604 = vmatpush1.msra.mxu0 0.0
  %8605 = vmatprep.subr.mxu0 0.0
  %8606 = vmatpush1.msra.mxu0 0.0
  %8607 = vmatprep.subr.mxu0 0.0
  %8608 = vmatpush1.msra.mxu0 0.0
  %8609 = vmatprep.subr.mxu0 0.0
  %8610 = vmatpush1.msra.mxu0 0.0
  %8611 = vmatprep.subr.mxu0 0.0
  %8612 = vmatpush1.msra.mxu0 0.0
  %8613 = vmatprep.subr.mxu0 0.0
  %8614 = vmatpush1.msra.mxu0 0.0
  %8615 = vmatprep.subr.mxu0 0.0
  %8616 = vmatpush1.msra.mxu0 0.0
  %8617 = vmatprep.subr.mxu0 0.0
  %8618 = vmatpush1.msra.mxu0 0.0
  %8619 = vmatprep.subr.mxu0 0.0
  %8620 = vmatpush1.msra.mxu0 0.0
  %8621 = vmatprep.subr.mxu0 0.0
  %8622 = vmatpush1.msra.mxu0 0.0
  %8623 = vmatprep.subr.mxu0 0.0
  %8624 = vmatpush1.msra.mxu0 0.0
  %8625 = vmatprep.subr.mxu0 0.0
  %8626 = vmatpush1.msra.mxu0 0.0
  %8627 = vmatprep.subr.mxu0 0.0
  %8628 = vmatpush1.msra.mxu0 0.0
  %8629 = vmatprep.subr.mxu0 0.0
  %8630 = vmatpush1.msra.mxu0 %v8599
  %8631 = vmatprep.subr.mxu0 0.0
  %8632 = vmatpush1.msra.mxu0 %v8588
  %8633 = vmatprep.subr.mxu0 0.0
  %8634 = vmatpush2.msra.mxu0 0.0
  %8635 = vmatprep.subr.mxu0 0.0
  %8636 = vmatpush2.msra.mxu0 0.0
  %8637 = vmatprep.subr.mxu0 0.0
  %8638 = vmatpush2.msra.mxu0 0.0
  %8639 = vmatprep.subr.mxu0 0.0
  %8640 = vmatpush2.msra.mxu0 0.0
  %8641 = vmatprep.subr.mxu0 0.0
  %8642 = vmatpush2.msra.mxu0 0.0
  %8643 = vmatprep.subr.mxu0 0.0
  %8644 = vmatpush2.msra.mxu0 0.0
  %8645 = vmatprep.subr.mxu0 0.0
  %8646 = vmatpush2.msra.mxu0 0.0
  %8647 = vmatprep.subr.mxu0 0.0
  %8648 = vmatpush2.msra.mxu0 0.0
  %8649 = vmatprep.subr.mxu0 0.0
  %8650 = vmatpush2.msra.mxu0 0.0
  %8651 = vmatprep.subr.mxu0 0.0
  %8652 = vmatpush2.msra.mxu0 0.0
  %8653 = vmatprep.subr.mxu0 0.0
  %8654 = vmatpush2.msra.mxu0 0.0
  %8655 = vmatprep.subr.mxu0 0.0
  %8656 = vmatpush2.msra.mxu0 0.0
  %8657 = vmatprep.subr.mxu0 0.0
  %8658 = vmatpush2.msra.mxu0 0.0
  %8659 = vmatprep.subr.mxu0 0.0
  %8660 = vmatpush2.msra.mxu0 0.0
  %8661 = vmatprep.subr.mxu0 0.0
  %8662 = vmatpush2.msra.mxu0 0.0
  %8663 = vmatprep.subr.mxu0 0.0
  %8664 = vmatpush2.msra.mxu0 0.0
  %8665 = vmatprep.mubr.f32.mxu0 0.0
  %8666 = vmatmul.mubr.f32.gmra.mxu0 %v8505
  %v8667 = vpop.f32.mrf.mxu0
  %v8668 = vadd.f32 %v8596, %v8667
  %v8669 = vpop.f32.mrf.mxu0
  %8670 = vmatprep.mubr.f32.mxu0 0.0
  %8671 = vmatmul.mubr.f32.gmra.mxu0 %v8507
  %v8672 = vpop.f32.mrf.mxu0
  %v8673 = vadd.f32 %v8596, %v8672
  %v8674 = vpop.f32.mrf.mxu0
  %8675 = vdwg.mxu0
  %v8676 = vsel %vm427, %v8486, 0
  %v8679 = vsel %vm427, %v8579, 0
  %8681 = vmatprep.subr.mxu0 0.0
  %8682 = vmatpush1.xpose.msra.mxu0 0.0
  %8683 = vmatprep.subr.mxu0 0.0
  %8684 = vmatpush1.xpose.msra.mxu0 0.0
  %8685 = vmatprep.subr.mxu0 0.0
  %8686 = vmatpush1.xpose.msra.mxu0 0.0
  %8687 = vmatprep.subr.mxu0 0.0
  %8688 = vmatpush1.xpose.msra.mxu0 0.0
  %8689 = vmatprep.subr.mxu0 0.0
  %8690 = vmatpush1.xpose.msra.mxu0 0.0
  %8691 = vmatprep.subr.mxu0 0.0
  %8692 = vmatpush1.xpose.msra.mxu0 0.0
  %8693 = vmatprep.subr.mxu0 0.0
  %8694 = vmatpush1.xpose.msra.mxu0 0.0
  %8695 = vmatprep.subr.mxu0 0.0
  %8696 = vmatpush1.xpose.msra.mxu0 0.0
  %8697 = vmatprep.subr.mxu0 0.0
  %8698 = vmatpush1.xpose.msra.mxu0 0.0
  %8699 = vmatprep.subr.mxu0 0.0
  %8700 = vmatpush1.xpose.msra.mxu0 0.0
  %8701 = vmatprep.subr.mxu0 0.0
  %8702 = vmatpush1.xpose.msra.mxu0 0.0
  %8703 = vmatprep.subr.mxu0 0.0
  %8704 = vmatpush1.xpose.msra.mxu0 0.0
  %8705 = vmatprep.subr.mxu0 0.0
  %8706 = vmatpush1.xpose.msra.mxu0 0.0
  %8707 = vmatprep.subr.mxu0 0.0
  %8708 = vmatpush1.xpose.msra.mxu0 0.0
  %8709 = vmatprep.subr.mxu0 0.0
  %8710 = vmatpush1.xpose.msra.mxu0 0.0
  %8711 = vmatprep.subr.mxu0 0.0
  %8712 = vmatpush1.xpose.msra.mxu0 %v8679
  %8713 = vmatprep.subr.mxu0 0.0
  %8714 = vmatpush2.xpose.msra.mxu0 0.0
  %8715 = vmatprep.subr.mxu0 0.0
  %8716 = vmatpush2.xpose.msra.mxu0 0.0
  %8717 = vmatprep.subr.mxu0 0.0
  %8718 = vmatpush2.xpose.msra.mxu0 0.0
  %8719 = vmatprep.subr.mxu0 0.0
  %8720 = vmatpush2.xpose.msra.mxu0 0.0
  %8721 = vmatprep.subr.mxu0 0.0
  %8722 = vmatpush2.xpose.msra.mxu0 0.0
  %8723 = vmatprep.subr.mxu0 0.0
  %8724 = vmatpush2.xpose.msra.mxu0 0.0
  %8725 = vmatprep.subr.mxu0 0.0
  %8726 = vmatpush2.xpose.msra.mxu0 0.0
  %8727 = vmatprep.subr.mxu0 0.0
  %8728 = vmatpush2.xpose.msra.mxu0 0.0
  %8729 = vmatprep.subr.mxu0 0.0
  %8730 = vmatpush2.xpose.msra.mxu0 0.0
  %8731 = vmatprep.subr.mxu0 0.0
  %8732 = vmatpush2.xpose.msra.mxu0 0.0
  %8733 = vmatprep.subr.mxu0 0.0
  %8734 = vmatpush2.xpose.msra.mxu0 0.0
  %8735 = vmatprep.subr.mxu0 0.0
  %8736 = vmatpush2.xpose.msra.mxu0 0.0
  %8737 = vmatprep.subr.mxu0 0.0
  %8738 = vmatpush2.xpose.msra.mxu0 0.0
  %8739 = vmatprep.subr.mxu0 0.0
  %8740 = vmatpush2.xpose.msra.mxu0 0.0
  %8741 = vmatprep.subr.mxu0 0.0
  %8742 = vmatpush2.xpose.msra.mxu0 0.0
  %8743 = vmatprep.subr.mxu0 0.0
  %8744 = vmatpush2.xpose.msra.mxu0 0.0
  %8745 = vmatprep.mubr.f32.mxu0 0.0
  %8746 = vmatmul.mubr.f32.gmra.mxu0 %v8676
  %v8747 = vpop.f32.mrf.mxu0
  %v8748 = vadd.f32 0.0, %v8747
  %v8749 = vpop.f32.mrf.mxu0
  %8750 = vdwg.mxu0
  %v8751 = vsel %vm427, %v8493, 0
  %v8754 = vsel %vm427, %v8584, 0
  %8756 = vmatprep.subr.mxu0 0.0
  %8757 = vmatpush1.xpose.msra.mxu0 0.0
  %8758 = vmatprep.subr.mxu0 0.0
  %8759 = vmatpush1.xpose.msra.mxu0 0.0
  %8760 = vmatprep.subr.mxu0 0.0
  %8761 = vmatpush1.xpose.msra.mxu0 0.0
  %8762 = vmatprep.subr.mxu0 0.0
  %8763 = vmatpush1.xpose.msra.mxu0 0.0
  %8764 = vmatprep.subr.mxu0 0.0
  %8765 = vmatpush1.xpose.msra.mxu0 0.0
  %8766 = vmatprep.subr.mxu0 0.0
  %8767 = vmatpush1.xpose.msra.mxu0 0.0
  %8768 = vmatprep.subr.mxu0 0.0
  %8769 = vmatpush1.xpose.msra.mxu0 0.0
  %8770 = vmatprep.subr.mxu0 0.0
  %8771 = vmatpush1.xpose.msra.mxu0 0.0
  %8772 = vmatprep.subr.mxu0 0.0
  %8773 = vmatpush1.xpose.msra.mxu0 0.0
  %8774 = vmatprep.subr.mxu0 0.0
  %8775 = vmatpush1.xpose.msra.mxu0 0.0
  %8776 = vmatprep.subr.mxu0 0.0
  %8777 = vmatpush1.xpose.msra.mxu0 0.0
  %8778 = vmatprep.subr.mxu0 0.0
  %8779 = vmatpush1.xpose.msra.mxu0 0.0
  %8780 = vmatprep.subr.mxu0 0.0
  %8781 = vmatpush1.xpose.msra.mxu0 0.0
  %8782 = vmatprep.subr.mxu0 0.0
  %8783 = vmatpush1.xpose.msra.mxu0 0.0
  %8784 = vmatprep.subr.mxu0 0.0
  %8785 = vmatpush1.xpose.msra.mxu0 0.0
  %8786 = vmatprep.subr.mxu0 0.0
  %8787 = vmatpush1.xpose.msra.mxu0 %v8754
  %8788 = vmatprep.subr.mxu0 0.0
  %8789 = vmatpush2.xpose.msra.mxu0 0.0
  %8790 = vmatprep.subr.mxu0 0.0
  %8791 = vmatpush2.xpose.msra.mxu0 0.0
  %8792 = vmatprep.subr.mxu0 0.0
  %8793 = vmatpush2.xpose.msra.mxu0 0.0
  %8794 = vmatprep.subr.mxu0 0.0
  %8795 = vmatpush2.xpose.msra.mxu0 0.0
  %8796 = vmatprep.subr.mxu0 0.0
  %8797 = vmatpush2.xpose.msra.mxu0 0.0
  %8798 = vmatprep.subr.mxu0 0.0
  %8799 = vmatpush2.xpose.msra.mxu0 0.0
  %8800 = vmatprep.subr.mxu0 0.0
  %8801 = vmatpush2.xpose.msra.mxu0 0.0
  %8802 = vmatprep.subr.mxu0 0.0
  %8803 = vmatpush2.xpose.msra.mxu0 0.0
  %8804 = vmatprep.subr.mxu0 0.0
  %8805 = vmatpush2.xpose.msra.mxu0 0.0
  %8806 = vmatprep.subr.mxu0 0.0
  %8807 = vmatpush2.xpose.msra.mxu0 0.0
  %8808 = vmatprep.subr.mxu0 0.0
  %8809 = vmatpush2.xpose.msra.mxu0 0.0
  %8810 = vmatprep.subr.mxu0 0.0
  %8811 = vmatpush2.xpose.msra.mxu0 0.0
  %8812 = vmatprep.subr.mxu0 0.0
  %8813 = vmatpush2.xpose.msra.mxu0 0.0
  %8814 = vmatprep.subr.mxu0 0.0
  %8815 = vmatpush2.xpose.msra.mxu0 0.0
  %8816 = vmatprep.subr.mxu0 0.0
  %8817 = vmatpush2.xpose.msra.mxu0 0.0
  %8818 = vmatprep.subr.mxu0 0.0
  %8819 = vmatpush2.xpose.msra.mxu0 0.0
  %8820 = vmatprep.mubr.f32.mxu0 0.0
  %8821 = vmatmul.mubr.f32.gmra.mxu0 %v8751
  %v8822 = vpop.f32.mrf.mxu0
  %v8823 = vadd.f32 0.0, %v8822
  %v8824 = vpop.f32.mrf.mxu0
  %8825 = vdwg.mxu0
  %vm8826 = vcmask 57344
  %v8827 = vsel %vm8826, %v8748, -inf
  %8828 = vmax.xlane.f32.xlu0 %v8827
  %v8829 = vpop.xlane.xlu0 %8828
  %v8830 = vsel %vm8826, %v8823, -inf
  %8831 = vmax.xlane.f32.xlu0 %v8830
  %v8832 = vpop.xlane.xlu0 %8831
  %v8833 = vsub.f32 %v8748, %v8829
  %v8834 = vsub.f32 %v8823, %v8832
  %v8835 = vmul.f32 %v8833, 1.442695
  %v8836 = vpow.pop %v8835
  %v8837 = vmul.f32 %v8834, 1.442695
  %v8838 = vpow.pop %v8837
  %v8839 = vsel %vm8826, %v8836, 0.0
  %8840 = vadd.xlane.f32.xlu0 %v8839
  %v8841 = vpop.xlane.xlu0 %8840
  %v8842 = vsel %vm8826, %v8838, 0.0
  %8843 = vadd.xlane.f32.xlu0 %v8842
  %v8844 = vpop.xlane.xlu0 %8843
  %v8845 = vrcp.pop %v8841
  %v8846 = vmul.f32 %v8836, %v8845
  %v8847 = vrcp.pop %v8844
  %v8848 = vmul.f32 %v8838, %v8847
  %v8850 = vsel %vm580, %v8846, 0
  %8852 = vmatprep.subr.mxu0 0.0
  %8853 = vmatpush1.msra.mxu0 0.0
  %8854 = vmatprep.subr.mxu0 0.0
  %8855 = vmatpush1.msra.mxu0 0.0
  %8856 = vmatprep.subr.mxu0 0.0
  %8857 = vmatpush1.msra.mxu0 0.0
  %8858 = vmatprep.subr.mxu0 0.0
  %8859 = vmatpush1.msra.mxu0 0.0
  %8860 = vmatprep.subr.mxu0 0.0
  %8861 = vmatpush1.msra.mxu0 0.0
  %8862 = vmatprep.subr.mxu0 0.0
  %8863 = vmatpush1.msra.mxu0 0.0
  %8864 = vmatprep.subr.mxu0 0.0
  %8865 = vmatpush1.msra.mxu0 0.0
  %8866 = vmatprep.subr.mxu0 0.0
  %8867 = vmatpush1.msra.mxu0 0.0
  %8868 = vmatprep.subr.mxu0 0.0
  %8869 = vmatpush1.msra.mxu0 0.0
  %8870 = vmatprep.subr.mxu0 0.0
  %8871 = vmatpush1.msra.mxu0 0.0
  %8872 = vmatprep.subr.mxu0 0.0
  %8873 = vmatpush1.msra.mxu0 0.0
  %8874 = vmatprep.subr.mxu0 0.0
  %8875 = vmatpush1.msra.mxu0 0.0
  %8876 = vmatprep.subr.mxu0 0.0
  %8877 = vmatpush1.msra.mxu0 0.0
  %8878 = vmatprep.subr.mxu0 0.0
  %8879 = vmatpush1.msra.mxu0 0.0
  %8880 = vmatprep.subr.mxu0 0.0
  %8881 = vmatpush1.msra.mxu0 0.0
  %8882 = vmatprep.subr.mxu0 0.0
  %8883 = vmatpush1.msra.mxu0 %v8668
  %8884 = vmatprep.subr.mxu0 0.0
  %8885 = vmatpush2.msra.mxu0 0.0
  %8886 = vmatprep.subr.mxu0 0.0
  %8887 = vmatpush2.msra.mxu0 0.0
  %8888 = vmatprep.subr.mxu0 0.0
  %8889 = vmatpush2.msra.mxu0 0.0
  %8890 = vmatprep.subr.mxu0 0.0
  %8891 = vmatpush2.msra.mxu0 0.0
  %8892 = vmatprep.subr.mxu0 0.0
  %8893 = vmatpush2.msra.mxu0 0.0
  %8894 = vmatprep.subr.mxu0 0.0
  %8895 = vmatpush2.msra.mxu0 0.0
  %8896 = vmatprep.subr.mxu0 0.0
  %8897 = vmatpush2.msra.mxu0 0.0
  %8898 = vmatprep.subr.mxu0 0.0
  %8899 = vmatpush2.msra.mxu0 0.0
  %8900 = vmatprep.subr.mxu0 0.0
  %8901 = vmatpush2.msra.mxu0 0.0
  %8902 = vmatprep.subr.mxu0 0.0
  %8903 = vmatpush2.msra.mxu0 0.0
  %8904 = vmatprep.subr.mxu0 0.0
  %8905 = vmatpush2.msra.mxu0 0.0
  %8906 = vmatprep.subr.mxu0 0.0
  %8907 = vmatpush2.msra.mxu0 0.0
  %8908 = vmatprep.subr.mxu0 0.0
  %8909 = vmatpush2.msra.mxu0 0.0
  %8910 = vmatprep.subr.mxu0 0.0
  %8911 = vmatpush2.msra.mxu0 0.0
  %8912 = vmatprep.subr.mxu0 0.0
  %8913 = vmatpush2.msra.mxu0 0.0
  %8914 = vmatprep.subr.mxu0 0.0
  %8915 = vmatpush2.msra.mxu0 0.0
  %8916 = vmatprep.mubr.f32.mxu0 0.0
  %8917 = vmatmul.mubr.f32.gmra.mxu0 %v8850
  %v8918 = vpop.f32.mrf.mxu0
  %v8919 = vadd.f32 0.0, %v8918
  %v8920 = vpop.f32.mrf.mxu0
  %8921 = vdwg.mxu0
  %v8923 = vsel %vm580, %v8848, 0
  %8925 = vmatprep.subr.mxu0 0.0
  %8926 = vmatpush1.msra.mxu0 0.0
  %8927 = vmatprep.subr.mxu0 0.0
  %8928 = vmatpush1.msra.mxu0 0.0
  %8929 = vmatprep.subr.mxu0 0.0
  %8930 = vmatpush1.msra.mxu0 0.0
  %8931 = vmatprep.subr.mxu0 0.0
  %8932 = vmatpush1.msra.mxu0 0.0
  %8933 = vmatprep.subr.mxu0 0.0
  %8934 = vmatpush1.msra.mxu0 0.0
  %8935 = vmatprep.subr.mxu0 0.0
  %8936 = vmatpush1.msra.mxu0 0.0
  %8937 = vmatprep.subr.mxu0 0.0
  %8938 = vmatpush1.msra.mxu0 0.0
  %8939 = vmatprep.subr.mxu0 0.0
  %8940 = vmatpush1.msra.mxu0 0.0
  %8941 = vmatprep.subr.mxu0 0.0
  %8942 = vmatpush1.msra.mxu0 0.0
  %8943 = vmatprep.subr.mxu0 0.0
  %8944 = vmatpush1.msra.mxu0 0.0
  %8945 = vmatprep.subr.mxu0 0.0
  %8946 = vmatpush1.msra.mxu0 0.0
  %8947 = vmatprep.subr.mxu0 0.0
  %8948 = vmatpush1.msra.mxu0 0.0
  %8949 = vmatprep.subr.mxu0 0.0
  %8950 = vmatpush1.msra.mxu0 0.0
  %8951 = vmatprep.subr.mxu0 0.0
  %8952 = vmatpush1.msra.mxu0 0.0
  %8953 = vmatprep.subr.mxu0 0.0
  %8954 = vmatpush1.msra.mxu0 0.0
  %8955 = vmatprep.subr.mxu0 0.0
  %8956 = vmatpush1.msra.mxu0 %v8673
  %8957 = vmatprep.subr.mxu0 0.0
  %8958 = vmatpush2.msra.mxu0 0.0
  %8959 = vmatprep.subr.mxu0 0.0
  %8960 = vmatpush2.msra.mxu0 0.0
  %8961 = vmatprep.subr.mxu0 0.0
  %8962 = vmatpush2.msra.mxu0 0.0
  %8963 = vmatprep.subr.mxu0 0.0
  %8964 = vmatpush2.msra.mxu0 0.0
  %8965 = vmatprep.subr.mxu0 0.0
  %8966 = vmatpush2.msra.mxu0 0.0
  %8967 = vmatprep.subr.mxu0 0.0
  %8968 = vmatpush2.msra.mxu0 0.0
  %8969 = vmatprep.subr.mxu0 0.0
  %8970 = vmatpush2.msra.mxu0 0.0
  %8971 = vmatprep.subr.mxu0 0.0
  %8972 = vmatpush2.msra.mxu0 0.0
  %8973 = vmatprep.subr.mxu0 0.0
  %8974 = vmatpush2.msra.mxu0 0.0
  %8975 = vmatprep.subr.mxu0 0.0
  %8976 = vmatpush2.msra.mxu0 0.0
  %8977 = vmatprep.subr.mxu0 0.0
  %8978 = vmatpush2.msra.mxu0 0.0
  %8979 = vmatprep.subr.mxu0 0.0
  %8980 = vmatpush2.msra.mxu0 0.0
  %8981 = vmatprep.subr.mxu0 0.0
  %8982 = vmatpush2.msra.mxu0 0.0
  %8983 = vmatprep.subr.mxu0 0.0
  %8984 = vmatpush2.msra.mxu0 0.0
  %8985 = vmatprep.subr.mxu0 0.0
  %8986 = vmatpush2.msra.mxu0 0.0
  %8987 = vmatprep.subr.mxu0 0.0
  %8988 = vmatpush2.msra.mxu0 0.0
  %8989 = vmatprep.mubr.f32.mxu0 0.0
  %8990 = vmatmul.mubr.f32.gmra.mxu0 %v8923
  %v8991 = vpop.f32.mrf.mxu0
  %v8992 = vadd.f32 0.0, %v8991
  %v8993 = vpop.f32.mrf.mxu0
  %8994 = vdwg.mxu0
  %s8995 = scalar_lea.vmem %s8, 24
  %v8996 = vld [vmem:[%s8995] sm:$0x7]
  %v8999 = vrot.slane %v8992, 7
  %v9000 = vsel %vm8394, %v8999, %v8919
  %v9001 = vsel %vm427, %v9000, 0
  %v9004 = vsel %vm756, %v8996, 0
  %9006 = vmatprep.subr.mxu0 0.0
  %9007 = vmatpush1.msra.mxu0 0.0
  %9008 = vmatprep.subr.mxu0 0.0
  %9009 = vmatpush1.msra.mxu0 0.0
  %9010 = vmatprep.subr.mxu0 0.0
  %9011 = vmatpush1.msra.mxu0 0.0
  %9012 = vmatprep.subr.mxu0 0.0
  %9013 = vmatpush1.msra.mxu0 0.0
  %9014 = vmatprep.subr.mxu0 0.0
  %9015 = vmatpush1.msra.mxu0 0.0
  %9016 = vmatprep.subr.mxu0 0.0
  %9017 = vmatpush1.msra.mxu0 0.0
  %9018 = vmatprep.subr.mxu0 0.0
  %9019 = vmatpush1.msra.mxu0 0.0
  %9020 = vmatprep.subr.mxu0 0.0
  %9021 = vmatpush1.msra.mxu0 0.0
  %9022 = vmatprep.subr.mxu0 0.0
  %9023 = vmatpush1.msra.mxu0 0.0
  %9024 = vmatprep.subr.mxu0 0.0
  %9025 = vmatpush1.msra.mxu0 0.0
  %9026 = vmatprep.subr.mxu0 0.0
  %9027 = vmatpush1.msra.mxu0 0.0
  %9028 = vmatprep.subr.mxu0 0.0
  %9029 = vmatpush1.msra.mxu0 0.0
  %9030 = vmatprep.subr.mxu0 0.0
  %9031 = vmatpush1.msra.mxu0 0.0
  %9032 = vmatprep.subr.mxu0 0.0
  %9033 = vmatpush1.msra.mxu0 0.0
  %9034 = vmatprep.subr.mxu0 0.0
  %9035 = vmatpush1.msra.mxu0 0.0
  %9036 = vmatprep.subr.mxu0 0.0
  %9037 = vmatpush1.msra.mxu0 %v9004
  %9038 = vmatprep.subr.mxu0 0.0
  %9039 = vmatpush2.msra.mxu0 0.0
  %9040 = vmatprep.subr.mxu0 0.0
  %9041 = vmatpush2.msra.mxu0 0.0
  %9042 = vmatprep.subr.mxu0 0.0
  %9043 = vmatpush2.msra.mxu0 0.0
  %9044 = vmatprep.subr.mxu0 0.0
  %9045 = vmatpush2.msra.mxu0 0.0
  %9046 = vmatprep.subr.mxu0 0.0
  %9047 = vmatpush2.msra.mxu0 0.0
  %9048 = vmatprep.subr.mxu0 0.0
  %9049 = vmatpush2.msra.mxu0 0.0
  %9050 = vmatprep.subr.mxu0 0.0
  %9051 = vmatpush2.msra.mxu0 0.0
  %9052 = vmatprep.subr.mxu0 0.0
  %9053 = vmatpush2.msra.mxu0 0.0
  %9054 = vmatprep.subr.mxu0 0.0
  %9055 = vmatpush2.msra.mxu0 0.0
  %9056 = vmatprep.subr.mxu0 0.0
  %9057 = vmatpush2.msra.mxu0 0.0
  %9058 = vmatprep.subr.mxu0 0.0
  %9059 = vmatpush2.msra.mxu0 0.0
  %9060 = vmatprep.subr.mxu0 0.0
  %9061 = vmatpush2.msra.mxu0 0.0
  %9062 = vmatprep.subr.mxu0 0.0
  %9063 = vmatpush2.msra.mxu0 0.0
  %9064 = vmatprep.subr.mxu0 0.0
  %9065 = vmatpush2.msra.mxu0 0.0
  %9066 = vmatprep.subr.mxu0 0.0
  %9067 = vmatpush2.msra.mxu0 0.0
  %9068 = vmatprep.subr.mxu0 0.0
  %9069 = vmatpush2.msra.mxu0 0.0
  %9070 = vmatprep.mubr.f32.mxu0 0.0
  %9071 = vmatmul.mubr.f32.gmra.mxu0 %v9001
  %v9072 = vpop.f32.mrf.mxu0
  %v9073 = vadd.f32 0.0, %v9072
  %v9074 = vpop.f32.mrf.mxu0
  %9075 = vdwg.mxu0
  %v9077 = vlaneseq
  %v9078 = vshrl.u32 %v9077, 7
  %v9079 = vsub.s32 0, %v9078
  %v9080 = vrot.slane %v8378, %v9079
  %v9082 = vadd.f32 %v9080, %v9073
  %s9083 = scalar_lea.vmem %s2, 112
  %v9084 = vld [vmem:[%s9083] sm:$0xff]
  %v9085 = vld [vmem:[%s9083 + $0x8] sm:$0x1]
  %s9086 = scalar_lea.vmem %s3, 7
  %v9087 = vld [vmem:[%s9086] sm:$0x1]
  %v9089 = vlaneseq
  %v9090 = vshrl.u32 %v9089, 7
  %v9091 = vsub.s32 0, %v9090
  %v9092 = vrot.slane %v9087, %v9091
  %v9095 = vsel %vm174, %v9085, 0
  %9097 = vmatprep.subr.mxu0 0.0
  %9098 = vmatpush1.msra.mxu0 0.0
  %9099 = vmatprep.subr.mxu0 0.0
  %9100 = vmatpush1.msra.mxu0 0.0
  %9101 = vmatprep.subr.mxu0 0.0
  %9102 = vmatpush1.msra.mxu0 0.0
  %9103 = vmatprep.subr.mxu0 0.0
  %9104 = vmatpush1.msra.mxu0 0.0
  %9105 = vmatprep.subr.mxu0 0.0
  %9106 = vmatpush1.msra.mxu0 0.0
  %9107 = vmatprep.subr.mxu0 0.0
  %9108 = vmatpush1.msra.mxu0 0.0
  %9109 = vmatprep.subr.mxu0 0.0
  %9110 = vmatpush1.msra.mxu0 0.0
  %9111 = vmatprep.subr.mxu0 0.0
  %9112 = vmatpush1.msra.mxu0 0.0
  %9113 = vmatprep.subr.mxu0 0.0
  %9114 = vmatpush1.msra.mxu0 0.0
  %9115 = vmatprep.subr.mxu0 0.0
  %9116 = vmatpush1.msra.mxu0 0.0
  %9117 = vmatprep.subr.mxu0 0.0
  %9118 = vmatpush1.msra.mxu0 0.0
  %9119 = vmatprep.subr.mxu0 0.0
  %9120 = vmatpush1.msra.mxu0 0.0
  %9121 = vmatprep.subr.mxu0 0.0
  %9122 = vmatpush1.msra.mxu0 0.0
  %9123 = vmatprep.subr.mxu0 0.0
  %9124 = vmatpush1.msra.mxu0 0.0
  %9125 = vmatprep.subr.mxu0 0.0
  %9126 = vmatpush1.msra.mxu0 %v9095
  %9127 = vmatprep.subr.mxu0 0.0
  %9128 = vmatpush1.msra.mxu0 %v9084
  %9129 = vmatprep.subr.mxu0 0.0
  %9130 = vmatpush2.msra.mxu0 0.0
  %9131 = vmatprep.subr.mxu0 0.0
  %9132 = vmatpush2.msra.mxu0 0.0
  %9133 = vmatprep.subr.mxu0 0.0
  %9134 = vmatpush2.msra.mxu0 0.0
  %9135 = vmatprep.subr.mxu0 0.0
  %9136 = vmatpush2.msra.mxu0 0.0
  %9137 = vmatprep.subr.mxu0 0.0
  %9138 = vmatpush2.msra.mxu0 0.0
  %9139 = vmatprep.subr.mxu0 0.0
  %9140 = vmatpush2.msra.mxu0 0.0
  %9141 = vmatprep.subr.mxu0 0.0
  %9142 = vmatpush2.msra.mxu0 0.0
  %9143 = vmatprep.subr.mxu0 0.0
  %9144 = vmatpush2.msra.mxu0 0.0
  %9145 = vmatprep.subr.mxu0 0.0
  %9146 = vmatpush2.msra.mxu0 0.0
  %9147 = vmatprep.subr.mxu0 0.0
  %9148 = vmatpush2.msra.mxu0 0.0
  %9149 = vmatprep.subr.mxu0 0.0
  %9150 = vmatpush2.msra.mxu0 0.0
  %9151 = vmatprep.subr.mxu0 0.0
  %9152 = vmatpush2.msra.mxu0 0.0
  %9153 = vmatprep.subr.mxu0 0.0
  %9154 = vmatpush2.msra.mxu0 0.0
  %9155 = vmatprep.subr.mxu0 0.0
  %9156 = vmatpush2.msra.mxu0 0.0
  %9157 = vmatprep.subr.mxu0 0.0
  %9158 = vmatpush2.msra.mxu0 0.0
  %9159 = vmatprep.subr.mxu0 0.0
  %9160 = vmatpush2.msra.mxu0 0.0
  %9161 = vmatprep.mubr.f32.mxu0 0.0
  %9162 = vmatmul.mubr.f32.gmra.mxu0 %v8396
  %v9163 = vpop.f32.mrf.mxu0
  %v9164 = vadd.f32 %v9092, %v9163
  %v9165 = vpop.f32.mrf.mxu0
  %9166 = vdwg.mxu0
  %v9169 = vunpack.c.l.s4 1966171168
  %v9170 = vunpack.c.0.s8 %v9169
  %v9171 = vlaneseq
  %v9172 = vshrl.u32 %v9171, 7
  %v9173 = vsub.s32 %v9170, %v9172
  %v9174 = vrot.slane %v9164, %v9173
  %v9175 = vcombine.high %v9174, %v9174
  %v9177 = vunpack.c.l.s4 1966171168
  %v9178 = vunpack.c.0.s8 %v9177
  %v9179 = vlaneseq
  %v9180 = vshrl.u32 %v9179, 7
  %v9181 = vsub.s32 %v9178, %v9180
  %v9182 = vrot.slane %v9174, %v9181
  %v9184 = vunpack.c.l.s4 1966171168
  %v9185 = vunpack.c.0.s8 %v9184
  %v9186 = vlaneseq
  %v9187 = vshrl.u32 %v9186, 7
  %v9188 = vsub.s32 %v9185, %v9187
  %v9189 = vrot.slane %v9175, %v9188
  %s9190 = scalar_lea.vmem %s4, 112
  %v9191 = vld [vmem:[%s9190] sm:$0xff]
  %v9192 = vld [vmem:[%s9190 + $0x8] sm:$0x1]
  %s9193 = scalar_lea.vmem %s5, 7
  %v9194 = vld [vmem:[%s9193] sm:$0x1]
  %v9196 = vlaneseq
  %v9197 = vshrl.u32 %v9196, 7
  %v9198 = vsub.s32 0, %v9197
  %v9199 = vrot.slane %v9194, %v9198
  %v9202 = vsel %vm174, %v9192, 0
  %9204 = vmatprep.subr.mxu0 0.0
  %9205 = vmatpush1.msra.mxu0 0.0
  %9206 = vmatprep.subr.mxu0 0.0
  %9207 = vmatpush1.msra.mxu0 0.0
  %9208 = vmatprep.subr.mxu0 0.0
  %9209 = vmatpush1.msra.mxu0 0.0
  %9210 = vmatprep.subr.mxu0 0.0
  %9211 = vmatpush1.msra.mxu0 0.0
  %9212 = vmatprep.subr.mxu0 0.0
  %9213 = vmatpush1.msra.mxu0 0.0
  %9214 = vmatprep.subr.mxu0 0.0
  %9215 = vmatpush1.msra.mxu0 0.0
  %9216 = vmatprep.subr.mxu0 0.0
  %9217 = vmatpush1.msra.mxu0 0.0
  %9218 = vmatprep.subr.mxu0 0.0
  %9219 = vmatpush1.msra.mxu0 0.0
  %9220 = vmatprep.subr.mxu0 0.0
  %9221 = vmatpush1.msra.mxu0 0.0
  %9222 = vmatprep.subr.mxu0 0.0
  %9223 = vmatpush1.msra.mxu0 0.0
  %9224 = vmatprep.subr.mxu0 0.0
  %9225 = vmatpush1.msra.mxu0 0.0
  %9226 = vmatprep.subr.mxu0 0.0
  %9227 = vmatpush1.msra.mxu0 0.0
  %9228 = vmatprep.subr.mxu0 0.0
  %9229 = vmatpush1.msra.mxu0 0.0
  %9230 = vmatprep.subr.mxu0 0.0
  %9231 = vmatpush1.msra.mxu0 0.0
  %9232 = vmatprep.subr.mxu0 0.0
  %9233 = vmatpush1.msra.mxu0 %v9202
  %9234 = vmatprep.subr.mxu0 0.0
  %9235 = vmatpush1.msra.mxu0 %v9191
  %9236 = vmatprep.subr.mxu0 0.0
  %9237 = vmatpush2.msra.mxu0 0.0
  %9238 = vmatprep.subr.mxu0 0.0
  %9239 = vmatpush2.msra.mxu0 0.0
  %9240 = vmatprep.subr.mxu0 0.0
  %9241 = vmatpush2.msra.mxu0 0.0
  %9242 = vmatprep.subr.mxu0 0.0
  %9243 = vmatpush2.msra.mxu0 0.0
  %9244 = vmatprep.subr.mxu0 0.0
  %9245 = vmatpush2.msra.mxu0 0.0
  %9246 = vmatprep.subr.mxu0 0.0
  %9247 = vmatpush2.msra.mxu0 0.0
  %9248 = vmatprep.subr.mxu0 0.0
  %9249 = vmatpush2.msra.mxu0 0.0
  %9250 = vmatprep.subr.mxu0 0.0
  %9251 = vmatpush2.msra.mxu0 0.0
  %9252 = vmatprep.subr.mxu0 0.0
  %9253 = vmatpush2.msra.mxu0 0.0
  %9254 = vmatprep.subr.mxu0 0.0
  %9255 = vmatpush2.msra.mxu0 0.0
  %9256 = vmatprep.subr.mxu0 0.0
  %9257 = vmatpush2.msra.mxu0 0.0
  %9258 = vmatprep.subr.mxu0 0.0
  %9259 = vmatpush2.msra.mxu0 0.0
  %9260 = vmatprep.subr.mxu0 0.0
  %9261 = vmatpush2.msra.mxu0 0.0
  %9262 = vmatprep.subr.mxu0 0.0
  %9263 = vmatpush2.msra.mxu0 0.0
  %9264 = vmatprep.subr.mxu0 0.0
  %9265 = vmatpush2.msra.mxu0 0.0
  %9266 = vmatprep.subr.mxu0 0.0
  %9267 = vmatpush2.msra.mxu0 0.0
  %9268 = vmatprep.mubr.f32.mxu0 0.0
  %9269 = vmatmul.mubr.f32.gmra.mxu0 %v8505
  %v9270 = vpop.f32.mrf.mxu0
  %v9271 = vadd.f32 %v9199, %v9270
  %v9272 = vpop.f32.mrf.mxu0
  %9273 = vmatprep.mubr.f32.mxu0 0.0
  %9274 = vmatmul.mubr.f32.gmra.mxu0 %v8507
  %v9275 = vpop.f32.mrf.mxu0
  %v9276 = vadd.f32 %v9199, %v9275
  %v9277 = vpop.f32.mrf.mxu0
  %9278 = vdwg.mxu0
  %s9279 = scalar_lea.vmem %s6, 112
  %v9280 = vld [vmem:[%s9279] sm:$0xff]
  %v9281 = vld [vmem:[%s9279 + $0x8] sm:$0x1]
  %s9282 = scalar_lea.vmem %s7, 7
  %v9283 = vld [vmem:[%s9282] sm:$0x1]
  %v9285 = vlaneseq
  %v9286 = vshrl.u32 %v9285, 7
  %v9287 = vsub.s32 0, %v9286
  %v9288 = vrot.slane %v9283, %v9287
  %v9291 = vsel %vm174, %v9281, 0
  %9293 = vmatprep.subr.mxu0 0.0
  %9294 = vmatpush1.msra.mxu0 0.0
  %9295 = vmatprep.subr.mxu0 0.0
  %9296 = vmatpush1.msra.mxu0 0.0
  %9297 = vmatprep.subr.mxu0 0.0
  %9298 = vmatpush1.msra.mxu0 0.0
  %9299 = vmatprep.subr.mxu0 0.0
  %9300 = vmatpush1.msra.mxu0 0.0
  %9301 = vmatprep.subr.mxu0 0.0
  %9302 = vmatpush1.msra.mxu0 0.0
  %9303 = vmatprep.subr.mxu0 0.0
  %9304 = vmatpush1.msra.mxu0 0.0
  %9305 = vmatprep.subr.mxu0 0.0
  %9306 = vmatpush1.msra.mxu0 0.0
  %9307 = vmatprep.subr.mxu0 0.0
  %9308 = vmatpush1.msra.mxu0 0.0
  %9309 = vmatprep.subr.mxu0 0.0
  %9310 = vmatpush1.msra.mxu0 0.0
  %9311 = vmatprep.subr.mxu0 0.0
  %9312 = vmatpush1.msra.mxu0 0.0
  %9313 = vmatprep.subr.mxu0 0.0
  %9314 = vmatpush1.msra.mxu0 0.0
  %9315 = vmatprep.subr.mxu0 0.0
  %9316 = vmatpush1.msra.mxu0 0.0
  %9317 = vmatprep.subr.mxu0 0.0
  %9318 = vmatpush1.msra.mxu0 0.0
  %9319 = vmatprep.subr.mxu0 0.0
  %9320 = vmatpush1.msra.mxu0 0.0
  %9321 = vmatprep.subr.mxu0 0.0
  %9322 = vmatpush1.msra.mxu0 %v9291
  %9323 = vmatprep.subr.mxu0 0.0
  %9324 = vmatpush1.msra.mxu0 %v9280
  %9325 = vmatprep.subr.mxu0 0.0
  %9326 = vmatpush2.msra.mxu0 0.0
  %9327 = vmatprep.subr.mxu0 0.0
  %9328 = vmatpush2.msra.mxu0 0.0
  %9329 = vmatprep.subr.mxu0 0.0
  %9330 = vmatpush2.msra.mxu0 0.0
  %9331 = vmatprep.subr.mxu0 0.0
  %9332 = vmatpush2.msra.mxu0 0.0
  %9333 = vmatprep.subr.mxu0 0.0
  %9334 = vmatpush2.msra.mxu0 0.0
  %9335 = vmatprep.subr.mxu0 0.0
  %9336 = vmatpush2.msra.mxu0 0.0
  %9337 = vmatprep.subr.mxu0 0.0
  %9338 = vmatpush2.msra.mxu0 0.0
  %9339 = vmatprep.subr.mxu0 0.0
  %9340 = vmatpush2.msra.mxu0 0.0
  %9341 = vmatprep.subr.mxu0 0.0
  %9342 = vmatpush2.msra.mxu0 0.0
  %9343 = vmatprep.subr.mxu0 0.0
  %9344 = vmatpush2.msra.mxu0 0.0
  %9345 = vmatprep.subr.mxu0 0.0
  %9346 = vmatpush2.msra.mxu0 0.0
  %9347 = vmatprep.subr.mxu0 0.0
  %9348 = vmatpush2.msra.mxu0 0.0
  %9349 = vmatprep.subr.mxu0 0.0
  %9350 = vmatpush2.msra.mxu0 0.0
  %9351 = vmatprep.subr.mxu0 0.0
  %9352 = vmatpush2.msra.mxu0 0.0
  %9353 = vmatprep.subr.mxu0 0.0
  %9354 = vmatpush2.msra.mxu0 0.0
  %9355 = vmatprep.subr.mxu0 0.0
  %9356 = vmatpush2.msra.mxu0 0.0
  %9357 = vmatprep.mubr.f32.mxu0 0.0
  %9358 = vmatmul.mubr.f32.gmra.mxu0 %v8505
  %v9359 = vpop.f32.mrf.mxu0
  %v9360 = vadd.f32 %v9288, %v9359
  %v9361 = vpop.f32.mrf.mxu0
  %9362 = vmatprep.mubr.f32.mxu0 0.0
  %9363 = vmatmul.mubr.f32.gmra.mxu0 %v8507
  %v9364 = vpop.f32.mrf.mxu0
  %v9365 = vadd.f32 %v9288, %v9364
  %v9366 = vpop.f32.mrf.mxu0
  %9367 = vdwg.mxu0
  %v9368 = vsel %vm427, %v9182, 0
  %v9371 = vsel %vm427, %v9271, 0
  %9373 = vmatprep.subr.mxu0 0.0
  %9374 = vmatpush1.xpose.msra.mxu0 0.0
  %9375 = vmatprep.subr.mxu0 0.0
  %9376 = vmatpush1.xpose.msra.mxu0 0.0
  %9377 = vmatprep.subr.mxu0 0.0
  %9378 = vmatpush1.xpose.msra.mxu0 0.0
  %9379 = vmatprep.subr.mxu0 0.0
  %9380 = vmatpush1.xpose.msra.mxu0 0.0
  %9381 = vmatprep.subr.mxu0 0.0
  %9382 = vmatpush1.xpose.msra.mxu0 0.0
  %9383 = vmatprep.subr.mxu0 0.0
  %9384 = vmatpush1.xpose.msra.mxu0 0.0
  %9385 = vmatprep.subr.mxu0 0.0
  %9386 = vmatpush1.xpose.msra.mxu0 0.0
  %9387 = vmatprep.subr.mxu0 0.0
  %9388 = vmatpush1.xpose.msra.mxu0 0.0
  %9389 = vmatprep.subr.mxu0 0.0
  %9390 = vmatpush1.xpose.msra.mxu0 0.0
  %9391 = vmatprep.subr.mxu0 0.0
  %9392 = vmatpush1.xpose.msra.mxu0 0.0
  %9393 = vmatprep.subr.mxu0 0.0
  %9394 = vmatpush1.xpose.msra.mxu0 0.0
  %9395 = vmatprep.subr.mxu0 0.0
  %9396 = vmatpush1.xpose.msra.mxu0 0.0
  %9397 = vmatprep.subr.mxu0 0.0
  %9398 = vmatpush1.xpose.msra.mxu0 0.0
  %9399 = vmatprep.subr.mxu0 0.0
  %9400 = vmatpush1.xpose.msra.mxu0 0.0
  %9401 = vmatprep.subr.mxu0 0.0
  %9402 = vmatpush1.xpose.msra.mxu0 0.0
  %9403 = vmatprep.subr.mxu0 0.0
  %9404 = vmatpush1.xpose.msra.mxu0 %v9371
  %9405 = vmatprep.subr.mxu0 0.0
  %9406 = vmatpush2.xpose.msra.mxu0 0.0
  %9407 = vmatprep.subr.mxu0 0.0
  %9408 = vmatpush2.xpose.msra.mxu0 0.0
  %9409 = vmatprep.subr.mxu0 0.0
  %9410 = vmatpush2.xpose.msra.mxu0 0.0
  %9411 = vmatprep.subr.mxu0 0.0
  %9412 = vmatpush2.xpose.msra.mxu0 0.0
  %9413 = vmatprep.subr.mxu0 0.0
  %9414 = vmatpush2.xpose.msra.mxu0 0.0
  %9415 = vmatprep.subr.mxu0 0.0
  %9416 = vmatpush2.xpose.msra.mxu0 0.0
  %9417 = vmatprep.subr.mxu0 0.0
  %9418 = vmatpush2.xpose.msra.mxu0 0.0
  %9419 = vmatprep.subr.mxu0 0.0
  %9420 = vmatpush2.xpose.msra.mxu0 0.0
  %9421 = vmatprep.subr.mxu0 0.0
  %9422 = vmatpush2.xpose.msra.mxu0 0.0
  %9423 = vmatprep.subr.mxu0 0.0
  %9424 = vmatpush2.xpose.msra.mxu0 0.0
  %9425 = vmatprep.subr.mxu0 0.0
  %9426 = vmatpush2.xpose.msra.mxu0 0.0
  %9427 = vmatprep.subr.mxu0 0.0
  %9428 = vmatpush2.xpose.msra.mxu0 0.0
  %9429 = vmatprep.subr.mxu0 0.0
  %9430 = vmatpush2.xpose.msra.mxu0 0.0
  %9431 = vmatprep.subr.mxu0 0.0
  %9432 = vmatpush2.xpose.msra.mxu0 0.0
  %9433 = vmatprep.subr.mxu0 0.0
  %9434 = vmatpush2.xpose.msra.mxu0 0.0
  %9435 = vmatprep.subr.mxu0 0.0
  %9436 = vmatpush2.xpose.msra.mxu0 0.0
  %9437 = vmatprep.mubr.f32.mxu0 0.0
  %9438 = vmatmul.mubr.f32.gmra.mxu0 %v9368
  %v9439 = vpop.f32.mrf.mxu0
  %v9440 = vadd.f32 0.0, %v9439
  %v9441 = vpop.f32.mrf.mxu0
  %9442 = vdwg.mxu0
  %v9443 = vsel %vm427, %v9189, 0
  %v9446 = vsel %vm427, %v9276, 0
  %9448 = vmatprep.subr.mxu0 0.0
  %9449 = vmatpush1.xpose.msra.mxu0 0.0
  %9450 = vmatprep.subr.mxu0 0.0
  %9451 = vmatpush1.xpose.msra.mxu0 0.0
  %9452 = vmatprep.subr.mxu0 0.0
  %9453 = vmatpush1.xpose.msra.mxu0 0.0
  %9454 = vmatprep.subr.mxu0 0.0
  %9455 = vmatpush1.xpose.msra.mxu0 0.0
  %9456 = vmatprep.subr.mxu0 0.0
  %9457 = vmatpush1.xpose.msra.mxu0 0.0
  %9458 = vmatprep.subr.mxu0 0.0
  %9459 = vmatpush1.xpose.msra.mxu0 0.0
  %9460 = vmatprep.subr.mxu0 0.0
  %9461 = vmatpush1.xpose.msra.mxu0 0.0
  %9462 = vmatprep.subr.mxu0 0.0
  %9463 = vmatpush1.xpose.msra.mxu0 0.0
  %9464 = vmatprep.subr.mxu0 0.0
  %9465 = vmatpush1.xpose.msra.mxu0 0.0
  %9466 = vmatprep.subr.mxu0 0.0
  %9467 = vmatpush1.xpose.msra.mxu0 0.0
  %9468 = vmatprep.subr.mxu0 0.0
  %9469 = vmatpush1.xpose.msra.mxu0 0.0
  %9470 = vmatprep.subr.mxu0 0.0
  %9471 = vmatpush1.xpose.msra.mxu0 0.0
  %9472 = vmatprep.subr.mxu0 0.0
  %9473 = vmatpush1.xpose.msra.mxu0 0.0
  %9474 = vmatprep.subr.mxu0 0.0
  %9475 = vmatpush1.xpose.msra.mxu0 0.0
  %9476 = vmatprep.subr.mxu0 0.0
  %9477 = vmatpush1.xpose.msra.mxu0 0.0
  %9478 = vmatprep.subr.mxu0 0.0
  %9479 = vmatpush1.xpose.msra.mxu0 %v9446
  %9480 = vmatprep.subr.mxu0 0.0
  %9481 = vmatpush2.xpose.msra.mxu0 0.0
  %9482 = vmatprep.subr.mxu0 0.0
  %9483 = vmatpush2.xpose.msra.mxu0 0.0
  %9484 = vmatprep.subr.mxu0 0.0
  %9485 = vmatpush2.xpose.msra.mxu0 0.0
  %9486 = vmatprep.subr.mxu0 0.0
  %9487 = vmatpush2.xpose.msra.mxu0 0.0
  %9488 = vmatprep.subr.mxu0 0.0
  %9489 = vmatpush2.xpose.msra.mxu0 0.0
  %9490 = vmatprep.subr.mxu0 0.0
  %9491 = vmatpush2.xpose.msra.mxu0 0.0
  %9492 = vmatprep.subr.mxu0 0.0
  %9493 = vmatpush2.xpose.msra.mxu0 0.0
  %9494 = vmatprep.subr.mxu0 0.0
  %9495 = vmatpush2.xpose.msra.mxu0 0.0
  %9496 = vmatprep.subr.mxu0 0.0
  %9497 = vmatpush2.xpose.msra.mxu0 0.0
  %9498 = vmatprep.subr.mxu0 0.0
  %9499 = vmatpush2.xpose.msra.mxu0 0.0
  %9500 = vmatprep.subr.mxu0 0.0
  %9501 = vmatpush2.xpose.msra.mxu0 0.0
  %9502 = vmatprep.subr.mxu0 0.0
  %9503 = vmatpush2.xpose.msra.mxu0 0.0
  %9504 = vmatprep.subr.mxu0 0.0
  %9505 = vmatpush2.xpose.msra.mxu0 0.0
  %9506 = vmatprep.subr.mxu0 0.0
  %9507 = vmatpush2.xpose.msra.mxu0 0.0
  %9508 = vmatprep.subr.mxu0 0.0
  %9509 = vmatpush2.xpose.msra.mxu0 0.0
  %9510 = vmatprep.subr.mxu0 0.0
  %9511 = vmatpush2.xpose.msra.mxu0 0.0
  %9512 = vmatprep.mubr.f32.mxu0 0.0
  %9513 = vmatmul.mubr.f32.gmra.mxu0 %v9443
  %v9514 = vpop.f32.mrf.mxu0
  %v9515 = vadd.f32 0.0, %v9514
  %v9516 = vpop.f32.mrf.mxu0
  %9517 = vdwg.mxu0
  %v9518 = vsel %vm8826, %v9440, -inf
  %9519 = vmax.xlane.f32.xlu0 %v9518
  %v9520 = vpop.xlane.xlu0 %9519
  %v9521 = vsel %vm8826, %v9515, -inf
  %9522 = vmax.xlane.f32.xlu0 %v9521
  %v9523 = vpop.xlane.xlu0 %9522
  %v9524 = vsub.f32 %v9440, %v9520
  %v9525 = vsub.f32 %v9515, %v9523
  %v9526 = vmul.f32 %v9524, 1.442695
  %v9527 = vpow.pop %v9526
  %v9528 = vmul.f32 %v9525, 1.442695
  %v9529 = vpow.pop %v9528
  %v9530 = vsel %vm8826, %v9527, 0.0
  %9531 = vadd.xlane.f32.xlu0 %v9530
  %v9532 = vpop.xlane.xlu0 %9531
  %v9533 = vsel %vm8826, %v9529, 0.0
  %9534 = vadd.xlane.f32.xlu0 %v9533
  %v9535 = vpop.xlane.xlu0 %9534
  %v9536 = vrcp.pop %v9532
  %v9537 = vmul.f32 %v9527, %v9536
  %v9538 = vrcp.pop %v9535
  %v9539 = vmul.f32 %v9529, %v9538
  %v9541 = vsel %vm580, %v9537, 0
  %9543 = vmatprep.subr.mxu0 0.0
  %9544 = vmatpush1.msra.mxu0 0.0
  %9545 = vmatprep.subr.mxu0 0.0
  %9546 = vmatpush1.msra.mxu0 0.0
  %9547 = vmatprep.subr.mxu0 0.0
  %9548 = vmatpush1.msra.mxu0 0.0
  %9549 = vmatprep.subr.mxu0 0.0
  %9550 = vmatpush1.msra.mxu0 0.0
  %9551 = vmatprep.subr.mxu0 0.0
  %9552 = vmatpush1.msra.mxu0 0.0
  %9553 = vmatprep.subr.mxu0 0.0
  %9554 = vmatpush1.msra.mxu0 0.0
  %9555 = vmatprep.subr.mxu0 0.0
  %9556 = vmatpush1.msra.mxu0 0.0
  %9557 = vmatprep.subr.mxu0 0.0
  %9558 = vmatpush1.msra.mxu0 0.0
  %9559 = vmatprep.subr.mxu0 0.0
  %9560 = vmatpush1.msra.mxu0 0.0
  %9561 = vmatprep.subr.mxu0 0.0
  %9562 = vmatpush1.msra.mxu0 0.0
  %9563 = vmatprep.subr.mxu0 0.0
  %9564 = vmatpush1.msra.mxu0 0.0
  %9565 = vmatprep.subr.mxu0 0.0
  %9566 = vmatpush1.msra.mxu0 0.0
  %9567 = vmatprep.subr.mxu0 0.0
  %9568 = vmatpush1.msra.mxu0 0.0
  %9569 = vmatprep.subr.mxu0 0.0
  %9570 = vmatpush1.msra.mxu0 0.0
  %9571 = vmatprep.subr.mxu0 0.0
  %9572 = vmatpush1.msra.mxu0 0.0
  %9573 = vmatprep.subr.mxu0 0.0
  %9574 = vmatpush1.msra.mxu0 %v9360
  %9575 = vmatprep.subr.mxu0 0.0
  %9576 = vmatpush2.msra.mxu0 0.0
  %9577 = vmatprep.subr.mxu0 0.0
  %9578 = vmatpush2.msra.mxu0 0.0
  %9579 = vmatprep.subr.mxu0 0.0
  %9580 = vmatpush2.msra.mxu0 0.0
  %9581 = vmatprep.subr.mxu0 0.0
  %9582 = vmatpush2.msra.mxu0 0.0
  %9583 = vmatprep.subr.mxu0 0.0
  %9584 = vmatpush2.msra.mxu0 0.0
  %9585 = vmatprep.subr.mxu0 0.0
  %9586 = vmatpush2.msra.mxu0 0.0
  %9587 = vmatprep.subr.mxu0 0.0
  %9588 = vmatpush2.msra.mxu0 0.0
  %9589 = vmatprep.subr.mxu0 0.0
  %9590 = vmatpush2.msra.mxu0 0.0
  %9591 = vmatprep.subr.mxu0 0.0
  %9592 = vmatpush2.msra.mxu0 0.0
  %9593 = vmatprep.subr.mxu0 0.0
  %9594 = vmatpush2.msra.mxu0 0.0
  %9595 = vmatprep.subr.mxu0 0.0
  %9596 = vmatpush2.msra.mxu0 0.0
  %9597 = vmatprep.subr.mxu0 0.0
  %9598 = vmatpush2.msra.mxu0 0.0
  %9599 = vmatprep.subr.mxu0 0.0
  %9600 = vmatpush2.msra.mxu0 0.0
  %9601 = vmatprep.subr.mxu0 0.0
  %9602 = vmatpush2.msra.mxu0 0.0
  %9603 = vmatprep.subr.mxu0 0.0
  %9604 = vmatpush2.msra.mxu0 0.0
  %9605 = vmatprep.subr.mxu0 0.0
  %9606 = vmatpush2.msra.mxu0 0.0
  %9607 = vmatprep.mubr.f32.mxu0 0.0
  %9608 = vmatmul.mubr.f32.gmra.mxu0 %v9541
  %v9609 = vpop.f32.mrf.mxu0
  %v9610 = vadd.f32 0.0, %v9609
  %v9611 = vpop.f32.mrf.mxu0
  %9612 = vdwg.mxu0
  %v9614 = vsel %vm580, %v9539, 0
  %9616 = vmatprep.subr.mxu0 0.0
  %9617 = vmatpush1.msra.mxu0 0.0
  %9618 = vmatprep.subr.mxu0 0.0
  %9619 = vmatpush1.msra.mxu0 0.0
  %9620 = vmatprep.subr.mxu0 0.0
  %9621 = vmatpush1.msra.mxu0 0.0
  %9622 = vmatprep.subr.mxu0 0.0
  %9623 = vmatpush1.msra.mxu0 0.0
  %9624 = vmatprep.subr.mxu0 0.0
  %9625 = vmatpush1.msra.mxu0 0.0
  %9626 = vmatprep.subr.mxu0 0.0
  %9627 = vmatpush1.msra.mxu0 0.0
  %9628 = vmatprep.subr.mxu0 0.0
  %9629 = vmatpush1.msra.mxu0 0.0
  %9630 = vmatprep.subr.mxu0 0.0
  %9631 = vmatpush1.msra.mxu0 0.0
  %9632 = vmatprep.subr.mxu0 0.0
  %9633 = vmatpush1.msra.mxu0 0.0
  %9634 = vmatprep.subr.mxu0 0.0
  %9635 = vmatpush1.msra.mxu0 0.0
  %9636 = vmatprep.subr.mxu0 0.0
  %9637 = vmatpush1.msra.mxu0 0.0
  %9638 = vmatprep.subr.mxu0 0.0
  %9639 = vmatpush1.msra.mxu0 0.0
  %9640 = vmatprep.subr.mxu0 0.0
  %9641 = vmatpush1.msra.mxu0 0.0
  %9642 = vmatprep.subr.mxu0 0.0
  %9643 = vmatpush1.msra.mxu0 0.0
  %9644 = vmatprep.subr.mxu0 0.0
  %9645 = vmatpush1.msra.mxu0 0.0
  %9646 = vmatprep.subr.mxu0 0.0
  %9647 = vmatpush1.msra.mxu0 %v9365
  %9648 = vmatprep.subr.mxu0 0.0
  %9649 = vmatpush2.msra.mxu0 0.0
  %9650 = vmatprep.subr.mxu0 0.0
  %9651 = vmatpush2.msra.mxu0 0.0
  %9652 = vmatprep.subr.mxu0 0.0
  %9653 = vmatpush2.msra.mxu0 0.0
  %9654 = vmatprep.subr.mxu0 0.0
  %9655 = vmatpush2.msra.mxu0 0.0
  %9656 = vmatprep.subr.mxu0 0.0
  %9657 = vmatpush2.msra.mxu0 0.0
  %9658 = vmatprep.subr.mxu0 0.0
  %9659 = vmatpush2.msra.mxu0 0.0
  %9660 = vmatprep.subr.mxu0 0.0
  %9661 = vmatpush2.msra.mxu0 0.0
  %9662 = vmatprep.subr.mxu0 0.0
  %9663 = vmatpush2.msra.mxu0 0.0
  %9664 = vmatprep.subr.mxu0 0.0
  %9665 = vmatpush2.msra.mxu0 0.0
  %9666 = vmatprep.subr.mxu0 0.0
  %9667 = vmatpush2.msra.mxu0 0.0
  %9668 = vmatprep.subr.mxu0 0.0
  %9669 = vmatpush2.msra.mxu0 0.0
  %9670 = vmatprep.subr.mxu0 0.0
  %9671 = vmatpush2.msra.mxu0 0.0
  %9672 = vmatprep.subr.mxu0 0.0
  %9673 = vmatpush2.msra.mxu0 0.0
  %9674 = vmatprep.subr.mxu0 0.0
  %9675 = vmatpush2.msra.mxu0 0.0
  %9676 = vmatprep.subr.mxu0 0.0
  %9677 = vmatpush2.msra.mxu0 0.0
  %9678 = vmatprep.subr.mxu0 0.0
  %9679 = vmatpush2.msra.mxu0 0.0
  %9680 = vmatprep.mubr.f32.mxu0 0.0
  %9681 = vmatmul.mubr.f32.gmra.mxu0 %v9614
  %v9682 = vpop.f32.mrf.mxu0
  %v9683 = vadd.f32 0.0, %v9682
  %v9684 = vpop.f32.mrf.mxu0
  %9685 = vdwg.mxu0
  %s9686 = scalar_lea.vmem %s8, 28
  %v9687 = vld [vmem:[%s9686] sm:$0x7]
  %v9690 = vrot.slane %v9683, 7
  %v9691 = vsel %vm8394, %v9690, %v9610
  %v9692 = vsel %vm427, %v9691, 0
  %v9695 = vsel %vm756, %v9687, 0
  %9697 = vmatprep.subr.mxu0 0.0
  %9698 = vmatpush1.msra.mxu0 0.0
  %9699 = vmatprep.subr.mxu0 0.0
  %9700 = vmatpush1.msra.mxu0 0.0
  %9701 = vmatprep.subr.mxu0 0.0
  %9702 = vmatpush1.msra.mxu0 0.0
  %9703 = vmatprep.subr.mxu0 0.0
  %9704 = vmatpush1.msra.mxu0 0.0
  %9705 = vmatprep.subr.mxu0 0.0
  %9706 = vmatpush1.msra.mxu0 0.0
  %9707 = vmatprep.subr.mxu0 0.0
  %9708 = vmatpush1.msra.mxu0 0.0
  %9709 = vmatprep.subr.mxu0 0.0
  %9710 = vmatpush1.msra.mxu0 0.0
  %9711 = vmatprep.subr.mxu0 0.0
  %9712 = vmatpush1.msra.mxu0 0.0
  %9713 = vmatprep.subr.mxu0 0.0
  %9714 = vmatpush1.msra.mxu0 0.0
  %9715 = vmatprep.subr.mxu0 0.0
  %9716 = vmatpush1.msra.mxu0 0.0
  %9717 = vmatprep.subr.mxu0 0.0
  %9718 = vmatpush1.msra.mxu0 0.0
  %9719 = vmatprep.subr.mxu0 0.0
  %9720 = vmatpush1.msra.mxu0 0.0
  %9721 = vmatprep.subr.mxu0 0.0
  %9722 = vmatpush1.msra.mxu0 0.0
  %9723 = vmatprep.subr.mxu0 0.0
  %9724 = vmatpush1.msra.mxu0 0.0
  %9725 = vmatprep.subr.mxu0 0.0
  %9726 = vmatpush1.msra.mxu0 0.0
  %9727 = vmatprep.subr.mxu0 0.0
  %9728 = vmatpush1.msra.mxu0 %v9695
  %9729 = vmatprep.subr.mxu0 0.0
  %9730 = vmatpush2.msra.mxu0 0.0
  %9731 = vmatprep.subr.mxu0 0.0
  %9732 = vmatpush2.msra.mxu0 0.0
  %9733 = vmatprep.subr.mxu0 0.0
  %9734 = vmatpush2.msra.mxu0 0.0
  %9735 = vmatprep.subr.mxu0 0.0
  %9736 = vmatpush2.msra.mxu0 0.0
  %9737 = vmatprep.subr.mxu0 0.0
  %9738 = vmatpush2.msra.mxu0 0.0
  %9739 = vmatprep.subr.mxu0 0.0
  %9740 = vmatpush2.msra.mxu0 0.0
  %9741 = vmatprep.subr.mxu0 0.0
  %9742 = vmatpush2.msra.mxu0 0.0
  %9743 = vmatprep.subr.mxu0 0.0
  %9744 = vmatpush2.msra.mxu0 0.0
  %9745 = vmatprep.subr.mxu0 0.0
  %9746 = vmatpush2.msra.mxu0 0.0
  %9747 = vmatprep.subr.mxu0 0.0
  %9748 = vmatpush2.msra.mxu0 0.0
  %9749 = vmatprep.subr.mxu0 0.0
  %9750 = vmatpush2.msra.mxu0 0.0
  %9751 = vmatprep.subr.mxu0 0.0
  %9752 = vmatpush2.msra.mxu0 0.0
  %9753 = vmatprep.subr.mxu0 0.0
  %9754 = vmatpush2.msra.mxu0 0.0
  %9755 = vmatprep.subr.mxu0 0.0
  %9756 = vmatpush2.msra.mxu0 0.0
  %9757 = vmatprep.subr.mxu0 0.0
  %9758 = vmatpush2.msra.mxu0 0.0
  %9759 = vmatprep.subr.mxu0 0.0
  %9760 = vmatpush2.msra.mxu0 0.0
  %9761 = vmatprep.mubr.f32.mxu0 0.0
  %9762 = vmatmul.mubr.f32.gmra.mxu0 %v9692
  %v9763 = vpop.f32.mrf.mxu0
  %v9764 = vadd.f32 0.0, %v9763
  %v9765 = vpop.f32.mrf.mxu0
  %9766 = vdwg.mxu0
  %v9767 = vadd.f32 %v9082, %v9764
  %s9768 = scalar_lea.vmem %s2, 128
  %v9769 = vld [vmem:[%s9768] sm:$0xff]
  %v9770 = vld [vmem:[%s9768 + $0x8] sm:$0x1]
  %s9771 = scalar_lea.vmem %s3, 8
  %v9772 = vld [vmem:[%s9771] sm:$0x1]
  %v9774 = vlaneseq
  %v9775 = vshrl.u32 %v9774, 7
  %v9776 = vsub.s32 0, %v9775
  %v9777 = vrot.slane %v9772, %v9776
  %v9780 = vsel %vm174, %v9770, 0
  %9782 = vmatprep.subr.mxu0 0.0
  %9783 = vmatpush1.msra.mxu0 0.0
  %9784 = vmatprep.subr.mxu0 0.0
  %9785 = vmatpush1.msra.mxu0 0.0
  %9786 = vmatprep.subr.mxu0 0.0
  %9787 = vmatpush1.msra.mxu0 0.0
  %9788 = vmatprep.subr.mxu0 0.0
  %9789 = vmatpush1.msra.mxu0 0.0
  %9790 = vmatprep.subr.mxu0 0.0
  %9791 = vmatpush1.msra.mxu0 0.0
  %9792 = vmatprep.subr.mxu0 0.0
  %9793 = vmatpush1.msra.mxu0 0.0
  %9794 = vmatprep.subr.mxu0 0.0
  %9795 = vmatpush1.msra.mxu0 0.0
  %9796 = vmatprep.subr.mxu0 0.0
  %9797 = vmatpush1.msra.mxu0 0.0
  %9798 = vmatprep.subr.mxu0 0.0
  %9799 = vmatpush1.msra.mxu0 0.0
  %9800 = vmatprep.subr.mxu0 0.0
  %9801 = vmatpush1.msra.mxu0 0.0
  %9802 = vmatprep.subr.mxu0 0.0
  %9803 = vmatpush1.msra.mxu0 0.0
  %9804 = vmatprep.subr.mxu0 0.0
  %9805 = vmatpush1.msra.mxu0 0.0
  %9806 = vmatprep.subr.mxu0 0.0
  %9807 = vmatpush1.msra.mxu0 0.0
  %9808 = vmatprep.subr.mxu0 0.0
  %9809 = vmatpush1.msra.mxu0 0.0
  %9810 = vmatprep.subr.mxu0 0.0
  %9811 = vmatpush1.msra.mxu0 %v9780
  %9812 = vmatprep.subr.mxu0 0.0
  %9813 = vmatpush1.msra.mxu0 %v9769
  %9814 = vmatprep.subr.mxu0 0.0
  %9815 = vmatpush2.msra.mxu0 0.0
  %9816 = vmatprep.subr.mxu0 0.0
  %9817 = vmatpush2.msra.mxu0 0.0
  %9818 = vmatprep.subr.mxu0 0.0
  %9819 = vmatpush2.msra.mxu0 0.0
  %9820 = vmatprep.subr.mxu0 0.0
  %9821 = vmatpush2.msra.mxu0 0.0
  %9822 = vmatprep.subr.mxu0 0.0
  %9823 = vmatpush2.msra.mxu0 0.0
  %9824 = vmatprep.subr.mxu0 0.0
  %9825 = vmatpush2.msra.mxu0 0.0
  %9826 = vmatprep.subr.mxu0 0.0
  %9827 = vmatpush2.msra.mxu0 0.0
  %9828 = vmatprep.subr.mxu0 0.0
  %9829 = vmatpush2.msra.mxu0 0.0
  %9830 = vmatprep.subr.mxu0 0.0
  %9831 = vmatpush2.msra.mxu0 0.0
  %9832 = vmatprep.subr.mxu0 0.0
  %9833 = vmatpush2.msra.mxu0 0.0
  %9834 = vmatprep.subr.mxu0 0.0
  %9835 = vmatpush2.msra.mxu0 0.0
  %9836 = vmatprep.subr.mxu0 0.0
  %9837 = vmatpush2.msra.mxu0 0.0
  %9838 = vmatprep.subr.mxu0 0.0
  %9839 = vmatpush2.msra.mxu0 0.0
  %9840 = vmatprep.subr.mxu0 0.0
  %9841 = vmatpush2.msra.mxu0 0.0
  %9842 = vmatprep.subr.mxu0 0.0
  %9843 = vmatpush2.msra.mxu0 0.0
  %9844 = vmatprep.subr.mxu0 0.0
  %9845 = vmatpush2.msra.mxu0 0.0
  %9846 = vmatprep.mubr.f32.mxu0 0.0
  %9847 = vmatmul.mubr.f32.gmra.mxu0 %v8396
  %v9848 = vpop.f32.mrf.mxu0
  %v9849 = vadd.f32 %v9777, %v9848
  %v9850 = vpop.f32.mrf.mxu0
  %9851 = vdwg.mxu0
  %v9854 = vunpack.c.l.s4 1966171168
  %v9855 = vunpack.c.0.s8 %v9854
  %v9856 = vlaneseq
  %v9857 = vshrl.u32 %v9856, 7
  %v9858 = vsub.s32 %v9855, %v9857
  %v9859 = vrot.slane %v9849, %v9858
  %v9860 = vcombine.high %v9859, %v9859
  %v9862 = vunpack.c.l.s4 1966171168
  %v9863 = vunpack.c.0.s8 %v9862
  %v9864 = vlaneseq
  %v9865 = vshrl.u32 %v9864, 7
  %v9866 = vsub.s32 %v9863, %v9865
  %v9867 = vrot.slane %v9859, %v9866
  %v9869 = vunpack.c.l.s4 1966171168
  %v9870 = vunpack.c.0.s8 %v9869
  %v9871 = vlaneseq
  %v9872 = vshrl.u32 %v9871, 7
  %v9873 = vsub.s32 %v9870, %v9872
  %v9874 = vrot.slane %v9860, %v9873
  %s9875 = scalar_lea.vmem %s4, 128
  %v9876 = vld [vmem:[%s9875] sm:$0xff]
  %v9877 = vld [vmem:[%s9875 + $0x8] sm:$0x1]
  %s9878 = scalar_lea.vmem %s5, 8
  %v9879 = vld [vmem:[%s9878] sm:$0x1]
  %v9881 = vlaneseq
  %v9882 = vshrl.u32 %v9881, 7
  %v9883 = vsub.s32 0, %v9882
  %v9884 = vrot.slane %v9879, %v9883
  %v9887 = vsel %vm174, %v9877, 0
  %9889 = vmatprep.subr.mxu0 0.0
  %9890 = vmatpush1.msra.mxu0 0.0
  %9891 = vmatprep.subr.mxu0 0.0
  %9892 = vmatpush1.msra.mxu0 0.0
  %9893 = vmatprep.subr.mxu0 0.0
  %9894 = vmatpush1.msra.mxu0 0.0
  %9895 = vmatprep.subr.mxu0 0.0
  %9896 = vmatpush1.msra.mxu0 0.0
  %9897 = vmatprep.subr.mxu0 0.0
  %9898 = vmatpush1.msra.mxu0 0.0
  %9899 = vmatprep.subr.mxu0 0.0
  %9900 = vmatpush1.msra.mxu0 0.0
  %9901 = vmatprep.subr.mxu0 0.0
  %9902 = vmatpush1.msra.mxu0 0.0
  %9903 = vmatprep.subr.mxu0 0.0
  %9904 = vmatpush1.msra.mxu0 0.0
  %9905 = vmatprep.subr.mxu0 0.0
  %9906 = vmatpush1.msra.mxu0 0.0
  %9907 = vmatprep.subr.mxu0 0.0
  %9908 = vmatpush1.msra.mxu0 0.0
  %9909 = vmatprep.subr.mxu0 0.0
  %9910 = vmatpush1.msra.mxu0 0.0
  %9911 = vmatprep.subr.mxu0 0.0
  %9912 = vmatpush1.msra.mxu0 0.0
  %9913 = vmatprep.subr.mxu0 0.0
  %9914 = vmatpush1.msra.mxu0 0.0
  %9915 = vmatprep.subr.mxu0 0.0
  %9916 = vmatpush1.msra.mxu0 0.0
  %9917 = vmatprep.subr.mxu0 0.0
  %9918 = vmatpush1.msra.mxu0 %v9887
  %9919 = vmatprep.subr.mxu0 0.0
  %9920 = vmatpush1.msra.mxu0 %v9876
  %9921 = vmatprep.subr.mxu0 0.0
  %9922 = vmatpush2.msra.mxu0 0.0
  %9923 = vmatprep.subr.mxu0 0.0
  %9924 = vmatpush2.msra.mxu0 0.0
  %9925 = vmatprep.subr.mxu0 0.0
  %9926 = vmatpush2.msra.mxu0 0.0
  %9927 = vmatprep.subr.mxu0 0.0
  %9928 = vmatpush2.msra.mxu0 0.0
  %9929 = vmatprep.subr.mxu0 0.0
  %9930 = vmatpush2.msra.mxu0 0.0
  %9931 = vmatprep.subr.mxu0 0.0
  %9932 = vmatpush2.msra.mxu0 0.0
  %9933 = vmatprep.subr.mxu0 0.0
  %9934 = vmatpush2.msra.mxu0 0.0
  %9935 = vmatprep.subr.mxu0 0.0
  %9936 = vmatpush2.msra.mxu0 0.0
  %9937 = vmatprep.subr.mxu0 0.0
  %9938 = vmatpush2.msra.mxu0 0.0
  %9939 = vmatprep.subr.mxu0 0.0
  %9940 = vmatpush2.msra.mxu0 0.0
  %9941 = vmatprep.subr.mxu0 0.0
  %9942 = vmatpush2.msra.mxu0 0.0
  %9943 = vmatprep.subr.mxu0 0.0
  %9944 = vmatpush2.msra.mxu0 0.0
  %9945 = vmatprep.subr.mxu0 0.0
  %9946 = vmatpush2.msra.mxu0 0.0
  %9947 = vmatprep.subr.mxu0 0.0
  %9948 = vmatpush2.msra.mxu0 0.0
  %9949 = vmatprep.subr.mxu0 0.0
  %9950 = vmatpush2.msra.mxu0 0.0
  %9951 = vmatprep.subr.mxu0 0.0
  %9952 = vmatpush2.msra.mxu0 0.0
  %9953 = vmatprep.mubr.f32.mxu0 0.0
  %9954 = vmatmul.mubr.f32.gmra.mxu0 %v8505
  %v9955 = vpop.f32.mrf.mxu0
  %v9956 = vadd.f32 %v9884, %v9955
  %v9957 = vpop.f32.mrf.mxu0
  %9958 = vmatprep.mubr.f32.mxu0 0.0
  %9959 = vmatmul.mubr.f32.gmra.mxu0 %v8507
  %v9960 = vpop.f32.mrf.mxu0
  %v9961 = vadd.f32 %v9884, %v9960
  %v9962 = vpop.f32.mrf.mxu0
  %9963 = vdwg.mxu0
  %s9964 = scalar_lea.vmem %s6, 128
  %v9965 = vld [vmem:[%s9964] sm:$0xff]
  %v9966 = vld [vmem:[%s9964 + $0x8] sm:$0x1]
  %s9967 = scalar_lea.vmem %s7, 8
  %v9968 = vld [vmem:[%s9967] sm:$0x1]
  %v9970 = vlaneseq
  %v9971 = vshrl.u32 %v9970, 7
  %v9972 = vsub.s32 0, %v9971
  %v9973 = vrot.slane %v9968, %v9972
  %v9976 = vsel %vm174, %v9966, 0
  %9978 = vmatprep.subr.mxu0 0.0
  %9979 = vmatpush1.msra.mxu0 0.0
  %9980 = vmatprep.subr.mxu0 0.0
  %9981 = vmatpush1.msra.mxu0 0.0
  %9982 = vmatprep.subr.mxu0 0.0
  %9983 = vmatpush1.msra.mxu0 0.0
  %9984 = vmatprep.subr.mxu0 0.0
  %9985 = vmatpush1.msra.mxu0 0.0
  %9986 = vmatprep.subr.mxu0 0.0
  %9987 = vmatpush1.msra.mxu0 0.0
  %9988 = vmatprep.subr.mxu0 0.0
  %9989 = vmatpush1.msra.mxu0 0.0
  %9990 = vmatprep.subr.mxu0 0.0
  %9991 = vmatpush1.msra.mxu0 0.0
  %9992 = vmatprep.subr.mxu0 0.0
  %9993 = vmatpush1.msra.mxu0 0.0
  %9994 = vmatprep.subr.mxu0 0.0
  %9995 = vmatpush1.msra.mxu0 0.0
  %9996 = vmatprep.subr.mxu0 0.0
  %9997 = vmatpush1.msra.mxu0 0.0
  %9998 = vmatprep.subr.mxu0 0.0
  %9999 = vmatpush1.msra.mxu0 0.0
  %10000 = vmatprep.subr.mxu0 0.0
  %10001 = vmatpush1.msra.mxu0 0.0
  %10002 = vmatprep.subr.mxu0 0.0
  %10003 = vmatpush1.msra.mxu0 0.0
  %10004 = vmatprep.subr.mxu0 0.0
  %10005 = vmatpush1.msra.mxu0 0.0
  %10006 = vmatprep.subr.mxu0 0.0
  %10007 = vmatpush1.msra.mxu0 %v9976
  %10008 = vmatprep.subr.mxu0 0.0
  %10009 = vmatpush1.msra.mxu0 %v9965
  %10010 = vmatprep.subr.mxu0 0.0
  %10011 = vmatpush2.msra.mxu0 0.0
  %10012 = vmatprep.subr.mxu0 0.0
  %10013 = vmatpush2.msra.mxu0 0.0
  %10014 = vmatprep.subr.mxu0 0.0
  %10015 = vmatpush2.msra.mxu0 0.0
  %10016 = vmatprep.subr.mxu0 0.0
  %10017 = vmatpush2.msra.mxu0 0.0
  %10018 = vmatprep.subr.mxu0 0.0
  %10019 = vmatpush2.msra.mxu0 0.0
  %10020 = vmatprep.subr.mxu0 0.0
  %10021 = vmatpush2.msra.mxu0 0.0
  %10022 = vmatprep.subr.mxu0 0.0
  %10023 = vmatpush2.msra.mxu0 0.0
  %10024 = vmatprep.subr.mxu0 0.0
  %10025 = vmatpush2.msra.mxu0 0.0
  %10026 = vmatprep.subr.mxu0 0.0
  %10027 = vmatpush2.msra.mxu0 0.0
  %10028 = vmatprep.subr.mxu0 0.0
  %10029 = vmatpush2.msra.mxu0 0.0
  %10030 = vmatprep.subr.mxu0 0.0
  %10031 = vmatpush2.msra.mxu0 0.0
  %10032 = vmatprep.subr.mxu0 0.0
  %10033 = vmatpush2.msra.mxu0 0.0
  %10034 = vmatprep.subr.mxu0 0.0
  %10035 = vmatpush2.msra.mxu0 0.0
  %10036 = vmatprep.subr.mxu0 0.0
  %10037 = vmatpush2.msra.mxu0 0.0
  %10038 = vmatprep.subr.mxu0 0.0
  %10039 = vmatpush2.msra.mxu0 0.0
  %10040 = vmatprep.subr.mxu0 0.0
  %10041 = vmatpush2.msra.mxu0 0.0
  %10042 = vmatprep.mubr.f32.mxu0 0.0
  %10043 = vmatmul.mubr.f32.gmra.mxu0 %v8505
  %v10044 = vpop.f32.mrf.mxu0
  %v10045 = vadd.f32 %v9973, %v10044
  %v10046 = vpop.f32.mrf.mxu0
  %10047 = vmatprep.mubr.f32.mxu0 0.0
  %10048 = vmatmul.mubr.f32.gmra.mxu0 %v8507
  %v10049 = vpop.f32.mrf.mxu0
  %v10050 = vadd.f32 %v9973, %v10049
  %v10051 = vpop.f32.mrf.mxu0
  %10052 = vdwg.mxu0
  %v10053 = vsel %vm427, %v9867, 0
  %v10056 = vsel %vm427, %v9956, 0
  %10058 = vmatprep.subr.mxu0 0.0
  %10059 = vmatpush1.xpose.msra.mxu0 0.0
  %10060 = vmatprep.subr.mxu0 0.0
  %10061 = vmatpush1.xpose.msra.mxu0 0.0
  %10062 = vmatprep.subr.mxu0 0.0
  %10063 = vmatpush1.xpose.msra.mxu0 0.0
  %10064 = vmatprep.subr.mxu0 0.0
  %10065 = vmatpush1.xpose.msra.mxu0 0.0
  %10066 = vmatprep.subr.mxu0 0.0
  %10067 = vmatpush1.xpose.msra.mxu0 0.0
  %10068 = vmatprep.subr.mxu0 0.0
  %10069 = vmatpush1.xpose.msra.mxu0 0.0
  %10070 = vmatprep.subr.mxu0 0.0
  %10071 = vmatpush1.xpose.msra.mxu0 0.0
  %10072 = vmatprep.subr.mxu0 0.0
  %10073 = vmatpush1.xpose.msra.mxu0 0.0
  %10074 = vmatprep.subr.mxu0 0.0
  %10075 = vmatpush1.xpose.msra.mxu0 0.0
  %10076 = vmatprep.subr.mxu0 0.0
  %10077 = vmatpush1.xpose.msra.mxu0 0.0
  %10078 = vmatprep.subr.mxu0 0.0
  %10079 = vmatpush1.xpose.msra.mxu0 0.0
  %10080 = vmatprep.subr.mxu0 0.0
  %10081 = vmatpush1.xpose.msra.mxu0 0.0
  %10082 = vmatprep.subr.mxu0 0.0
  %10083 = vmatpush1.xpose.msra.mxu0 0.0
  %10084 = vmatprep.subr.mxu0 0.0
  %10085 = vmatpush1.xpose.msra.mxu0 0.0
  %10086 = vmatprep.subr.mxu0 0.0
  %10087 = vmatpush1.xpose.msra.mxu0 0.0
  %10088 = vmatprep.subr.mxu0 0.0
  %10089 = vmatpush1.xpose.msra.mxu0 %v10056
  %10090 = vmatprep.subr.mxu0 0.0
  %10091 = vmatpush2.xpose.msra.mxu0 0.0
  %10092 = vmatprep.subr.mxu0 0.0
  %10093 = vmatpush2.xpose.msra.mxu0 0.0
  %10094 = vmatprep.subr.mxu0 0.0
  %10095 = vmatpush2.xpose.msra.mxu0 0.0
  %10096 = vmatprep.subr.mxu0 0.0
  %10097 = vmatpush2.xpose.msra.mxu0 0.0
  %10098 = vmatprep.subr.mxu0 0.0
  %10099 = vmatpush2.xpose.msra.mxu0 0.0
  %10100 = vmatprep.subr.mxu0 0.0
  %10101 = vmatpush2.xpose.msra.mxu0 0.0
  %10102 = vmatprep.subr.mxu0 0.0
  %10103 = vmatpush2.xpose.msra.mxu0 0.0
  %10104 = vmatprep.subr.mxu0 0.0
  %10105 = vmatpush2.xpose.msra.mxu0 0.0
  %10106 = vmatprep.subr.mxu0 0.0
  %10107 = vmatpush2.xpose.msra.mxu0 0.0
  %10108 = vmatprep.subr.mxu0 0.0
  %10109 = vmatpush2.xpose.msra.mxu0 0.0
  %10110 = vmatprep.subr.mxu0 0.0
  %10111 = vmatpush2.xpose.msra.mxu0 0.0
  %10112 = vmatprep.subr.mxu0 0.0
  %10113 = vmatpush2.xpose.msra.mxu0 0.0
  %10114 = vmatprep.subr.mxu0 0.0
  %10115 = vmatpush2.xpose.msra.mxu0 0.0
  %10116 = vmatprep.subr.mxu0 0.0
  %10117 = vmatpush2.xpose.msra.mxu0 0.0
  %10118 = vmatprep.subr.mxu0 0.0
  %10119 = vmatpush2.xpose.msra.mxu0 0.0
  %10120 = vmatprep.subr.mxu0 0.0
  %10121 = vmatpush2.xpose.msra.mxu0 0.0
  %10122 = vmatprep.mubr.f32.mxu0 0.0
  %10123 = vmatmul.mubr.f32.gmra.mxu0 %v10053
  %v10124 = vpop.f32.mrf.mxu0
  %v10125 = vadd.f32 0.0, %v10124
  %v10126 = vpop.f32.mrf.mxu0
  %10127 = vdwg.mxu0
  %v10128 = vsel %vm427, %v9874, 0
  %v10131 = vsel %vm427, %v9961, 0
  %10133 = vmatprep.subr.mxu0 0.0
  %10134 = vmatpush1.xpose.msra.mxu0 0.0
  %10135 = vmatprep.subr.mxu0 0.0
  %10136 = vmatpush1.xpose.msra.mxu0 0.0
  %10137 = vmatprep.subr.mxu0 0.0
  %10138 = vmatpush1.xpose.msra.mxu0 0.0
  %10139 = vmatprep.subr.mxu0 0.0
  %10140 = vmatpush1.xpose.msra.mxu0 0.0
  %10141 = vmatprep.subr.mxu0 0.0
  %10142 = vmatpush1.xpose.msra.mxu0 0.0
  %10143 = vmatprep.subr.mxu0 0.0
  %10144 = vmatpush1.xpose.msra.mxu0 0.0
  %10145 = vmatprep.subr.mxu0 0.0
  %10146 = vmatpush1.xpose.msra.mxu0 0.0
  %10147 = vmatprep.subr.mxu0 0.0
  %10148 = vmatpush1.xpose.msra.mxu0 0.0
  %10149 = vmatprep.subr.mxu0 0.0
  %10150 = vmatpush1.xpose.msra.mxu0 0.0
  %10151 = vmatprep.subr.mxu0 0.0
  %10152 = vmatpush1.xpose.msra.mxu0 0.0
  %10153 = vmatprep.subr.mxu0 0.0
  %10154 = vmatpush1.xpose.msra.mxu0 0.0
  %10155 = vmatprep.subr.mxu0 0.0
  %10156 = vmatpush1.xpose.msra.mxu0 0.0
  %10157 = vmatprep.subr.mxu0 0.0
  %10158 = vmatpush1.xpose.msra.mxu0 0.0
  %10159 = vmatprep.subr.mxu0 0.0
  %10160 = vmatpush1.xpose.msra.mxu0 0.0
  %10161 = vmatprep.subr.mxu0 0.0
  %10162 = vmatpush1.xpose.msra.mxu0 0.0
  %10163 = vmatprep.subr.mxu0 0.0
  %10164 = vmatpush1.xpose.msra.mxu0 %v10131
  %10165 = vmatprep.subr.mxu0 0.0
  %10166 = vmatpush2.xpose.msra.mxu0 0.0
  %10167 = vmatprep.subr.mxu0 0.0
  %10168 = vmatpush2.xpose.msra.mxu0 0.0
  %10169 = vmatprep.subr.mxu0 0.0
  %10170 = vmatpush2.xpose.msra.mxu0 0.0
  %10171 = vmatprep.subr.mxu0 0.0
  %10172 = vmatpush2.xpose.msra.mxu0 0.0
  %10173 = vmatprep.subr.mxu0 0.0
  %10174 = vmatpush2.xpose.msra.mxu0 0.0
  %10175 = vmatprep.subr.mxu0 0.0
  %10176 = vmatpush2.xpose.msra.mxu0 0.0
  %10177 = vmatprep.subr.mxu0 0.0
  %10178 = vmatpush2.xpose.msra.mxu0 0.0
  %10179 = vmatprep.subr.mxu0 0.0
  %10180 = vmatpush2.xpose.msra.mxu0 0.0
  %10181 = vmatprep.subr.mxu0 0.0
  %10182 = vmatpush2.xpose.msra.mxu0 0.0
  %10183 = vmatprep.subr.mxu0 0.0
  %10184 = vmatpush2.xpose.msra.mxu0 0.0
  %10185 = vmatprep.subr.mxu0 0.0
  %10186 = vmatpush2.xpose.msra.mxu0 0.0
  %10187 = vmatprep.subr.mxu0 0.0
  %10188 = vmatpush2.xpose.msra.mxu0 0.0
  %10189 = vmatprep.subr.mxu0 0.0
  %10190 = vmatpush2.xpose.msra.mxu0 0.0
  %10191 = vmatprep.subr.mxu0 0.0
  %10192 = vmatpush2.xpose.msra.mxu0 0.0
  %10193 = vmatprep.subr.mxu0 0.0
  %10194 = vmatpush2.xpose.msra.mxu0 0.0
  %10195 = vmatprep.subr.mxu0 0.0
  %10196 = vmatpush2.xpose.msra.mxu0 0.0
  %10197 = vmatprep.mubr.f32.mxu0 0.0
  %10198 = vmatmul.mubr.f32.gmra.mxu0 %v10128
  %v10199 = vpop.f32.mrf.mxu0
  %v10200 = vadd.f32 0.0, %v10199
  %v10201 = vpop.f32.mrf.mxu0
  %10202 = vdwg.mxu0
  %v10203 = vsel %vm8826, %v10125, -inf
  %10204 = vmax.xlane.f32.xlu0 %v10203
  %v10205 = vpop.xlane.xlu0 %10204
  %v10206 = vsel %vm8826, %v10200, -inf
  %10207 = vmax.xlane.f32.xlu0 %v10206
  %v10208 = vpop.xlane.xlu0 %10207
  %v10209 = vsub.f32 %v10125, %v10205
  %v10210 = vsub.f32 %v10200, %v10208
  %v10211 = vmul.f32 %v10209, 1.442695
  %v10212 = vpow.pop %v10211
  %v10213 = vmul.f32 %v10210, 1.442695
  %v10214 = vpow.pop %v10213
  %v10215 = vsel %vm8826, %v10212, 0.0
  %10216 = vadd.xlane.f32.xlu0 %v10215
  %v10217 = vpop.xlane.xlu0 %10216
  %v10218 = vsel %vm8826, %v10214, 0.0
  %10219 = vadd.xlane.f32.xlu0 %v10218
  %v10220 = vpop.xlane.xlu0 %10219
  %v10221 = vrcp.pop %v10217
  %v10222 = vmul.f32 %v10212, %v10221
  %v10223 = vrcp.pop %v10220
  %v10224 = vmul.f32 %v10214, %v10223
  %v10226 = vsel %vm580, %v10222, 0
  %10228 = vmatprep.subr.mxu0 0.0
  %10229 = vmatpush1.msra.mxu0 0.0
  %10230 = vmatprep.subr.mxu0 0.0
  %10231 = vmatpush1.msra.mxu0 0.0
  %10232 = vmatprep.subr.mxu0 0.0
  %10233 = vmatpush1.msra.mxu0 0.0
  %10234 = vmatprep.subr.mxu0 0.0
  %10235 = vmatpush1.msra.mxu0 0.0
  %10236 = vmatprep.subr.mxu0 0.0
  %10237 = vmatpush1.msra.mxu0 0.0
  %10238 = vmatprep.subr.mxu0 0.0
  %10239 = vmatpush1.msra.mxu0 0.0
  %10240 = vmatprep.subr.mxu0 0.0
  %10241 = vmatpush1.msra.mxu0 0.0
  %10242 = vmatprep.subr.mxu0 0.0
  %10243 = vmatpush1.msra.mxu0 0.0
  %10244 = vmatprep.subr.mxu0 0.0
  %10245 = vmatpush1.msra.mxu0 0.0
  %10246 = vmatprep.subr.mxu0 0.0
  %10247 = vmatpush1.msra.mxu0 0.0
  %10248 = vmatprep.subr.mxu0 0.0
  %10249 = vmatpush1.msra.mxu0 0.0
  %10250 = vmatprep.subr.mxu0 0.0
  %10251 = vmatpush1.msra.mxu0 0.0
  %10252 = vmatprep.subr.mxu0 0.0
  %10253 = vmatpush1.msra.mxu0 0.0
  %10254 = vmatprep.subr.mxu0 0.0
  %10255 = vmatpush1.msra.mxu0 0.0
  %10256 = vmatprep.subr.mxu0 0.0
  %10257 = vmatpush1.msra.mxu0 0.0
  %10258 = vmatprep.subr.mxu0 0.0
  %10259 = vmatpush1.msra.mxu0 %v10045
  %10260 = vmatprep.subr.mxu0 0.0
  %10261 = vmatpush2.msra.mxu0 0.0
  %10262 = vmatprep.subr.mxu0 0.0
  %10263 = vmatpush2.msra.mxu0 0.0
  %10264 = vmatprep.subr.mxu0 0.0
  %10265 = vmatpush2.msra.mxu0 0.0
  %10266 = vmatprep.subr.mxu0 0.0
  %10267 = vmatpush2.msra.mxu0 0.0
  %10268 = vmatprep.subr.mxu0 0.0
  %10269 = vmatpush2.msra.mxu0 0.0
  %10270 = vmatprep.subr.mxu0 0.0
  %10271 = vmatpush2.msra.mxu0 0.0
  %10272 = vmatprep.subr.mxu0 0.0
  %10273 = vmatpush2.msra.mxu0 0.0
  %10274 = vmatprep.subr.mxu0 0.0
  %10275 = vmatpush2.msra.mxu0 0.0
  %10276 = vmatprep.subr.mxu0 0.0
  %10277 = vmatpush2.msra.mxu0 0.0
  %10278 = vmatprep.subr.mxu0 0.0
  %10279 = vmatpush2.msra.mxu0 0.0
  %10280 = vmatprep.subr.mxu0 0.0
  %10281 = vmatpush2.msra.mxu0 0.0
  %10282 = vmatprep.subr.mxu0 0.0
  %10283 = vmatpush2.msra.mxu0 0.0
  %10284 = vmatprep.subr.mxu0 0.0
  %10285 = vmatpush2.msra.mxu0 0.0
  %10286 = vmatprep.subr.mxu0 0.0
  %10287 = vmatpush2.msra.mxu0 0.0
  %10288 = vmatprep.subr.mxu0 0.0
  %10289 = vmatpush2.msra.mxu0 0.0
  %10290 = vmatprep.subr.mxu0 0.0
  %10291 = vmatpush2.msra.mxu0 0.0
  %10292 = vmatprep.mubr.f32.mxu0 0.0
  %10293 = vmatmul.mubr.f32.gmra.mxu0 %v10226
  %v10294 = vpop.f32.mrf.mxu0
  %v10295 = vadd.f32 0.0, %v10294
  %v10296 = vpop.f32.mrf.mxu0
  %10297 = vdwg.mxu0
  %v10299 = vsel %vm580, %v10224, 0
  %10301 = vmatprep.subr.mxu0 0.0
  %10302 = vmatpush1.msra.mxu0 0.0
  %10303 = vmatprep.subr.mxu0 0.0
  %10304 = vmatpush1.msra.mxu0 0.0
  %10305 = vmatprep.subr.mxu0 0.0
  %10306 = vmatpush1.msra.mxu0 0.0
  %10307 = vmatprep.subr.mxu0 0.0
  %10308 = vmatpush1.msra.mxu0 0.0
  %10309 = vmatprep.subr.mxu0 0.0
  %10310 = vmatpush1.msra.mxu0 0.0
  %10311 = vmatprep.subr.mxu0 0.0
  %10312 = vmatpush1.msra.mxu0 0.0
  %10313 = vmatprep.subr.mxu0 0.0
  %10314 = vmatpush1.msra.mxu0 0.0
  %10315 = vmatprep.subr.mxu0 0.0
  %10316 = vmatpush1.msra.mxu0 0.0
  %10317 = vmatprep.subr.mxu0 0.0
  %10318 = vmatpush1.msra.mxu0 0.0
  %10319 = vmatprep.subr.mxu0 0.0
  %10320 = vmatpush1.msra.mxu0 0.0
  %10321 = vmatprep.subr.mxu0 0.0
  %10322 = vmatpush1.msra.mxu0 0.0
  %10323 = vmatprep.subr.mxu0 0.0
  %10324 = vmatpush1.msra.mxu0 0.0
  %10325 = vmatprep.subr.mxu0 0.0
  %10326 = vmatpush1.msra.mxu0 0.0
  %10327 = vmatprep.subr.mxu0 0.0
  %10328 = vmatpush1.msra.mxu0 0.0
  %10329 = vmatprep.subr.mxu0 0.0
  %10330 = vmatpush1.msra.mxu0 0.0
  %10331 = vmatprep.subr.mxu0 0.0
  %10332 = vmatpush1.msra.mxu0 %v10050
  %10333 = vmatprep.subr.mxu0 0.0
  %10334 = vmatpush2.msra.mxu0 0.0
  %10335 = vmatprep.subr.mxu0 0.0
  %10336 = vmatpush2.msra.mxu0 0.0
  %10337 = vmatprep.subr.mxu0 0.0
  %10338 = vmatpush2.msra.mxu0 0.0
  %10339 = vmatprep.subr.mxu0 0.0
  %10340 = vmatpush2.msra.mxu0 0.0
  %10341 = vmatprep.subr.mxu0 0.0
  %10342 = vmatpush2.msra.mxu0 0.0
  %10343 = vmatprep.subr.mxu0 0.0
  %10344 = vmatpush2.msra.mxu0 0.0
  %10345 = vmatprep.subr.mxu0 0.0
  %10346 = vmatpush2.msra.mxu0 0.0
  %10347 = vmatprep.subr.mxu0 0.0
  %10348 = vmatpush2.msra.mxu0 0.0
  %10349 = vmatprep.subr.mxu0 0.0
  %10350 = vmatpush2.msra.mxu0 0.0
  %10351 = vmatprep.subr.mxu0 0.0
  %10352 = vmatpush2.msra.mxu0 0.0
  %10353 = vmatprep.subr.mxu0 0.0
  %10354 = vmatpush2.msra.mxu0 0.0
  %10355 = vmatprep.subr.mxu0 0.0
  %10356 = vmatpush2.msra.mxu0 0.0
  %10357 = vmatprep.subr.mxu0 0.0
  %10358 = vmatpush2.msra.mxu0 0.0
  %10359 = vmatprep.subr.mxu0 0.0
  %10360 = vmatpush2.msra.mxu0 0.0
  %10361 = vmatprep.subr.mxu0 0.0
  %10362 = vmatpush2.msra.mxu0 0.0
  %10363 = vmatprep.subr.mxu0 0.0
  %10364 = vmatpush2.msra.mxu0 0.0
  %10365 = vmatprep.mubr.f32.mxu0 0.0
  %10366 = vmatmul.mubr.f32.gmra.mxu0 %v10299
  %v10367 = vpop.f32.mrf.mxu0
  %v10368 = vadd.f32 0.0, %v10367
  %v10369 = vpop.f32.mrf.mxu0
  %10370 = vdwg.mxu0
  %s10371 = scalar_lea.vmem %s8, 32
  %v10372 = vld [vmem:[%s10371] sm:$0x7]
  %v10375 = vrot.slane %v10368, 7
  %v10376 = vsel %vm8394, %v10375, %v10295
  %v10377 = vsel %vm427, %v10376, 0
  %v10380 = vsel %vm756, %v10372, 0
  %10382 = vmatprep.subr.mxu0 0.0
  %10383 = vmatpush1.msra.mxu0 0.0
  %10384 = vmatprep.subr.mxu0 0.0
  %10385 = vmatpush1.msra.mxu0 0.0
  %10386 = vmatprep.subr.mxu0 0.0
  %10387 = vmatpush1.msra.mxu0 0.0
  %10388 = vmatprep.subr.mxu0 0.0
  %10389 = vmatpush1.msra.mxu0 0.0
  %10390 = vmatprep.subr.mxu0 0.0
  %10391 = vmatpush1.msra.mxu0 0.0
  %10392 = vmatprep.subr.mxu0 0.0
  %10393 = vmatpush1.msra.mxu0 0.0
  %10394 = vmatprep.subr.mxu0 0.0
  %10395 = vmatpush1.msra.mxu0 0.0
  %10396 = vmatprep.subr.mxu0 0.0
  %10397 = vmatpush1.msra.mxu0 0.0
  %10398 = vmatprep.subr.mxu0 0.0
  %10399 = vmatpush1.msra.mxu0 0.0
  %10400 = vmatprep.subr.mxu0 0.0
  %10401 = vmatpush1.msra.mxu0 0.0
  %10402 = vmatprep.subr.mxu0 0.0
  %10403 = vmatpush1.msra.mxu0 0.0
  %10404 = vmatprep.subr.mxu0 0.0
  %10405 = vmatpush1.msra.mxu0 0.0
  %10406 = vmatprep.subr.mxu0 0.0
  %10407 = vmatpush1.msra.mxu0 0.0
  %10408 = vmatprep.subr.mxu0 0.0
  %10409 = vmatpush1.msra.mxu0 0.0
  %10410 = vmatprep.subr.mxu0 0.0
  %10411 = vmatpush1.msra.mxu0 0.0
  %10412 = vmatprep.subr.mxu0 0.0
  %10413 = vmatpush1.msra.mxu0 %v10380
  %10414 = vmatprep.subr.mxu0 0.0
  %10415 = vmatpush2.msra.mxu0 0.0
  %10416 = vmatprep.subr.mxu0 0.0
  %10417 = vmatpush2.msra.mxu0 0.0
  %10418 = vmatprep.subr.mxu0 0.0
  %10419 = vmatpush2.msra.mxu0 0.0
  %10420 = vmatprep.subr.mxu0 0.0
  %10421 = vmatpush2.msra.mxu0 0.0
  %10422 = vmatprep.subr.mxu0 0.0
  %10423 = vmatpush2.msra.mxu0 0.0
  %10424 = vmatprep.subr.mxu0 0.0
  %10425 = vmatpush2.msra.mxu0 0.0
  %10426 = vmatprep.subr.mxu0 0.0
  %10427 = vmatpush2.msra.mxu0 0.0
  %10428 = vmatprep.subr.mxu0 0.0
  %10429 = vmatpush2.msra.mxu0 0.0
  %10430 = vmatprep.subr.mxu0 0.0
  %10431 = vmatpush2.msra.mxu0 0.0
  %10432 = vmatprep.subr.mxu0 0.0
  %10433 = vmatpush2.msra.mxu0 0.0
  %10434 = vmatprep.subr.mxu0 0.0
  %10435 = vmatpush2.msra.mxu0 0.0
  %10436 = vmatprep.subr.mxu0 0.0
  %10437 = vmatpush2.msra.mxu0 0.0
  %10438 = vmatprep.subr.mxu0 0.0
  %10439 = vmatpush2.msra.mxu0 0.0
  %10440 = vmatprep.subr.mxu0 0.0
  %10441 = vmatpush2.msra.mxu0 0.0
  %10442 = vmatprep.subr.mxu0 0.0
  %10443 = vmatpush2.msra.mxu0 0.0
  %10444 = vmatprep.subr.mxu0 0.0
  %10445 = vmatpush2.msra.mxu0 0.0
  %10446 = vmatprep.mubr.f32.mxu0 0.0
  %10447 = vmatmul.mubr.f32.gmra.mxu0 %v10377
  %v10448 = vpop.f32.mrf.mxu0
  %v10449 = vadd.f32 0.0, %v10448
  %v10450 = vpop.f32.mrf.mxu0
  %10451 = vdwg.mxu0
  %v10452 = vadd.f32 %v9767, %v10449
  %v10454 = vrot.slane %v10452, 1
  %v10455 = vrot.slane %v10452, 2
  %v10458 = vadd.f32 %v8375, %v10454
  %v10459 = vadd.f32 %v8376, %v10455
  %s10460 = scalar_lea.vmem %s10, 2
  %v10461 = vld [vmem:[%s10460] sm:$0x1]
  %s10462 = scalar_lea.vmem %s11, 2
  %v10463 = vld [vmem:[%s10462] sm:$0x1]
  %v10466 = vrot.slane %v10459, 7
  %vm10469 = vcmask 72711
  %v10470 = vsel %vm10469, %v10458, 0.0
  %10471 = vadd.xlane.f32.xlu0 %v10470
  %v10472 = vpop.xlane.xlu0 %10471
  %vm10473 = vcmask 65536
  %v10474 = vsel %vm10473, %v10466, 0.0
  %10475 = vadd.xlane.f32.xlu0 %v10474
  %v10476 = vpop.xlane.xlu0 %10475
  %v10477 = vmul.f32 %v10472, 0.11111111
  %v10478 = vmul.f32 %v10476, 0.11111111
  %v10479 = vmul.f32 %v10458, %v10458
  %v10480 = vmul.f32 %v10459, %v10459
  %v10483 = vrot.slane %v10480, 7
  %v10486 = vsel %vm10469, %v10479, 0.0
  %10487 = vadd.xlane.f32.xlu0 %v10486
  %v10488 = vpop.xlane.xlu0 %10487
  %v10489 = vsel %vm10473, %v10483, 0.0
  %10490 = vadd.xlane.f32.xlu0 %v10489
  %v10491 = vpop.xlane.xlu0 %10490
  %v10492 = vmul.f32 %v10488, 0.11111111
  %v10493 = vmul.f32 %v10491, 0.11111111
  %v10494 = vmul.f32 %v10477, %v10477
  %v10495 = vmul.f32 %v10478, %v10478
  %v10496 = vsub.f32 %v10492, %v10494
  %v10497 = vsub.f32 %v10493, %v10495
  %v10500 = vrot.slane %v10478, 1
  %v10503 = vsub.f32 %v10458, %v10477
  %v10504 = vsub.f32 %v10459, %v10500
  %v10505 = vadd.f32 %v10496, 1e-05
  %v10506 = vadd.f32 %v10497, 1e-05
  %v10507 = vrsqrt.pop %v10505
  %v10508 = vrsqrt.pop %v10506
  %v10511 = vrot.slane %v10508, 1
  %v10514 = vmul.f32 %v10503, %v10507
  %v10515 = vmul.f32 %v10504, %v10511
  %v10517 = vlaneseq
  %v10518 = vshrl.u32 %v10517, 7
  %v10519 = vsub.s32 0, %v10518
  %v10520 = vrot.slane %v10461, %v10519
  %v10522 = vmul.f32 %v10514, %v10520
  %v10523 = vmul.f32 %v10515, %v10520
  %v10525 = vlaneseq
  %v10526 = vshrl.u32 %v10525, 7
  %v10527 = vsub.s32 0, %v10526
  %v10528 = vrot.slane %v10463, %v10527
  %v10530 = vadd.f32 %v10522, %v10528
  %v10531 = vadd.f32 %v10523, %v10528
  %v10532 = vpack.c.bf16 %v10530, %v10530
  %v10533 = vpack.c.bf16 %v10531, %v10531
  %s10534 = scalar_lea.vmem %s12, 256
  %v10535 = vld [vmem:[%s10534] sm:$0xff]
  %v10536 = vld [vmem:[%s10534 + $0x8] sm:$0xff]
  %v10537 = vld [vmem:[%s10534 + $0x10] sm:$0xff]
  %v10538 = vld [vmem:[%s10534 + $0x18] sm:$0xff]
  %v10539 = vld [vmem:[%s10534 + $0x20] sm:$0xff]
  %v10540 = vld [vmem:[%s10534 + $0x28] sm:$0xff]
  %v10541 = vld [vmem:[%s10534 + $0x30] sm:$0xff]
  %v10542 = vld [vmem:[%s10534 + $0x38] sm:$0xff]
  %v10543 = vld [vmem:[%s10534 + $0x40] sm:$0x11]
  %v10544 = vld [vmem:[%s10534 + $0x48] sm:$0x11]
  %v10545 = vld [vmem:[%s10534 + $0x50] sm:$0x11]
  %v10546 = vld [vmem:[%s10534 + $0x58] sm:$0x11]
  %v10547 = vld [vmem:[%s10534 + $0x60] sm:$0x11]
  %v10548 = vld [vmem:[%s10534 + $0x68] sm:$0x11]
  %v10549 = vld [vmem:[%s10534 + $0x70] sm:$0x11]
  %v10550 = vld [vmem:[%s10534 + $0x78] sm:$0x11]
  %s10551 = scalar_lea.vmem %s13, 32
  %v10552 = vld [vmem:[%s10551] sm:$0xff]
  %v10553 = vld [vmem:[%s10551 + $0x8] sm:$0xff]
  %v10556 = vlaneseq
  %v10557 = vshrl.u32 %v10556, 7
  %v10558 = vsub.s32 0, %v10557
  %v10559 = vrot.slane %v10552, %v10558
  %v10560 = vlaneseq
  %v10561 = vshrl.u32 %v10560, 7
  %v10562 = vsub.s32 1, %v10561
  %v10563 = vrot.slane %v10552, %v10562
  %v10564 = vlaneseq
  %v10565 = vshrl.u32 %v10564, 7
  %v10566 = vsub.s32 2, %v10565
  %v10567 = vrot.slane %v10552, %v10566
  %v10568 = vlaneseq
  %v10569 = vshrl.u32 %v10568, 7
  %v10570 = vsub.s32 3, %v10569
  %v10571 = vrot.slane %v10552, %v10570
  %v10572 = vlaneseq
  %v10573 = vshrl.u32 %v10572, 7
  %v10574 = vsub.s32 4, %v10573
  %v10575 = vrot.slane %v10552, %v10574
  %v10576 = vlaneseq
  %v10577 = vshrl.u32 %v10576, 7
  %v10578 = vsub.s32 5, %v10577
  %v10579 = vrot.slane %v10552, %v10578
  %v10580 = vlaneseq
  %v10581 = vshrl.u32 %v10580, 7
  %v10582 = vsub.s32 6, %v10581
  %v10583 = vrot.slane %v10552, %v10582
  %v10584 = vlaneseq
  %v10585 = vshrl.u32 %v10584, 7
  %v10586 = vsub.s32 7, %v10585
  %v10587 = vrot.slane %v10552, %v10586
  %v10588 = vlaneseq
  %v10589 = vshrl.u32 %v10588, 7
  %v10590 = vsub.s32 0, %v10589
  %v10591 = vrot.slane %v10553, %v10590
  %v10592 = vlaneseq
  %v10593 = vshrl.u32 %v10592, 7
  %v10594 = vsub.s32 1, %v10593
  %v10595 = vrot.slane %v10553, %v10594
  %v10596 = vlaneseq
  %v10597 = vshrl.u32 %v10596, 7
  %v10598 = vsub.s32 2, %v10597
  %v10599 = vrot.slane %v10553, %v10598
  %v10600 = vlaneseq
  %v10601 = vshrl.u32 %v10600, 7
  %v10602 = vsub.s32 3, %v10601
  %v10603 = vrot.slane %v10553, %v10602
  %v10604 = vlaneseq
  %v10605 = vshrl.u32 %v10604, 7
  %v10606 = vsub.s32 4, %v10605
  %v10607 = vrot.slane %v10553, %v10606
  %v10608 = vlaneseq
  %v10609 = vshrl.u32 %v10608, 7
  %v10610 = vsub.s32 5, %v10609
  %v10611 = vrot.slane %v10553, %v10610
  %v10612 = vlaneseq
  %v10613 = vshrl.u32 %v10612, 7
  %v10614 = vsub.s32 6, %v10613
  %v10615 = vrot.slane %v10553, %v10614
  %v10616 = vlaneseq
  %v10617 = vshrl.u32 %v10616, 7
  %v10618 = vsub.s32 7, %v10617
  %v10619 = vrot.slane %v10553, %v10618
  %v10638 = vunpack.c.l.b16 %v10532
  %v10639 = vunpack.c.l.b16 %v10533
  %v10640 = vrot.slane %v10638, 7
  %v10641 = vrot.slane %v10639, 6
  %v10642 = vsel %vm8394, %v10641, %v10640
  %v10643 = vpack.c.b16 %v10642, %v10642
  %v10660 = vunpack.c.l.b16 %v10535
  %v10661 = vunpack.c.h.b16 %v10535
  %v10662 = vunpack.c.l.b16 %v10536
  %v10663 = vunpack.c.h.b16 %v10536
  %v10664 = vunpack.c.l.b16 %v10537
  %v10665 = vunpack.c.h.b16 %v10537
  %v10666 = vunpack.c.l.b16 %v10538
  %v10667 = vunpack.c.h.b16 %v10538
  %v10668 = vunpack.c.l.b16 %v10539
  %v10669 = vunpack.c.h.b16 %v10539
  %v10670 = vunpack.c.l.b16 %v10540
  %v10671 = vunpack.c.h.b16 %v10540
  %v10672 = vunpack.c.l.b16 %v10541
  %v10673 = vunpack.c.h.b16 %v10541
  %v10674 = vunpack.c.l.b16 %v10542
  %v10675 = vunpack.c.h.b16 %v10542
  %v10676 = vunpack.c.l.b16 %v10543
  %v10677 = vunpack.c.h.b16 %v10543
  %v10678 = vunpack.c.l.b16 %v10544
  %v10679 = vunpack.c.h.b16 %v10544
  %v10680 = vunpack.c.l.b16 %v10545
  %v10681 = vunpack.c.h.b16 %v10545
  %v10682 = vunpack.c.l.b16 %v10546
  %v10683 = vunpack.c.h.b16 %v10546
  %v10684 = vunpack.c.l.b16 %v10547
  %v10685 = vunpack.c.h.b16 %v10547
  %v10686 = vunpack.c.l.b16 %v10548
  %v10687 = vunpack.c.h.b16 %v10548
  %v10688 = vunpack.c.l.b16 %v10549
  %v10689 = vunpack.c.h.b16 %v10549
  %v10690 = vunpack.c.l.b16 %v10550
  %v10691 = vunpack.c.h.b16 %v10550
  %v10692 = vpack.c.b16 %v10676, %v10660
  %v10693 = vpack.c.b16 %v10677, %v10661
  %v10694 = vpack.c.b16 %v10678, %v10662
  %v10695 = vpack.c.b16 %v10679, %v10663
  %v10696 = vpack.c.b16 %v10680, %v10664
  %v10697 = vpack.c.b16 %v10681, %v10665
  %v10698 = vpack.c.b16 %v10682, %v10666
  %v10699 = vpack.c.b16 %v10683, %v10667
  %v10700 = vpack.c.b16 %v10684, %v10668
  %v10701 = vpack.c.b16 %v10685, %v10669
  %v10702 = vpack.c.b16 %v10686, %v10670
  %v10703 = vpack.c.b16 %v10687, %v10671
  %v10704 = vpack.c.b16 %v10688, %v10672
  %v10705 = vpack.c.b16 %v10689, %v10673
  %v10706 = vpack.c.b16 %v10690, %v10674
  %v10707 = vpack.c.b16 %v10691, %v10675
  %v10709 = vsel %vm167, %v10643, 0
  %v10712 = vand.u32 %v10692, %v2413
  %v10715 = vand.u32 %v10693, %v2413
  %v10718 = vand.u32 %v10694, %v2413
  %v10721 = vand.u32 %v10695, %v2413
  %v10724 = vand.u32 %v10696, %v2413
  %v10727 = vand.u32 %v10697, %v2413
  %v10730 = vand.u32 %v10698, %v2413
  %v10733 = vand.u32 %v10699, %v2413
  %v10736 = vand.u32 %v10700, %v2413
  %v10739 = vand.u32 %v10701, %v2413
  %v10742 = vand.u32 %v10702, %v2413
  %v10745 = vand.u32 %v10703, %v2413
  %v10748 = vand.u32 %v10704, %v2413
  %v10751 = vand.u32 %v10705, %v2413
  %v10754 = vand.u32 %v10706, %v2413
  %v10757 = vand.u32 %v10707, %v2413
  %10759 = vmatprep.subr.bf16.mxu0 0
  %10760 = vmatpush1.bf16.msra.mxu0 0
  %10761 = vmatprep.subr.bf16.mxu0 0
  %10762 = vmatpush1.bf16.msra.mxu0 0
  %10763 = vmatprep.subr.bf16.mxu0 0
  %10764 = vmatpush1.bf16.msra.mxu0 0
  %10765 = vmatprep.subr.bf16.mxu0 0
  %10766 = vmatpush1.bf16.msra.mxu0 0
  %10767 = vmatprep.subr.bf16.mxu0 0
  %10768 = vmatpush1.bf16.msra.mxu0 0
  %10769 = vmatprep.subr.bf16.mxu0 0
  %10770 = vmatpush1.bf16.msra.mxu0 0
  %10771 = vmatprep.subr.bf16.mxu0 0
  %10772 = vmatpush1.bf16.msra.mxu0 0
  %10773 = vmatprep.subr.bf16.mxu0 %v10715
  %10774 = vmatpush1.bf16.msra.mxu0 %v10712
  %10775 = vmatprep.subr.bf16.mxu0 0
  %10776 = vmatpush2.bf16.msra.mxu0 0
  %10777 = vmatprep.subr.bf16.mxu0 0
  %10778 = vmatpush2.bf16.msra.mxu0 0
  %10779 = vmatprep.subr.bf16.mxu0 0
  %10780 = vmatpush2.bf16.msra.mxu0 0
  %10781 = vmatprep.subr.bf16.mxu0 0
  %10782 = vmatpush2.bf16.msra.mxu0 0
  %10783 = vmatprep.subr.bf16.mxu0 0
  %10784 = vmatpush2.bf16.msra.mxu0 0
  %10785 = vmatprep.subr.bf16.mxu0 0
  %10786 = vmatpush2.bf16.msra.mxu0 0
  %10787 = vmatprep.subr.bf16.mxu0 0
  %10788 = vmatpush2.bf16.msra.mxu0 0
  %10789 = vmatprep.subr.bf16.mxu0 0
  %10790 = vmatpush2.bf16.msra.mxu0 0
  %10791 = vmatprep.mubr.bf16.mxu0 0
  %10792 = vmatmul.mubr.bf16.gmra.mxu0 %v10709
  %v10793 = vpop.f32.mrf.mxu0
  %v10794 = vadd.f32 %v10559, %v10793
  %v10795 = vpop.f32.mrf.mxu0
  %v10796 = vadd.f32 %v10563, %v10795
  %v10797 = vpop.f32.mrf.mxu0
  %v10798 = vpop.f32.mrf.mxu0
  %10799 = vdwg.mxu0
  %10800 = vmatprep.subr.bf16.mxu0 0
  %10801 = vmatpush1.bf16.msra.mxu0 0
  %10802 = vmatprep.subr.bf16.mxu0 0
  %10803 = vmatpush1.bf16.msra.mxu0 0
  %10804 = vmatprep.subr.bf16.mxu0 0
  %10805 = vmatpush1.bf16.msra.mxu0 0
  %10806 = vmatprep.subr.bf16.mxu0 0
  %10807 = vmatpush1.bf16.msra.mxu0 0
  %10808 = vmatprep.subr.bf16.mxu0 0
  %10809 = vmatpush1.bf16.msra.mxu0 0
  %10810 = vmatprep.subr.bf16.mxu0 0
  %10811 = vmatpush1.bf16.msra.mxu0 0
  %10812 = vmatprep.subr.bf16.mxu0 0
  %10813 = vmatpush1.bf16.msra.mxu0 0
  %10814 = vmatprep.subr.bf16.mxu0 %v10721
  %10815 = vmatpush1.bf16.msra.mxu0 %v10718
  %10816 = vmatprep.subr.bf16.mxu0 0
  %10817 = vmatpush2.bf16.msra.mxu0 0
  %10818 = vmatprep.subr.bf16.mxu0 0
  %10819 = vmatpush2.bf16.msra.mxu0 0
  %10820 = vmatprep.subr.bf16.mxu0 0
  %10821 = vmatpush2.bf16.msra.mxu0 0
  %10822 = vmatprep.subr.bf16.mxu0 0
  %10823 = vmatpush2.bf16.msra.mxu0 0
  %10824 = vmatprep.subr.bf16.mxu0 0
  %10825 = vmatpush2.bf16.msra.mxu0 0
  %10826 = vmatprep.subr.bf16.mxu0 0
  %10827 = vmatpush2.bf16.msra.mxu0 0
  %10828 = vmatprep.subr.bf16.mxu0 0
  %10829 = vmatpush2.bf16.msra.mxu0 0
  %10830 = vmatprep.subr.bf16.mxu0 0
  %10831 = vmatpush2.bf16.msra.mxu0 0
  %10832 = vmatprep.mubr.bf16.mxu0 0
  %10833 = vmatmul.mubr.bf16.gmra.mxu0 %v10709
  %v10834 = vpop.f32.mrf.mxu0
  %v10835 = vadd.f32 %v10567, %v10834
  %v10836 = vpop.f32.mrf.mxu0
  %v10837 = vadd.f32 %v10571, %v10836
  %v10838 = vpop.f32.mrf.mxu0
  %v10839 = vpop.f32.mrf.mxu0
  %10840 = vdwg.mxu0
  %10841 = vmatprep.subr.bf16.mxu0 0
  %10842 = vmatpush1.bf16.msra.mxu0 0
  %10843 = vmatprep.subr.bf16.mxu0 0
  %10844 = vmatpush1.bf16.msra.mxu0 0
  %10845 = vmatprep.subr.bf16.mxu0 0
  %10846 = vmatpush1.bf16.msra.mxu0 0
  %10847 = vmatprep.subr.bf16.mxu0 0
  %10848 = vmatpush1.bf16.msra.mxu0 0
  %10849 = vmatprep.subr.bf16.mxu0 0
  %10850 = vmatpush1.bf16.msra.mxu0 0
  %10851 = vmatprep.subr.bf16.mxu0 0
  %10852 = vmatpush1.bf16.msra.mxu0 0
  %10853 = vmatprep.subr.bf16.mxu0 0
  %10854 = vmatpush1.bf16.msra.mxu0 0
  %10855 = vmatprep.subr.bf16.mxu0 %v10727
  %10856 = vmatpush1.bf16.msra.mxu0 %v10724
  %10857 = vmatprep.subr.bf16.mxu0 0
  %10858 = vmatpush2.bf16.msra.mxu0 0
  %10859 = vmatprep.subr.bf16.mxu0 0
  %10860 = vmatpush2.bf16.msra.mxu0 0
  %10861 = vmatprep.subr.bf16.mxu0 0
  %10862 = vmatpush2.bf16.msra.mxu0 0
  %10863 = vmatprep.subr.bf16.mxu0 0
  %10864 = vmatpush2.bf16.msra.mxu0 0
  %10865 = vmatprep.subr.bf16.mxu0 0
  %10866 = vmatpush2.bf16.msra.mxu0 0
  %10867 = vmatprep.subr.bf16.mxu0 0
  %10868 = vmatpush2.bf16.msra.mxu0 0
  %10869 = vmatprep.subr.bf16.mxu0 0
  %10870 = vmatpush2.bf16.msra.mxu0 0
  %10871 = vmatprep.subr.bf16.mxu0 0
  %10872 = vmatpush2.bf16.msra.mxu0 0
  %10873 = vmatprep.mubr.bf16.mxu0 0
  %10874 = vmatmul.mubr.bf16.gmra.mxu0 %v10709
  %v10875 = vpop.f32.mrf.mxu0
  %v10876 = vadd.f32 %v10575, %v10875
  %v10877 = vpop.f32.mrf.mxu0
  %v10878 = vadd.f32 %v10579, %v10877
  %v10879 = vpop.f32.mrf.mxu0
  %v10880 = vpop.f32.mrf.mxu0
  %10881 = vdwg.mxu0
  %10882 = vmatprep.subr.bf16.mxu0 0
  %10883 = vmatpush1.bf16.msra.mxu0 0
  %10884 = vmatprep.subr.bf16.mxu0 0
  %10885 = vmatpush1.bf16.msra.mxu0 0
  %10886 = vmatprep.subr.bf16.mxu0 0
  %10887 = vmatpush1.bf16.msra.mxu0 0
  %10888 = vmatprep.subr.bf16.mxu0 0
  %10889 = vmatpush1.bf16.msra.mxu0 0
  %10890 = vmatprep.subr.bf16.mxu0 0
  %10891 = vmatpush1.bf16.msra.mxu0 0
  %10892 = vmatprep.subr.bf16.mxu0 0
  %10893 = vmatpush1.bf16.msra.mxu0 0
  %10894 = vmatprep.subr.bf16.mxu0 0
  %10895 = vmatpush1.bf16.msra.mxu0 0
  %10896 = vmatprep.subr.bf16.mxu0 %v10733
  %10897 = vmatpush1.bf16.msra.mxu0 %v10730
  %10898 = vmatprep.subr.bf16.mxu0 0
  %10899 = vmatpush2.bf16.msra.mxu0 0
  %10900 = vmatprep.subr.bf16.mxu0 0
  %10901 = vmatpush2.bf16.msra.mxu0 0
  %10902 = vmatprep.subr.bf16.mxu0 0
  %10903 = vmatpush2.bf16.msra.mxu0 0
  %10904 = vmatprep.subr.bf16.mxu0 0
  %10905 = vmatpush2.bf16.msra.mxu0 0
  %10906 = vmatprep.subr.bf16.mxu0 0
  %10907 = vmatpush2.bf16.msra.mxu0 0
  %10908 = vmatprep.subr.bf16.mxu0 0
  %10909 = vmatpush2.bf16.msra.mxu0 0
  %10910 = vmatprep.subr.bf16.mxu0 0
  %10911 = vmatpush2.bf16.msra.mxu0 0
  %10912 = vmatprep.subr.bf16.mxu0 0
  %10913 = vmatpush2.bf16.msra.mxu0 0
  %10914 = vmatprep.mubr.bf16.mxu0 0
  %10915 = vmatmul.mubr.bf16.gmra.mxu0 %v10709
  %v10916 = vpop.f32.mrf.mxu0
  %v10917 = vadd.f32 %v10583, %v10916
  %v10918 = vpop.f32.mrf.mxu0
  %v10919 = vadd.f32 %v10587, %v10918
  %v10920 = vpop.f32.mrf.mxu0
  %v10921 = vpop.f32.mrf.mxu0
  %10922 = vdwg.mxu0
  %10923 = vmatprep.subr.bf16.mxu0 0
  %10924 = vmatpush1.bf16.msra.mxu0 0
  %10925 = vmatprep.subr.bf16.mxu0 0
  %10926 = vmatpush1.bf16.msra.mxu0 0
  %10927 = vmatprep.subr.bf16.mxu0 0
  %10928 = vmatpush1.bf16.msra.mxu0 0
  %10929 = vmatprep.subr.bf16.mxu0 0
  %10930 = vmatpush1.bf16.msra.mxu0 0
  %10931 = vmatprep.subr.bf16.mxu0 0
  %10932 = vmatpush1.bf16.msra.mxu0 0
  %10933 = vmatprep.subr.bf16.mxu0 0
  %10934 = vmatpush1.bf16.msra.mxu0 0
  %10935 = vmatprep.subr.bf16.mxu0 0
  %10936 = vmatpush1.bf16.msra.mxu0 0
  %10937 = vmatprep.subr.bf16.mxu0 %v10739
  %10938 = vmatpush1.bf16.msra.mxu0 %v10736
  %10939 = vmatprep.subr.bf16.mxu0 0
  %10940 = vmatpush2.bf16.msra.mxu0 0
  %10941 = vmatprep.subr.bf16.mxu0 0
  %10942 = vmatpush2.bf16.msra.mxu0 0
  %10943 = vmatprep.subr.bf16.mxu0 0
  %10944 = vmatpush2.bf16.msra.mxu0 0
  %10945 = vmatprep.subr.bf16.mxu0 0
  %10946 = vmatpush2.bf16.msra.mxu0 0
  %10947 = vmatprep.subr.bf16.mxu0 0
  %10948 = vmatpush2.bf16.msra.mxu0 0
  %10949 = vmatprep.subr.bf16.mxu0 0
  %10950 = vmatpush2.bf16.msra.mxu0 0
  %10951 = vmatprep.subr.bf16.mxu0 0
  %10952 = vmatpush2.bf16.msra.mxu0 0
  %10953 = vmatprep.subr.bf16.mxu0 0
  %10954 = vmatpush2.bf16.msra.mxu0 0
  %10955 = vmatprep.mubr.bf16.mxu0 0
  %10956 = vmatmul.mubr.bf16.gmra.mxu0 %v10709
  %v10957 = vpop.f32.mrf.mxu0
  %v10958 = vadd.f32 %v10591, %v10957
  %v10959 = vpop.f32.mrf.mxu0
  %v10960 = vadd.f32 %v10595, %v10959
  %v10961 = vpop.f32.mrf.mxu0
  %v10962 = vpop.f32.mrf.mxu0
  %10963 = vdwg.mxu0
  %10964 = vmatprep.subr.bf16.mxu0 0
  %10965 = vmatpush1.bf16.msra.mxu0 0
  %10966 = vmatprep.subr.bf16.mxu0 0
  %10967 = vmatpush1.bf16.msra.mxu0 0
  %10968 = vmatprep.subr.bf16.mxu0 0
  %10969 = vmatpush1.bf16.msra.mxu0 0
  %10970 = vmatprep.subr.bf16.mxu0 0
  %10971 = vmatpush1.bf16.msra.mxu0 0
  %10972 = vmatprep.subr.bf16.mxu0 0
  %10973 = vmatpush1.bf16.msra.mxu0 0
  %10974 = vmatprep.subr.bf16.mxu0 0
  %10975 = vmatpush1.bf16.msra.mxu0 0
  %10976 = vmatprep.subr.bf16.mxu0 0
  %10977 = vmatpush1.bf16.msra.mxu0 0
  %10978 = vmatprep.subr.bf16.mxu0 %v10745
  %10979 = vmatpush1.bf16.msra.mxu0 %v10742
  %10980 = vmatprep.subr.bf16.mxu0 0
  %10981 = vmatpush2.bf16.msra.mxu0 0
  %10982 = vmatprep.subr.bf16.mxu0 0
  %10983 = vmatpush2.bf16.msra.mxu0 0
  %10984 = vmatprep.subr.bf16.mxu0 0
  %10985 = vmatpush2.bf16.msra.mxu0 0
  %10986 = vmatprep.subr.bf16.mxu0 0
  %10987 = vmatpush2.bf16.msra.mxu0 0
  %10988 = vmatprep.subr.bf16.mxu0 0
  %10989 = vmatpush2.bf16.msra.mxu0 0
  %10990 = vmatprep.subr.bf16.mxu0 0
  %10991 = vmatpush2.bf16.msra.mxu0 0
  %10992 = vmatprep.subr.bf16.mxu0 0
  %10993 = vmatpush2.bf16.msra.mxu0 0
  %10994 = vmatprep.subr.bf16.mxu0 0
  %10995 = vmatpush2.bf16.msra.mxu0 0
  %10996 = vmatprep.mubr.bf16.mxu0 0
  %10997 = vmatmul.mubr.bf16.gmra.mxu0 %v10709
  %v10998 = vpop.f32.mrf.mxu0
  %v10999 = vadd.f32 %v10599, %v10998
  %v11000 = vpop.f32.mrf.mxu0
  %v11001 = vadd.f32 %v10603, %v11000
  %v11002 = vpop.f32.mrf.mxu0
  %v11003 = vpop.f32.mrf.mxu0
  %11004 = vdwg.mxu0
  %11005 = vmatprep.subr.bf16.mxu0 0
  %11006 = vmatpush1.bf16.msra.mxu0 0
  %11007 = vmatprep.subr.bf16.mxu0 0
  %11008 = vmatpush1.bf16.msra.mxu0 0
  %11009 = vmatprep.subr.bf16.mxu0 0
  %11010 = vmatpush1.bf16.msra.mxu0 0
  %11011 = vmatprep.subr.bf16.mxu0 0
  %11012 = vmatpush1.bf16.msra.mxu0 0
  %11013 = vmatprep.subr.bf16.mxu0 0
  %11014 = vmatpush1.bf16.msra.mxu0 0
  %11015 = vmatprep.subr.bf16.mxu0 0
  %11016 = vmatpush1.bf16.msra.mxu0 0
  %11017 = vmatprep.subr.bf16.mxu0 0
  %11018 = vmatpush1.bf16.msra.mxu0 0
  %11019 = vmatprep.subr.bf16.mxu0 %v10751
  %11020 = vmatpush1.bf16.msra.mxu0 %v10748
  %11021 = vmatprep.subr.bf16.mxu0 0
  %11022 = vmatpush2.bf16.msra.mxu0 0
  %11023 = vmatprep.subr.bf16.mxu0 0
  %11024 = vmatpush2.bf16.msra.mxu0 0
  %11025 = vmatprep.subr.bf16.mxu0 0
  %11026 = vmatpush2.bf16.msra.mxu0 0
  %11027 = vmatprep.subr.bf16.mxu0 0
  %11028 = vmatpush2.bf16.msra.mxu0 0
  %11029 = vmatprep.subr.bf16.mxu0 0
  %11030 = vmatpush2.bf16.msra.mxu0 0
  %11031 = vmatprep.subr.bf16.mxu0 0
  %11032 = vmatpush2.bf16.msra.mxu0 0
  %11033 = vmatprep.subr.bf16.mxu0 0
  %11034 = vmatpush2.bf16.msra.mxu0 0
  %11035 = vmatprep.subr.bf16.mxu0 0
  %11036 = vmatpush2.bf16.msra.mxu0 0
  %11037 = vmatprep.mubr.bf16.mxu0 0
  %11038 = vmatmul.mubr.bf16.gmra.mxu0 %v10709
  %v11039 = vpop.f32.mrf.mxu0
  %v11040 = vadd.f32 %v10607, %v11039
  %v11041 = vpop.f32.mrf.mxu0
  %v11042 = vadd.f32 %v10611, %v11041
  %v11043 = vpop.f32.mrf.mxu0
  %v11044 = vpop.f32.mrf.mxu0
  %11045 = vdwg.mxu0
  %11046 = vmatprep.subr.bf16.mxu0 0
  %11047 = vmatpush1.bf16.msra.mxu0 0
  %11048 = vmatprep.subr.bf16.mxu0 0
  %11049 = vmatpush1.bf16.msra.mxu0 0
  %11050 = vmatprep.subr.bf16.mxu0 0
  %11051 = vmatpush1.bf16.msra.mxu0 0
  %11052 = vmatprep.subr.bf16.mxu0 0
  %11053 = vmatpush1.bf16.msra.mxu0 0
  %11054 = vmatprep.subr.bf16.mxu0 0
  %11055 = vmatpush1.bf16.msra.mxu0 0
  %11056 = vmatprep.subr.bf16.mxu0 0
  %11057 = vmatpush1.bf16.msra.mxu0 0
  %11058 = vmatprep.subr.bf16.mxu0 0
  %11059 = vmatpush1.bf16.msra.mxu0 0
  %11060 = vmatprep.subr.bf16.mxu0 %v10757
  %11061 = vmatpush1.bf16.msra.mxu0 %v10754
  %11062 = vmatprep.subr.bf16.mxu0 0
  %11063 = vmatpush2.bf16.msra.mxu0 0
  %11064 = vmatprep.subr.bf16.mxu0 0
  %11065 = vmatpush2.bf16.msra.mxu0 0
  %11066 = vmatprep.subr.bf16.mxu0 0
  %11067 = vmatpush2.bf16.msra.mxu0 0
  %11068 = vmatprep.subr.bf16.mxu0 0
  %11069 = vmatpush2.bf16.msra.mxu0 0
  %11070 = vmatprep.subr.bf16.mxu0 0
  %11071 = vmatpush2.bf16.msra.mxu0 0
  %11072 = vmatprep.subr.bf16.mxu0 0
  %11073 = vmatpush2.bf16.msra.mxu0 0
  %11074 = vmatprep.subr.bf16.mxu0 0
  %11075 = vmatpush2.bf16.msra.mxu0 0
  %11076 = vmatprep.subr.bf16.mxu0 0
  %11077 = vmatpush2.bf16.msra.mxu0 0
  %11078 = vmatprep.mubr.bf16.mxu0 0
  %11079 = vmatmul.mubr.bf16.gmra.mxu0 %v10709
  %v11080 = vpop.f32.mrf.mxu0
  %v11081 = vadd.f32 %v10615, %v11080
  %v11082 = vpop.f32.mrf.mxu0
  %v11083 = vadd.f32 %v10619, %v11082
  %v11084 = vpop.f32.mrf.mxu0
  %v11085 = vpop.f32.mrf.mxu0
  %11086 = vdwg.mxu0
  %v11087 = vmax.f32 %v10794, 0.0
  %v11088 = vmax.f32 %v10796, 0.0
  %v11089 = vmax.f32 %v10835, 0.0
  %v11090 = vmax.f32 %v10837, 0.0
  %v11091 = vmax.f32 %v10876, 0.0
  %v11092 = vmax.f32 %v10878, 0.0
  %v11093 = vmax.f32 %v10917, 0.0
  %v11094 = vmax.f32 %v10919, 0.0
  %v11095 = vmax.f32 %v10958, 0.0
  %v11096 = vmax.f32 %v10960, 0.0
  %v11097 = vmax.f32 %v10999, 0.0
  %v11098 = vmax.f32 %v11001, 0.0
  %v11099 = vmax.f32 %v11040, 0.0
  %v11100 = vmax.f32 %v11042, 0.0
  %v11101 = vmax.f32 %v11081, 0.0
  %v11102 = vmax.f32 %v11083, 0.0
  %v11103 = vpack.c.bf16 %v11087, %v11087
  %v11104 = vpack.c.bf16 %v11088, %v11088
  %v11105 = vpack.c.bf16 %v11089, %v11089
  %v11106 = vpack.c.bf16 %v11090, %v11090
  %v11107 = vpack.c.bf16 %v11091, %v11091
  %v11108 = vpack.c.bf16 %v11092, %v11092
  %v11109 = vpack.c.bf16 %v11093, %v11093
  %v11110 = vpack.c.bf16 %v11094, %v11094
  %v11111 = vpack.c.bf16 %v11095, %v11095
  %v11112 = vpack.c.bf16 %v11096, %v11096
  %v11113 = vpack.c.bf16 %v11097, %v11097
  %v11114 = vpack.c.bf16 %v11098, %v11098
  %v11115 = vpack.c.bf16 %v11099, %v11099
  %v11116 = vpack.c.bf16 %v11100, %v11100
  %v11117 = vpack.c.bf16 %v11101, %v11101
  %v11118 = vpack.c.bf16 %v11102, %v11102
  %s11119 = scalar_lea.vmem %s14, 2048
  %v11120 = vld [vmem:[%s11119] sm:$0xf]
  %v11121 = vld [vmem:[%s11119 + $0x4] sm:$0xf]
  %v11122 = vld [vmem:[%s11119 + $0x8] sm:$0xf]
  %v11123 = vld [vmem:[%s11119 + $0xc] sm:$0xf]
  %v11124 = vld [vmem:[%s11119 + $0x10] sm:$0xf]
  %v11125 = vld [vmem:[%s11119 + $0x14] sm:$0xf]
  %v11126 = vld [vmem:[%s11119 + $0x18] sm:$0xf]
  %v11127 = vld [vmem:[%s11119 + $0x1c] sm:$0xf]
  %v11128 = vld [vmem:[%s11119 + $0x20] sm:$0xf]
  %v11129 = vld [vmem:[%s11119 + $0x24] sm:$0xf]
  %v11130 = vld [vmem:[%s11119 + $0x28] sm:$0xf]
  %v11131 = vld [vmem:[%s11119 + $0x2c] sm:$0xf]
  %v11132 = vld [vmem:[%s11119 + $0x30] sm:$0xf]
  %v11133 = vld [vmem:[%s11119 + $0x34] sm:$0xf]
  %v11134 = vld [vmem:[%s11119 + $0x38] sm:$0xf]
  %v11135 = vld [vmem:[%s11119 + $0x3c] sm:$0xf]
  %v11136 = vld [vmem:[%s11119 + $0x40] sm:$0xf]
  %v11137 = vld [vmem:[%s11119 + $0x44] sm:$0xf]
  %v11138 = vld [vmem:[%s11119 + $0x48] sm:$0xf]
  %v11139 = vld [vmem:[%s11119 + $0x4c] sm:$0xf]
  %v11140 = vld [vmem:[%s11119 + $0x50] sm:$0xf]
  %v11141 = vld [vmem:[%s11119 + $0x54] sm:$0xf]
  %v11142 = vld [vmem:[%s11119 + $0x58] sm:$0xf]
  %v11143 = vld [vmem:[%s11119 + $0x5c] sm:$0xf]
  %v11144 = vld [vmem:[%s11119 + $0x60] sm:$0xf]
  %v11145 = vld [vmem:[%s11119 + $0x64] sm:$0xf]
  %v11146 = vld [vmem:[%s11119 + $0x68] sm:$0xf]
  %v11147 = vld [vmem:[%s11119 + $0x6c] sm:$0xf]
  %v11148 = vld [vmem:[%s11119 + $0x70] sm:$0xf]
  %v11149 = vld [vmem:[%s11119 + $0x74] sm:$0xf]
  %v11150 = vld [vmem:[%s11119 + $0x78] sm:$0xf]
  %v11151 = vld [vmem:[%s11119 + $0x7c] sm:$0xf]
  %v11152 = vld [vmem:[%s11119 + $0x80] sm:$0xf]
  %v11153 = vld [vmem:[%s11119 + $0x84] sm:$0xf]
  %v11154 = vld [vmem:[%s11119 + $0x88] sm:$0xf]
  %v11155 = vld [vmem:[%s11119 + $0x8c] sm:$0xf]
  %v11156 = vld [vmem:[%s11119 + $0x90] sm:$0xf]
  %v11157 = vld [vmem:[%s11119 + $0x94] sm:$0xf]
  %v11158 = vld [vmem:[%s11119 + $0x98] sm:$0xf]
  %v11159 = vld [vmem:[%s11119 + $0x9c] sm:$0xf]
  %v11160 = vld [vmem:[%s11119 + $0xa0] sm:$0xf]
  %v11161 = vld [vmem:[%s11119 + $0xa4] sm:$0xf]
  %v11162 = vld [vmem:[%s11119 + $0xa8] sm:$0xf]
  %v11163 = vld [vmem:[%s11119 + $0xac] sm:$0xf]
  %v11164 = vld [vmem:[%s11119 + $0xb0] sm:$0xf]
  %v11165 = vld [vmem:[%s11119 + $0xb4] sm:$0xf]
  %v11166 = vld [vmem:[%s11119 + $0xb8] sm:$0xf]
  %v11167 = vld [vmem:[%s11119 + $0xbc] sm:$0xf]
  %v11168 = vld [vmem:[%s11119 + $0xc0] sm:$0xf]
  %v11169 = vld [vmem:[%s11119 + $0xc4] sm:$0xf]
  %v11170 = vld [vmem:[%s11119 + $0xc8] sm:$0xf]
  %v11171 = vld [vmem:[%s11119 + $0xcc] sm:$0xf]
  %v11172 = vld [vmem:[%s11119 + $0xd0] sm:$0xf]
  %v11173 = vld [vmem:[%s11119 + $0xd4] sm:$0xf]
  %v11174 = vld [vmem:[%s11119 + $0xd8] sm:$0xf]
  %v11175 = vld [vmem:[%s11119 + $0xdc] sm:$0xf]
  %v11176 = vld [vmem:[%s11119 + $0xe0] sm:$0xf]
  %v11177 = vld [vmem:[%s11119 + $0xe4] sm:$0xf]
  %v11178 = vld [vmem:[%s11119 + $0xe8] sm:$0xf]
  %v11179 = vld [vmem:[%s11119 + $0xec] sm:$0xf]
  %v11180 = vld [vmem:[%s11119 + $0xf0] sm:$0xf]
  %v11181 = vld [vmem:[%s11119 + $0xf4] sm:$0xf]
  %v11182 = vld [vmem:[%s11119 + $0xf8] sm:$0xf]
  %v11183 = vld [vmem:[%s11119 + $0xfc] sm:$0xf]
  %v11184 = vld [vmem:[%s11119 + $0x100] sm:$0xf]
  %v11185 = vld [vmem:[%s11119 + $0x104] sm:$0xf]
  %v11186 = vld [vmem:[%s11119 + $0x108] sm:$0xf]
  %v11187 = vld [vmem:[%s11119 + $0x10c] sm:$0xf]
  %v11188 = vld [vmem:[%s11119 + $0x110] sm:$0xf]
  %v11189 = vld [vmem:[%s11119 + $0x114] sm:$0xf]
  %v11190 = vld [vmem:[%s11119 + $0x118] sm:$0xf]
  %v11191 = vld [vmem:[%s11119 + $0x11c] sm:$0xf]
  %v11192 = vld [vmem:[%s11119 + $0x120] sm:$0xf]
  %v11193 = vld [vmem:[%s11119 + $0x124] sm:$0xf]
  %v11194 = vld [vmem:[%s11119 + $0x128] sm:$0xf]
  %v11195 = vld [vmem:[%s11119 + $0x12c] sm:$0xf]
  %v11196 = vld [vmem:[%s11119 + $0x130] sm:$0xf]
  %v11197 = vld [vmem:[%s11119 + $0x134] sm:$0xf]
  %v11198 = vld [vmem:[%s11119 + $0x138] sm:$0xf]
  %v11199 = vld [vmem:[%s11119 + $0x13c] sm:$0xf]
  %v11200 = vld [vmem:[%s11119 + $0x140] sm:$0xf]
  %v11201 = vld [vmem:[%s11119 + $0x144] sm:$0xf]
  %v11202 = vld [vmem:[%s11119 + $0x148] sm:$0xf]
  %v11203 = vld [vmem:[%s11119 + $0x14c] sm:$0xf]
  %v11204 = vld [vmem:[%s11119 + $0x150] sm:$0xf]
  %v11205 = vld [vmem:[%s11119 + $0x154] sm:$0xf]
  %v11206 = vld [vmem:[%s11119 + $0x158] sm:$0xf]
  %v11207 = vld [vmem:[%s11119 + $0x15c] sm:$0xf]
  %v11208 = vld [vmem:[%s11119 + $0x160] sm:$0xf]
  %v11209 = vld [vmem:[%s11119 + $0x164] sm:$0xf]
  %v11210 = vld [vmem:[%s11119 + $0x168] sm:$0xf]
  %v11211 = vld [vmem:[%s11119 + $0x16c] sm:$0xf]
  %v11212 = vld [vmem:[%s11119 + $0x170] sm:$0xf]
  %v11213 = vld [vmem:[%s11119 + $0x174] sm:$0xf]
  %v11214 = vld [vmem:[%s11119 + $0x178] sm:$0xf]
  %v11215 = vld [vmem:[%s11119 + $0x17c] sm:$0xf]
  %v11216 = vld [vmem:[%s11119 + $0x180] sm:$0xf]
  %v11217 = vld [vmem:[%s11119 + $0x184] sm:$0xf]
  %v11218 = vld [vmem:[%s11119 + $0x188] sm:$0xf]
  %v11219 = vld [vmem:[%s11119 + $0x18c] sm:$0xf]
  %v11220 = vld [vmem:[%s11119 + $0x190] sm:$0xf]
  %v11221 = vld [vmem:[%s11119 + $0x194] sm:$0xf]
  %v11222 = vld [vmem:[%s11119 + $0x198] sm:$0xf]
  %v11223 = vld [vmem:[%s11119 + $0x19c] sm:$0xf]
  %v11224 = vld [vmem:[%s11119 + $0x1a0] sm:$0xf]
  %v11225 = vld [vmem:[%s11119 + $0x1a4] sm:$0xf]
  %v11226 = vld [vmem:[%s11119 + $0x1a8] sm:$0xf]
  %v11227 = vld [vmem:[%s11119 + $0x1ac] sm:$0xf]
  %v11228 = vld [vmem:[%s11119 + $0x1b0] sm:$0xf]
  %v11229 = vld [vmem:[%s11119 + $0x1b4] sm:$0xf]
  %v11230 = vld [vmem:[%s11119 + $0x1b8] sm:$0xf]
  %v11231 = vld [vmem:[%s11119 + $0x1bc] sm:$0xf]
  %v11232 = vld [vmem:[%s11119 + $0x1c0] sm:$0xf]
  %v11233 = vld [vmem:[%s11119 + $0x1c4] sm:$0xf]
  %v11234 = vld [vmem:[%s11119 + $0x1c8] sm:$0xf]
  %v11235 = vld [vmem:[%s11119 + $0x1cc] sm:$0xf]
  %v11236 = vld [vmem:[%s11119 + $0x1d0] sm:$0xf]
  %v11237 = vld [vmem:[%s11119 + $0x1d4] sm:$0xf]
  %v11238 = vld [vmem:[%s11119 + $0x1d8] sm:$0xf]
  %v11239 = vld [vmem:[%s11119 + $0x1dc] sm:$0xf]
  %v11240 = vld [vmem:[%s11119 + $0x1e0] sm:$0xf]
  %v11241 = vld [vmem:[%s11119 + $0x1e4] sm:$0xf]
  %v11242 = vld [vmem:[%s11119 + $0x1e8] sm:$0xf]
  %v11243 = vld [vmem:[%s11119 + $0x1ec] sm:$0xf]
  %v11244 = vld [vmem:[%s11119 + $0x1f0] sm:$0xf]
  %v11245 = vld [vmem:[%s11119 + $0x1f4] sm:$0xf]
  %v11246 = vld [vmem:[%s11119 + $0x1f8] sm:$0xf]
  %v11247 = vld [vmem:[%s11119 + $0x1fc] sm:$0xf]
  %v11248 = vld [vmem:[%s11119 + $0x200] sm:$0xf]
  %v11249 = vld [vmem:[%s11119 + $0x204] sm:$0xf]
  %v11250 = vld [vmem:[%s11119 + $0x208] sm:$0xf]
  %v11251 = vld [vmem:[%s11119 + $0x20c] sm:$0xf]
  %v11252 = vld [vmem:[%s11119 + $0x210] sm:$0xf]
  %v11253 = vld [vmem:[%s11119 + $0x214] sm:$0xf]
  %v11254 = vld [vmem:[%s11119 + $0x218] sm:$0xf]
  %v11255 = vld [vmem:[%s11119 + $0x21c] sm:$0xf]
  %v11256 = vld [vmem:[%s11119 + $0x220] sm:$0xf]
  %v11257 = vld [vmem:[%s11119 + $0x224] sm:$0xf]
  %v11258 = vld [vmem:[%s11119 + $0x228] sm:$0xf]
  %v11259 = vld [vmem:[%s11119 + $0x22c] sm:$0xf]
  %v11260 = vld [vmem:[%s11119 + $0x230] sm:$0xf]
  %v11261 = vld [vmem:[%s11119 + $0x234] sm:$0xf]
  %v11262 = vld [vmem:[%s11119 + $0x238] sm:$0xf]
  %v11263 = vld [vmem:[%s11119 + $0x23c] sm:$0xf]
  %v11264 = vld [vmem:[%s11119 + $0x240] sm:$0xf]
  %v11265 = vld [vmem:[%s11119 + $0x244] sm:$0xf]
  %v11266 = vld [vmem:[%s11119 + $0x248] sm:$0xf]
  %v11267 = vld [vmem:[%s11119 + $0x24c] sm:$0xf]
  %v11268 = vld [vmem:[%s11119 + $0x250] sm:$0xf]
  %v11269 = vld [vmem:[%s11119 + $0x254] sm:$0xf]
  %v11270 = vld [vmem:[%s11119 + $0x258] sm:$0xf]
  %v11271 = vld [vmem:[%s11119 + $0x25c] sm:$0xf]
  %v11272 = vld [vmem:[%s11119 + $0x260] sm:$0xf]
  %v11273 = vld [vmem:[%s11119 + $0x264] sm:$0xf]
  %v11274 = vld [vmem:[%s11119 + $0x268] sm:$0xf]
  %v11275 = vld [vmem:[%s11119 + $0x26c] sm:$0xf]
  %v11276 = vld [vmem:[%s11119 + $0x270] sm:$0xf]
  %v11277 = vld [vmem:[%s11119 + $0x274] sm:$0xf]
  %v11278 = vld [vmem:[%s11119 + $0x278] sm:$0xf]
  %v11279 = vld [vmem:[%s11119 + $0x27c] sm:$0xf]
  %v11280 = vld [vmem:[%s11119 + $0x280] sm:$0xf]
  %v11281 = vld [vmem:[%s11119 + $0x284] sm:$0xf]
  %v11282 = vld [vmem:[%s11119 + $0x288] sm:$0xf]
  %v11283 = vld [vmem:[%s11119 + $0x28c] sm:$0xf]
  %v11284 = vld [vmem:[%s11119 + $0x290] sm:$0xf]
  %v11285 = vld [vmem:[%s11119 + $0x294] sm:$0xf]
  %v11286 = vld [vmem:[%s11119 + $0x298] sm:$0xf]
  %v11287 = vld [vmem:[%s11119 + $0x29c] sm:$0xf]
  %v11288 = vld [vmem:[%s11119 + $0x2a0] sm:$0xf]
  %v11289 = vld [vmem:[%s11119 + $0x2a4] sm:$0xf]
  %v11290 = vld [vmem:[%s11119 + $0x2a8] sm:$0xf]
  %v11291 = vld [vmem:[%s11119 + $0x2ac] sm:$0xf]
  %v11292 = vld [vmem:[%s11119 + $0x2b0] sm:$0xf]
  %v11293 = vld [vmem:[%s11119 + $0x2b4] sm:$0xf]
  %v11294 = vld [vmem:[%s11119 + $0x2b8] sm:$0xf]
  %v11295 = vld [vmem:[%s11119 + $0x2bc] sm:$0xf]
  %v11296 = vld [vmem:[%s11119 + $0x2c0] sm:$0xf]
  %v11297 = vld [vmem:[%s11119 + $0x2c4] sm:$0xf]
  %v11298 = vld [vmem:[%s11119 + $0x2c8] sm:$0xf]
  %v11299 = vld [vmem:[%s11119 + $0x2cc] sm:$0xf]
  %v11300 = vld [vmem:[%s11119 + $0x2d0] sm:$0xf]
  %v11301 = vld [vmem:[%s11119 + $0x2d4] sm:$0xf]
  %v11302 = vld [vmem:[%s11119 + $0x2d8] sm:$0xf]
  %v11303 = vld [vmem:[%s11119 + $0x2dc] sm:$0xf]
  %v11304 = vld [vmem:[%s11119 + $0x2e0] sm:$0xf]
  %v11305 = vld [vmem:[%s11119 + $0x2e4] sm:$0xf]
  %v11306 = vld [vmem:[%s11119 + $0x2e8] sm:$0xf]
  %v11307 = vld [vmem:[%s11119 + $0x2ec] sm:$0xf]
  %v11308 = vld [vmem:[%s11119 + $0x2f0] sm:$0xf]
  %v11309 = vld [vmem:[%s11119 + $0x2f4] sm:$0xf]
  %v11310 = vld [vmem:[%s11119 + $0x2f8] sm:$0xf]
  %v11311 = vld [vmem:[%s11119 + $0x2fc] sm:$0xf]
  %v11312 = vld [vmem:[%s11119 + $0x300] sm:$0xf]
  %v11313 = vld [vmem:[%s11119 + $0x304] sm:$0xf]
  %v11314 = vld [vmem:[%s11119 + $0x308] sm:$0xf]
  %v11315 = vld [vmem:[%s11119 + $0x30c] sm:$0xf]
  %v11316 = vld [vmem:[%s11119 + $0x310] sm:$0xf]
  %v11317 = vld [vmem:[%s11119 + $0x314] sm:$0xf]
  %v11318 = vld [vmem:[%s11119 + $0x318] sm:$0xf]
  %v11319 = vld [vmem:[%s11119 + $0x31c] sm:$0xf]
  %v11320 = vld [vmem:[%s11119 + $0x320] sm:$0xf]
  %v11321 = vld [vmem:[%s11119 + $0x324] sm:$0xf]
  %v11322 = vld [vmem:[%s11119 + $0x328] sm:$0xf]
  %v11323 = vld [vmem:[%s11119 + $0x32c] sm:$0xf]
  %v11324 = vld [vmem:[%s11119 + $0x330] sm:$0xf]
  %v11325 = vld [vmem:[%s11119 + $0x334] sm:$0xf]
  %v11326 = vld [vmem:[%s11119 + $0x338] sm:$0xf]
  %v11327 = vld [vmem:[%s11119 + $0x33c] sm:$0xf]
  %v11328 = vld [vmem:[%s11119 + $0x340] sm:$0xf]
  %v11329 = vld [vmem:[%s11119 + $0x344] sm:$0xf]
  %v11330 = vld [vmem:[%s11119 + $0x348] sm:$0xf]
  %v11331 = vld [vmem:[%s11119 + $0x34c] sm:$0xf]
  %v11332 = vld [vmem:[%s11119 + $0x350] sm:$0xf]
  %v11333 = vld [vmem:[%s11119 + $0x354] sm:$0xf]
  %v11334 = vld [vmem:[%s11119 + $0x358] sm:$0xf]
  %v11335 = vld [vmem:[%s11119 + $0x35c] sm:$0xf]
  %v11336 = vld [vmem:[%s11119 + $0x360] sm:$0xf]
  %v11337 = vld [vmem:[%s11119 + $0x364] sm:$0xf]
  %v11338 = vld [vmem:[%s11119 + $0x368] sm:$0xf]
  %v11339 = vld [vmem:[%s11119 + $0x36c] sm:$0xf]
  %v11340 = vld [vmem:[%s11119 + $0x370] sm:$0xf]
  %v11341 = vld [vmem:[%s11119 + $0x374] sm:$0xf]
  %v11342 = vld [vmem:[%s11119 + $0x378] sm:$0xf]
  %v11343 = vld [vmem:[%s11119 + $0x37c] sm:$0xf]
  %v11344 = vld [vmem:[%s11119 + $0x380] sm:$0xf]
  %v11345 = vld [vmem:[%s11119 + $0x384] sm:$0xf]
  %v11346 = vld [vmem:[%s11119 + $0x388] sm:$0xf]
  %v11347 = vld [vmem:[%s11119 + $0x38c] sm:$0xf]
  %v11348 = vld [vmem:[%s11119 + $0x390] sm:$0xf]
  %v11349 = vld [vmem:[%s11119 + $0x394] sm:$0xf]
  %v11350 = vld [vmem:[%s11119 + $0x398] sm:$0xf]
  %v11351 = vld [vmem:[%s11119 + $0x39c] sm:$0xf]
  %v11352 = vld [vmem:[%s11119 + $0x3a0] sm:$0xf]
  %v11353 = vld [vmem:[%s11119 + $0x3a4] sm:$0xf]
  %v11354 = vld [vmem:[%s11119 + $0x3a8] sm:$0xf]
  %v11355 = vld [vmem:[%s11119 + $0x3ac] sm:$0xf]
  %v11356 = vld [vmem:[%s11119 + $0x3b0] sm:$0xf]
  %v11357 = vld [vmem:[%s11119 + $0x3b4] sm:$0xf]
  %v11358 = vld [vmem:[%s11119 + $0x3b8] sm:$0xf]
  %v11359 = vld [vmem:[%s11119 + $0x3bc] sm:$0xf]
  %v11360 = vld [vmem:[%s11119 + $0x3c0] sm:$0xf]
  %v11361 = vld [vmem:[%s11119 + $0x3c4] sm:$0xf]
  %v11362 = vld [vmem:[%s11119 + $0x3c8] sm:$0xf]
  %v11363 = vld [vmem:[%s11119 + $0x3cc] sm:$0xf]
  %v11364 = vld [vmem:[%s11119 + $0x3d0] sm:$0xf]
  %v11365 = vld [vmem:[%s11119 + $0x3d4] sm:$0xf]
  %v11366 = vld [vmem:[%s11119 + $0x3d8] sm:$0xf]
  %v11367 = vld [vmem:[%s11119 + $0x3dc] sm:$0xf]
  %v11368 = vld [vmem:[%s11119 + $0x3e0] sm:$0xf]
  %v11369 = vld [vmem:[%s11119 + $0x3e4] sm:$0xf]
  %v11370 = vld [vmem:[%s11119 + $0x3e8] sm:$0xf]
  %v11371 = vld [vmem:[%s11119 + $0x3ec] sm:$0xf]
  %v11372 = vld [vmem:[%s11119 + $0x3f0] sm:$0xf]
  %v11373 = vld [vmem:[%s11119 + $0x3f4] sm:$0xf]
  %v11374 = vld [vmem:[%s11119 + $0x3f8] sm:$0xf]
  %v11375 = vld [vmem:[%s11119 + $0x3fc] sm:$0xf]
  %s11376 = scalar_lea.vmem %s15, 2
  %v11377 = vld [vmem:[%s11376] sm:$0x1]
  %v11379 = vlaneseq
  %v11380 = vshrl.u32 %v11379, 7
  %v11381 = vsub.s32 0, %v11380
  %v11382 = vrot.slane %v11377, %v11381
  %v11640 = vunpack.c.l.b16 %v11120
  %v11641 = vunpack.c.l.b16 %v11121
  %v11642 = vunpack.c.l.b16 %v11122
  %v11643 = vunpack.c.l.b16 %v11123
  %v11644 = vunpack.c.l.b16 %v11124
  %v11645 = vunpack.c.l.b16 %v11125
  %v11646 = vunpack.c.l.b16 %v11126
  %v11647 = vunpack.c.l.b16 %v11127
  %v11648 = vunpack.c.l.b16 %v11128
  %v11649 = vunpack.c.l.b16 %v11129
  %v11650 = vunpack.c.l.b16 %v11130
  %v11651 = vunpack.c.l.b16 %v11131
  %v11652 = vunpack.c.l.b16 %v11132
  %v11653 = vunpack.c.l.b16 %v11133
  %v11654 = vunpack.c.l.b16 %v11134
  %v11655 = vunpack.c.l.b16 %v11135
  %v11656 = vunpack.c.l.b16 %v11136
  %v11657 = vunpack.c.l.b16 %v11137
  %v11658 = vunpack.c.l.b16 %v11138
  %v11659 = vunpack.c.l.b16 %v11139
  %v11660 = vunpack.c.l.b16 %v11140
  %v11661 = vunpack.c.l.b16 %v11141
  %v11662 = vunpack.c.l.b16 %v11142
  %v11663 = vunpack.c.l.b16 %v11143
  %v11664 = vunpack.c.l.b16 %v11144
  %v11665 = vunpack.c.l.b16 %v11145
  %v11666 = vunpack.c.l.b16 %v11146
  %v11667 = vunpack.c.l.b16 %v11147
  %v11668 = vunpack.c.l.b16 %v11148
  %v11669 = vunpack.c.l.b16 %v11149
  %v11670 = vunpack.c.l.b16 %v11150
  %v11671 = vunpack.c.l.b16 %v11151
  %v11672 = vunpack.c.l.b16 %v11152
  %v11673 = vunpack.c.l.b16 %v11153
  %v11674 = vunpack.c.l.b16 %v11154
  %v11675 = vunpack.c.l.b16 %v11155
  %v11676 = vunpack.c.l.b16 %v11156
  %v11677 = vunpack.c.l.b16 %v11157
  %v11678 = vunpack.c.l.b16 %v11158
  %v11679 = vunpack.c.l.b16 %v11159
  %v11680 = vunpack.c.l.b16 %v11160
  %v11681 = vunpack.c.l.b16 %v11161
  %v11682 = vunpack.c.l.b16 %v11162
  %v11683 = vunpack.c.l.b16 %v11163
  %v11684 = vunpack.c.l.b16 %v11164
  %v11685 = vunpack.c.l.b16 %v11165
  %v11686 = vunpack.c.l.b16 %v11166
  %v11687 = vunpack.c.l.b16 %v11167
  %v11688 = vunpack.c.l.b16 %v11168
  %v11689 = vunpack.c.l.b16 %v11169
  %v11690 = vunpack.c.l.b16 %v11170
  %v11691 = vunpack.c.l.b16 %v11171
  %v11692 = vunpack.c.l.b16 %v11172
  %v11693 = vunpack.c.l.b16 %v11173
  %v11694 = vunpack.c.l.b16 %v11174
  %v11695 = vunpack.c.l.b16 %v11175
  %v11696 = vunpack.c.l.b16 %v11176
  %v11697 = vunpack.c.l.b16 %v11177
  %v11698 = vunpack.c.l.b16 %v11178
  %v11699 = vunpack.c.l.b16 %v11179
  %v11700 = vunpack.c.l.b16 %v11180
  %v11701 = vunpack.c.l.b16 %v11181
  %v11702 = vunpack.c.l.b16 %v11182
  %v11703 = vunpack.c.l.b16 %v11183
  %v11704 = vunpack.c.l.b16 %v11184
  %v11705 = vunpack.c.l.b16 %v11185
  %v11706 = vunpack.c.l.b16 %v11186
  %v11707 = vunpack.c.l.b16 %v11187
  %v11708 = vunpack.c.l.b16 %v11188
  %v11709 = vunpack.c.l.b16 %v11189
  %v11710 = vunpack.c.l.b16 %v11190
  %v11711 = vunpack.c.l.b16 %v11191
  %v11712 = vunpack.c.l.b16 %v11192
  %v11713 = vunpack.c.l.b16 %v11193
  %v11714 = vunpack.c.l.b16 %v11194
  %v11715 = vunpack.c.l.b16 %v11195
  %v11716 = vunpack.c.l.b16 %v11196
  %v11717 = vunpack.c.l.b16 %v11197
  %v11718 = vunpack.c.l.b16 %v11198
  %v11719 = vunpack.c.l.b16 %v11199
  %v11720 = vunpack.c.l.b16 %v11200
  %v11721 = vunpack.c.l.b16 %v11201
  %v11722 = vunpack.c.l.b16 %v11202
  %v11723 = vunpack.c.l.b16 %v11203
  %v11724 = vunpack.c.l.b16 %v11204
  %v11725 = vunpack.c.l.b16 %v11205
  %v11726 = vunpack.c.l.b16 %v11206
  %v11727 = vunpack.c.l.b16 %v11207
  %v11728 = vunpack.c.l.b16 %v11208
  %v11729 = vunpack.c.l.b16 %v11209
  %v11730 = vunpack.c.l.b16 %v11210
  %v11731 = vunpack.c.l.b16 %v11211
  %v11732 = vunpack.c.l.b16 %v11212
  %v11733 = vunpack.c.l.b16 %v11213
  %v11734 = vunpack.c.l.b16 %v11214
  %v11735 = vunpack.c.l.b16 %v11215
  %v11736 = vunpack.c.l.b16 %v11216
  %v11737 = vunpack.c.l.b16 %v11217
  %v11738 = vunpack.c.l.b16 %v11218
  %v11739 = vunpack.c.l.b16 %v11219
  %v11740 = vunpack.c.l.b16 %v11220
  %v11741 = vunpack.c.l.b16 %v11221
  %v11742 = vunpack.c.l.b16 %v11222
  %v11743 = vunpack.c.l.b16 %v11223
  %v11744 = vunpack.c.l.b16 %v11224
  %v11745 = vunpack.c.l.b16 %v11225
  %v11746 = vunpack.c.l.b16 %v11226
  %v11747 = vunpack.c.l.b16 %v11227
  %v11748 = vunpack.c.l.b16 %v11228
  %v11749 = vunpack.c.l.b16 %v11229
  %v11750 = vunpack.c.l.b16 %v11230
  %v11751 = vunpack.c.l.b16 %v11231
  %v11752 = vunpack.c.l.b16 %v11232
  %v11753 = vunpack.c.l.b16 %v11233
  %v11754 = vunpack.c.l.b16 %v11234
  %v11755 = vunpack.c.l.b16 %v11235
  %v11756 = vunpack.c.l.b16 %v11236
  %v11757 = vunpack.c.l.b16 %v11237
  %v11758 = vunpack.c.l.b16 %v11238
  %v11759 = vunpack.c.l.b16 %v11239
  %v11760 = vunpack.c.l.b16 %v11240
  %v11761 = vunpack.c.l.b16 %v11241
  %v11762 = vunpack.c.l.b16 %v11242
  %v11763 = vunpack.c.l.b16 %v11243
  %v11764 = vunpack.c.l.b16 %v11244
  %v11765 = vunpack.c.l.b16 %v11245
  %v11766 = vunpack.c.l.b16 %v11246
  %v11767 = vunpack.c.l.b16 %v11247
  %v11768 = vunpack.c.l.b16 %v11248
  %v11769 = vunpack.c.l.b16 %v11249
  %v11770 = vunpack.c.l.b16 %v11250
  %v11771 = vunpack.c.l.b16 %v11251
  %v11772 = vunpack.c.l.b16 %v11252
  %v11773 = vunpack.c.l.b16 %v11253
  %v11774 = vunpack.c.l.b16 %v11254
  %v11775 = vunpack.c.l.b16 %v11255
  %v11776 = vunpack.c.l.b16 %v11256
  %v11777 = vunpack.c.l.b16 %v11257
  %v11778 = vunpack.c.l.b16 %v11258
  %v11779 = vunpack.c.l.b16 %v11259
  %v11780 = vunpack.c.l.b16 %v11260
  %v11781 = vunpack.c.l.b16 %v11261
  %v11782 = vunpack.c.l.b16 %v11262
  %v11783 = vunpack.c.l.b16 %v11263
  %v11784 = vunpack.c.l.b16 %v11264
  %v11785 = vunpack.c.l.b16 %v11265
  %v11786 = vunpack.c.l.b16 %v11266
  %v11787 = vunpack.c.l.b16 %v11267
  %v11788 = vunpack.c.l.b16 %v11268
  %v11789 = vunpack.c.l.b16 %v11269
  %v11790 = vunpack.c.l.b16 %v11270
  %v11791 = vunpack.c.l.b16 %v11271
  %v11792 = vunpack.c.l.b16 %v11272
  %v11793 = vunpack.c.l.b16 %v11273
  %v11794 = vunpack.c.l.b16 %v11274
  %v11795 = vunpack.c.l.b16 %v11275
  %v11796 = vunpack.c.l.b16 %v11276
  %v11797 = vunpack.c.l.b16 %v11277
  %v11798 = vunpack.c.l.b16 %v11278
  %v11799 = vunpack.c.l.b16 %v11279
  %v11800 = vunpack.c.l.b16 %v11280
  %v11801 = vunpack.c.l.b16 %v11281
  %v11802 = vunpack.c.l.b16 %v11282
  %v11803 = vunpack.c.l.b16 %v11283
  %v11804 = vunpack.c.l.b16 %v11284
  %v11805 = vunpack.c.l.b16 %v11285
  %v11806 = vunpack.c.l.b16 %v11286
  %v11807 = vunpack.c.l.b16 %v11287
  %v11808 = vunpack.c.l.b16 %v11288
  %v11809 = vunpack.c.l.b16 %v11289
  %v11810 = vunpack.c.l.b16 %v11290
  %v11811 = vunpack.c.l.b16 %v11291
  %v11812 = vunpack.c.l.b16 %v11292
  %v11813 = vunpack.c.l.b16 %v11293
  %v11814 = vunpack.c.l.b16 %v11294
  %v11815 = vunpack.c.l.b16 %v11295
  %v11816 = vunpack.c.l.b16 %v11296
  %v11817 = vunpack.c.l.b16 %v11297
  %v11818 = vunpack.c.l.b16 %v11298
  %v11819 = vunpack.c.l.b16 %v11299
  %v11820 = vunpack.c.l.b16 %v11300
  %v11821 = vunpack.c.l.b16 %v11301
  %v11822 = vunpack.c.l.b16 %v11302
  %v11823 = vunpack.c.l.b16 %v11303
  %v11824 = vunpack.c.l.b16 %v11304
  %v11825 = vunpack.c.l.b16 %v11305
  %v11826 = vunpack.c.l.b16 %v11306
  %v11827 = vunpack.c.l.b16 %v11307
  %v11828 = vunpack.c.l.b16 %v11308
  %v11829 = vunpack.c.l.b16 %v11309
  %v11830 = vunpack.c.l.b16 %v11310
  %v11831 = vunpack.c.l.b16 %v11311
  %v11832 = vunpack.c.l.b16 %v11312
  %v11833 = vunpack.c.l.b16 %v11313
  %v11834 = vunpack.c.l.b16 %v11314
  %v11835 = vunpack.c.l.b16 %v11315
  %v11836 = vunpack.c.l.b16 %v11316
  %v11837 = vunpack.c.l.b16 %v11317
  %v11838 = vunpack.c.l.b16 %v11318
  %v11839 = vunpack.c.l.b16 %v11319
  %v11840 = vunpack.c.l.b16 %v11320
  %v11841 = vunpack.c.l.b16 %v11321
  %v11842 = vunpack.c.l.b16 %v11322
  %v11843 = vunpack.c.l.b16 %v11323
  %v11844 = vunpack.c.l.b16 %v11324
  %v11845 = vunpack.c.l.b16 %v11325
  %v11846 = vunpack.c.l.b16 %v11326
  %v11847 = vunpack.c.l.b16 %v11327
  %v11848 = vunpack.c.l.b16 %v11328
  %v11849 = vunpack.c.l.b16 %v11329
  %v11850 = vunpack.c.l.b16 %v11330
  %v11851 = vunpack.c.l.b16 %v11331
  %v11852 = vunpack.c.l.b16 %v11332
  %v11853 = vunpack.c.l.b16 %v11333
  %v11854 = vunpack.c.l.b16 %v11334
  %v11855 = vunpack.c.l.b16 %v11335
  %v11856 = vunpack.c.l.b16 %v11336
  %v11857 = vunpack.c.l.b16 %v11337
  %v11858 = vunpack.c.l.b16 %v11338
  %v11859 = vunpack.c.l.b16 %v11339
  %v11860 = vunpack.c.l.b16 %v11340
  %v11861 = vunpack.c.l.b16 %v11341
  %v11862 = vunpack.c.l.b16 %v11342
  %v11863 = vunpack.c.l.b16 %v11343
  %v11864 = vunpack.c.l.b16 %v11344
  %v11865 = vunpack.c.l.b16 %v11345
  %v11866 = vunpack.c.l.b16 %v11346
  %v11867 = vunpack.c.l.b16 %v11347
  %v11868 = vunpack.c.l.b16 %v11348
  %v11869 = vunpack.c.l.b16 %v11349
  %v11870 = vunpack.c.l.b16 %v11350
  %v11871 = vunpack.c.l.b16 %v11351
  %v11872 = vunpack.c.l.b16 %v11352
  %v11873 = vunpack.c.l.b16 %v11353
  %v11874 = vunpack.c.l.b16 %v11354
  %v11875 = vunpack.c.l.b16 %v11355
  %v11876 = vunpack.c.l.b16 %v11356
  %v11877 = vunpack.c.l.b16 %v11357
  %v11878 = vunpack.c.l.b16 %v11358
  %v11879 = vunpack.c.l.b16 %v11359
  %v11880 = vunpack.c.l.b16 %v11360
  %v11881 = vunpack.c.l.b16 %v11361
  %v11882 = vunpack.c.l.b16 %v11362
  %v11883 = vunpack.c.l.b16 %v11363
  %v11884 = vunpack.c.l.b16 %v11364
  %v11885 = vunpack.c.l.b16 %v11365
  %v11886 = vunpack.c.l.b16 %v11366
  %v11887 = vunpack.c.l.b16 %v11367
  %v11888 = vunpack.c.l.b16 %v11368
  %v11889 = vunpack.c.l.b16 %v11369
  %v11890 = vunpack.c.l.b16 %v11370
  %v11891 = vunpack.c.l.b16 %v11371
  %v11892 = vunpack.c.l.b16 %v11372
  %v11893 = vunpack.c.l.b16 %v11373
  %v11894 = vunpack.c.l.b16 %v11374
  %v11895 = vunpack.c.l.b16 %v11375
  %v11896 = vpack.c.b16 %v11641, %v11640
  %v11897 = vpack.c.b16 %v11643, %v11642
  %v11898 = vpack.c.b16 %v11645, %v11644
  %v11899 = vpack.c.b16 %v11647, %v11646
  %v11900 = vpack.c.b16 %v11649, %v11648
  %v11901 = vpack.c.b16 %v11651, %v11650
  %v11902 = vpack.c.b16 %v11653, %v11652
  %v11903 = vpack.c.b16 %v11655, %v11654
  %v11904 = vpack.c.b16 %v11657, %v11656
  %v11905 = vpack.c.b16 %v11659, %v11658
  %v11906 = vpack.c.b16 %v11661, %v11660
  %v11907 = vpack.c.b16 %v11663, %v11662
  %v11908 = vpack.c.b16 %v11665, %v11664
  %v11909 = vpack.c.b16 %v11667, %v11666
  %v11910 = vpack.c.b16 %v11669, %v11668
  %v11911 = vpack.c.b16 %v11671, %v11670
  %v11912 = vpack.c.b16 %v11673, %v11672
  %v11913 = vpack.c.b16 %v11675, %v11674
  %v11914 = vpack.c.b16 %v11677, %v11676
  %v11915 = vpack.c.b16 %v11679, %v11678
  %v11916 = vpack.c.b16 %v11681, %v11680
  %v11917 = vpack.c.b16 %v11683, %v11682
  %v11918 = vpack.c.b16 %v11685, %v11684
  %v11919 = vpack.c.b16 %v11687, %v11686
  %v11920 = vpack.c.b16 %v11689, %v11688
  %v11921 = vpack.c.b16 %v11691, %v11690
  %v11922 = vpack.c.b16 %v11693, %v11692
  %v11923 = vpack.c.b16 %v11695, %v11694
  %v11924 = vpack.c.b16 %v11697, %v11696
  %v11925 = vpack.c.b16 %v11699, %v11698
  %v11926 = vpack.c.b16 %v11701, %v11700
  %v11927 = vpack.c.b16 %v11703, %v11702
  %v11928 = vpack.c.b16 %v11705, %v11704
  %v11929 = vpack.c.b16 %v11707, %v11706
  %v11930 = vpack.c.b16 %v11709, %v11708
  %v11931 = vpack.c.b16 %v11711, %v11710
  %v11932 = vpack.c.b16 %v11713, %v11712
  %v11933 = vpack.c.b16 %v11715, %v11714
  %v11934 = vpack.c.b16 %v11717, %v11716
  %v11935 = vpack.c.b16 %v11719, %v11718
  %v11936 = vpack.c.b16 %v11721, %v11720
  %v11937 = vpack.c.b16 %v11723, %v11722
  %v11938 = vpack.c.b16 %v11725, %v11724
  %v11939 = vpack.c.b16 %v11727, %v11726
  %v11940 = vpack.c.b16 %v11729, %v11728
  %v11941 = vpack.c.b16 %v11731, %v11730
  %v11942 = vpack.c.b16 %v11733, %v11732
  %v11943 = vpack.c.b16 %v11735, %v11734
  %v11944 = vpack.c.b16 %v11737, %v11736
  %v11945 = vpack.c.b16 %v11739, %v11738
  %v11946 = vpack.c.b16 %v11741, %v11740
  %v11947 = vpack.c.b16 %v11743, %v11742
  %v11948 = vpack.c.b16 %v11745, %v11744
  %v11949 = vpack.c.b16 %v11747, %v11746
  %v11950 = vpack.c.b16 %v11749, %v11748
  %v11951 = vpack.c.b16 %v11751, %v11750
  %v11952 = vpack.c.b16 %v11753, %v11752
  %v11953 = vpack.c.b16 %v11755, %v11754
  %v11954 = vpack.c.b16 %v11757, %v11756
  %v11955 = vpack.c.b16 %v11759, %v11758
  %v11956 = vpack.c.b16 %v11761, %v11760
  %v11957 = vpack.c.b16 %v11763, %v11762
  %v11958 = vpack.c.b16 %v11765, %v11764
  %v11959 = vpack.c.b16 %v11767, %v11766
  %v11960 = vpack.c.b16 %v11769, %v11768
  %v11961 = vpack.c.b16 %v11771, %v11770
  %v11962 = vpack.c.b16 %v11773, %v11772
  %v11963 = vpack.c.b16 %v11775, %v11774
  %v11964 = vpack.c.b16 %v11777, %v11776
  %v11965 = vpack.c.b16 %v11779, %v11778
  %v11966 = vpack.c.b16 %v11781, %v11780
  %v11967 = vpack.c.b16 %v11783, %v11782
  %v11968 = vpack.c.b16 %v11785, %v11784
  %v11969 = vpack.c.b16 %v11787, %v11786
  %v11970 = vpack.c.b16 %v11789, %v11788
  %v11971 = vpack.c.b16 %v11791, %v11790
  %v11972 = vpack.c.b16 %v11793, %v11792
  %v11973 = vpack.c.b16 %v11795, %v11794
  %v11974 = vpack.c.b16 %v11797, %v11796
  %v11975 = vpack.c.b16 %v11799, %v11798
  %v11976 = vpack.c.b16 %v11801, %v11800
  %v11977 = vpack.c.b16 %v11803, %v11802
  %v11978 = vpack.c.b16 %v11805, %v11804
  %v11979 = vpack.c.b16 %v11807, %v11806
  %v11980 = vpack.c.b16 %v11809, %v11808
  %v11981 = vpack.c.b16 %v11811, %v11810
  %v11982 = vpack.c.b16 %v11813, %v11812
  %v11983 = vpack.c.b16 %v11815, %v11814
  %v11984 = vpack.c.b16 %v11817, %v11816
  %v11985 = vpack.c.b16 %v11819, %v11818
  %v11986 = vpack.c.b16 %v11821, %v11820
  %v11987 = vpack.c.b16 %v11823, %v11822
  %v11988 = vpack.c.b16 %v11825, %v11824
  %v11989 = vpack.c.b16 %v11827, %v11826
  %v11990 = vpack.c.b16 %v11829, %v11828
  %v11991 = vpack.c.b16 %v11831, %v11830
  %v11992 = vpack.c.b16 %v11833, %v11832
  %v11993 = vpack.c.b16 %v11835, %v11834
  %v11994 = vpack.c.b16 %v11837, %v11836
  %v11995 = vpack.c.b16 %v11839, %v11838
  %v11996 = vpack.c.b16 %v11841, %v11840
  %v11997 = vpack.c.b16 %v11843, %v11842
  %v11998 = vpack.c.b16 %v11845, %v11844
  %v11999 = vpack.c.b16 %v11847, %v11846
  %v12000 = vpack.c.b16 %v11849, %v11848
  %v12001 = vpack.c.b16 %v11851, %v11850
  %v12002 = vpack.c.b16 %v11853, %v11852
  %v12003 = vpack.c.b16 %v11855, %v11854
  %v12004 = vpack.c.b16 %v11857, %v11856
  %v12005 = vpack.c.b16 %v11859, %v11858
  %v12006 = vpack.c.b16 %v11861, %v11860
  %v12007 = vpack.c.b16 %v11863, %v11862
  %v12008 = vpack.c.b16 %v11865, %v11864
  %v12009 = vpack.c.b16 %v11867, %v11866
  %v12010 = vpack.c.b16 %v11869, %v11868
  %v12011 = vpack.c.b16 %v11871, %v11870
  %v12012 = vpack.c.b16 %v11873, %v11872
  %v12013 = vpack.c.b16 %v11875, %v11874
  %v12014 = vpack.c.b16 %v11877, %v11876
  %v12015 = vpack.c.b16 %v11879, %v11878
  %v12016 = vpack.c.b16 %v11881, %v11880
  %v12017 = vpack.c.b16 %v11883, %v11882
  %v12018 = vpack.c.b16 %v11885, %v11884
  %v12019 = vpack.c.b16 %v11887, %v11886
  %v12020 = vpack.c.b16 %v11889, %v11888
  %v12021 = vpack.c.b16 %v11891, %v11890
  %v12022 = vpack.c.b16 %v11893, %v11892
  %v12023 = vpack.c.b16 %v11895, %v11894
  %12152 = vmatprep.subr.bf16.mxu0 0
  %12153 = vmatpush1.bf16.msra.mxu0 %v11903
  %12154 = vmatprep.subr.bf16.mxu0 0
  %12155 = vmatpush1.bf16.msra.mxu0 %v11902
  %12156 = vmatprep.subr.bf16.mxu0 0
  %12157 = vmatpush1.bf16.msra.mxu0 %v11901
  %12158 = vmatprep.subr.bf16.mxu0 0
  %12159 = vmatpush1.bf16.msra.mxu0 %v11900
  %12160 = vmatprep.subr.bf16.mxu0 0
  %12161 = vmatpush1.bf16.msra.mxu0 %v11899
  %12162 = vmatprep.subr.bf16.mxu0 0
  %12163 = vmatpush1.bf16.msra.mxu0 %v11898
  %12164 = vmatprep.subr.bf16.mxu0 0
  %12165 = vmatpush1.bf16.msra.mxu0 %v11897
  %12166 = vmatprep.subr.bf16.mxu0 0
  %12167 = vmatpush1.bf16.msra.mxu0 %v11896
  %12168 = vmatprep.subr.bf16.mxu0 0
  %12169 = vmatpush2.bf16.msra.mxu0 %v11911
  %12170 = vmatprep.subr.bf16.mxu0 0
  %12171 = vmatpush2.bf16.msra.mxu0 %v11910
  %12172 = vmatprep.subr.bf16.mxu0 0
  %12173 = vmatpush2.bf16.msra.mxu0 %v11909
  %12174 = vmatprep.subr.bf16.mxu0 0
  %12175 = vmatpush2.bf16.msra.mxu0 %v11908
  %12176 = vmatprep.subr.bf16.mxu0 0
  %12177 = vmatpush2.bf16.msra.mxu0 %v11907
  %12178 = vmatprep.subr.bf16.mxu0 0
  %12179 = vmatpush2.bf16.msra.mxu0 %v11906
  %12180 = vmatprep.subr.bf16.mxu0 0
  %12181 = vmatpush2.bf16.msra.mxu0 %v11905
  %12182 = vmatprep.subr.bf16.mxu0 0
  %12183 = vmatpush2.bf16.msra.mxu0 %v11904
  %12184 = vmatprep.mubr.bf16.mxu0 %v11104
  %12185 = vmatmul.mubr.bf16.gmra.mxu0 %v11103
  %v12186 = vpop.f32.mrf.mxu0
  %v12187 = vadd.f32 %v11382, %v12186
  %v12188 = vpop.f32.mrf.mxu0
  %v12189 = vpop.f32.mrf.mxu0
  %v12190 = vpop.f32.mrf.mxu0
  %12191 = vdwg.mxu0
  %12192 = vmatprep.subr.bf16.mxu0 0
  %12193 = vmatpush1.bf16.msra.mxu0 %v11919
  %12194 = vmatprep.subr.bf16.mxu0 0
  %12195 = vmatpush1.bf16.msra.mxu0 %v11918
  %12196 = vmatprep.subr.bf16.mxu0 0
  %12197 = vmatpush1.bf16.msra.mxu0 %v11917
  %12198 = vmatprep.subr.bf16.mxu0 0
  %12199 = vmatpush1.bf16.msra.mxu0 %v11916
  %12200 = vmatprep.subr.bf16.mxu0 0
  %12201 = vmatpush1.bf16.msra.mxu0 %v11915
  %12202 = vmatprep.subr.bf16.mxu0 0
  %12203 = vmatpush1.bf16.msra.mxu0 %v11914
  %12204 = vmatprep.subr.bf16.mxu0 0
  %12205 = vmatpush1.bf16.msra.mxu0 %v11913
  %12206 = vmatprep.subr.bf16.mxu0 0
  %12207 = vmatpush1.bf16.msra.mxu0 %v11912
  %12208 = vmatprep.subr.bf16.mxu0 0
  %12209 = vmatpush2.bf16.msra.mxu0 %v11927
  %12210 = vmatprep.subr.bf16.mxu0 0
  %12211 = vmatpush2.bf16.msra.mxu0 %v11926
  %12212 = vmatprep.subr.bf16.mxu0 0
  %12213 = vmatpush2.bf16.msra.mxu0 %v11925
  %12214 = vmatprep.subr.bf16.mxu0 0
  %12215 = vmatpush2.bf16.msra.mxu0 %v11924
  %12216 = vmatprep.subr.bf16.mxu0 0
  %12217 = vmatpush2.bf16.msra.mxu0 %v11923
  %12218 = vmatprep.subr.bf16.mxu0 0
  %12219 = vmatpush2.bf16.msra.mxu0 %v11922
  %12220 = vmatprep.subr.bf16.mxu0 0
  %12221 = vmatpush2.bf16.msra.mxu0 %v11921
  %12222 = vmatprep.subr.bf16.mxu0 0
  %12223 = vmatpush2.bf16.msra.mxu0 %v11920
  %12224 = vmatprep.mubr.bf16.mxu0 %v11106
  %12225 = vmatmul.mubr.bf16.gmra.mxu0 %v11105
  %v12226 = vpop.f32.mrf.mxu0
  %v12227 = vadd.f32 %v12187, %v12226
  %v12228 = vpop.f32.mrf.mxu0
  %v12229 = vpop.f32.mrf.mxu0
  %v12230 = vpop.f32.mrf.mxu0
  %12231 = vdwg.mxu0
  %12232 = vmatprep.subr.bf16.mxu0 0
  %12233 = vmatpush1.bf16.msra.mxu0 %v11935
  %12234 = vmatprep.subr.bf16.mxu0 0
  %12235 = vmatpush1.bf16.msra.mxu0 %v11934
  %12236 = vmatprep.subr.bf16.mxu0 0
  %12237 = vmatpush1.bf16.msra.mxu0 %v11933
  %12238 = vmatprep.subr.bf16.mxu0 0
  %12239 = vmatpush1.bf16.msra.mxu0 %v11932
  %12240 = vmatprep.subr.bf16.mxu0 0
  %12241 = vmatpush1.bf16.msra.mxu0 %v11931
  %12242 = vmatprep.subr.bf16.mxu0 0
  %12243 = vmatpush1.bf16.msra.mxu0 %v11930
  %12244 = vmatprep.subr.bf16.mxu0 0
  %12245 = vmatpush1.bf16.msra.mxu0 %v11929
  %12246 = vmatprep.subr.bf16.mxu0 0
  %12247 = vmatpush1.bf16.msra.mxu0 %v11928
  %12248 = vmatprep.subr.bf16.mxu0 0
  %12249 = vmatpush2.bf16.msra.mxu0 %v11943
  %12250 = vmatprep.subr.bf16.mxu0 0
  %12251 = vmatpush2.bf16.msra.mxu0 %v11942
  %12252 = vmatprep.subr.bf16.mxu0 0
  %12253 = vmatpush2.bf16.msra.mxu0 %v11941
  %12254 = vmatprep.subr.bf16.mxu0 0
  %12255 = vmatpush2.bf16.msra.mxu0 %v11940
  %12256 = vmatprep.subr.bf16.mxu0 0
  %12257 = vmatpush2.bf16.msra.mxu0 %v11939
  %12258 = vmatprep.subr.bf16.mxu0 0
  %12259 = vmatpush2.bf16.msra.mxu0 %v11938
  %12260 = vmatprep.subr.bf16.mxu0 0
  %12261 = vmatpush2.bf16.msra.mxu0 %v11937
  %12262 = vmatprep.subr.bf16.mxu0 0
  %12263 = vmatpush2.bf16.msra.mxu0 %v11936
  %12264 = vmatprep.mubr.bf16.mxu0 %v11108
  %12265 = vmatmul.mubr.bf16.gmra.mxu0 %v11107
  %v12266 = vpop.f32.mrf.mxu0
  %v12267 = vadd.f32 %v12227, %v12266
  %v12268 = vpop.f32.mrf.mxu0
  %v12269 = vpop.f32.mrf.mxu0
  %v12270 = vpop.f32.mrf.mxu0
  %12271 = vdwg.mxu0
  %12272 = vmatprep.subr.bf16.mxu0 0
  %12273 = vmatpush1.bf16.msra.mxu0 %v11951
  %12274 = vmatprep.subr.bf16.mxu0 0
  %12275 = vmatpush1.bf16.msra.mxu0 %v11950
  %12276 = vmatprep.subr.bf16.mxu0 0
  %12277 = vmatpush1.bf16.msra.mxu0 %v11949
  %12278 = vmatprep.subr.bf16.mxu0 0
  %12279 = vmatpush1.bf16.msra.mxu0 %v11948
  %12280 = vmatprep.subr.bf16.mxu0 0
  %12281 = vmatpush1.bf16.msra.mxu0 %v11947
  %12282 = vmatprep.subr.bf16.mxu0 0
  %12283 = vmatpush1.bf16.msra.mxu0 %v11946
  %12284 = vmatprep.subr.bf16.mxu0 0
  %12285 = vmatpush1.bf16.msra.mxu0 %v11945
  %12286 = vmatprep.subr.bf16.mxu0 0
  %12287 = vmatpush1.bf16.msra.mxu0 %v11944
  %12288 = vmatprep.subr.bf16.mxu0 0
  %12289 = vmatpush2.bf16.msra.mxu0 %v11959
  %12290 = vmatprep.subr.bf16.mxu0 0
  %12291 = vmatpush2.bf16.msra.mxu0 %v11958
  %12292 = vmatprep.subr.bf16.mxu0 0
  %12293 = vmatpush2.bf16.msra.mxu0 %v11957
  %12294 = vmatprep.subr.bf16.mxu0 0
  %12295 = vmatpush2.bf16.msra.mxu0 %v11956
  %12296 = vmatprep.subr.bf16.mxu0 0
  %12297 = vmatpush2.bf16.msra.mxu0 %v11955
  %12298 = vmatprep.subr.bf16.mxu0 0
  %12299 = vmatpush2.bf16.msra.mxu0 %v11954
  %12300 = vmatprep.subr.bf16.mxu0 0
  %12301 = vmatpush2.bf16.msra.mxu0 %v11953
  %12302 = vmatprep.subr.bf16.mxu0 0
  %12303 = vmatpush2.bf16.msra.mxu0 %v11952
  %12304 = vmatprep.mubr.bf16.mxu0 %v11110
  %12305 = vmatmul.mubr.bf16.gmra.mxu0 %v11109
  %v12306 = vpop.f32.mrf.mxu0
  %v12307 = vadd.f32 %v12267, %v12306
  %v12308 = vpop.f32.mrf.mxu0
  %v12309 = vpop.f32.mrf.mxu0
  %v12310 = vpop.f32.mrf.mxu0
  %12311 = vdwg.mxu0
  %12312 = vmatprep.subr.bf16.mxu0 0
  %12313 = vmatpush1.bf16.msra.mxu0 %v11967
  %12314 = vmatprep.subr.bf16.mxu0 0
  %12315 = vmatpush1.bf16.msra.mxu0 %v11966
  %12316 = vmatprep.subr.bf16.mxu0 0
  %12317 = vmatpush1.bf16.msra.mxu0 %v11965
  %12318 = vmatprep.subr.bf16.mxu0 0
  %12319 = vmatpush1.bf16.msra.mxu0 %v11964
  %12320 = vmatprep.subr.bf16.mxu0 0
  %12321 = vmatpush1.bf16.msra.mxu0 %v11963
  %12322 = vmatprep.subr.bf16.mxu0 0
  %12323 = vmatpush1.bf16.msra.mxu0 %v11962
  %12324 = vmatprep.subr.bf16.mxu0 0
  %12325 = vmatpush1.bf16.msra.mxu0 %v11961
  %12326 = vmatprep.subr.bf16.mxu0 0
  %12327 = vmatpush1.bf16.msra.mxu0 %v11960
  %12328 = vmatprep.subr.bf16.mxu0 0
  %12329 = vmatpush2.bf16.msra.mxu0 %v11975
  %12330 = vmatprep.subr.bf16.mxu0 0
  %12331 = vmatpush2.bf16.msra.mxu0 %v11974
  %12332 = vmatprep.subr.bf16.mxu0 0
  %12333 = vmatpush2.bf16.msra.mxu0 %v11973
  %12334 = vmatprep.subr.bf16.mxu0 0
  %12335 = vmatpush2.bf16.msra.mxu0 %v11972
  %12336 = vmatprep.subr.bf16.mxu0 0
  %12337 = vmatpush2.bf16.msra.mxu0 %v11971
  %12338 = vmatprep.subr.bf16.mxu0 0
  %12339 = vmatpush2.bf16.msra.mxu0 %v11970
  %12340 = vmatprep.subr.bf16.mxu0 0
  %12341 = vmatpush2.bf16.msra.mxu0 %v11969
  %12342 = vmatprep.subr.bf16.mxu0 0
  %12343 = vmatpush2.bf16.msra.mxu0 %v11968
  %12344 = vmatprep.mubr.bf16.mxu0 %v11112
  %12345 = vmatmul.mubr.bf16.gmra.mxu0 %v11111
  %v12346 = vpop.f32.mrf.mxu0
  %v12347 = vadd.f32 %v12307, %v12346
  %v12348 = vpop.f32.mrf.mxu0
  %v12349 = vpop.f32.mrf.mxu0
  %v12350 = vpop.f32.mrf.mxu0
  %12351 = vdwg.mxu0
  %12352 = vmatprep.subr.bf16.mxu0 0
  %12353 = vmatpush1.bf16.msra.mxu0 %v11983
  %12354 = vmatprep.subr.bf16.mxu0 0
  %12355 = vmatpush1.bf16.msra.mxu0 %v11982
  %12356 = vmatprep.subr.bf16.mxu0 0
  %12357 = vmatpush1.bf16.msra.mxu0 %v11981
  %12358 = vmatprep.subr.bf16.mxu0 0
  %12359 = vmatpush1.bf16.msra.mxu0 %v11980
  %12360 = vmatprep.subr.bf16.mxu0 0
  %12361 = vmatpush1.bf16.msra.mxu0 %v11979
  %12362 = vmatprep.subr.bf16.mxu0 0
  %12363 = vmatpush1.bf16.msra.mxu0 %v11978
  %12364 = vmatprep.subr.bf16.mxu0 0
  %12365 = vmatpush1.bf16.msra.mxu0 %v11977
  %12366 = vmatprep.subr.bf16.mxu0 0
  %12367 = vmatpush1.bf16.msra.mxu0 %v11976
  %12368 = vmatprep.subr.bf16.mxu0 0
  %12369 = vmatpush2.bf16.msra.mxu0 %v11991
  %12370 = vmatprep.subr.bf16.mxu0 0
  %12371 = vmatpush2.bf16.msra.mxu0 %v11990
  %12372 = vmatprep.subr.bf16.mxu0 0
  %12373 = vmatpush2.bf16.msra.mxu0 %v11989
  %12374 = vmatprep.subr.bf16.mxu0 0
  %12375 = vmatpush2.bf16.msra.mxu0 %v11988
  %12376 = vmatprep.subr.bf16.mxu0 0
  %12377 = vmatpush2.bf16.msra.mxu0 %v11987
  %12378 = vmatprep.subr.bf16.mxu0 0
  %12379 = vmatpush2.bf16.msra.mxu0 %v11986
  %12380 = vmatprep.subr.bf16.mxu0 0
  %12381 = vmatpush2.bf16.msra.mxu0 %v11985
  %12382 = vmatprep.subr.bf16.mxu0 0
  %12383 = vmatpush2.bf16.msra.mxu0 %v11984
  %12384 = vmatprep.mubr.bf16.mxu0 %v11114
  %12385 = vmatmul.mubr.bf16.gmra.mxu0 %v11113
  %v12386 = vpop.f32.mrf.mxu0
  %v12387 = vadd.f32 %v12347, %v12386
  %v12388 = vpop.f32.mrf.mxu0
  %v12389 = vpop.f32.mrf.mxu0
  %v12390 = vpop.f32.mrf.mxu0
  %12391 = vdwg.mxu0
  %12392 = vmatprep.subr.bf16.mxu0 0
  %12393 = vmatpush1.bf16.msra.mxu0 %v11999
  %12394 = vmatprep.subr.bf16.mxu0 0
  %12395 = vmatpush1.bf16.msra.mxu0 %v11998
  %12396 = vmatprep.subr.bf16.mxu0 0
  %12397 = vmatpush1.bf16.msra.mxu0 %v11997
  %12398 = vmatprep.subr.bf16.mxu0 0
  %12399 = vmatpush1.bf16.msra.mxu0 %v11996
  %12400 = vmatprep.subr.bf16.mxu0 0
  %12401 = vmatpush1.bf16.msra.mxu0 %v11995
  %12402 = vmatprep.subr.bf16.mxu0 0
  %12403 = vmatpush1.bf16.msra.mxu0 %v11994
  %12404 = vmatprep.subr.bf16.mxu0 0
  %12405 = vmatpush1.bf16.msra.mxu0 %v11993
  %12406 = vmatprep.subr.bf16.mxu0 0
  %12407 = vmatpush1.bf16.msra.mxu0 %v11992
  %12408 = vmatprep.subr.bf16.mxu0 0
  %12409 = vmatpush2.bf16.msra.mxu0 %v12007
  %12410 = vmatprep.subr.bf16.mxu0 0
  %12411 = vmatpush2.bf16.msra.mxu0 %v12006
  %12412 = vmatprep.subr.bf16.mxu0 0
  %12413 = vmatpush2.bf16.msra.mxu0 %v12005
  %12414 = vmatprep.subr.bf16.mxu0 0
  %12415 = vmatpush2.bf16.msra.mxu0 %v12004
  %12416 = vmatprep.subr.bf16.mxu0 0
  %12417 = vmatpush2.bf16.msra.mxu0 %v12003
  %12418 = vmatprep.subr.bf16.mxu0 0
  %12419 = vmatpush2.bf16.msra.mxu0 %v12002
  %12420 = vmatprep.subr.bf16.mxu0 0
  %12421 = vmatpush2.bf16.msra.mxu0 %v12001
  %12422 = vmatprep.subr.bf16.mxu0 0
  %12423 = vmatpush2.bf16.msra.mxu0 %v12000
  %12424 = vmatprep.mubr.bf16.mxu0 %v11116
  %12425 = vmatmul.mubr.bf16.gmra.mxu0 %v11115
  %v12426 = vpop.f32.mrf.mxu0
  %v12427 = vadd.f32 %v12387, %v12426
  %v12428 = vpop.f32.mrf.mxu0
  %v12429 = vpop.f32.mrf.mxu0
  %v12430 = vpop.f32.mrf.mxu0
  %12431 = vdwg.mxu0
  %12432 = vmatprep.subr.bf16.mxu0 0
  %12433 = vmatpush1.bf16.msra.mxu0 %v12015
  %12434 = vmatprep.subr.bf16.mxu0 0
  %12435 = vmatpush1.bf16.msra.mxu0 %v12014
  %12436 = vmatprep.subr.bf16.mxu0 0
  %12437 = vmatpush1.bf16.msra.mxu0 %v12013
  %12438 = vmatprep.subr.bf16.mxu0 0
  %12439 = vmatpush1.bf16.msra.mxu0 %v12012
  %12440 = vmatprep.subr.bf16.mxu0 0
  %12441 = vmatpush1.bf16.msra.mxu0 %v12011
  %12442 = vmatprep.subr.bf16.mxu0 0
  %12443 = vmatpush1.bf16.msra.mxu0 %v12010
  %12444 = vmatprep.subr.bf16.mxu0 0
  %12445 = vmatpush1.bf16.msra.mxu0 %v12009
  %12446 = vmatprep.subr.bf16.mxu0 0
  %12447 = vmatpush1.bf16.msra.mxu0 %v12008
  %12448 = vmatprep.subr.bf16.mxu0 0
  %12449 = vmatpush2.bf16.msra.mxu0 %v12023
  %12450 = vmatprep.subr.bf16.mxu0 0
  %12451 = vmatpush2.bf16.msra.mxu0 %v12022
  %12452 = vmatprep.subr.bf16.mxu0 0
  %12453 = vmatpush2.bf16.msra.mxu0 %v12021
  %12454 = vmatprep.subr.bf16.mxu0 0
  %12455 = vmatpush2.bf16.msra.mxu0 %v12020
  %12456 = vmatprep.subr.bf16.mxu0 0
  %12457 = vmatpush2.bf16.msra.mxu0 %v12019
  %12458 = vmatprep.subr.bf16.mxu0 0
  %12459 = vmatpush2.bf16.msra.mxu0 %v12018
  %12460 = vmatprep.subr.bf16.mxu0 0
  %12461 = vmatpush2.bf16.msra.mxu0 %v12017
  %12462 = vmatprep.subr.bf16.mxu0 0
  %12463 = vmatpush2.bf16.msra.mxu0 %v12016
  %12464 = vmatprep.mubr.bf16.mxu0 %v11118
  %12465 = vmatmul.mubr.bf16.gmra.mxu0 %v11117
  %v12466 = vpop.f32.mrf.mxu0
  %v12467 = vadd.f32 %v12427, %v12466
  %v12468 = vpop.f32.mrf.mxu0
  %v12469 = vpop.f32.mrf.mxu0
  %v12470 = vpop.f32.mrf.mxu0
  %12471 = vdwg.mxu0
  %v12473 = vrot.slane %v12467, 1
  %v12474 = vrot.slane %v12467, 2
  %v12477 = vadd.f32 %v10530, %v12473
  %v12478 = vadd.f32 %v10531, %v12474
  %s12479 = scalar_lea.vmem %s16, 2
  %v12480 = vld [vmem:[%s12479] sm:$0x1]
  %s12481 = scalar_lea.vmem %s17, 2
  %v12482 = vld [vmem:[%s12481] sm:$0x1]
  %v12485 = vrot.slane %v12478, 7
  %v12488 = vsel %vm10469, %v12477, 0.0
  %12489 = vadd.xlane.f32.xlu0 %v12488
  %v12490 = vpop.xlane.xlu0 %12489
  %v12491 = vsel %vm10473, %v12485, 0.0
  %12492 = vadd.xlane.f32.xlu0 %v12491
  %v12493 = vpop.xlane.xlu0 %12492
  %v12494 = vmul.f32 %v12490, 0.11111111
  %v12495 = vmul.f32 %v12493, 0.11111111
  %v12496 = vmul.f32 %v12477, %v12477
  %v12497 = vmul.f32 %v12478, %v12478
  %v12500 = vrot.slane %v12497, 7
  %v12503 = vsel %vm10469, %v12496, 0.0
  %12504 = vadd.xlane.f32.xlu0 %v12503
  %v12505 = vpop.xlane.xlu0 %12504
  %v12506 = vsel %vm10473, %v12500, 0.0
  %12507 = vadd.xlane.f32.xlu0 %v12506
  %v12508 = vpop.xlane.xlu0 %12507
  %v12509 = vmul.f32 %v12505, 0.11111111
  %v12510 = vmul.f32 %v12508, 0.11111111
  %v12511 = vmul.f32 %v12494, %v12494
  %v12512 = vmul.f32 %v12495, %v12495
  %v12513 = vsub.f32 %v12509, %v12511
  %v12514 = vsub.f32 %v12510, %v12512
  %v12517 = vrot.slane %v12495, 1
  %v12520 = vsub.f32 %v12477, %v12494
  %v12521 = vsub.f32 %v12478, %v12517
  %v12522 = vadd.f32 %v12513, 1e-05
  %v12523 = vadd.f32 %v12514, 1e-05
  %v12524 = vrsqrt.pop %v12522
  %v12525 = vrsqrt.pop %v12523
  %v12528 = vrot.slane %v12525, 1
  %v12531 = vmul.f32 %v12520, %v12524
  %v12532 = vmul.f32 %v12521, %v12528
  %v12534 = vlaneseq
  %v12535 = vshrl.u32 %v12534, 7
  %v12536 = vsub.s32 0, %v12535
  %v12537 = vrot.slane %v12480, %v12536
  %v12539 = vmul.f32 %v12531, %v12537
  %v12540 = vmul.f32 %v12532, %v12537
  %v12542 = vlaneseq
  %v12543 = vshrl.u32 %v12542, 7
  %v12544 = vsub.s32 0, %v12543
  %v12545 = vrot.slane %v12482, %v12544
  %v12547 = vadd.f32 %v12539, %v12545
  %v12548 = vadd.f32 %v12540, %v12545
  %v12549 = vld [vmem:[%s18] sm:$0x1]
  %v12551 = vlaneseq
  %v12552 = vshrl.u32 %v12551, 7
  %v12553 = vsub.s32 0, %v12552
  %v12554 = vrot.slane %v12549, %v12553
  %v12556 = vmul.f32 %v12547, %v12554
  %v12557 = vmul.f32 %v12548, %v12554
  %v12560 = vrot.slane %v12557, 7
  %v12563 = vsel %vm10469, %v12556, 0.0
  %12564 = vadd.xlane.f32.xlu0 %v12563
  %v12565 = vpop.xlane.xlu0 %12564
  %v12566 = vsel %vm10473, %v12560, 0.0
  %12567 = vadd.xlane.f32.xlu0 %v12566
  %v12568 = vpop.xlane.xlu0 %12567
  %v12569 = vld [vmem:[#allocation2] sm:$0x1]
  %v12571 = vlaneseq
  %v12572 = vshrl.u32 %v12571, 7
  %v12573 = vsub.s32 0, %v12572
  %v12574 = vrot.slane %v12569, %v12573
  %v12576 = vadd.f32 %v12565, %v12574
  %v12577 = vadd.f32 %v12568, %v12574
  %vm12578 = vcmask 7175
  %12579 = vst.msk [vmem:[%s20 - $0x7] sm:$0x80] %vm12578, %v12576
  %vm12580 = vcmask 0
  %12581 = vst.msk [vmem:[%s20 + $0x1] sm:$0x1] %vm12580, %v12577
  // Predicated region
  $region82: #{tpu_custom_call.1} parent=0 // pred_check
    _
  $region83: #{tpu_custom_call.1} parent=0 // pred_check_branch
    %12583 = sbr.rel (0) target = $region85
  $region84: #{tpu_custom_call.1} parent=0 // pred_region
    _
  $region85: #{tpu_custom_call.1} parent=0 // pred_fallthru
    _
  // Predicated region
  $region86: #{tpu_custom_call.1} parent=0 // pred_check
    _
  $region87: #{tpu_custom_call.1} parent=0 // pred_check_branch
    %12585 = sbr.rel (0) target = $region89
  $region88: #{tpu_custom_call.1} parent=0 // pred_region
    _
  $region89: #{tpu_custom_call.1} parent=0 // pred_fallthru
    _

</llo_original>
